<compile_context>
chip_gen: v7x
topology: tpu7x:2x2x1
jax: 0.10.0
libtpu: 0.0.40
codegen_flags: <defaults>
</compile_context>

<pallas_src>
import functools

import jax
import jax.numpy as jnp
from jax.experimental import pallas as pl
from jax.experimental.pallas import tpu as pltpu


_MXU_DTYPE = jnp.bfloat16           # matmul operand / intermediate activation dtype
_VMEM_LIMIT = 48 * 1024 * 1024      # explicit scoped-VMEM budget (fits v7x 64 MiB)


def _cparams():
    return pltpu.CompilerParams(dimension_semantics=("parallel",),
                                vmem_limit_bytes=_VMEM_LIMIT)


# ----------------------------- Pallas kernels ------------------------------

def _conv_relu_pool_kernel(x_ref, w_ref, b_ref, o_ref, *, offsets, m_out, nblk):
    """Fused conv3x3(pad=1) + bias + ReLU + maxpool2x2 for one batch tile.

    x_ref : (bt*rows_in, K)             folded input rows (bf16)
    w_ref : (len(offsets), K, 4*nblk)   folded weights (bf16), VMEM-resident
    b_ref : (1, 4*nblk)                 bias tiled over the 4 pool positions (f32)
    o_ref : (bt*rows_in, nblk)          pooled rows (bf16); first m_out rows valid

    Each tap is a single batched-M matmul spanning the whole batch tile; the 4
    pool-window candidates land in 4 adjacent lane blocks of width nblk, so the
    2x2 max-pool is 3 element-wise maxes.
    """
    acc = None
    for k, off in enumerate(offsets):
        part = jnp.dot(x_ref[pl.ds(off, m_out), :], w_ref[k],
                       preferred_element_type=jnp.float32)
        acc = part if acc is None else acc + part
    acc = jnp.maximum(acc + b_ref[...], 0.0)            # bias + ReLU in f32
    pooled = jnp.maximum(
        jnp.maximum(acc[:, 0 * nblk:1 * nblk], acc[:, 1 * nblk:2 * nblk]),
        jnp.maximum(acc[:, 2 * nblk:3 * nblk], acc[:, 3 * nblk:4 * nblk]))
    o_ref[pl.ds(0, m_out), :] = pooled.astype(o_ref.dtype)


def _linear_logsoftmax_kernel(x_ref, w_ref, b_ref, o_ref):
    # x: (bt, F) bf16; w: (F, 128) bf16; b: (1, 128) f32; o: (bt, 128) f32.
    # Padded lanes (>= 10) carry a -1e9 bias so they do not perturb the softmax.
    logits = jnp.dot(x_ref[...], w_ref[...],
                     preferred_element_type=jnp.float32) + b_ref[...]
    m = jnp.max(logits, axis=-1, keepdims=True)
    shifted = logits - m
    lse = jnp.log(jnp.sum(jnp.exp(shifted), axis=-1, keepdims=True))
    o_ref[...] = shifted - lse


# --------------------------- host-side helpers ------------------------------

def _fold_conv_weight(w3):
    """(3, 3, cin, cout) -> (4, 4*cin, 4*cout) folded conv+pool-block weights.

    Plane k = 2*t + s;  Wf[k][(i, j, ci), (dy, dx, co)] =
      w3[2t + i - dy, 2s + j - dx, ci, co]  if both taps lie inside the 3x3
    kernel, else 0.  Combined with space-to-depth-by-2 inputs this turns the
    3x3 conv restricted to each 2x2 pool window into 4 dense matmuls.
    """
    cin, cout = w3.shape[2], w3.shape[3]
    planes = []
    for t in range(2):
        for s in range(2):
            blk = jnp.zeros((2, 2, cin, 2, 2, cout), w3.dtype)
            for i in range(2):
                for j in range(2):
                    for dy in range(2):
                        for dx in range(2):
                            ky, kx = 2 * t + i - dy, 2 * s + j - dx
                            if 0 <= ky < 3 and 0 <= kx < 3:
                                blk = blk.at[i, j, :, dy, dx, :].set(w3[ky, kx])
            planes.append(blk.reshape(4 * cin, 4 * cout))
    return jnp.stack(planes, axis=0)


def _fold_conv_weight_wlanes(w3, W2, Wp2, Wq):
    """Banded fold for the width-in-lanes layout (used for stage 1, Cin=1).

    Returns (2, Wp2*4*cin, 4*Wq*cout):
      Wt[t][xq_in*4*cin + (i,j,ci), ((dy,dx)*Wq + xq_out)*cout + co]
        = Wf[2t+s][(i,j,ci), (dy,dx,co)] for s = xq_in - xq_out in {0,1}, else 0.
    Output xq columns >= W2 are zero padding (makes the pooled output lane dense).
    """
    Wf = _fold_conv_weight(w3)                         # (4, 4*cin, 4*cout)
    cin, cout = w3.shape[2], w3.shape[3]
    planes = []
    for t in range(2):
        kblocks = []
        for k in range(4):                             # k = (dy, dx) pool position
            blk_acc = jnp.zeros((Wp2 * 4 * cin, W2 * cout), w3.dtype)
            for s in range(2):
                band = jnp.eye(Wp2, W2, k=-s, dtype=w3.dtype)     # xq_in = xq_out + s
                blk = Wf[2 * t + s][:, k * cout:(k + 1) * cout]   # (4*cin, cout)
                blk_acc = blk_acc + jnp.kron(band, blk)
            kblocks.append(jnp.pad(blk_acc, ((0, 0), (0, (Wq - W2) * cout))))
        planes.append(jnp.concatenate(kblocks, axis=1))
    return jnp.stack(planes, axis=0)


def _conv_relu_pool_stage(x_nhwc, w3, b, *, block_b):
    """Generic folded conv stage: (B,H,W,Cin) f32/bf16 -> (B,H//2,W//2,Cout) bf16."""
    B, H, W, Cin = x_nhwc.shape
    Cout = w3.shape[-1]
    H2, W2 = H // 2, W // 2
    Hp2, Wp2 = H2 + 2, W2 + 1                 # halved padded dims (extra bottom/right)
    rows_in, rows_out = Hp2 * Wp2, H2 * Wp2

    # zero pad (1 top/left for the conv; the rest only feeds discarded rows),
    # then space-to-depth by 2: lanes become (i, j, ci) of width 4*Cin.
    xp = jnp.pad(x_nhwc, ((0, 0), (1, 2 * Hp2 - H - 1),
                          (1, 2 * Wp2 - W - 1), (0, 0)))
    xf = xp.reshape(B, Hp2, 2, Wp2, 2, Cin).transpose(0, 1, 3, 2, 4, 5)
    xf = xf.reshape(B * rows_in, 4 * Cin).astype(_MXU_DTYPE)

    wf = _fold_conv_weight(w3).astype(_MXU_DTYPE)                   # (4,4Ci,4Co)
    b4 = jnp.tile(b.reshape(1, Cout).astype(jnp.float32), (1, 4))   # (1, 4Co)

    m_out = block_b * rows_in - 2 * Wp2       # valid rows in each batch tile
    kern = functools.partial(_conv_relu_pool_kernel,
                             offsets=(0, 1, Wp2, Wp2 + 1),
                             m_out=m_out, nblk=Cout)
    out_flat = pl.pallas_call(
        kern,
        out_shape=jax.ShapeDtypeStruct((B * rows_in, Cout), _MXU_DTYPE),
        grid=(B // block_b,),
        in_specs=[
            pl.BlockSpec((block_b * rows_in, 4 * Cin), lambda i: (i, 0)),
            pl.BlockSpec(wf.shape, lambda i: (0, 0, 0)),   # VMEM-resident weights
            pl.BlockSpec(b4.shape, lambda i: (0, 0)),      # VMEM-resident bias
        ],
        out_specs=pl.BlockSpec((block_b * rows_in, Cout), lambda i: (i, 0)),
        compiler_params=_cparams(),
    )(xf, wf, b4)

    # drop per-image garbage tail rows and the extra Wp2 column.
    out = out_flat.reshape(B, rows_in, Cout)[:, :rows_out]
    return out.reshape(B, H2, Wp2, Cout)[:, :, :W2, :]


def _conv_relu_pool_stage1(x_nhwc, w3, b, *, block_b):
    """Stage-1 (Cin==1) variant: pooled-x packed into lanes, banded weights.

    Input lanes = (xq, i, j) of width Wp2*4 (= 60 for 28x28), output lanes =
    (xq_out, co) of width Wq*Cout (= 256), both far denser than the generic
    (rows, 4)-lane layout; conv+bias+ReLU+pool is 2 matmuls of K=60, N=1024.
    """
    B, H, W, Cin = x_nhwc.shape
    Cout = w3.shape[-1]
    H2, W2 = H // 2, W // 2
    Hp2, Wp2 = H2 + 2, W2 + 1
    Wq = W2
    while (Wq * Cout) % 128:                  # pad pooled-x so the output is lane dense
        Wq += 1
    nblk = Wq * Cout

    xp = jnp.pad(x_nhwc, ((0, 0), (1, 2 * Hp2 - H - 1),
                          (1, 2 * Wp2 - W - 1), (0, 0)))
    xf = xp.reshape(B, Hp2, 2, Wp2, 2, Cin).transpose(0, 1, 3, 2, 4, 5)
    xf = xf.reshape(B * Hp2, Wp2 * 4 * Cin).astype(_MXU_DTYPE)

    wt = _fold_conv_weight_wlanes(w3, W2, Wp2, Wq).astype(_MXU_DTYPE)
    bw = jnp.tile(b.reshape(1, Cout).astype(jnp.float32), (1, 4 * Wq))

    m_out = block_b * Hp2 - (Hp2 - H2)
    kern = functools.partial(_conv_relu_pool_kernel, offsets=(0, 1),
                             m_out=m_out, nblk=nblk)
    out = pl.pallas_call(
        kern,
        out_shape=jax.ShapeDtypeStruct((B * Hp2, nblk), _MXU_DTYPE),
        grid=(B // block_b,),
        in_specs=[
            pl.BlockSpec((block_b * Hp2, Wp2 * 4 * Cin), lambda i: (i, 0)),
            pl.BlockSpec(wt.shape, lambda i: (0, 0, 0)),   # VMEM-resident weights
            pl.BlockSpec(bw.shape, lambda i: (0, 0)),      # VMEM-resident bias
        ],
        out_specs=pl.BlockSpec((block_b * Hp2, nblk), lambda i: (i, 0)),
        compiler_params=_cparams(),
    )(xf, wt, bw)

    return out.reshape(B, Hp2, Wq, Cout)[:, :H2, :W2, :]


def _linear_logsoftmax(feat, wl, bl, *, block_b, n_pad=128):
    B, F = feat.shape
    n_out = wl.shape[1]
    # Lane-dense logits: pad weights with zeros and bias with -1e9 (exp -> 0).
    wl_p = jnp.pad(wl, ((0, 0), (0, n_pad - n_out))).astype(_MXU_DTYPE)
    bl_p = jnp.concatenate(
        [bl.astype(jnp.float32),
         jnp.full((n_pad - n_out,), -1e9, jnp.float32)]).reshape(1, n_pad)
    out = pl.pallas_call(
        _linear_logsoftmax_kernel,
        out_shape=jax.ShapeDtypeStruct((B, n_pad), jnp.float32),
        grid=(B // block_b,),
        in_specs=[
            pl.BlockSpec((block_b, F), lambda i: (i, 0)),
            pl.BlockSpec((F, n_pad), lambda i: (0, 0)),    # VMEM-resident weight
            pl.BlockSpec((1, n_pad), lambda i: (0, 0)),    # VMEM-resident bias
        ],
        out_specs=pl.BlockSpec((block_b, n_pad), lambda i: (i, 0)),
        compiler_params=_cparams(),
    )(feat.astype(_MXU_DTYPE), wl_p, bl_p)
    return out[:, :n_out]


# ------------------------------ model ---------------------------------------

def init_params(key):
    # TODO(synk): PyTorch's default kaiming/uniform init is not reproduced;
    # 0.1*normal is used (irrelevant if real weights are loaded instead).
    ks = jax.random.split(key, 8)
    s = 0.1
    return {
        "w1": s * jax.random.normal(ks[0], (3, 3, 1, 16), jnp.float32),
        "b1": s * jax.random.normal(ks[1], (16,), jnp.float32),
        "w2": s * jax.random.normal(ks[2], (3, 3, 16, 32), jnp.float32),
        "b2": s * jax.random.normal(ks[3], (32,), jnp.float32),
        "w3": s * jax.random.normal(ks[4], (3, 3, 32, 64), jnp.float32),
        "b3": s * jax.random.normal(ks[5], (64,), jnp.float32),
        "wl": s * jax.random.normal(ks[6], (64 * 3 * 3, 10), jnp.float32),
        "bl": s * jax.random.normal(ks[7], (10,), jnp.float32),
    }


def cnn_forward(x_nchw, params, *, block_b=128):
    # x_nchw: (B, 1, 28, 28) f32, like the PyTorch module expects.
    B = x_nchw.shape[0]
    bt = min(block_b, max(B, 1))
    bt = ((bt + 7) // 8) * 8                       # keep sublane tiling legal
    Bp = ((B + bt - 1) // bt) * bt

    x = jnp.transpose(x_nchw, (0, 2, 3, 1)).astype(jnp.float32)  # NCHW -> NHWC
    if Bp != B:
        x = jnp.pad(x, ((0, Bp - B), (0, 0), (0, 0), (0, 0)))

    x = _conv_relu_pool_stage1(x, params["w1"], params["b1"], block_b=bt)  # 14x14x16
    x = _conv_relu_pool_stage(x, params["w2"], params["b2"], block_b=bt)   # 7x7x32
    x = _conv_relu_pool_stage(x, params["w3"], params["b3"], block_b=bt)   # 3x3x64

    # NHWC flatten of bf16 activations + row-permuted Linear weight is
    # equivalent to torch's NCHW flatten order (no activation transpose).
    Hf, Wf, Cf = x.shape[1], x.shape[2], x.shape[3]
    feat = x.reshape(Bp, Hf * Wf * Cf)
    n_out = params["wl"].shape[1]
    wl = params["wl"].reshape(Cf, Hf, Wf, n_out).transpose(1, 2, 0, 3)
    wl = wl.reshape(Hf * Wf * Cf, n_out)

    out = _linear_logsoftmax(feat, wl, params["bl"], block_b=bt)
    return out[:B]

# TODO(synk): the `mode`/freeze() logic only toggles requires_grad (training);
# it has no effect on the forward pass, so it is intentionally omitted.


# --------------------------- pure-JAX references -----------------------------

def _reference_forward(x_nchw, params):
    """Pure f32 reference."""
    x = jnp.transpose(x_nchw, (0, 2, 3, 1)).astype(jnp.float32)
    for wk, bk in (("w1", "b1"), ("w2", "b2"), ("w3", "b3")):
        w3, b = params[wk], params[bk]
        B, H, W, _ = x.shape
        xp = jnp.pad(x, ((0, 0), (1, 1), (1, 1), (0, 0)))
        y = jnp.zeros((B, H, W, w3.shape[-1]), jnp.float32) + b
        for ky in range(3):
            for kx in range(3):
                y = y + jnp.einsum('bhwc,cd->bhwd',
                                   xp[:, ky:ky + H, kx:kx + W, :], w3[ky, kx])
        y = jnp.maximum(y, 0.0)
        H2, W2 = H // 2, W // 2
        x = y[:, :2 * H2, :2 * W2, :].reshape(B, H2, 2, W2, 2, -1).max(axis=(2, 4))
    feat = jnp.transpose(x, (0, 3, 1, 2)).reshape(x.shape[0], -1)
    logits = feat @ params["wl"] + params["bl"]
    return jax.nn.log_softmax(logits, axis=-1)


def _reference_forward_bf16(x_nchw, params):
    """Precision-mirrored reference: bf16 weights/activations, f32 accumulation
    (same quantization points as the Pallas pipeline) -> allows a tight check."""
    f32 = jnp.float32

    def q(a):
        return a.astype(jnp.bfloat16).astype(f32)

    x = q(jnp.transpose(x_nchw, (0, 2, 3, 1)).astype(f32))
    for wk, bk in (("w1", "b1"), ("w2", "b2"), ("w3", "b3")):
        w3, b = q(params[wk]), params[bk].astype(f32)
        B, H, W, _ = x.shape
        xp = jnp.pad(x, ((0, 0), (1, 1), (1, 1), (0, 0)))
        y = jnp.zeros((B, H, W, w3.shape[-1]), f32) + b
        for ky in range(3):
            for kx in range(3):
                y = y + jnp.einsum('bhwc,cd->bhwd',
                                   xp[:, ky:ky + H, kx:kx + W, :], w3[ky, kx])
        y = jnp.maximum(y, 0.0)
        H2, W2 = H // 2, W // 2
        x = q(y[:, :2 * H2, :2 * W2, :]
              .reshape(B, H2, 2, W2, 2, -1).max(axis=(2, 4)))
    feat = jnp.transpose(x, (0, 3, 1, 2)).reshape(x.shape[0], -1)
    logits = feat @ q(params["wl"]) + params["bl"].astype(f32)
    return jax.nn.log_softmax(logits, axis=-1)


if __name__ == "__main__":
    key = jax.random.PRNGKey(0)
    k_x, k_p = jax.random.split(key)
    # 64*3*3 flatten implies 28x28 single-channel input (MNIST-like).
    x = jax.random.normal(k_x, (2, 1, 28, 28), jnp.float32)
    params = init_params(k_p)

    out = jax.block_until_ready(jax.jit(cnn_forward)(x, params))
    assert out.shape == (2, 10)

    # Tight check vs a precision-mirrored (bf16) reference -- catches real
    # implementation regressions -- plus a loose sanity bound vs pure f32.
    ref16 = jax.block_until_ready(_reference_forward_bf16(x, params))
    ref32 = jax.block_until_ready(_reference_forward(x, params))
    err16 = float(jnp.max(jnp.abs(out - ref16)))
    err32 = float(jnp.max(jnp.abs(out - ref32)))
    assert err16 < 2e-2, f"mismatch vs bf16-mirrored reference: {err16}"
    assert err32 < 1e-1, f"mismatch vs f32 reference: {err32}"

    print("KERNEL_OK")
</pallas_src>

<mosaic_0001>
module attributes {stable_mosaic.version = 11 : i64} {
  func.func @_conv_relu_pool_kernel(%arg0: i32, %arg1: memref<128x60xbf16, #tpu.memory_space<vmem>>, %arg2: memref<2x60x1024xbf16, #tpu.memory_space<vmem>>, %arg3: memref<1x1024xf32, #tpu.memory_space<vmem>>, %arg4: memref<128x256xbf16, #tpu.memory_space<vmem>>) attributes {dimension_semantics = [#tpu.dimension_semantics<parallel>], iteration_bounds = array<i64: 1>, scalar_prefetch = 0 : i64, scratch_operands = 0 : i64, tpu.core_type = #tpu.core_type<tc>, window_params = [{transform_indices = @transform_0, window_bounds = array<i64: 128, 60>}, {pipeline_mode = #tpu.pipeline_mode<synchronous>, transform_indices = @transform_1, window_bounds = array<i64: 2, 60, 1024>}, {pipeline_mode = #tpu.pipeline_mode<synchronous>, transform_indices = @transform_2, window_bounds = array<i64: 1, 1024>}, {transform_indices = @transform_3, window_bounds = array<i64: 128, 256>}]} {
    %c0 = arith.constant 0 : index
    %c0_0 = arith.constant 0 : index
    %0 = vector.load %arg1[%c0, %c0_0] : memref<128x60xbf16, #tpu.memory_space<vmem>>, vector<126x60xbf16>
    %c0_1 = arith.constant 0 : index
    %c0_2 = arith.constant 0 : index
    %c0_3 = arith.constant 0 : index
    %1 = vector.load %arg2[%c0_1, %c0_2, %c0_3] : memref<2x60x1024xbf16, #tpu.memory_space<vmem>>, vector<1x60x1024xbf16>
    %2 = vector.shape_cast %1 : vector<1x60x1024xbf16> to vector<60x1024xbf16>
    %cst = arith.constant dense<0.000000e+00> : vector<126x1024xf32>
    %3 = tpu.matmul %0, %2, %cst {dimension_numbers = #tpu.dot_dimension_numbers<[1], [0], [0], [1], [0, 0, 1, 1], [], []>} : vector<126x60xbf16>, vector<60x1024xbf16>, vector<126x1024xf32> -> vector<126x1024xf32>
    %c1 = arith.constant 1 : index
    %c0_4 = arith.constant 0 : index
    %4 = vector.load %arg1[%c1, %c0_4] : memref<128x60xbf16, #tpu.memory_space<vmem>>, vector<126x60xbf16>
    %c1_5 = arith.constant 1 : index
    %c0_6 = arith.constant 0 : index
    %c0_7 = arith.constant 0 : index
    %5 = vector.load %arg2[%c1_5, %c0_6, %c0_7] : memref<2x60x1024xbf16, #tpu.memory_space<vmem>>, vector<1x60x1024xbf16>
    %6 = vector.shape_cast %5 : vector<1x60x1024xbf16> to vector<60x1024xbf16>
    %cst_8 = arith.constant dense<0.000000e+00> : vector<126x1024xf32>
    %7 = tpu.matmul %4, %6, %cst_8 {dimension_numbers = #tpu.dot_dimension_numbers<[1], [0], [0], [1], [0, 0, 1, 1], [], []>} : vector<126x60xbf16>, vector<60x1024xbf16>, vector<126x1024xf32> -> vector<126x1024xf32>
    %8 = arith.addf %3, %7 : vector<126x1024xf32>
    %c0_9 = arith.constant 0 : index
    %c0_10 = arith.constant 0 : index
    %9 = vector.load %arg3[%c0_9, %c0_10] : memref<1x1024xf32, #tpu.memory_space<vmem>>, vector<1x1024xf32>
    %10 = vector.broadcast %9 : vector<1x1024xf32> to vector<126x1024xf32>
    %11 = arith.addf %8, %10 : vector<126x1024xf32>
    %cst_11 = arith.constant 0.000000e+00 : f32
    %12 = vector.broadcast %cst_11 : f32 to vector<126x1024xf32>
    %13 = arith.maximumf %11, %12 : vector<126x1024xf32>
    %14 = vector.extract_strided_slice %13 {offsets = [0, 0], sizes = [126, 256], strides = [1, 1]} : vector<126x1024xf32> to vector<126x256xf32>
    %15 = vector.extract_strided_slice %13 {offsets = [0, 256], sizes = [126, 256], strides = [1, 1]} : vector<126x1024xf32> to vector<126x256xf32>
    %16 = arith.maximumf %14, %15 : vector<126x256xf32>
    %17 = vector.extract_strided_slice %13 {offsets = [0, 512], sizes = [126, 256], strides = [1, 1]} : vector<126x1024xf32> to vector<126x256xf32>
    %18 = vector.extract_strided_slice %13 {offsets = [0, 768], sizes = [126, 256], strides = [1, 1]} : vector<126x1024xf32> to vector<126x256xf32>
    %19 = arith.maximumf %17, %18 : vector<126x256xf32>
    %20 = arith.maximumf %16, %19 : vector<126x256xf32>
    %21 = arith.truncf %20 : vector<126x256xf32> to vector<126x256xbf16>
    %c0_12 = arith.constant 0 : index
    %c0_13 = arith.constant 0 : index
    %22 = vector.load %arg4[%c0_12, %c0_13] : memref<128x256xbf16, #tpu.memory_space<vmem>>, vector<126x256xbf16>
    tpu.vector_store %arg4[%c0_12, %c0_13], %21 {strides = array<i32>} : memref<128x256xbf16, #tpu.memory_space<vmem>>, vector<126x256xbf16>,
    return
  }
  func.func @transform_0(%arg0: i32) -> (i32, i32) {
    %c0_i32 = arith.constant 0 : i32
    %c0_i32_0 = arith.constant 0 : i32
    return %arg0, %c0_i32 : i32, i32
  }
  func.func @transform_1(%arg0: i32) -> (i32, i32, i32) {
    %c0_i32 = arith.constant 0 : i32
    %c0_i32_0 = arith.constant 0 : i32
    %c0_i32_1 = arith.constant 0 : i32
    %c0_i32_2 = arith.constant 0 : i32
    return %c0_i32, %c0_i32_0, %c0_i32_1 : i32, i32, i32
  }
  func.func @transform_2(%arg0: i32) -> (i32, i32) {
    %c0_i32 = arith.constant 0 : i32
    %c0_i32_0 = arith.constant 0 : i32
    %c0_i32_1 = arith.constant 0 : i32
    return %c0_i32, %c0_i32_0 : i32, i32
  }
  func.func @transform_3(%arg0: i32) -> (i32, i32) {
    %c0_i32 = arith.constant 0 : i32
    %c0_i32_0 = arith.constant 0 : i32
    return %arg0, %c0_i32 : i32, i32
  }
}

module attributes {stable_mosaic.version = 11 : i64} {
  func.func @_conv_relu_pool_kernel(%arg0: i32, %arg1: memref<576x64xbf16, #tpu.memory_space<vmem>>, %arg2: memref<4x64x128xbf16, #tpu.memory_space<vmem>>, %arg3: memref<1x128xf32, #tpu.memory_space<vmem>>, %arg4: memref<576x32xbf16, #tpu.memory_space<vmem>>) attributes {dimension_semantics = [#tpu.dimension_semantics<parallel>], iteration_bounds = array<i64: 1>, scalar_prefetch = 0 : i64, scratch_operands = 0 : i64, tpu.core_type = #tpu.core_type<tc>, window_params = [{transform_indices = @transform_0, window_bounds = array<i64: 576, 64>}, {pipeline_mode = #tpu.pipeline_mode<synchronous>, transform_indices = @transform_1, window_bounds = array<i64: 4, 64, 128>}, {pipeline_mode = #tpu.pipeline_mode<synchronous>, transform_indices = @transform_2, window_bounds = array<i64: 1, 128>}, {transform_indices = @transform_3, window_bounds = array<i64: 576, 32>}]} {
    %c0 = arith.constant 0 : index
    %c0_0 = arith.constant 0 : index
    %0 = vector.load %arg1[%c0, %c0_0] : memref<576x64xbf16, #tpu.memory_space<vmem>>, vector<560x64xbf16>
    %c0_1 = arith.constant 0 : index
    %c0_2 = arith.constant 0 : index
    %c0_3 = arith.constant 0 : index
    %1 = vector.load %arg2[%c0_1, %c0_2, %c0_3] : memref<4x64x128xbf16, #tpu.memory_space<vmem>>, vector<1x64x128xbf16>
    %2 = vector.shape_cast %1 : vector<1x64x128xbf16> to vector<64x128xbf16>
    %cst = arith.constant dense<0.000000e+00> : vector<560x128xf32>
    %3 = tpu.matmul %0, %2, %cst {dimension_numbers = #tpu.dot_dimension_numbers<[1], [0], [0], [1], [0, 0, 1, 1], [], []>} : vector<560x64xbf16>, vector<64x128xbf16>, vector<560x128xf32> -> vector<560x128xf32>
    %c1 = arith.constant 1 : index
    %c0_4 = arith.constant 0 : index
    %4 = vector.load %arg1[%c1, %c0_4] : memref<576x64xbf16, #tpu.memory_space<vmem>>, vector<560x64xbf16>
    %c1_5 = arith.constant 1 : index
    %c0_6 = arith.constant 0 : index
    %c0_7 = arith.constant 0 : index
    %5 = vector.load %arg2[%c1_5, %c0_6, %c0_7] : memref<4x64x128xbf16, #tpu.memory_space<vmem>>, vector<1x64x128xbf16>
    %6 = vector.shape_cast %5 : vector<1x64x128xbf16> to vector<64x128xbf16>
    %cst_8 = arith.constant dense<0.000000e+00> : vector<560x128xf32>
    %7 = tpu.matmul %4, %6, %cst_8 {dimension_numbers = #tpu.dot_dimension_numbers<[1], [0], [0], [1], [0, 0, 1, 1], [], []>} : vector<560x64xbf16>, vector<64x128xbf16>, vector<560x128xf32> -> vector<560x128xf32>
    %8 = arith.addf %3, %7 : vector<560x128xf32>
    %c8 = arith.constant 8 : index
    %c0_9 = arith.constant 0 : index
    %9 = vector.load %arg1[%c8, %c0_9] : memref<576x64xbf16, #tpu.memory_space<vmem>>, vector<560x64xbf16>
    %c2 = arith.constant 2 : index
    %c0_10 = arith.constant 0 : index
    %c0_11 = arith.constant 0 : index
    %10 = vector.load %arg2[%c2, %c0_10, %c0_11] : memref<4x64x128xbf16, #tpu.memory_space<vmem>>, vector<1x64x128xbf16>
    %11 = vector.shape_cast %10 : vector<1x64x128xbf16> to vector<64x128xbf16>
    %cst_12 = arith.constant dense<0.000000e+00> : vector<560x128xf32>
    %12 = tpu.matmul %9, %11, %cst_12 {dimension_numbers = #tpu.dot_dimension_numbers<[1], [0], [0], [1], [0, 0, 1, 1], [], []>} : vector<560x64xbf16>, vector<64x128xbf16>, vector<560x128xf32> -> vector<560x128xf32>
    %13 = arith.addf %8, %12 : vector<560x128xf32>
    %c9 = arith.constant 9 : index
    %c0_13 = arith.constant 0 : index
    %14 = vector.load %arg1[%c9, %c0_13] : memref<576x64xbf16, #tpu.memory_space<vmem>>, vector<560x64xbf16>
    %c3 = arith.constant 3 : index
    %c0_14 = arith.constant 0 : index
    %c0_15 = arith.constant 0 : index
    %15 = vector.load %arg2[%c3, %c0_14, %c0_15] : memref<4x64x128xbf16, #tpu.memory_space<vmem>>, vector<1x64x128xbf16>
    %16 = vector.shape_cast %15 : vector<1x64x128xbf16> to vector<64x128xbf16>
    %cst_16 = arith.constant dense<0.000000e+00> : vector<560x128xf32>
    %17 = tpu.matmul %14, %16, %cst_16 {dimension_numbers = #tpu.dot_dimension_numbers<[1], [0], [0], [1], [0, 0, 1, 1], [], []>} : vector<560x64xbf16>, vector<64x128xbf16>, vector<560x128xf32> -> vector<560x128xf32>
    %18 = arith.addf %13, %17 : vector<560x128xf32>
    %c0_17 = arith.constant 0 : index
    %c0_18 = arith.constant 0 : index
    %19 = vector.load %arg3[%c0_17, %c0_18] : memref<1x128xf32, #tpu.memory_space<vmem>>, vector<1x128xf32>
    %20 = vector.broadcast %19 : vector<1x128xf32> to vector<560x128xf32>
    %21 = arith.addf %18, %20 : vector<560x128xf32>
    %cst_19 = arith.constant 0.000000e+00 : f32
    %22 = vector.broadcast %cst_19 : f32 to vector<560x128xf32>
    %23 = arith.maximumf %21, %22 : vector<560x128xf32>
    %24 = vector.extract_strided_slice %23 {offsets = [0, 0], sizes = [560, 32], strides = [1, 1]} : vector<560x128xf32> to vector<560x32xf32>
    %25 = vector.extract_strided_slice %23 {offsets = [0, 32], sizes = [560, 32], strides = [1, 1]} : vector<560x128xf32> to vector<560x32xf32>
    %26 = arith.maximumf %24, %25 : vector<560x32xf32>
    %27 = vector.extract_strided_slice %23 {offsets = [0, 64], sizes = [560, 32], strides = [1, 1]} : vector<560x128xf32> to vector<560x32xf32>
    %28 = vector.extract_strided_slice %23 {offsets = [0, 96], sizes = [560, 32], strides = [1, 1]} : vector<560x128xf32> to vector<560x32xf32>
    %29 = arith.maximumf %27, %28 : vector<560x32xf32>
    %30 = arith.maximumf %26, %29 : vector<560x32xf32>
    %31 = arith.truncf %30 : vector<560x32xf32> to vector<560x32xbf16>
    %c0_20 = arith.constant 0 : index
    %c0_21 = arith.constant 0 : index
    %32 = vector.load %arg4[%c0_20, %c0_21] : memref<576x32xbf16, #tpu.memory_space<vmem>>, vector<560x32xbf16>
    tpu.vector_store %arg4[%c0_20, %c0_21], %31 {strides = array<i32>} : memref<576x32xbf16, #tpu.memory_space<vmem>>, vector<560x32xbf16>,
    return
  }
  func.func @transform_0(%arg0: i32) -> (i32, i32) {
    %c0_i32 = arith.constant 0 : i32
    %c0_i32_0 = arith.constant 0 : i32
    return %arg0, %c0_i32 : i32, i32
  }
  func.func @transform_1(%arg0: i32) -> (i32, i32, i32) {
    %c0_i32 = arith.constant 0 : i32
    %c0_i32_0 = arith.constant 0 : i32
    %c0_i32_1 = arith.constant 0 : i32
    %c0_i32_2 = arith.constant 0 : i32
    return %c0_i32, %c0_i32_0, %c0_i32_1 : i32, i32, i32
  }
  func.func @transform_2(%arg0: i32) -> (i32, i32) {
    %c0_i32 = arith.constant 0 : i32
    %c0_i32_0 = arith.constant 0 : i32
    %c0_i32_1 = arith.constant 0 : i32
    return %c0_i32, %c0_i32_0 : i32, i32
  }
  func.func @transform_3(%arg0: i32) -> (i32, i32) {
    %c0_i32 = arith.constant 0 : i32
    %c0_i32_0 = arith.constant 0 : i32
    return %arg0, %c0_i32 : i32, i32
  }
}

module attributes {stable_mosaic.version = 11 : i64} {
  func.func @_conv_relu_pool_kernel(%arg0: i32, %arg1: memref<160x128xbf16, #tpu.memory_space<vmem>>, %arg2: memref<4x128x256xbf16, #tpu.memory_space<vmem>>, %arg3: memref<1x256xf32, #tpu.memory_space<vmem>>, %arg4: memref<160x64xbf16, #tpu.memory_space<vmem>>) attributes {dimension_semantics = [#tpu.dimension_semantics<parallel>], iteration_bounds = array<i64: 1>, scalar_prefetch = 0 : i64, scratch_operands = 0 : i64, tpu.core_type = #tpu.core_type<tc>, window_params = [{transform_indices = @transform_0, window_bounds = array<i64: 160, 128>}, {pipeline_mode = #tpu.pipeline_mode<synchronous>, transform_indices = @transform_1, window_bounds = array<i64: 4, 128, 256>}, {pipeline_mode = #tpu.pipeline_mode<synchronous>, transform_indices = @transform_2, window_bounds = array<i64: 1, 256>}, {transform_indices = @transform_3, window_bounds = array<i64: 160, 64>}]} {
    %c0 = arith.constant 0 : index
    %c0_0 = arith.constant 0 : index
    %0 = vector.load %arg1[%c0, %c0_0] : memref<160x128xbf16, #tpu.memory_space<vmem>>, vector<152x128xbf16>
    %c0_1 = arith.constant 0 : index
    %c0_2 = arith.constant 0 : index
    %c0_3 = arith.constant 0 : index
    %1 = vector.load %arg2[%c0_1, %c0_2, %c0_3] : memref<4x128x256xbf16, #tpu.memory_space<vmem>>, vector<1x128x256xbf16>
    %2 = vector.shape_cast %1 : vector<1x128x256xbf16> to vector<128x256xbf16>
    %cst = arith.constant dense<0.000000e+00> : vector<152x256xf32>
    %3 = tpu.matmul %0, %2, %cst {dimension_numbers = #tpu.dot_dimension_numbers<[1], [0], [0], [1], [0, 0, 1, 1], [], []>} : vector<152x128xbf16>, vector<128x256xbf16>, vector<152x256xf32> -> vector<152x256xf32>
    %c1 = arith.constant 1 : index
    %c0_4 = arith.constant 0 : index
    %4 = vector.load %arg1[%c1, %c0_4] : memref<160x128xbf16, #tpu.memory_space<vmem>>, vector<152x128xbf16>
    %c1_5 = arith.constant 1 : index
    %c0_6 = arith.constant 0 : index
    %c0_7 = arith.constant 0 : index
    %5 = vector.load %arg2[%c1_5, %c0_6, %c0_7] : memref<4x128x256xbf16, #tpu.memory_space<vmem>>, vector<1x128x256xbf16>
    %6 = vector.shape_cast %5 : vector<1x128x256xbf16> to vector<128x256xbf16>
    %cst_8 = arith.constant dense<0.000000e+00> : vector<152x256xf32>
    %7 = tpu.matmul %4, %6, %cst_8 {dimension_numbers = #tpu.dot_dimension_numbers<[1], [0], [0], [1], [0, 0, 1, 1], [], []>} : vector<152x128xbf16>, vector<128x256xbf16>, vector<152x256xf32> -> vector<152x256xf32>
    %8 = arith.addf %3, %7 : vector<152x256xf32>
    %c4 = arith.constant 4 : index
    %c0_9 = arith.constant 0 : index
    %9 = vector.load %arg1[%c4, %c0_9] : memref<160x128xbf16, #tpu.memory_space<vmem>>, vector<152x128xbf16>
    %c2 = arith.constant 2 : index
    %c0_10 = arith.constant 0 : index
    %c0_11 = arith.constant 0 : index
    %10 = vector.load %arg2[%c2, %c0_10, %c0_11] : memref<4x128x256xbf16, #tpu.memory_space<vmem>>, vector<1x128x256xbf16>
    %11 = vector.shape_cast %10 : vector<1x128x256xbf16> to vector<128x256xbf16>
    %cst_12 = arith.constant dense<0.000000e+00> : vector<152x256xf32>
    %12 = tpu.matmul %9, %11, %cst_12 {dimension_numbers = #tpu.dot_dimension_numbers<[1], [0], [0], [1], [0, 0, 1, 1], [], []>} : vector<152x128xbf16>, vector<128x256xbf16>, vector<152x256xf32> -> vector<152x256xf32>
    %13 = arith.addf %8, %12 : vector<152x256xf32>
    %c5 = arith.constant 5 : index
    %c0_13 = arith.constant 0 : index
    %14 = vector.load %arg1[%c5, %c0_13] : memref<160x128xbf16, #tpu.memory_space<vmem>>, vector<152x128xbf16>
    %c3 = arith.constant 3 : index
    %c0_14 = arith.constant 0 : index
    %c0_15 = arith.constant 0 : index
    %15 = vector.load %arg2[%c3, %c0_14, %c0_15] : memref<4x128x256xbf16, #tpu.memory_space<vmem>>, vector<1x128x256xbf16>
    %16 = vector.shape_cast %15 : vector<1x128x256xbf16> to vector<128x256xbf16>
    %cst_16 = arith.constant dense<0.000000e+00> : vector<152x256xf32>
    %17 = tpu.matmul %14, %16, %cst_16 {dimension_numbers = #tpu.dot_dimension_numbers<[1], [0], [0], [1], [0, 0, 1, 1], [], []>} : vector<152x128xbf16>, vector<128x256xbf16>, vector<152x256xf32> -> vector<152x256xf32>
    %18 = arith.addf %13, %17 : vector<152x256xf32>
    %c0_17 = arith.constant 0 : index
    %c0_18 = arith.constant 0 : index
    %19 = vector.load %arg3[%c0_17, %c0_18] : memref<1x256xf32, #tpu.memory_space<vmem>>, vector<1x256xf32>
    %20 = vector.broadcast %19 : vector<1x256xf32> to vector<152x256xf32>
    %21 = arith.addf %18, %20 : vector<152x256xf32>
    %cst_19 = arith.constant 0.000000e+00 : f32
    %22 = vector.broadcast %cst_19 : f32 to vector<152x256xf32>
    %23 = arith.maximumf %21, %22 : vector<152x256xf32>
    %24 = vector.extract_strided_slice %23 {offsets = [0, 0], sizes = [152, 64], strides = [1, 1]} : vector<152x256xf32> to vector<152x64xf32>
    %25 = vector.extract_strided_slice %23 {offsets = [0, 64], sizes = [152, 64], strides = [1, 1]} : vector<152x256xf32> to vector<152x64xf32>
    %26 = arith.maximumf %24, %25 : vector<152x64xf32>
    %27 = vector.extract_strided_slice %23 {offsets = [0, 128], sizes = [152, 64], strides = [1, 1]} : vector<152x256xf32> to vector<152x64xf32>
    %28 = vector.extract_strided_slice %23 {offsets = [0, 192], sizes = [152, 64], strides = [1, 1]} : vector<152x256xf32> to vector<152x64xf32>
    %29 = arith.maximumf %27, %28 : vector<152x64xf32>
    %30 = arith.maximumf %26, %29 : vector<152x64xf32>
    %31 = arith.truncf %30 : vector<152x64xf32> to vector<152x64xbf16>
    %c0_20 = arith.constant 0 : index
    %c0_21 = arith.constant 0 : index
    %32 = vector.load %arg4[%c0_20, %c0_21] : memref<160x64xbf16, #tpu.memory_space<vmem>>, vector<152x64xbf16>
    tpu.vector_store %arg4[%c0_20, %c0_21], %31 {strides = array<i32>} : memref<160x64xbf16, #tpu.memory_space<vmem>>, vector<152x64xbf16>,
    return
  }
  func.func @transform_0(%arg0: i32) -> (i32, i32) {
    %c0_i32 = arith.constant 0 : i32
    %c0_i32_0 = arith.constant 0 : i32
    return %arg0, %c0_i32 : i32, i32
  }
  func.func @transform_1(%arg0: i32) -> (i32, i32, i32) {
    %c0_i32 = arith.constant 0 : i32
    %c0_i32_0 = arith.constant 0 : i32
    %c0_i32_1 = arith.constant 0 : i32
    %c0_i32_2 = arith.constant 0 : i32
    return %c0_i32, %c0_i32_0, %c0_i32_1 : i32, i32, i32
  }
  func.func @transform_2(%arg0: i32) -> (i32, i32) {
    %c0_i32 = arith.constant 0 : i32
    %c0_i32_0 = arith.constant 0 : i32
    %c0_i32_1 = arith.constant 0 : i32
    return %c0_i32, %c0_i32_0 : i32, i32
  }
  func.func @transform_3(%arg0: i32) -> (i32, i32) {
    %c0_i32 = arith.constant 0 : i32
    %c0_i32_0 = arith.constant 0 : i32
    return %arg0, %c0_i32 : i32, i32
  }
}

module attributes {stable_mosaic.version = 11 : i64} {
  func.func @_linear_logsoftmax_kernel(%arg0: i32, %arg1: memref<8x576xbf16, #tpu.memory_space<vmem>>, %arg2: memref<576x128xbf16, #tpu.memory_space<vmem>>, %arg3: memref<1x128xf32, #tpu.memory_space<vmem>>, %arg4: memref<8x128xf32, #tpu.memory_space<vmem>>) attributes {dimension_semantics = [#tpu.dimension_semantics<parallel>], iteration_bounds = array<i64: 1>, scalar_prefetch = 0 : i64, scratch_operands = 0 : i64, tpu.core_type = #tpu.core_type<tc>, window_params = [{transform_indices = @transform_0, window_bounds = array<i64: 8, 576>}, {pipeline_mode = #tpu.pipeline_mode<synchronous>, transform_indices = @transform_1, window_bounds = array<i64: 576, 128>}, {pipeline_mode = #tpu.pipeline_mode<synchronous>, transform_indices = @transform_2, window_bounds = array<i64: 1, 128>}, {transform_indices = @transform_3, window_bounds = array<i64: 8, 128>}]} {
    %c0 = arith.constant 0 : index
    %c0_0 = arith.constant 0 : index
    %0 = vector.load %arg1[%c0, %c0_0] : memref<8x576xbf16, #tpu.memory_space<vmem>>, vector<8x576xbf16>
    %c0_1 = arith.constant 0 : index
    %c0_2 = arith.constant 0 : index
    %1 = vector.load %arg2[%c0_1, %c0_2] : memref<576x128xbf16, #tpu.memory_space<vmem>>, vector<576x128xbf16>
    %cst = arith.constant dense<0.000000e+00> : vector<8x128xf32>
    %2 = tpu.matmul %0, %1, %cst {dimension_numbers = #tpu.dot_dimension_numbers<[1], [0], [0], [1], [0, 0, 1, 1], [], []>} : vector<8x576xbf16>, vector<576x128xbf16>, vector<8x128xf32> -> vector<8x128xf32>
    %c0_3 = arith.constant 0 : index
    %c0_4 = arith.constant 0 : index
    %3 = vector.load %arg3[%c0_3, %c0_4] : memref<1x128xf32, #tpu.memory_space<vmem>>, vector<1x128xf32>
    %4 = vector.broadcast %3 : vector<1x128xf32> to vector<8x128xf32>
    %5 = arith.addf %2, %4 : vector<8x128xf32>
    %cst_5 = arith.constant dense<0xFF800000> : vector<8xf32>
    %6 = vector.multi_reduction <maximumf>, %5, %cst_5 [1] : vector<8x128xf32> to vector<8xf32>
    %7 = vector.shape_cast %6 : vector<8xf32> to vector<8x1xf32>
    %8 = vector.broadcast %7 : vector<8x1xf32> to vector<8x128xf32>
    %9 = arith.subf %5, %8 : vector<8x128xf32>
    %10 = math.exp %9 : vector<8x128xf32>
    %cst_6 = arith.constant dense<0.000000e+00> : vector<8xf32>
    %11 = vector.multi_reduction <add>, %10, %cst_6 [1] : vector<8x128xf32> to vector<8xf32>
    %12 = vector.shape_cast %11 : vector<8xf32> to vector<8x1xf32>
    %13 = math.log %12 : vector<8x1xf32>
    %14 = vector.broadcast %13 : vector<8x1xf32> to vector<8x128xf32>
    %15 = arith.subf %9, %14 : vector<8x128xf32>
    %c0_7 = arith.constant 0 : index
    %c0_8 = arith.constant 0 : index
    %16 = vector.load %arg4[%c0_7, %c0_8] : memref<8x128xf32, #tpu.memory_space<vmem>>, vector<8x128xf32>
    tpu.vector_store %arg4[%c0_7, %c0_8], %15 {strides = array<i32>} : memref<8x128xf32, #tpu.memory_space<vmem>>, vector<8x128xf32>,
    return
  }
  func.func @transform_0(%arg0: i32) -> (i32, i32) {
    %c0_i32 = arith.constant 0 : i32
    %c0_i32_0 = arith.constant 0 : i32
    return %arg0, %c0_i32 : i32, i32
  }
  func.func @transform_1(%arg0: i32) -> (i32, i32) {
    %c0_i32 = arith.constant 0 : i32
    %c0_i32_0 = arith.constant 0 : i32
    %c0_i32_1 = arith.constant 0 : i32
    return %c0_i32, %c0_i32_0 : i32, i32
  }
  func.func @transform_2(%arg0: i32) -> (i32, i32) {
    %c0_i32 = arith.constant 0 : i32
    %c0_i32_0 = arith.constant 0 : i32
    %c0_i32_1 = arith.constant 0 : i32
    return %c0_i32, %c0_i32_0 : i32, i32
  }
  func.func @transform_3(%arg0: i32) -> (i32, i32) {
    %c0_i32 = arith.constant 0 : i32
    %c0_i32_0 = arith.constant 0 : i32
    return %arg0, %c0_i32 : i32, i32
  }
}

</mosaic_0001>

<llo_original>
// kernel: cnn_forward.4
$region0: #{cnn_forward.4}
  #allocation0 [shape = 'u32[]', space=smem, size = 0x4, offset = 0x4, fixed_abs, tag = 'smem constant byte address 0x4 - core index']
  #allocation1 [shape = 'u32[144,128]{1,0:T(1,128)}', space=vmem, size = 0x12000, scoped, tag = 'internal scratch']
  %s0 = inlined_call_operand.vmem [shape: bf16[128,60], index: 0, kind: input, shape index: {}]
  %s1 = inlined_call_operand.vmem [shape: bf16[2,60,1024], index: 1, kind: input, shape index: {}]
  %s2 = inlined_call_operand.vmem [shape: f32[1,1024], index: 2, kind: input, shape index: {}]
  %s3 = inlined_call_operand.vmem [shape: bf16[128,256], index: 3, kind: output, shape index: {}]
  %s4 = sld [smem:[#allocation0]]
  $region22: #{cnn_forward.4} parent=0
    _
  %s6 = ssub.s32 1, %s4
  %s7 = scalar_select 0, %s6, %s4
  // Predicated region
  $region2: #{cnn_forward.4} parent=0 // pred_check
    _
  $region3: #{cnn_forward.4} parent=0 // pred_check_branch
    %9 = sbr.rel (0) target = $region5
  $region4: #{cnn_forward.4} parent=0 // pred_region
    _
  $region5: #{cnn_forward.4} parent=0 // pred_fallthru
    _
  // Predicated region
  $region6: #{cnn_forward.4} parent=0 // pred_check
    _
  $region7: #{cnn_forward.4} parent=0 // pred_check_branch
    %11 = sbr.rel (0) target = $region9
  $region8: #{cnn_forward.4} parent=0 // pred_region
    _
  $region9: #{cnn_forward.4} parent=0 // pred_fallthru
    _
  // Predicated region
  $region10: #{cnn_forward.4} parent=0 // pred_check
    _
  $region11: #{cnn_forward.4} parent=0 // pred_check_branch
    %13 = sbr.rel (0) target = $region13
  $region12: #{cnn_forward.4} parent=0 // pred_region
    _
  $region13: #{cnn_forward.4} parent=0 // pred_fallthru
    _
  %v15 = vld [vmem:[%s0] sm:$0xf]
  %v16 = vld [vmem:[%s0 + $0x4] sm:$0xf]
  %v17 = vld [vmem:[%s0 + $0x8] sm:$0xf]
  %v18 = vld [vmem:[%s0 + $0xc] sm:$0xf]
  %v19 = vld [vmem:[%s0 + $0x10] sm:$0xf]
  %v20 = vld [vmem:[%s0 + $0x14] sm:$0xf]
  %v21 = vld [vmem:[%s0 + $0x18] sm:$0xf]
  %v22 = vld [vmem:[%s0 + $0x1c] sm:$0xf]
  %v23 = vld [vmem:[%s0 + $0x20] sm:$0xf]
  %v24 = vld [vmem:[%s0 + $0x24] sm:$0xf]
  %v25 = vld [vmem:[%s0 + $0x28] sm:$0xf]
  %v26 = vld [vmem:[%s0 + $0x2c] sm:$0xf]
  %v27 = vld [vmem:[%s0 + $0x30] sm:$0xf]
  %v28 = vld [vmem:[%s0 + $0x34] sm:$0xf]
  %v29 = vld [vmem:[%s0 + $0x38] sm:$0xf]
  %v30 = vld [vmem:[%s0 + $0x3c] sm:$0x7]
  %v31 = vld [vmem:[%s1] sm:$0xff]
  %v32 = vld [vmem:[%s1 + $0x8] sm:$0xff]
  %v33 = vld [vmem:[%s1 + $0x10] sm:$0xff]
  %v34 = vld [vmem:[%s1 + $0x18] sm:$0xff]
  %v35 = vld [vmem:[%s1 + $0x20] sm:$0xff]
  %v36 = vld [vmem:[%s1 + $0x28] sm:$0xff]
  %v37 = vld [vmem:[%s1 + $0x30] sm:$0xff]
  %v38 = vld [vmem:[%s1 + $0x38] sm:$0xff]
  %v39 = vld [vmem:[%s1 + $0x40] sm:$0xff]
  %v40 = vld [vmem:[%s1 + $0x48] sm:$0xff]
  %v41 = vld [vmem:[%s1 + $0x50] sm:$0xff]
  %v42 = vld [vmem:[%s1 + $0x58] sm:$0xff]
  %v43 = vld [vmem:[%s1 + $0x60] sm:$0xff]
  %v44 = vld [vmem:[%s1 + $0x68] sm:$0xff]
  %v45 = vld [vmem:[%s1 + $0x70] sm:$0xff]
  %v46 = vld [vmem:[%s1 + $0x78] sm:$0xff]
  %v47 = vld [vmem:[%s1 + $0x80] sm:$0xff]
  %v48 = vld [vmem:[%s1 + $0x88] sm:$0xff]
  %v49 = vld [vmem:[%s1 + $0x90] sm:$0xff]
  %v50 = vld [vmem:[%s1 + $0x98] sm:$0xff]
  %v51 = vld [vmem:[%s1 + $0xa0] sm:$0xff]
  %v52 = vld [vmem:[%s1 + $0xa8] sm:$0xff]
  %v53 = vld [vmem:[%s1 + $0xb0] sm:$0xff]
  %v54 = vld [vmem:[%s1 + $0xb8] sm:$0xff]
  %v55 = vld [vmem:[%s1 + $0xc0] sm:$0xff]
  %v56 = vld [vmem:[%s1 + $0xc8] sm:$0xff]
  %v57 = vld [vmem:[%s1 + $0xd0] sm:$0xff]
  %v58 = vld [vmem:[%s1 + $0xd8] sm:$0xff]
  %v59 = vld [vmem:[%s1 + $0xe0] sm:$0x33]
  %v60 = vld [vmem:[%s1 + $0xe8] sm:$0x33]
  %v61 = vld [vmem:[%s1 + $0xf0] sm:$0x33]
  %v62 = vld [vmem:[%s1 + $0xf8] sm:$0x33]
  %v63 = vld [vmem:[%s0 + $0x3c] sm:$0xf]
  %s64 = scalar_lea.vmem %s1, 256
  %v65 = vld [vmem:[%s64] sm:$0xff]
  %v66 = vld [vmem:[%s64 + $0x8] sm:$0xff]
  %v67 = vld [vmem:[%s64 + $0x10] sm:$0xff]
  %v68 = vld [vmem:[%s64 + $0x18] sm:$0xff]
  %v69 = vld [vmem:[%s64 + $0x20] sm:$0xff]
  %v70 = vld [vmem:[%s64 + $0x28] sm:$0xff]
  %v71 = vld [vmem:[%s64 + $0x30] sm:$0xff]
  %v72 = vld [vmem:[%s64 + $0x38] sm:$0xff]
  %v73 = vld [vmem:[%s64 + $0x40] sm:$0xff]
  %v74 = vld [vmem:[%s64 + $0x48] sm:$0xff]
  %v75 = vld [vmem:[%s64 + $0x50] sm:$0xff]
  %v76 = vld [vmem:[%s64 + $0x58] sm:$0xff]
  %v77 = vld [vmem:[%s64 + $0x60] sm:$0xff]
  %v78 = vld [vmem:[%s64 + $0x68] sm:$0xff]
  %v79 = vld [vmem:[%s64 + $0x70] sm:$0xff]
  %v80 = vld [vmem:[%s64 + $0x78] sm:$0xff]
  %v81 = vld [vmem:[%s64 + $0x80] sm:$0xff]
  %v82 = vld [vmem:[%s64 + $0x88] sm:$0xff]
  %v83 = vld [vmem:[%s64 + $0x90] sm:$0xff]
  %v84 = vld [vmem:[%s64 + $0x98] sm:$0xff]
  %v85 = vld [vmem:[%s64 + $0xa0] sm:$0xff]
  %v86 = vld [vmem:[%s64 + $0xa8] sm:$0xff]
  %v87 = vld [vmem:[%s64 + $0xb0] sm:$0xff]
  %v88 = vld [vmem:[%s64 + $0xb8] sm:$0xff]
  %v89 = vld [vmem:[%s64 + $0xc0] sm:$0xff]
  %v90 = vld [vmem:[%s64 + $0xc8] sm:$0xff]
  %v91 = vld [vmem:[%s64 + $0xd0] sm:$0xff]
  %v92 = vld [vmem:[%s64 + $0xd8] sm:$0xff]
  %v93 = vld [vmem:[%s64 + $0xe0] sm:$0x33]
  %v94 = vld [vmem:[%s64 + $0xe8] sm:$0x33]
  %v95 = vld [vmem:[%s64 + $0xf0] sm:$0x33]
  %v96 = vld [vmem:[%s64 + $0xf8] sm:$0x33]
  %v113 = vunpack.c.l.b16 %v15
  %v114 = vunpack.c.l.b16 %v16
  %v115 = vunpack.c.l.b16 %v17
  %v116 = vunpack.c.l.b16 %v18
  %v117 = vunpack.c.l.b16 %v19
  %v118 = vunpack.c.l.b16 %v20
  %v119 = vunpack.c.l.b16 %v21
  %v120 = vunpack.c.l.b16 %v22
  %v121 = vunpack.c.l.b16 %v23
  %v122 = vunpack.c.l.b16 %v24
  %v123 = vunpack.c.l.b16 %v25
  %v124 = vunpack.c.l.b16 %v26
  %v125 = vunpack.c.l.b16 %v27
  %v126 = vunpack.c.l.b16 %v28
  %v127 = vunpack.c.l.b16 %v29
  %v128 = vunpack.c.l.b16 %v63
  %v129 = vpack.c.b16 %v114, %v113
  %v130 = vpack.c.b16 %v116, %v115
  %v131 = vpack.c.b16 %v118, %v117
  %v132 = vpack.c.b16 %v120, %v119
  %v133 = vpack.c.b16 %v122, %v121
  %v134 = vpack.c.b16 %v124, %v123
  %v135 = vpack.c.b16 %v126, %v125
  %v136 = vpack.c.b16 %v128, %v127
  %vm137 = vsmask.f32 7424
  %v139 = vshrl.u32 %v129, 16
  %v141 = vshll.u32 %v129, 16
  %v143 = vrot.slane %v141, 1
  %v144 = vor.u32 %v139, %v143
  %v146 = vshll.u32 %v130, 16
  %v148 = vrot.slane %v146, 1
  %v149 = vsel %vm137, %v144, %v148
  %v150 = vshrl.u32 %v130, 16
  %v152 = vor.u32 %v150, %v148
  %v154 = vshll.u32 %v131, 16
  %v156 = vrot.slane %v154, 1
  %v157 = vsel %vm137, %v152, %v156
  %v158 = vshrl.u32 %v131, 16
  %v160 = vor.u32 %v158, %v156
  %v162 = vshll.u32 %v132, 16
  %v164 = vrot.slane %v162, 1
  %v165 = vsel %vm137, %v160, %v164
  %v166 = vshrl.u32 %v132, 16
  %v168 = vor.u32 %v166, %v164
  %v170 = vshll.u32 %v133, 16
  %v172 = vrot.slane %v170, 1
  %v173 = vsel %vm137, %v168, %v172
  %v174 = vshrl.u32 %v133, 16
  %v176 = vor.u32 %v174, %v172
  %v178 = vshll.u32 %v134, 16
  %v180 = vrot.slane %v178, 1
  %v181 = vsel %vm137, %v176, %v180
  %v182 = vshrl.u32 %v134, 16
  %v184 = vor.u32 %v182, %v180
  %v186 = vshll.u32 %v135, 16
  %v188 = vrot.slane %v186, 1
  %v189 = vsel %vm137, %v184, %v188
  %v190 = vshrl.u32 %v135, 16
  %v192 = vor.u32 %v190, %v188
  %v194 = vshll.u32 %v136, 16
  %v196 = vrot.slane %v194, 1
  %v197 = vsel %vm137, %v192, %v196
  %v198 = vshrl.u32 %v136, 16
  %v200 = vor.u32 %v198, %v196
  %v233 = vunpack.c.l.b16 %v65
  %v234 = vunpack.c.h.b16 %v65
  %v235 = vunpack.c.l.b16 %v66
  %v236 = vunpack.c.h.b16 %v66
  %v237 = vunpack.c.l.b16 %v67
  %v238 = vunpack.c.h.b16 %v67
  %v239 = vunpack.c.l.b16 %v68
  %v240 = vunpack.c.h.b16 %v68
  %v241 = vunpack.c.l.b16 %v69
  %v242 = vunpack.c.h.b16 %v69
  %v243 = vunpack.c.l.b16 %v70
  %v244 = vunpack.c.h.b16 %v70
  %v245 = vunpack.c.l.b16 %v71
  %v246 = vunpack.c.h.b16 %v71
  %v247 = vunpack.c.l.b16 %v72
  %v248 = vunpack.c.h.b16 %v72
  %v249 = vunpack.c.l.b16 %v73
  %v250 = vunpack.c.h.b16 %v73
  %v251 = vunpack.c.l.b16 %v74
  %v252 = vunpack.c.h.b16 %v74
  %v253 = vunpack.c.l.b16 %v75
  %v254 = vunpack.c.h.b16 %v75
  %v255 = vunpack.c.l.b16 %v76
  %v256 = vunpack.c.h.b16 %v76
  %v257 = vunpack.c.l.b16 %v77
  %v258 = vunpack.c.h.b16 %v77
  %v259 = vunpack.c.l.b16 %v78
  %v260 = vunpack.c.h.b16 %v78
  %v261 = vunpack.c.l.b16 %v79
  %v262 = vunpack.c.h.b16 %v79
  %v263 = vunpack.c.l.b16 %v80
  %v264 = vunpack.c.h.b16 %v80
  %v265 = vunpack.c.l.b16 %v81
  %v266 = vunpack.c.h.b16 %v81
  %v267 = vunpack.c.l.b16 %v82
  %v268 = vunpack.c.h.b16 %v82
  %v269 = vunpack.c.l.b16 %v83
  %v270 = vunpack.c.h.b16 %v83
  %v271 = vunpack.c.l.b16 %v84
  %v272 = vunpack.c.h.b16 %v84
  %v273 = vunpack.c.l.b16 %v85
  %v274 = vunpack.c.h.b16 %v85
  %v275 = vunpack.c.l.b16 %v86
  %v276 = vunpack.c.h.b16 %v86
  %v277 = vunpack.c.l.b16 %v87
  %v278 = vunpack.c.h.b16 %v87
  %v279 = vunpack.c.l.b16 %v88
  %v280 = vunpack.c.h.b16 %v88
  %v281 = vunpack.c.l.b16 %v89
  %v282 = vunpack.c.h.b16 %v89
  %v283 = vunpack.c.l.b16 %v90
  %v284 = vunpack.c.h.b16 %v90
  %v285 = vunpack.c.l.b16 %v91
  %v286 = vunpack.c.h.b16 %v91
  %v287 = vunpack.c.l.b16 %v92
  %v288 = vunpack.c.h.b16 %v92
  %v289 = vunpack.c.l.b16 %v93
  %v290 = vunpack.c.h.b16 %v93
  %v291 = vunpack.c.l.b16 %v94
  %v292 = vunpack.c.h.b16 %v94
  %v293 = vunpack.c.l.b16 %v95
  %v294 = vunpack.c.h.b16 %v95
  %v295 = vunpack.c.l.b16 %v96
  %v296 = vunpack.c.h.b16 %v96
  %v297 = vpack.c.b16 %v241, %v233
  %v298 = vpack.c.b16 %v242, %v234
  %v299 = vpack.c.b16 %v243, %v235
  %v300 = vpack.c.b16 %v244, %v236
  %v301 = vpack.c.b16 %v245, %v237
  %v302 = vpack.c.b16 %v246, %v238
  %v303 = vpack.c.b16 %v247, %v239
  %v304 = vpack.c.b16 %v248, %v240
  %v305 = vpack.c.b16 %v257, %v249
  %v306 = vpack.c.b16 %v258, %v250
  %v307 = vpack.c.b16 %v259, %v251
  %v308 = vpack.c.b16 %v260, %v252
  %v309 = vpack.c.b16 %v261, %v253
  %v310 = vpack.c.b16 %v262, %v254
  %v311 = vpack.c.b16 %v263, %v255
  %v312 = vpack.c.b16 %v264, %v256
  %v313 = vpack.c.b16 %v273, %v265
  %v314 = vpack.c.b16 %v274, %v266
  %v315 = vpack.c.b16 %v275, %v267
  %v316 = vpack.c.b16 %v276, %v268
  %v317 = vpack.c.b16 %v277, %v269
  %v318 = vpack.c.b16 %v278, %v270
  %v319 = vpack.c.b16 %v279, %v271
  %v320 = vpack.c.b16 %v280, %v272
  %v321 = vpack.c.b16 %v289, %v281
  %v322 = vpack.c.b16 %v290, %v282
  %v323 = vpack.c.b16 %v291, %v283
  %v324 = vpack.c.b16 %v292, %v284
  %v325 = vpack.c.b16 %v293, %v285
  %v326 = vpack.c.b16 %v294, %v286
  %v327 = vpack.c.b16 %v295, %v287
  %v328 = vpack.c.b16 %v296, %v288
  %vm353 = vcmask 490496
  %v355 = vsel %vm353, %v149, 0
  %v358 = vsel %vm353, %v157, 0
  %v361 = vsel %vm353, %v165, 0
  %v364 = vsel %vm353, %v173, 0
  %v367 = vsel %vm353, %v181, 0
  %v370 = vsel %vm353, %v189, 0
  %v373 = vsel %vm353, %v197, 0
  %v376 = vsel %vm353, %v200, 0
  %vm378 = vcmask 1045504
  %v380 = vsel %vm378, %v321, 0
  %v383 = vsel %vm378, %v322, 0
  %v386 = vsel %vm378, %v323, 0
  %v389 = vsel %vm378, %v324, 0
  %v392 = vsel %vm378, %v325, 0
  %v395 = vsel %vm378, %v326, 0
  %v398 = vsel %vm378, %v327, 0
  %v401 = vsel %vm378, %v328, 0
  %403 = vmatprep.subr.bf16.mxu0 %v298
  %404 = vmatpush1.bf16.msra.mxu0 %v297
  %405 = vmatprep.subr.bf16.mxu0 %v306
  %406 = vmatpush1.bf16.msra.mxu0 %v305
  %407 = vmatprep.subr.bf16.mxu0 %v314
  %408 = vmatpush1.bf16.msra.mxu0 %v313
  %409 = vmatprep.subr.bf16.mxu0 %v383
  %410 = vmatpush1.bf16.msra.mxu0 %v380
  %411 = vmatprep.subr.bf16.mxu0 0
  %412 = vmatpush1.bf16.msra.mxu0 0
  %413 = vmatprep.subr.bf16.mxu0 0
  %414 = vmatpush1.bf16.msra.mxu0 0
  %415 = vmatprep.subr.bf16.mxu0 0
  %416 = vmatpush1.bf16.msra.mxu0 0
  %417 = vmatprep.subr.bf16.mxu0 0
  %418 = vmatpush1.bf16.msra.mxu0 0
  %419 = vmatprep.subr.bf16.mxu0 0
  %420 = vmatpush1.bf16.msra.mxu0 0
  %421 = vmatprep.subr.bf16.mxu0 0
  %422 = vmatpush1.bf16.msra.mxu0 0
  %423 = vmatprep.subr.bf16.mxu0 0
  %424 = vmatpush1.bf16.msra.mxu0 0
  %425 = vmatprep.subr.bf16.mxu0 0
  %426 = vmatpush1.bf16.msra.mxu0 0
  %427 = vmatprep.subr.bf16.mxu0 0
  %428 = vmatpush1.bf16.msra.mxu0 0
  %429 = vmatprep.subr.bf16.mxu0 0
  %430 = vmatpush1.bf16.msra.mxu0 0
  %431 = vmatprep.subr.bf16.mxu0 0
  %432 = vmatpush1.bf16.msra.mxu0 0
  %433 = vmatprep.subr.bf16.mxu0 0
  %434 = vmatpush1.bf16.msra.mxu0 0
  %435 = vmatprep.mubr.bf16.mxu0 0
  %436 = vmatmul.mubr.bf16.gmra.mrb[0].mxu0 %v355
  %v437 = vpop.f32.mrb[0].mxu0
  %v438 = vadd.f32 0.0, %v437
  %v439 = vpop.f32.mrb[0].mxu0
  %v440 = vadd.f32 0.0, %v439
  %v441 = vpop.f32.mrb[0].mxu0
  %v442 = vadd.f32 0.0, %v441
  %v443 = vpop.f32.mrb[0].mxu0
  %v444 = vadd.f32 0.0, %v443
  %445 = vmatprep.mubr.bf16.mxu0 0
  %446 = vmatmul.mubr.bf16.gmra.mrb[0].mxu0 %v358
  %v447 = vpop.f32.mrb[0].mxu0
  %v448 = vadd.f32 0.0, %v447
  %v449 = vpop.f32.mrb[0].mxu0
  %v450 = vadd.f32 0.0, %v449
  %v451 = vpop.f32.mrb[0].mxu0
  %v452 = vadd.f32 0.0, %v451
  %v453 = vpop.f32.mrb[0].mxu0
  %v454 = vadd.f32 0.0, %v453
  %455 = vmatprep.mubr.bf16.mxu0 0
  %456 = vmatmul.mubr.bf16.gmra.mrb[0].mxu0 %v361
  %v457 = vpop.f32.mrb[0].mxu0
  %v458 = vadd.f32 0.0, %v457
  %v459 = vpop.f32.mrb[0].mxu0
  %v460 = vadd.f32 0.0, %v459
  %v461 = vpop.f32.mrb[0].mxu0
  %v462 = vadd.f32 0.0, %v461
  %v463 = vpop.f32.mrb[0].mxu0
  %v464 = vadd.f32 0.0, %v463
  %465 = vmatprep.mubr.bf16.mxu0 0
  %466 = vmatmul.mubr.bf16.gmra.mrb[0].mxu0 %v364
  %v467 = vpop.f32.mrb[0].mxu0
  %v468 = vadd.f32 0.0, %v467
  %v469 = vpop.f32.mrb[0].mxu0
  %v470 = vadd.f32 0.0, %v469
  %v471 = vpop.f32.mrb[0].mxu0
  %v472 = vadd.f32 0.0, %v471
  %v473 = vpop.f32.mrb[0].mxu0
  %v474 = vadd.f32 0.0, %v473
  %475 = vmatprep.mubr.bf16.mxu0 0
  %476 = vmatmul.mubr.bf16.gmra.mrb[0].mxu0 %v367
  %v477 = vpop.f32.mrb[0].mxu0
  %v478 = vadd.f32 0.0, %v477
  %v479 = vpop.f32.mrb[0].mxu0
  %v480 = vadd.f32 0.0, %v479
  %v481 = vpop.f32.mrb[0].mxu0
  %v482 = vadd.f32 0.0, %v481
  %v483 = vpop.f32.mrb[0].mxu0
  %v484 = vadd.f32 0.0, %v483
  %485 = vmatprep.mubr.bf16.mxu0 0
  %486 = vmatmul.mubr.bf16.gmra.mrb[0].mxu0 %v370
  %v487 = vpop.f32.mrb[0].mxu0
  %v488 = vadd.f32 0.0, %v487
  %v489 = vpop.f32.mrb[0].mxu0
  %v490 = vadd.f32 0.0, %v489
  %v491 = vpop.f32.mrb[0].mxu0
  %v492 = vadd.f32 0.0, %v491
  %v493 = vpop.f32.mrb[0].mxu0
  %v494 = vadd.f32 0.0, %v493
  %495 = vmatprep.mubr.bf16.mxu0 0
  %496 = vmatmul.mubr.bf16.gmra.mrb[0].mxu0 %v373
  %v497 = vpop.f32.mrb[0].mxu0
  %v498 = vadd.f32 0.0, %v497
  %v499 = vpop.f32.mrb[0].mxu0
  %v500 = vadd.f32 0.0, %v499
  %v501 = vpop.f32.mrb[0].mxu0
  %v502 = vadd.f32 0.0, %v501
  %v503 = vpop.f32.mrb[0].mxu0
  %v504 = vadd.f32 0.0, %v503
  %505 = vmatprep.mubr.bf16.mxu0 0
  %506 = vmatmul.mubr.bf16.gmra.mrb[0].mxu0 %v376
  %v507 = vpop.f32.mrb[0].mxu0
  %v508 = vadd.f32 0.0, %v507
  %v509 = vpop.f32.mrb[0].mxu0
  %v510 = vadd.f32 0.0, %v509
  %v511 = vpop.f32.mrb[0].mxu0
  %v512 = vadd.f32 0.0, %v511
  %v513 = vpop.f32.mrb[0].mxu0
  %v514 = vadd.f32 0.0, %v513
  %515 = vdwg.mxu0
  %516 = vmatprep.subr.bf16.mxu0 %v300
  %517 = vmatpush1.bf16.msra.mxu0 %v299
  %518 = vmatprep.subr.bf16.mxu0 %v308
  %519 = vmatpush1.bf16.msra.mxu0 %v307
  %520 = vmatprep.subr.bf16.mxu0 %v316
  %521 = vmatpush1.bf16.msra.mxu0 %v315
  %522 = vmatprep.subr.bf16.mxu0 %v389
  %523 = vmatpush1.bf16.msra.mxu0 %v386
  %524 = vmatprep.subr.bf16.mxu0 0
  %525 = vmatpush1.bf16.msra.mxu0 0
  %526 = vmatprep.subr.bf16.mxu0 0
  %527 = vmatpush1.bf16.msra.mxu0 0
  %528 = vmatprep.subr.bf16.mxu0 0
  %529 = vmatpush1.bf16.msra.mxu0 0
  %530 = vmatprep.subr.bf16.mxu0 0
  %531 = vmatpush1.bf16.msra.mxu0 0
  %532 = vmatprep.subr.bf16.mxu0 0
  %533 = vmatpush1.bf16.msra.mxu0 0
  %534 = vmatprep.subr.bf16.mxu0 0
  %535 = vmatpush1.bf16.msra.mxu0 0
  %536 = vmatprep.subr.bf16.mxu0 0
  %537 = vmatpush1.bf16.msra.mxu0 0
  %538 = vmatprep.subr.bf16.mxu0 0
  %539 = vmatpush1.bf16.msra.mxu0 0
  %540 = vmatprep.subr.bf16.mxu0 0
  %541 = vmatpush1.bf16.msra.mxu0 0
  %542 = vmatprep.subr.bf16.mxu0 0
  %543 = vmatpush1.bf16.msra.mxu0 0
  %544 = vmatprep.subr.bf16.mxu0 0
  %545 = vmatpush1.bf16.msra.mxu0 0
  %546 = vmatprep.subr.bf16.mxu0 0
  %547 = vmatpush1.bf16.msra.mxu0 0
  %548 = vmatprep.mubr.bf16.mxu0 0
  %549 = vmatmul.mubr.bf16.gmra.mrb[0].mxu0 %v355
  %v550 = vpop.f32.mrb[0].mxu0
  %v551 = vadd.f32 0.0, %v550
  %v552 = vpop.f32.mrb[0].mxu0
  %v553 = vadd.f32 0.0, %v552
  %v554 = vpop.f32.mrb[0].mxu0
  %v555 = vadd.f32 0.0, %v554
  %v556 = vpop.f32.mrb[0].mxu0
  %v557 = vadd.f32 0.0, %v556
  %558 = vmatprep.mubr.bf16.mxu0 0
  %559 = vmatmul.mubr.bf16.gmra.mrb[0].mxu0 %v358
  %v560 = vpop.f32.mrb[0].mxu0
  %v561 = vadd.f32 0.0, %v560
  %v562 = vpop.f32.mrb[0].mxu0
  %v563 = vadd.f32 0.0, %v562
  %v564 = vpop.f32.mrb[0].mxu0
  %v565 = vadd.f32 0.0, %v564
  %v566 = vpop.f32.mrb[0].mxu0
  %v567 = vadd.f32 0.0, %v566
  %568 = vmatprep.mubr.bf16.mxu0 0
  %569 = vmatmul.mubr.bf16.gmra.mrb[0].mxu0 %v361
  %v570 = vpop.f32.mrb[0].mxu0
  %v571 = vadd.f32 0.0, %v570
  %v572 = vpop.f32.mrb[0].mxu0
  %v573 = vadd.f32 0.0, %v572
  %v574 = vpop.f32.mrb[0].mxu0
  %v575 = vadd.f32 0.0, %v574
  %v576 = vpop.f32.mrb[0].mxu0
  %v577 = vadd.f32 0.0, %v576
  %578 = vmatprep.mubr.bf16.mxu0 0
  %579 = vmatmul.mubr.bf16.gmra.mrb[0].mxu0 %v364
  %v580 = vpop.f32.mrb[0].mxu0
  %v581 = vadd.f32 0.0, %v580
  %v582 = vpop.f32.mrb[0].mxu0
  %v583 = vadd.f32 0.0, %v582
  %v584 = vpop.f32.mrb[0].mxu0
  %v585 = vadd.f32 0.0, %v584
  %v586 = vpop.f32.mrb[0].mxu0
  %v587 = vadd.f32 0.0, %v586
  %588 = vmatprep.mubr.bf16.mxu0 0
  %589 = vmatmul.mubr.bf16.gmra.mrb[0].mxu0 %v367
  %v590 = vpop.f32.mrb[0].mxu0
  %v591 = vadd.f32 0.0, %v590
  %v592 = vpop.f32.mrb[0].mxu0
  %v593 = vadd.f32 0.0, %v592
  %v594 = vpop.f32.mrb[0].mxu0
  %v595 = vadd.f32 0.0, %v594
  %v596 = vpop.f32.mrb[0].mxu0
  %v597 = vadd.f32 0.0, %v596
  %598 = vmatprep.mubr.bf16.mxu0 0
  %599 = vmatmul.mubr.bf16.gmra.mrb[0].mxu0 %v370
  %v600 = vpop.f32.mrb[0].mxu0
  %v601 = vadd.f32 0.0, %v600
  %v602 = vpop.f32.mrb[0].mxu0
  %v603 = vadd.f32 0.0, %v602
  %v604 = vpop.f32.mrb[0].mxu0
  %v605 = vadd.f32 0.0, %v604
  %v606 = vpop.f32.mrb[0].mxu0
  %v607 = vadd.f32 0.0, %v606
  %608 = vmatprep.mubr.bf16.mxu0 0
  %609 = vmatmul.mubr.bf16.gmra.mrb[0].mxu0 %v373
  %v610 = vpop.f32.mrb[0].mxu0
  %v611 = vadd.f32 0.0, %v610
  %v612 = vpop.f32.mrb[0].mxu0
  %v613 = vadd.f32 0.0, %v612
  %v614 = vpop.f32.mrb[0].mxu0
  %v615 = vadd.f32 0.0, %v614
  %v616 = vpop.f32.mrb[0].mxu0
  %v617 = vadd.f32 0.0, %v616
  %618 = vmatprep.mubr.bf16.mxu0 0
  %619 = vmatmul.mubr.bf16.gmra.mrb[0].mxu0 %v376
  %v620 = vpop.f32.mrb[0].mxu0
  %v621 = vadd.f32 0.0, %v620
  %v622 = vpop.f32.mrb[0].mxu0
  %v623 = vadd.f32 0.0, %v622
  %v624 = vpop.f32.mrb[0].mxu0
  %v625 = vadd.f32 0.0, %v624
  %v626 = vpop.f32.mrb[0].mxu0
  %v627 = vadd.f32 0.0, %v626
  %628 = vdwg.mxu0
  %629 = vmatprep.subr.bf16.mxu0 %v302
  %630 = vmatpush1.bf16.msra.mxu0 %v301
  %631 = vmatprep.subr.bf16.mxu0 %v310
  %632 = vmatpush1.bf16.msra.mxu0 %v309
  %633 = vmatprep.subr.bf16.mxu0 %v318
  %634 = vmatpush1.bf16.msra.mxu0 %v317
  %635 = vmatprep.subr.bf16.mxu0 %v395
  %636 = vmatpush1.bf16.msra.mxu0 %v392
  %637 = vmatprep.subr.bf16.mxu0 0
  %638 = vmatpush1.bf16.msra.mxu0 0
  %639 = vmatprep.subr.bf16.mxu0 0
  %640 = vmatpush1.bf16.msra.mxu0 0
  %641 = vmatprep.subr.bf16.mxu0 0
  %642 = vmatpush1.bf16.msra.mxu0 0
  %643 = vmatprep.subr.bf16.mxu0 0
  %644 = vmatpush1.bf16.msra.mxu0 0
  %645 = vmatprep.subr.bf16.mxu0 0
  %646 = vmatpush1.bf16.msra.mxu0 0
  %647 = vmatprep.subr.bf16.mxu0 0
  %648 = vmatpush1.bf16.msra.mxu0 0
  %649 = vmatprep.subr.bf16.mxu0 0
  %650 = vmatpush1.bf16.msra.mxu0 0
  %651 = vmatprep.subr.bf16.mxu0 0
  %652 = vmatpush1.bf16.msra.mxu0 0
  %653 = vmatprep.subr.bf16.mxu0 0
  %654 = vmatpush1.bf16.msra.mxu0 0
  %655 = vmatprep.subr.bf16.mxu0 0
  %656 = vmatpush1.bf16.msra.mxu0 0
  %657 = vmatprep.subr.bf16.mxu0 0
  %658 = vmatpush1.bf16.msra.mxu0 0
  %659 = vmatprep.subr.bf16.mxu0 0
  %660 = vmatpush1.bf16.msra.mxu0 0
  %661 = vmatprep.mubr.bf16.mxu0 0
  %662 = vmatmul.mubr.bf16.gmra.mrb[0].mxu0 %v355
  %v663 = vpop.f32.mrb[0].mxu0
  %v664 = vadd.f32 0.0, %v663
  %v665 = vpop.f32.mrb[0].mxu0
  %v666 = vadd.f32 0.0, %v665
  %v667 = vpop.f32.mrb[0].mxu0
  %v668 = vadd.f32 0.0, %v667
  %v669 = vpop.f32.mrb[0].mxu0
  %v670 = vadd.f32 0.0, %v669
  %671 = vmatprep.mubr.bf16.mxu0 0
  %672 = vmatmul.mubr.bf16.gmra.mrb[0].mxu0 %v358
  %v673 = vpop.f32.mrb[0].mxu0
  %v674 = vadd.f32 0.0, %v673
  %v675 = vpop.f32.mrb[0].mxu0
  %v676 = vadd.f32 0.0, %v675
  %v677 = vpop.f32.mrb[0].mxu0
  %v678 = vadd.f32 0.0, %v677
  %v679 = vpop.f32.mrb[0].mxu0
  %v680 = vadd.f32 0.0, %v679
  %681 = vmatprep.mubr.bf16.mxu0 0
  %682 = vmatmul.mubr.bf16.gmra.mrb[0].mxu0 %v361
  %v683 = vpop.f32.mrb[0].mxu0
  %v684 = vadd.f32 0.0, %v683
  %v685 = vpop.f32.mrb[0].mxu0
  %v686 = vadd.f32 0.0, %v685
  %v687 = vpop.f32.mrb[0].mxu0
  %v688 = vadd.f32 0.0, %v687
  %v689 = vpop.f32.mrb[0].mxu0
  %v690 = vadd.f32 0.0, %v689
  %691 = vmatprep.mubr.bf16.mxu0 0
  %692 = vmatmul.mubr.bf16.gmra.mrb[0].mxu0 %v364
  %v693 = vpop.f32.mrb[0].mxu0
  %v694 = vadd.f32 0.0, %v693
  %v695 = vpop.f32.mrb[0].mxu0
  %v696 = vadd.f32 0.0, %v695
  %v697 = vpop.f32.mrb[0].mxu0
  %v698 = vadd.f32 0.0, %v697
  %v699 = vpop.f32.mrb[0].mxu0
  %v700 = vadd.f32 0.0, %v699
  %701 = vmatprep.mubr.bf16.mxu0 0
  %702 = vmatmul.mubr.bf16.gmra.mrb[0].mxu0 %v367
  %v703 = vpop.f32.mrb[0].mxu0
  %v704 = vadd.f32 0.0, %v703
  %v705 = vpop.f32.mrb[0].mxu0
  %v706 = vadd.f32 0.0, %v705
  %v707 = vpop.f32.mrb[0].mxu0
  %v708 = vadd.f32 0.0, %v707
  %v709 = vpop.f32.mrb[0].mxu0
  %v710 = vadd.f32 0.0, %v709
  %711 = vmatprep.mubr.bf16.mxu0 0
  %712 = vmatmul.mubr.bf16.gmra.mrb[0].mxu0 %v370
  %v713 = vpop.f32.mrb[0].mxu0
  %v714 = vadd.f32 0.0, %v713
  %v715 = vpop.f32.mrb[0].mxu0
  %v716 = vadd.f32 0.0, %v715
  %v717 = vpop.f32.mrb[0].mxu0
  %v718 = vadd.f32 0.0, %v717
  %v719 = vpop.f32.mrb[0].mxu0
  %v720 = vadd.f32 0.0, %v719
  %721 = vmatprep.mubr.bf16.mxu0 0
  %722 = vmatmul.mubr.bf16.gmra.mrb[0].mxu0 %v373
  %v723 = vpop.f32.mrb[0].mxu0
  %v724 = vadd.f32 0.0, %v723
  %v725 = vpop.f32.mrb[0].mxu0
  %v726 = vadd.f32 0.0, %v725
  %v727 = vpop.f32.mrb[0].mxu0
  %v728 = vadd.f32 0.0, %v727
  %v729 = vpop.f32.mrb[0].mxu0
  %v730 = vadd.f32 0.0, %v729
  %731 = vmatprep.mubr.bf16.mxu0 0
  %732 = vmatmul.mubr.bf16.gmra.mrb[0].mxu0 %v376
  %v733 = vpop.f32.mrb[0].mxu0
  %v734 = vadd.f32 0.0, %v733
  %v735 = vpop.f32.mrb[0].mxu0
  %v736 = vadd.f32 0.0, %v735
  %v737 = vpop.f32.mrb[0].mxu0
  %v738 = vadd.f32 0.0, %v737
  %v739 = vpop.f32.mrb[0].mxu0
  %v740 = vadd.f32 0.0, %v739
  %741 = vdwg.mxu0
  %742 = vmatprep.subr.bf16.mxu0 %v304
  %743 = vmatpush1.bf16.msra.mxu0 %v303
  %744 = vmatprep.subr.bf16.mxu0 %v312
  %745 = vmatpush1.bf16.msra.mxu0 %v311
  %746 = vmatprep.subr.bf16.mxu0 %v320
  %747 = vmatpush1.bf16.msra.mxu0 %v319
  %748 = vmatprep.subr.bf16.mxu0 %v401
  %749 = vmatpush1.bf16.msra.mxu0 %v398
  %750 = vmatprep.subr.bf16.mxu0 0
  %751 = vmatpush1.bf16.msra.mxu0 0
  %752 = vmatprep.subr.bf16.mxu0 0
  %753 = vmatpush1.bf16.msra.mxu0 0
  %754 = vmatprep.subr.bf16.mxu0 0
  %755 = vmatpush1.bf16.msra.mxu0 0
  %756 = vmatprep.subr.bf16.mxu0 0
  %757 = vmatpush1.bf16.msra.mxu0 0
  %758 = vmatprep.subr.bf16.mxu0 0
  %759 = vmatpush1.bf16.msra.mxu0 0
  %760 = vmatprep.subr.bf16.mxu0 0
  %761 = vmatpush1.bf16.msra.mxu0 0
  %762 = vmatprep.subr.bf16.mxu0 0
  %763 = vmatpush1.bf16.msra.mxu0 0
  %764 = vmatprep.subr.bf16.mxu0 0
  %765 = vmatpush1.bf16.msra.mxu0 0
  %766 = vmatprep.subr.bf16.mxu0 0
  %767 = vmatpush1.bf16.msra.mxu0 0
  %768 = vmatprep.subr.bf16.mxu0 0
  %769 = vmatpush1.bf16.msra.mxu0 0
  %770 = vmatprep.subr.bf16.mxu0 0
  %771 = vmatpush1.bf16.msra.mxu0 0
  %772 = vmatprep.subr.bf16.mxu0 0
  %773 = vmatpush1.bf16.msra.mxu0 0
  %774 = vmatprep.mubr.bf16.mxu0 0
  %775 = vmatmul.mubr.bf16.gmra.mrb[0].mxu0 %v355
  %v776 = vpop.f32.mrb[0].mxu0
  %v777 = vadd.f32 0.0, %v776
  %v778 = vpop.f32.mrb[0].mxu0
  %v779 = vadd.f32 0.0, %v778
  %v780 = vpop.f32.mrb[0].mxu0
  %v781 = vadd.f32 0.0, %v780
  %v782 = vpop.f32.mrb[0].mxu0
  %v783 = vadd.f32 0.0, %v782
  %784 = vmatprep.mubr.bf16.mxu0 0
  %785 = vmatmul.mubr.bf16.gmra.mrb[0].mxu0 %v358
  %v786 = vpop.f32.mrb[0].mxu0
  %v787 = vadd.f32 0.0, %v786
  %v788 = vpop.f32.mrb[0].mxu0
  %v789 = vadd.f32 0.0, %v788
  %v790 = vpop.f32.mrb[0].mxu0
  %v791 = vadd.f32 0.0, %v790
  %v792 = vpop.f32.mrb[0].mxu0
  %v793 = vadd.f32 0.0, %v792
  %794 = vmatprep.mubr.bf16.mxu0 0
  %795 = vmatmul.mubr.bf16.gmra.mrb[0].mxu0 %v361
  %v796 = vpop.f32.mrb[0].mxu0
  %v797 = vadd.f32 0.0, %v796
  %v798 = vpop.f32.mrb[0].mxu0
  %v799 = vadd.f32 0.0, %v798
  %v800 = vpop.f32.mrb[0].mxu0
  %v801 = vadd.f32 0.0, %v800
  %v802 = vpop.f32.mrb[0].mxu0
  %v803 = vadd.f32 0.0, %v802
  %804 = vmatprep.mubr.bf16.mxu0 0
  %805 = vmatmul.mubr.bf16.gmra.mrb[0].mxu0 %v364
  %v806 = vpop.f32.mrb[0].mxu0
  %v807 = vadd.f32 0.0, %v806
  %v808 = vpop.f32.mrb[0].mxu0
  %v809 = vadd.f32 0.0, %v808
  %v810 = vpop.f32.mrb[0].mxu0
  %v811 = vadd.f32 0.0, %v810
  %v812 = vpop.f32.mrb[0].mxu0
  %v813 = vadd.f32 0.0, %v812
  %814 = vmatprep.mubr.bf16.mxu0 0
  %815 = vmatmul.mubr.bf16.gmra.mrb[0].mxu0 %v367
  %v816 = vpop.f32.mrb[0].mxu0
  %v817 = vadd.f32 0.0, %v816
  %v818 = vpop.f32.mrb[0].mxu0
  %v819 = vadd.f32 0.0, %v818
  %v820 = vpop.f32.mrb[0].mxu0
  %v821 = vadd.f32 0.0, %v820
  %v822 = vpop.f32.mrb[0].mxu0
  %v823 = vadd.f32 0.0, %v822
  %824 = vmatprep.mubr.bf16.mxu0 0
  %825 = vmatmul.mubr.bf16.gmra.mrb[0].mxu0 %v370
  %v826 = vpop.f32.mrb[0].mxu0
  %v827 = vadd.f32 0.0, %v826
  %v828 = vpop.f32.mrb[0].mxu0
  %v829 = vadd.f32 0.0, %v828
  %v830 = vpop.f32.mrb[0].mxu0
  %v831 = vadd.f32 0.0, %v830
  %v832 = vpop.f32.mrb[0].mxu0
  %v833 = vadd.f32 0.0, %v832
  %834 = vmatprep.mubr.bf16.mxu0 0
  %835 = vmatmul.mubr.bf16.gmra.mrb[0].mxu0 %v373
  %v836 = vpop.f32.mrb[0].mxu0
  %v837 = vadd.f32 0.0, %v836
  %v838 = vpop.f32.mrb[0].mxu0
  %v839 = vadd.f32 0.0, %v838
  %v840 = vpop.f32.mrb[0].mxu0
  %v841 = vadd.f32 0.0, %v840
  %v842 = vpop.f32.mrb[0].mxu0
  %v843 = vadd.f32 0.0, %v842
  %844 = vmatprep.mubr.bf16.mxu0 0
  %845 = vmatmul.mubr.bf16.gmra.mrb[0].mxu0 %v376
  %v846 = vpop.f32.mrb[0].mxu0
  %v847 = vadd.f32 0.0, %v846
  %v848 = vpop.f32.mrb[0].mxu0
  %v849 = vadd.f32 0.0, %v848
  %v850 = vpop.f32.mrb[0].mxu0
  %v851 = vadd.f32 0.0, %v850
  %v852 = vpop.f32.mrb[0].mxu0
  %v853 = vadd.f32 0.0, %v852
  %854 = vdwg.mxu0
  %v856 = vunpack.c.l.b16 %v30
  %v857 = vpack.c.b16 %v856, %v127
  %v890 = vunpack.c.l.b16 %v31
  %v891 = vunpack.c.h.b16 %v31
  %v892 = vunpack.c.l.b16 %v32
  %v893 = vunpack.c.h.b16 %v32
  %v894 = vunpack.c.l.b16 %v33
  %v895 = vunpack.c.h.b16 %v33
  %v896 = vunpack.c.l.b16 %v34
  %v897 = vunpack.c.h.b16 %v34
  %v898 = vunpack.c.l.b16 %v35
  %v899 = vunpack.c.h.b16 %v35
  %v900 = vunpack.c.l.b16 %v36
  %v901 = vunpack.c.h.b16 %v36
  %v902 = vunpack.c.l.b16 %v37
  %v903 = vunpack.c.h.b16 %v37
  %v904 = vunpack.c.l.b16 %v38
  %v905 = vunpack.c.h.b16 %v38
  %v906 = vunpack.c.l.b16 %v39
  %v907 = vunpack.c.h.b16 %v39
  %v908 = vunpack.c.l.b16 %v40
  %v909 = vunpack.c.h.b16 %v40
  %v910 = vunpack.c.l.b16 %v41
  %v911 = vunpack.c.h.b16 %v41
  %v912 = vunpack.c.l.b16 %v42
  %v913 = vunpack.c.h.b16 %v42
  %v914 = vunpack.c.l.b16 %v43
  %v915 = vunpack.c.h.b16 %v43
  %v916 = vunpack.c.l.b16 %v44
  %v917 = vunpack.c.h.b16 %v44
  %v918 = vunpack.c.l.b16 %v45
  %v919 = vunpack.c.h.b16 %v45
  %v920 = vunpack.c.l.b16 %v46
  %v921 = vunpack.c.h.b16 %v46
  %v922 = vunpack.c.l.b16 %v47
  %v923 = vunpack.c.h.b16 %v47
  %v924 = vunpack.c.l.b16 %v48
  %v925 = vunpack.c.h.b16 %v48
  %v926 = vunpack.c.l.b16 %v49
  %v927 = vunpack.c.h.b16 %v49
  %v928 = vunpack.c.l.b16 %v50
  %v929 = vunpack.c.h.b16 %v50
  %v930 = vunpack.c.l.b16 %v51
  %v931 = vunpack.c.h.b16 %v51
  %v932 = vunpack.c.l.b16 %v52
  %v933 = vunpack.c.h.b16 %v52
  %v934 = vunpack.c.l.b16 %v53
  %v935 = vunpack.c.h.b16 %v53
  %v936 = vunpack.c.l.b16 %v54
  %v937 = vunpack.c.h.b16 %v54
  %v938 = vunpack.c.l.b16 %v55
  %v939 = vunpack.c.h.b16 %v55
  %v940 = vunpack.c.l.b16 %v56
  %v941 = vunpack.c.h.b16 %v56
  %v942 = vunpack.c.l.b16 %v57
  %v943 = vunpack.c.h.b16 %v57
  %v944 = vunpack.c.l.b16 %v58
  %v945 = vunpack.c.h.b16 %v58
  %v946 = vunpack.c.l.b16 %v59
  %v947 = vunpack.c.h.b16 %v59
  %v948 = vunpack.c.l.b16 %v60
  %v949 = vunpack.c.h.b16 %v60
  %v950 = vunpack.c.l.b16 %v61
  %v951 = vunpack.c.h.b16 %v61
  %v952 = vunpack.c.l.b16 %v62
  %v953 = vunpack.c.h.b16 %v62
  %v954 = vpack.c.b16 %v898, %v890
  %v955 = vpack.c.b16 %v899, %v891
  %v956 = vpack.c.b16 %v900, %v892
  %v957 = vpack.c.b16 %v901, %v893
  %v958 = vpack.c.b16 %v902, %v894
  %v959 = vpack.c.b16 %v903, %v895
  %v960 = vpack.c.b16 %v904, %v896
  %v961 = vpack.c.b16 %v905, %v897
  %v962 = vpack.c.b16 %v914, %v906
  %v963 = vpack.c.b16 %v915, %v907
  %v964 = vpack.c.b16 %v916, %v908
  %v965 = vpack.c.b16 %v917, %v909
  %v966 = vpack.c.b16 %v918, %v910
  %v967 = vpack.c.b16 %v919, %v911
  %v968 = vpack.c.b16 %v920, %v912
  %v969 = vpack.c.b16 %v921, %v913
  %v970 = vpack.c.b16 %v930, %v922
  %v971 = vpack.c.b16 %v931, %v923
  %v972 = vpack.c.b16 %v932, %v924
  %v973 = vpack.c.b16 %v933, %v925
  %v974 = vpack.c.b16 %v934, %v926
  %v975 = vpack.c.b16 %v935, %v927
  %v976 = vpack.c.b16 %v936, %v928
  %v977 = vpack.c.b16 %v937, %v929
  %v978 = vpack.c.b16 %v946, %v938
  %v979 = vpack.c.b16 %v947, %v939
  %v980 = vpack.c.b16 %v948, %v940
  %v981 = vpack.c.b16 %v949, %v941
  %v982 = vpack.c.b16 %v950, %v942
  %v983 = vpack.c.b16 %v951, %v943
  %v984 = vpack.c.b16 %v952, %v944
  %v985 = vpack.c.b16 %v953, %v945
  %v1010 = vsel %vm353, %v129, 0
  %v1012 = vsel %vm353, %v130, 0
  %v1014 = vsel %vm353, %v131, 0
  %v1016 = vsel %vm353, %v132, 0
  %v1018 = vsel %vm353, %v133, 0
  %v1020 = vsel %vm353, %v134, 0
  %v1022 = vsel %vm353, %v135, 0
  %v1025 = vsel %vm353, %v857, 0
  %v1028 = vsel %vm378, %v978, 0
  %v1031 = vsel %vm378, %v979, 0
  %v1034 = vsel %vm378, %v980, 0
  %v1037 = vsel %vm378, %v981, 0
  %v1040 = vsel %vm378, %v982, 0
  %v1043 = vsel %vm378, %v983, 0
  %v1046 = vsel %vm378, %v984, 0
  %v1049 = vsel %vm378, %v985, 0
  %1051 = vmatprep.subr.bf16.mxu0 %v955
  %1052 = vmatpush1.bf16.msra.mxu0 %v954
  %1053 = vmatprep.subr.bf16.mxu0 %v963
  %1054 = vmatpush1.bf16.msra.mxu0 %v962
  %1055 = vmatprep.subr.bf16.mxu0 %v971
  %1056 = vmatpush1.bf16.msra.mxu0 %v970
  %1057 = vmatprep.subr.bf16.mxu0 %v1031
  %1058 = vmatpush1.bf16.msra.mxu0 %v1028
  %1059 = vmatprep.subr.bf16.mxu0 0
  %1060 = vmatpush1.bf16.msra.mxu0 0
  %1061 = vmatprep.subr.bf16.mxu0 0
  %1062 = vmatpush1.bf16.msra.mxu0 0
  %1063 = vmatprep.subr.bf16.mxu0 0
  %1064 = vmatpush1.bf16.msra.mxu0 0
  %1065 = vmatprep.subr.bf16.mxu0 0
  %1066 = vmatpush1.bf16.msra.mxu0 0
  %1067 = vmatprep.subr.bf16.mxu0 0
  %1068 = vmatpush1.bf16.msra.mxu0 0
  %1069 = vmatprep.subr.bf16.mxu0 0
  %1070 = vmatpush1.bf16.msra.mxu0 0
  %1071 = vmatprep.subr.bf16.mxu0 0
  %1072 = vmatpush1.bf16.msra.mxu0 0
  %1073 = vmatprep.subr.bf16.mxu0 0
  %1074 = vmatpush1.bf16.msra.mxu0 0
  %1075 = vmatprep.subr.bf16.mxu0 0
  %1076 = vmatpush1.bf16.msra.mxu0 0
  %1077 = vmatprep.subr.bf16.mxu0 0
  %1078 = vmatpush1.bf16.msra.mxu0 0
  %1079 = vmatprep.subr.bf16.mxu0 0
  %1080 = vmatpush1.bf16.msra.mxu0 0
  %1081 = vmatprep.subr.bf16.mxu0 0
  %1082 = vmatpush1.bf16.msra.mxu0 0
  %1083 = vmatprep.mubr.bf16.mxu0 0
  %1084 = vmatmul.mubr.bf16.gmra.mrb[0].mxu0 %v1010
  %v1085 = vpop.f32.mrb[0].mxu0
  %v1086 = vadd.f32 %v438, %v1085
  %v1087 = vpop.f32.mrb[0].mxu0
  %v1088 = vadd.f32 %v440, %v1087
  %v1089 = vpop.f32.mrb[0].mxu0
  %v1090 = vadd.f32 %v442, %v1089
  %v1091 = vpop.f32.mrb[0].mxu0
  %v1092 = vadd.f32 %v444, %v1091
  %1093 = vmatprep.mubr.bf16.mxu0 0
  %1094 = vmatmul.mubr.bf16.gmra.mrb[0].mxu0 %v1012
  %v1095 = vpop.f32.mrb[0].mxu0
  %v1096 = vadd.f32 %v448, %v1095
  %v1097 = vpop.f32.mrb[0].mxu0
  %v1098 = vadd.f32 %v450, %v1097
  %v1099 = vpop.f32.mrb[0].mxu0
  %v1100 = vadd.f32 %v452, %v1099
  %v1101 = vpop.f32.mrb[0].mxu0
  %v1102 = vadd.f32 %v454, %v1101
  %1103 = vmatprep.mubr.bf16.mxu0 0
  %1104 = vmatmul.mubr.bf16.gmra.mrb[0].mxu0 %v1014
  %v1105 = vpop.f32.mrb[0].mxu0
  %v1106 = vadd.f32 %v458, %v1105
  %v1107 = vpop.f32.mrb[0].mxu0
  %v1108 = vadd.f32 %v460, %v1107
  %v1109 = vpop.f32.mrb[0].mxu0
  %v1110 = vadd.f32 %v462, %v1109
  %v1111 = vpop.f32.mrb[0].mxu0
  %v1112 = vadd.f32 %v464, %v1111
  %1113 = vmatprep.mubr.bf16.mxu0 0
  %1114 = vmatmul.mubr.bf16.gmra.mrb[0].mxu0 %v1016
  %v1115 = vpop.f32.mrb[0].mxu0
  %v1116 = vadd.f32 %v468, %v1115
  %v1117 = vpop.f32.mrb[0].mxu0
  %v1118 = vadd.f32 %v470, %v1117
  %v1119 = vpop.f32.mrb[0].mxu0
  %v1120 = vadd.f32 %v472, %v1119
  %v1121 = vpop.f32.mrb[0].mxu0
  %v1122 = vadd.f32 %v474, %v1121
  %1123 = vmatprep.mubr.bf16.mxu0 0
  %1124 = vmatmul.mubr.bf16.gmra.mrb[0].mxu0 %v1018
  %v1125 = vpop.f32.mrb[0].mxu0
  %v1126 = vadd.f32 %v478, %v1125
  %v1127 = vpop.f32.mrb[0].mxu0
  %v1128 = vadd.f32 %v480, %v1127
  %v1129 = vpop.f32.mrb[0].mxu0
  %v1130 = vadd.f32 %v482, %v1129
  %v1131 = vpop.f32.mrb[0].mxu0
  %v1132 = vadd.f32 %v484, %v1131
  %1133 = vmatprep.mubr.bf16.mxu0 0
  %1134 = vmatmul.mubr.bf16.gmra.mrb[0].mxu0 %v1020
  %v1135 = vpop.f32.mrb[0].mxu0
  %v1136 = vadd.f32 %v488, %v1135
  %v1137 = vpop.f32.mrb[0].mxu0
  %v1138 = vadd.f32 %v490, %v1137
  %v1139 = vpop.f32.mrb[0].mxu0
  %v1140 = vadd.f32 %v492, %v1139
  %v1141 = vpop.f32.mrb[0].mxu0
  %v1142 = vadd.f32 %v494, %v1141
  %1143 = vmatprep.mubr.bf16.mxu0 0
  %1144 = vmatmul.mubr.bf16.gmra.mrb[0].mxu0 %v1022
  %v1145 = vpop.f32.mrb[0].mxu0
  %v1146 = vadd.f32 %v498, %v1145
  %v1147 = vpop.f32.mrb[0].mxu0
  %v1148 = vadd.f32 %v500, %v1147
  %v1149 = vpop.f32.mrb[0].mxu0
  %v1150 = vadd.f32 %v502, %v1149
  %v1151 = vpop.f32.mrb[0].mxu0
  %v1152 = vadd.f32 %v504, %v1151
  %1153 = vmatprep.mubr.bf16.mxu0 0
  %1154 = vmatmul.mubr.bf16.gmra.mrb[0].mxu0 %v1025
  %v1155 = vpop.f32.mrb[0].mxu0
  %v1156 = vadd.f32 %v508, %v1155
  %v1157 = vpop.f32.mrb[0].mxu0
  %v1158 = vadd.f32 %v510, %v1157
  %v1159 = vpop.f32.mrb[0].mxu0
  %v1160 = vadd.f32 %v512, %v1159
  %v1161 = vpop.f32.mrb[0].mxu0
  %v1162 = vadd.f32 %v514, %v1161
  %1163 = vdwg.mxu0
  %1164 = vmatprep.subr.bf16.mxu0 %v957
  %1165 = vmatpush1.bf16.msra.mxu0 %v956
  %1166 = vmatprep.subr.bf16.mxu0 %v965
  %1167 = vmatpush1.bf16.msra.mxu0 %v964
  %1168 = vmatprep.subr.bf16.mxu0 %v973
  %1169 = vmatpush1.bf16.msra.mxu0 %v972
  %1170 = vmatprep.subr.bf16.mxu0 %v1037
  %1171 = vmatpush1.bf16.msra.mxu0 %v1034
  %1172 = vmatprep.subr.bf16.mxu0 0
  %1173 = vmatpush1.bf16.msra.mxu0 0
  %1174 = vmatprep.subr.bf16.mxu0 0
  %1175 = vmatpush1.bf16.msra.mxu0 0
  %1176 = vmatprep.subr.bf16.mxu0 0
  %1177 = vmatpush1.bf16.msra.mxu0 0
  %1178 = vmatprep.subr.bf16.mxu0 0
  %1179 = vmatpush1.bf16.msra.mxu0 0
  %1180 = vmatprep.subr.bf16.mxu0 0
  %1181 = vmatpush1.bf16.msra.mxu0 0
  %1182 = vmatprep.subr.bf16.mxu0 0
  %1183 = vmatpush1.bf16.msra.mxu0 0
  %1184 = vmatprep.subr.bf16.mxu0 0
  %1185 = vmatpush1.bf16.msra.mxu0 0
  %1186 = vmatprep.subr.bf16.mxu0 0
  %1187 = vmatpush1.bf16.msra.mxu0 0
  %1188 = vmatprep.subr.bf16.mxu0 0
  %1189 = vmatpush1.bf16.msra.mxu0 0
  %1190 = vmatprep.subr.bf16.mxu0 0
  %1191 = vmatpush1.bf16.msra.mxu0 0
  %1192 = vmatprep.subr.bf16.mxu0 0
  %1193 = vmatpush1.bf16.msra.mxu0 0
  %1194 = vmatprep.subr.bf16.mxu0 0
  %1195 = vmatpush1.bf16.msra.mxu0 0
  %1196 = vmatprep.mubr.bf16.mxu0 0
  %1197 = vmatmul.mubr.bf16.gmra.mrb[0].mxu0 %v1010
  %v1198 = vpop.f32.mrb[0].mxu0
  %v1199 = vadd.f32 %v551, %v1198
  %v1200 = vpop.f32.mrb[0].mxu0
  %v1201 = vadd.f32 %v553, %v1200
  %v1202 = vpop.f32.mrb[0].mxu0
  %v1203 = vadd.f32 %v555, %v1202
  %v1204 = vpop.f32.mrb[0].mxu0
  %v1205 = vadd.f32 %v557, %v1204
  %1206 = vmatprep.mubr.bf16.mxu0 0
  %1207 = vmatmul.mubr.bf16.gmra.mrb[0].mxu0 %v1012
  %v1208 = vpop.f32.mrb[0].mxu0
  %v1209 = vadd.f32 %v561, %v1208
  %v1210 = vpop.f32.mrb[0].mxu0
  %v1211 = vadd.f32 %v563, %v1210
  %v1212 = vpop.f32.mrb[0].mxu0
  %v1213 = vadd.f32 %v565, %v1212
  %v1214 = vpop.f32.mrb[0].mxu0
  %v1215 = vadd.f32 %v567, %v1214
  %1216 = vmatprep.mubr.bf16.mxu0 0
  %1217 = vmatmul.mubr.bf16.gmra.mrb[0].mxu0 %v1014
  %v1218 = vpop.f32.mrb[0].mxu0
  %v1219 = vadd.f32 %v571, %v1218
  %v1220 = vpop.f32.mrb[0].mxu0
  %v1221 = vadd.f32 %v573, %v1220
  %v1222 = vpop.f32.mrb[0].mxu0
  %v1223 = vadd.f32 %v575, %v1222
  %v1224 = vpop.f32.mrb[0].mxu0
  %v1225 = vadd.f32 %v577, %v1224
  %1226 = vmatprep.mubr.bf16.mxu0 0
  %1227 = vmatmul.mubr.bf16.gmra.mrb[0].mxu0 %v1016
  %v1228 = vpop.f32.mrb[0].mxu0
  %v1229 = vadd.f32 %v581, %v1228
  %v1230 = vpop.f32.mrb[0].mxu0
  %v1231 = vadd.f32 %v583, %v1230
  %v1232 = vpop.f32.mrb[0].mxu0
  %v1233 = vadd.f32 %v585, %v1232
  %v1234 = vpop.f32.mrb[0].mxu0
  %v1235 = vadd.f32 %v587, %v1234
  %1236 = vmatprep.mubr.bf16.mxu0 0
  %1237 = vmatmul.mubr.bf16.gmra.mrb[0].mxu0 %v1018
  %v1238 = vpop.f32.mrb[0].mxu0
  %v1239 = vadd.f32 %v591, %v1238
  %v1240 = vpop.f32.mrb[0].mxu0
  %v1241 = vadd.f32 %v593, %v1240
  %v1242 = vpop.f32.mrb[0].mxu0
  %v1243 = vadd.f32 %v595, %v1242
  %v1244 = vpop.f32.mrb[0].mxu0
  %v1245 = vadd.f32 %v597, %v1244
  %1246 = vmatprep.mubr.bf16.mxu0 0
  %1247 = vmatmul.mubr.bf16.gmra.mrb[0].mxu0 %v1020
  %v1248 = vpop.f32.mrb[0].mxu0
  %v1249 = vadd.f32 %v601, %v1248
  %v1250 = vpop.f32.mrb[0].mxu0
  %v1251 = vadd.f32 %v603, %v1250
  %v1252 = vpop.f32.mrb[0].mxu0
  %v1253 = vadd.f32 %v605, %v1252
  %v1254 = vpop.f32.mrb[0].mxu0
  %v1255 = vadd.f32 %v607, %v1254
  %1256 = vmatprep.mubr.bf16.mxu0 0
  %1257 = vmatmul.mubr.bf16.gmra.mrb[0].mxu0 %v1022
  %v1258 = vpop.f32.mrb[0].mxu0
  %v1259 = vadd.f32 %v611, %v1258
  %v1260 = vpop.f32.mrb[0].mxu0
  %v1261 = vadd.f32 %v613, %v1260
  %v1262 = vpop.f32.mrb[0].mxu0
  %v1263 = vadd.f32 %v615, %v1262
  %v1264 = vpop.f32.mrb[0].mxu0
  %v1265 = vadd.f32 %v617, %v1264
  %1266 = vmatprep.mubr.bf16.mxu0 0
  %1267 = vmatmul.mubr.bf16.gmra.mrb[0].mxu0 %v1025
  %v1268 = vpop.f32.mrb[0].mxu0
  %v1269 = vadd.f32 %v621, %v1268
  %v1270 = vpop.f32.mrb[0].mxu0
  %v1271 = vadd.f32 %v623, %v1270
  %v1272 = vpop.f32.mrb[0].mxu0
  %v1273 = vadd.f32 %v625, %v1272
  %v1274 = vpop.f32.mrb[0].mxu0
  %v1275 = vadd.f32 %v627, %v1274
  %1276 = vdwg.mxu0
  %1277 = vmatprep.subr.bf16.mxu0 %v959
  %1278 = vmatpush1.bf16.msra.mxu0 %v958
  %1279 = vmatprep.subr.bf16.mxu0 %v967
  %1280 = vmatpush1.bf16.msra.mxu0 %v966
  %1281 = vmatprep.subr.bf16.mxu0 %v975
  %1282 = vmatpush1.bf16.msra.mxu0 %v974
  %1283 = vmatprep.subr.bf16.mxu0 %v1043
  %1284 = vmatpush1.bf16.msra.mxu0 %v1040
  %1285 = vmatprep.subr.bf16.mxu0 0
  %1286 = vmatpush1.bf16.msra.mxu0 0
  %1287 = vmatprep.subr.bf16.mxu0 0
  %1288 = vmatpush1.bf16.msra.mxu0 0
  %1289 = vmatprep.subr.bf16.mxu0 0
  %1290 = vmatpush1.bf16.msra.mxu0 0
  %1291 = vmatprep.subr.bf16.mxu0 0
  %1292 = vmatpush1.bf16.msra.mxu0 0
  %1293 = vmatprep.subr.bf16.mxu0 0
  %1294 = vmatpush1.bf16.msra.mxu0 0
  %1295 = vmatprep.subr.bf16.mxu0 0
  %1296 = vmatpush1.bf16.msra.mxu0 0
  %1297 = vmatprep.subr.bf16.mxu0 0
  %1298 = vmatpush1.bf16.msra.mxu0 0
  %1299 = vmatprep.subr.bf16.mxu0 0
  %1300 = vmatpush1.bf16.msra.mxu0 0
  %1301 = vmatprep.subr.bf16.mxu0 0
  %1302 = vmatpush1.bf16.msra.mxu0 0
  %1303 = vmatprep.subr.bf16.mxu0 0
  %1304 = vmatpush1.bf16.msra.mxu0 0
  %1305 = vmatprep.subr.bf16.mxu0 0
  %1306 = vmatpush1.bf16.msra.mxu0 0
  %1307 = vmatprep.subr.bf16.mxu0 0
  %1308 = vmatpush1.bf16.msra.mxu0 0
  %1309 = vmatprep.mubr.bf16.mxu0 0
  %1310 = vmatmul.mubr.bf16.gmra.mrb[0].mxu0 %v1010
  %v1311 = vpop.f32.mrb[0].mxu0
  %v1312 = vadd.f32 %v664, %v1311
  %v1313 = vpop.f32.mrb[0].mxu0
  %v1314 = vadd.f32 %v666, %v1313
  %v1315 = vpop.f32.mrb[0].mxu0
  %v1316 = vadd.f32 %v668, %v1315
  %v1317 = vpop.f32.mrb[0].mxu0
  %v1318 = vadd.f32 %v670, %v1317
  %1319 = vmatprep.mubr.bf16.mxu0 0
  %1320 = vmatmul.mubr.bf16.gmra.mrb[0].mxu0 %v1012
  %v1321 = vpop.f32.mrb[0].mxu0
  %v1322 = vadd.f32 %v674, %v1321
  %v1323 = vpop.f32.mrb[0].mxu0
  %v1324 = vadd.f32 %v676, %v1323
  %v1325 = vpop.f32.mrb[0].mxu0
  %v1326 = vadd.f32 %v678, %v1325
  %v1327 = vpop.f32.mrb[0].mxu0
  %v1328 = vadd.f32 %v680, %v1327
  %1329 = vmatprep.mubr.bf16.mxu0 0
  %1330 = vmatmul.mubr.bf16.gmra.mrb[0].mxu0 %v1014
  %v1331 = vpop.f32.mrb[0].mxu0
  %v1332 = vadd.f32 %v684, %v1331
  %v1333 = vpop.f32.mrb[0].mxu0
  %v1334 = vadd.f32 %v686, %v1333
  %v1335 = vpop.f32.mrb[0].mxu0
  %v1336 = vadd.f32 %v688, %v1335
  %v1337 = vpop.f32.mrb[0].mxu0
  %v1338 = vadd.f32 %v690, %v1337
  %1339 = vmatprep.mubr.bf16.mxu0 0
  %1340 = vmatmul.mubr.bf16.gmra.mrb[0].mxu0 %v1016
  %v1341 = vpop.f32.mrb[0].mxu0
  %v1342 = vadd.f32 %v694, %v1341
  %v1343 = vpop.f32.mrb[0].mxu0
  %v1344 = vadd.f32 %v696, %v1343
  %v1345 = vpop.f32.mrb[0].mxu0
  %v1346 = vadd.f32 %v698, %v1345
  %v1347 = vpop.f32.mrb[0].mxu0
  %v1348 = vadd.f32 %v700, %v1347
  %1349 = vmatprep.mubr.bf16.mxu0 0
  %1350 = vmatmul.mubr.bf16.gmra.mrb[0].mxu0 %v1018
  %v1351 = vpop.f32.mrb[0].mxu0
  %v1352 = vadd.f32 %v704, %v1351
  %v1353 = vpop.f32.mrb[0].mxu0
  %v1354 = vadd.f32 %v706, %v1353
  %v1355 = vpop.f32.mrb[0].mxu0
  %v1356 = vadd.f32 %v708, %v1355
  %v1357 = vpop.f32.mrb[0].mxu0
  %v1358 = vadd.f32 %v710, %v1357
  %1359 = vmatprep.mubr.bf16.mxu0 0
  %1360 = vmatmul.mubr.bf16.gmra.mrb[0].mxu0 %v1020
  %v1361 = vpop.f32.mrb[0].mxu0
  %v1362 = vadd.f32 %v714, %v1361
  %v1363 = vpop.f32.mrb[0].mxu0
  %v1364 = vadd.f32 %v716, %v1363
  %v1365 = vpop.f32.mrb[0].mxu0
  %v1366 = vadd.f32 %v718, %v1365
  %v1367 = vpop.f32.mrb[0].mxu0
  %v1368 = vadd.f32 %v720, %v1367
  %1369 = vmatprep.mubr.bf16.mxu0 0
  %1370 = vmatmul.mubr.bf16.gmra.mrb[0].mxu0 %v1022
  %v1371 = vpop.f32.mrb[0].mxu0
  %v1372 = vadd.f32 %v724, %v1371
  %v1373 = vpop.f32.mrb[0].mxu0
  %v1374 = vadd.f32 %v726, %v1373
  %v1375 = vpop.f32.mrb[0].mxu0
  %v1376 = vadd.f32 %v728, %v1375
  %v1377 = vpop.f32.mrb[0].mxu0
  %v1378 = vadd.f32 %v730, %v1377
  %1379 = vmatprep.mubr.bf16.mxu0 0
  %1380 = vmatmul.mubr.bf16.gmra.mrb[0].mxu0 %v1025
  %v1381 = vpop.f32.mrb[0].mxu0
  %v1382 = vadd.f32 %v734, %v1381
  %v1383 = vpop.f32.mrb[0].mxu0
  %v1384 = vadd.f32 %v736, %v1383
  %v1385 = vpop.f32.mrb[0].mxu0
  %v1386 = vadd.f32 %v738, %v1385
  %v1387 = vpop.f32.mrb[0].mxu0
  %v1388 = vadd.f32 %v740, %v1387
  %1389 = vdwg.mxu0
  %1390 = vmatprep.subr.bf16.mxu0 %v961
  %1391 = vmatpush1.bf16.msra.mxu0 %v960
  %1392 = vmatprep.subr.bf16.mxu0 %v969
  %1393 = vmatpush1.bf16.msra.mxu0 %v968
  %1394 = vmatprep.subr.bf16.mxu0 %v977
  %1395 = vmatpush1.bf16.msra.mxu0 %v976
  %1396 = vmatprep.subr.bf16.mxu0 %v1049
  %1397 = vmatpush1.bf16.msra.mxu0 %v1046
  %1398 = vmatprep.subr.bf16.mxu0 0
  %1399 = vmatpush1.bf16.msra.mxu0 0
  %1400 = vmatprep.subr.bf16.mxu0 0
  %1401 = vmatpush1.bf16.msra.mxu0 0
  %1402 = vmatprep.subr.bf16.mxu0 0
  %1403 = vmatpush1.bf16.msra.mxu0 0
  %1404 = vmatprep.subr.bf16.mxu0 0
  %1405 = vmatpush1.bf16.msra.mxu0 0
  %1406 = vmatprep.subr.bf16.mxu0 0
  %1407 = vmatpush1.bf16.msra.mxu0 0
  %1408 = vmatprep.subr.bf16.mxu0 0
  %1409 = vmatpush1.bf16.msra.mxu0 0
  %1410 = vmatprep.subr.bf16.mxu0 0
  %1411 = vmatpush1.bf16.msra.mxu0 0
  %1412 = vmatprep.subr.bf16.mxu0 0
  %1413 = vmatpush1.bf16.msra.mxu0 0
  %1414 = vmatprep.subr.bf16.mxu0 0
  %1415 = vmatpush1.bf16.msra.mxu0 0
  %1416 = vmatprep.subr.bf16.mxu0 0
  %1417 = vmatpush1.bf16.msra.mxu0 0
  %1418 = vmatprep.subr.bf16.mxu0 0
  %1419 = vmatpush1.bf16.msra.mxu0 0
  %1420 = vmatprep.subr.bf16.mxu0 0
  %1421 = vmatpush1.bf16.msra.mxu0 0
  %1422 = vmatprep.mubr.bf16.mxu0 0
  %1423 = vmatmul.mubr.bf16.gmra.mrb[0].mxu0 %v1010
  %v1424 = vpop.f32.mrb[0].mxu0
  %v1425 = vadd.f32 %v777, %v1424
  %v1426 = vpop.f32.mrb[0].mxu0
  %v1427 = vadd.f32 %v779, %v1426
  %v1428 = vpop.f32.mrb[0].mxu0
  %v1429 = vadd.f32 %v781, %v1428
  %v1430 = vpop.f32.mrb[0].mxu0
  %v1431 = vadd.f32 %v783, %v1430
  %1432 = vmatprep.mubr.bf16.mxu0 0
  %1433 = vmatmul.mubr.bf16.gmra.mrb[0].mxu0 %v1012
  %v1434 = vpop.f32.mrb[0].mxu0
  %v1435 = vadd.f32 %v787, %v1434
  %v1436 = vpop.f32.mrb[0].mxu0
  %v1437 = vadd.f32 %v789, %v1436
  %v1438 = vpop.f32.mrb[0].mxu0
  %v1439 = vadd.f32 %v791, %v1438
  %v1440 = vpop.f32.mrb[0].mxu0
  %v1441 = vadd.f32 %v793, %v1440
  %1442 = vmatprep.mubr.bf16.mxu0 0
  %1443 = vmatmul.mubr.bf16.gmra.mrb[0].mxu0 %v1014
  %v1444 = vpop.f32.mrb[0].mxu0
  %v1445 = vadd.f32 %v797, %v1444
  %v1446 = vpop.f32.mrb[0].mxu0
  %v1447 = vadd.f32 %v799, %v1446
  %v1448 = vpop.f32.mrb[0].mxu0
  %v1449 = vadd.f32 %v801, %v1448
  %v1450 = vpop.f32.mrb[0].mxu0
  %v1451 = vadd.f32 %v803, %v1450
  %1452 = vmatprep.mubr.bf16.mxu0 0
  %1453 = vmatmul.mubr.bf16.gmra.mrb[0].mxu0 %v1016
  %v1454 = vpop.f32.mrb[0].mxu0
  %v1455 = vadd.f32 %v807, %v1454
  %v1456 = vpop.f32.mrb[0].mxu0
  %v1457 = vadd.f32 %v809, %v1456
  %v1458 = vpop.f32.mrb[0].mxu0
  %v1459 = vadd.f32 %v811, %v1458
  %v1460 = vpop.f32.mrb[0].mxu0
  %v1461 = vadd.f32 %v813, %v1460
  %1462 = vmatprep.mubr.bf16.mxu0 0
  %1463 = vmatmul.mubr.bf16.gmra.mrb[0].mxu0 %v1018
  %v1464 = vpop.f32.mrb[0].mxu0
  %v1465 = vadd.f32 %v817, %v1464
  %v1466 = vpop.f32.mrb[0].mxu0
  %v1467 = vadd.f32 %v819, %v1466
  %v1468 = vpop.f32.mrb[0].mxu0
  %v1469 = vadd.f32 %v821, %v1468
  %v1470 = vpop.f32.mrb[0].mxu0
  %v1471 = vadd.f32 %v823, %v1470
  %1472 = vmatprep.mubr.bf16.mxu0 0
  %1473 = vmatmul.mubr.bf16.gmra.mrb[0].mxu0 %v1020
  %v1474 = vpop.f32.mrb[0].mxu0
  %v1475 = vadd.f32 %v827, %v1474
  %v1476 = vpop.f32.mrb[0].mxu0
  %v1477 = vadd.f32 %v829, %v1476
  %v1478 = vpop.f32.mrb[0].mxu0
  %v1479 = vadd.f32 %v831, %v1478
  %v1480 = vpop.f32.mrb[0].mxu0
  %v1481 = vadd.f32 %v833, %v1480
  %1482 = vmatprep.mubr.bf16.mxu0 0
  %1483 = vmatmul.mubr.bf16.gmra.mrb[0].mxu0 %v1022
  %v1484 = vpop.f32.mrb[0].mxu0
  %v1485 = vadd.f32 %v837, %v1484
  %v1486 = vpop.f32.mrb[0].mxu0
  %v1487 = vadd.f32 %v839, %v1486
  %v1488 = vpop.f32.mrb[0].mxu0
  %v1489 = vadd.f32 %v841, %v1488
  %v1490 = vpop.f32.mrb[0].mxu0
  %v1491 = vadd.f32 %v843, %v1490
  %1492 = vmatprep.mubr.bf16.mxu0 0
  %1493 = vmatmul.mubr.bf16.gmra.mrb[0].mxu0 %v1025
  %v1494 = vpop.f32.mrb[0].mxu0
  %v1495 = vadd.f32 %v847, %v1494
  %v1496 = vpop.f32.mrb[0].mxu0
  %v1497 = vadd.f32 %v849, %v1496
  %v1498 = vpop.f32.mrb[0].mxu0
  %v1499 = vadd.f32 %v851, %v1498
  %v1500 = vpop.f32.mrb[0].mxu0
  %v1501 = vadd.f32 %v853, %v1500
  %1502 = vdwg.mxu0
  %v1503 = vld [vmem:[%s2] sm:$0xff]
  %v1505 = vlaneseq
  %v1506 = vshrl.u32 %v1505, 7
  %v1507 = vsub.s32 0, %v1506
  %v1508 = vrot.slane %v1503, %v1507
  %v1509 = vlaneseq
  %v1510 = vshrl.u32 %v1509, 7
  %v1511 = vsub.s32 1, %v1510
  %v1512 = vrot.slane %v1503, %v1511
  %v1513 = vlaneseq
  %v1514 = vshrl.u32 %v1513, 7
  %v1515 = vsub.s32 2, %v1514
  %v1516 = vrot.slane %v1503, %v1515
  %v1517 = vlaneseq
  %v1518 = vshrl.u32 %v1517, 7
  %v1519 = vsub.s32 3, %v1518
  %v1520 = vrot.slane %v1503, %v1519
  %v1521 = vlaneseq
  %v1522 = vshrl.u32 %v1521, 7
  %v1523 = vsub.s32 4, %v1522
  %v1524 = vrot.slane %v1503, %v1523
  %v1525 = vlaneseq
  %v1526 = vshrl.u32 %v1525, 7
  %v1527 = vsub.s32 5, %v1526
  %v1528 = vrot.slane %v1503, %v1527
  %v1529 = vlaneseq
  %v1530 = vshrl.u32 %v1529, 7
  %v1531 = vsub.s32 6, %v1530
  %v1532 = vrot.slane %v1503, %v1531
  %v1533 = vlaneseq
  %v1534 = vshrl.u32 %v1533, 7
  %v1535 = vsub.s32 7, %v1534
  %v1536 = vrot.slane %v1503, %v1535
  %v1545 = vadd.f32 %v1086, %v1508
  %v1546 = vadd.f32 %v1088, %v1512
  %v1547 = vadd.f32 %v1199, %v1516
  %v1548 = vadd.f32 %v1201, %v1520
  %v1549 = vadd.f32 %v1312, %v1524
  %v1550 = vadd.f32 %v1314, %v1528
  %v1551 = vadd.f32 %v1425, %v1532
  %v1552 = vadd.f32 %v1427, %v1536
  %v1553 = vadd.f32 %v1090, %v1508
  %v1554 = vadd.f32 %v1092, %v1512
  %v1555 = vadd.f32 %v1203, %v1516
  %v1556 = vadd.f32 %v1205, %v1520
  %v1557 = vadd.f32 %v1316, %v1524
  %v1558 = vadd.f32 %v1318, %v1528
  %v1559 = vadd.f32 %v1429, %v1532
  %v1560 = vadd.f32 %v1431, %v1536
  %v1561 = vadd.f32 %v1096, %v1508
  %v1562 = vadd.f32 %v1098, %v1512
  %v1563 = vadd.f32 %v1209, %v1516
  %v1564 = vadd.f32 %v1211, %v1520
  %v1565 = vadd.f32 %v1322, %v1524
  %v1566 = vadd.f32 %v1324, %v1528
  %v1567 = vadd.f32 %v1435, %v1532
  %v1568 = vadd.f32 %v1437, %v1536
  %v1569 = vadd.f32 %v1100, %v1508
  %v1570 = vadd.f32 %v1102, %v1512
  %v1571 = vadd.f32 %v1213, %v1516
  %v1572 = vadd.f32 %v1215, %v1520
  %v1573 = vadd.f32 %v1326, %v1524
  %v1574 = vadd.f32 %v1328, %v1528
  %v1575 = vadd.f32 %v1439, %v1532
  %v1576 = vadd.f32 %v1441, %v1536
  %v1577 = vadd.f32 %v1106, %v1508
  %v1578 = vadd.f32 %v1108, %v1512
  %v1579 = vadd.f32 %v1219, %v1516
  %v1580 = vadd.f32 %v1221, %v1520
  %v1581 = vadd.f32 %v1332, %v1524
  %v1582 = vadd.f32 %v1334, %v1528
  %v1583 = vadd.f32 %v1445, %v1532
  %v1584 = vadd.f32 %v1447, %v1536
  %v1585 = vadd.f32 %v1110, %v1508
  %v1586 = vadd.f32 %v1112, %v1512
  %v1587 = vadd.f32 %v1223, %v1516
  %v1588 = vadd.f32 %v1225, %v1520
  %v1589 = vadd.f32 %v1336, %v1524
  %v1590 = vadd.f32 %v1338, %v1528
  %v1591 = vadd.f32 %v1449, %v1532
  %v1592 = vadd.f32 %v1451, %v1536
  %v1593 = vadd.f32 %v1116, %v1508
  %v1594 = vadd.f32 %v1118, %v1512
  %v1595 = vadd.f32 %v1229, %v1516
  %v1596 = vadd.f32 %v1231, %v1520
  %v1597 = vadd.f32 %v1342, %v1524
  %v1598 = vadd.f32 %v1344, %v1528
  %v1599 = vadd.f32 %v1455, %v1532
  %v1600 = vadd.f32 %v1457, %v1536
  %v1601 = vadd.f32 %v1120, %v1508
  %v1602 = vadd.f32 %v1122, %v1512
  %v1603 = vadd.f32 %v1233, %v1516
  %v1604 = vadd.f32 %v1235, %v1520
  %v1605 = vadd.f32 %v1346, %v1524
  %v1606 = vadd.f32 %v1348, %v1528
  %v1607 = vadd.f32 %v1459, %v1532
  %v1608 = vadd.f32 %v1461, %v1536
  %v1609 = vadd.f32 %v1126, %v1508
  %v1610 = vadd.f32 %v1128, %v1512
  %v1611 = vadd.f32 %v1239, %v1516
  %v1612 = vadd.f32 %v1241, %v1520
  %v1613 = vadd.f32 %v1352, %v1524
  %v1614 = vadd.f32 %v1354, %v1528
  %v1615 = vadd.f32 %v1465, %v1532
  %v1616 = vadd.f32 %v1467, %v1536
  %v1617 = vadd.f32 %v1130, %v1508
  %v1618 = vadd.f32 %v1132, %v1512
  %v1619 = vadd.f32 %v1243, %v1516
  %v1620 = vadd.f32 %v1245, %v1520
  %v1621 = vadd.f32 %v1356, %v1524
  %v1622 = vadd.f32 %v1358, %v1528
  %v1623 = vadd.f32 %v1469, %v1532
  %v1624 = vadd.f32 %v1471, %v1536
  %v1625 = vadd.f32 %v1136, %v1508
  %v1626 = vadd.f32 %v1138, %v1512
  %v1627 = vadd.f32 %v1249, %v1516
  %v1628 = vadd.f32 %v1251, %v1520
  %v1629 = vadd.f32 %v1362, %v1524
  %v1630 = vadd.f32 %v1364, %v1528
  %v1631 = vadd.f32 %v1475, %v1532
  %v1632 = vadd.f32 %v1477, %v1536
  %v1633 = vadd.f32 %v1140, %v1508
  %v1634 = vadd.f32 %v1142, %v1512
  %v1635 = vadd.f32 %v1253, %v1516
  %v1636 = vadd.f32 %v1255, %v1520
  %v1637 = vadd.f32 %v1366, %v1524
  %v1638 = vadd.f32 %v1368, %v1528
  %v1639 = vadd.f32 %v1479, %v1532
  %v1640 = vadd.f32 %v1481, %v1536
  %v1641 = vadd.f32 %v1146, %v1508
  %v1642 = vadd.f32 %v1148, %v1512
  %v1643 = vadd.f32 %v1259, %v1516
  %v1644 = vadd.f32 %v1261, %v1520
  %v1645 = vadd.f32 %v1372, %v1524
  %v1646 = vadd.f32 %v1374, %v1528
  %v1647 = vadd.f32 %v1485, %v1532
  %v1648 = vadd.f32 %v1487, %v1536
  %v1649 = vadd.f32 %v1150, %v1508
  %v1650 = vadd.f32 %v1152, %v1512
  %v1651 = vadd.f32 %v1263, %v1516
  %v1652 = vadd.f32 %v1265, %v1520
  %v1653 = vadd.f32 %v1376, %v1524
  %v1654 = vadd.f32 %v1378, %v1528
  %v1655 = vadd.f32 %v1489, %v1532
  %v1656 = vadd.f32 %v1491, %v1536
  %v1657 = vadd.f32 %v1156, %v1508
  %v1658 = vadd.f32 %v1158, %v1512
  %v1659 = vadd.f32 %v1269, %v1516
  %v1660 = vadd.f32 %v1271, %v1520
  %v1661 = vadd.f32 %v1382, %v1524
  %v1662 = vadd.f32 %v1384, %v1528
  %v1663 = vadd.f32 %v1495, %v1532
  %v1664 = vadd.f32 %v1497, %v1536
  %v1665 = vadd.f32 %v1160, %v1508
  %v1666 = vadd.f32 %v1162, %v1512
  %v1667 = vadd.f32 %v1273, %v1516
  %v1668 = vadd.f32 %v1275, %v1520
  %v1669 = vadd.f32 %v1386, %v1524
  %v1670 = vadd.f32 %v1388, %v1528
  %v1671 = vadd.f32 %v1499, %v1532
  %v1672 = vadd.f32 %v1501, %v1536
  %v1673 = vmax.f32 %v1545, 0.0
  %v1674 = vmax.f32 %v1546, 0.0
  %v1675 = vmax.f32 %v1547, 0.0
  %v1676 = vmax.f32 %v1548, 0.0
  %v1677 = vmax.f32 %v1549, 0.0
  %v1678 = vmax.f32 %v1550, 0.0
  %v1679 = vmax.f32 %v1551, 0.0
  %v1680 = vmax.f32 %v1552, 0.0
  %v1681 = vmax.f32 %v1553, 0.0
  %v1682 = vmax.f32 %v1554, 0.0
  %v1683 = vmax.f32 %v1555, 0.0
  %v1684 = vmax.f32 %v1556, 0.0
  %v1685 = vmax.f32 %v1557, 0.0
  %v1686 = vmax.f32 %v1558, 0.0
  %v1687 = vmax.f32 %v1559, 0.0
  %v1688 = vmax.f32 %v1560, 0.0
  %v1689 = vmax.f32 %v1561, 0.0
  %v1690 = vmax.f32 %v1562, 0.0
  %v1691 = vmax.f32 %v1563, 0.0
  %v1692 = vmax.f32 %v1564, 0.0
  %v1693 = vmax.f32 %v1565, 0.0
  %v1694 = vmax.f32 %v1566, 0.0
  %v1695 = vmax.f32 %v1567, 0.0
  %v1696 = vmax.f32 %v1568, 0.0
  %v1697 = vmax.f32 %v1569, 0.0
  %v1698 = vmax.f32 %v1570, 0.0
  %v1699 = vmax.f32 %v1571, 0.0
  %v1700 = vmax.f32 %v1572, 0.0
  %v1701 = vmax.f32 %v1573, 0.0
  %v1702 = vmax.f32 %v1574, 0.0
  %v1703 = vmax.f32 %v1575, 0.0
  %v1704 = vmax.f32 %v1576, 0.0
  %v1705 = vmax.f32 %v1577, 0.0
  %v1706 = vmax.f32 %v1578, 0.0
  %v1707 = vmax.f32 %v1579, 0.0
  %v1708 = vmax.f32 %v1580, 0.0
  %v1709 = vmax.f32 %v1581, 0.0
  %v1710 = vmax.f32 %v1582, 0.0
  %v1711 = vmax.f32 %v1583, 0.0
  %v1712 = vmax.f32 %v1584, 0.0
  %v1713 = vmax.f32 %v1585, 0.0
  %v1714 = vmax.f32 %v1586, 0.0
  %v1715 = vmax.f32 %v1587, 0.0
  %v1716 = vmax.f32 %v1588, 0.0
  %v1717 = vmax.f32 %v1589, 0.0
  %v1718 = vmax.f32 %v1590, 0.0
  %v1719 = vmax.f32 %v1591, 0.0
  %v1720 = vmax.f32 %v1592, 0.0
  %v1721 = vmax.f32 %v1593, 0.0
  %v1722 = vmax.f32 %v1594, 0.0
  %v1723 = vmax.f32 %v1595, 0.0
  %v1724 = vmax.f32 %v1596, 0.0
  %v1725 = vmax.f32 %v1597, 0.0
  %v1726 = vmax.f32 %v1598, 0.0
  %v1727 = vmax.f32 %v1599, 0.0
  %v1728 = vmax.f32 %v1600, 0.0
  %v1729 = vmax.f32 %v1601, 0.0
  %v1730 = vmax.f32 %v1602, 0.0
  %v1731 = vmax.f32 %v1603, 0.0
  %v1732 = vmax.f32 %v1604, 0.0
  %v1733 = vmax.f32 %v1605, 0.0
  %v1734 = vmax.f32 %v1606, 0.0
  %v1735 = vmax.f32 %v1607, 0.0
  %v1736 = vmax.f32 %v1608, 0.0
  %v1737 = vmax.f32 %v1609, 0.0
  %v1738 = vmax.f32 %v1610, 0.0
  %v1739 = vmax.f32 %v1611, 0.0
  %v1740 = vmax.f32 %v1612, 0.0
  %v1741 = vmax.f32 %v1613, 0.0
  %v1742 = vmax.f32 %v1614, 0.0
  %v1743 = vmax.f32 %v1615, 0.0
  %v1744 = vmax.f32 %v1616, 0.0
  %v1745 = vmax.f32 %v1617, 0.0
  %v1746 = vmax.f32 %v1618, 0.0
  %v1747 = vmax.f32 %v1619, 0.0
  %v1748 = vmax.f32 %v1620, 0.0
  %v1749 = vmax.f32 %v1621, 0.0
  %v1750 = vmax.f32 %v1622, 0.0
  %v1751 = vmax.f32 %v1623, 0.0
  %v1752 = vmax.f32 %v1624, 0.0
  %v1753 = vmax.f32 %v1625, 0.0
  %v1754 = vmax.f32 %v1626, 0.0
  %v1755 = vmax.f32 %v1627, 0.0
  %v1756 = vmax.f32 %v1628, 0.0
  %v1757 = vmax.f32 %v1629, 0.0
  %v1758 = vmax.f32 %v1630, 0.0
  %v1759 = vmax.f32 %v1631, 0.0
  %v1760 = vmax.f32 %v1632, 0.0
  %v1761 = vmax.f32 %v1633, 0.0
  %v1762 = vmax.f32 %v1634, 0.0
  %v1763 = vmax.f32 %v1635, 0.0
  %v1764 = vmax.f32 %v1636, 0.0
  %v1765 = vmax.f32 %v1637, 0.0
  %v1766 = vmax.f32 %v1638, 0.0
  %v1767 = vmax.f32 %v1639, 0.0
  %v1768 = vmax.f32 %v1640, 0.0
  %v1769 = vmax.f32 %v1641, 0.0
  %v1770 = vmax.f32 %v1642, 0.0
  %v1771 = vmax.f32 %v1643, 0.0
  %v1772 = vmax.f32 %v1644, 0.0
  %v1773 = vmax.f32 %v1645, 0.0
  %v1774 = vmax.f32 %v1646, 0.0
  %v1775 = vmax.f32 %v1647, 0.0
  %v1776 = vmax.f32 %v1648, 0.0
  %v1777 = vmax.f32 %v1649, 0.0
  %v1778 = vmax.f32 %v1650, 0.0
  %v1779 = vmax.f32 %v1651, 0.0
  %v1780 = vmax.f32 %v1652, 0.0
  %v1781 = vmax.f32 %v1653, 0.0
  %v1782 = vmax.f32 %v1654, 0.0
  %v1783 = vmax.f32 %v1655, 0.0
  %v1784 = vmax.f32 %v1656, 0.0
  %v1785 = vmax.f32 %v1657, 0.0
  %v1786 = vmax.f32 %v1658, 0.0
  %v1787 = vmax.f32 %v1659, 0.0
  %v1788 = vmax.f32 %v1660, 0.0
  %v1789 = vmax.f32 %v1661, 0.0
  %v1790 = vmax.f32 %v1662, 0.0
  %v1791 = vmax.f32 %v1663, 0.0
  %v1792 = vmax.f32 %v1664, 0.0
  %v1793 = vmax.f32 %v1665, 0.0
  %v1794 = vmax.f32 %v1666, 0.0
  %v1795 = vmax.f32 %v1667, 0.0
  %v1796 = vmax.f32 %v1668, 0.0
  %v1797 = vmax.f32 %v1669, 0.0
  %v1798 = vmax.f32 %v1670, 0.0
  %v1799 = vmax.f32 %v1671, 0.0
  %v1800 = vmax.f32 %v1672, 0.0
  %v1801 = vmax.f32 %v1673, %v1675
  %v1802 = vmax.f32 %v1674, %v1676
  %v1803 = vmax.f32 %v1681, %v1683
  %v1804 = vmax.f32 %v1682, %v1684
  %v1805 = vmax.f32 %v1689, %v1691
  %v1806 = vmax.f32 %v1690, %v1692
  %v1807 = vmax.f32 %v1697, %v1699
  %v1808 = vmax.f32 %v1698, %v1700
  %v1809 = vmax.f32 %v1705, %v1707
  %v1810 = vmax.f32 %v1706, %v1708
  %v1811 = vmax.f32 %v1713, %v1715
  %v1812 = vmax.f32 %v1714, %v1716
  %v1813 = vmax.f32 %v1721, %v1723
  %v1814 = vmax.f32 %v1722, %v1724
  %v1815 = vmax.f32 %v1729, %v1731
  %v1816 = vmax.f32 %v1730, %v1732
  %v1817 = vmax.f32 %v1737, %v1739
  %v1818 = vmax.f32 %v1738, %v1740
  %v1819 = vmax.f32 %v1745, %v1747
  %v1820 = vmax.f32 %v1746, %v1748
  %v1821 = vmax.f32 %v1753, %v1755
  %v1822 = vmax.f32 %v1754, %v1756
  %v1823 = vmax.f32 %v1761, %v1763
  %v1824 = vmax.f32 %v1762, %v1764
  %v1825 = vmax.f32 %v1769, %v1771
  %v1826 = vmax.f32 %v1770, %v1772
  %v1827 = vmax.f32 %v1777, %v1779
  %v1828 = vmax.f32 %v1778, %v1780
  %v1829 = vmax.f32 %v1785, %v1787
  %v1830 = vmax.f32 %v1786, %v1788
  %v1831 = vmax.f32 %v1793, %v1795
  %v1832 = vmax.f32 %v1794, %v1796
  %v1833 = vmax.f32 %v1677, %v1679
  %v1834 = vmax.f32 %v1678, %v1680
  %v1835 = vmax.f32 %v1685, %v1687
  %v1836 = vmax.f32 %v1686, %v1688
  %v1837 = vmax.f32 %v1693, %v1695
  %v1838 = vmax.f32 %v1694, %v1696
  %v1839 = vmax.f32 %v1701, %v1703
  %v1840 = vmax.f32 %v1702, %v1704
  %v1841 = vmax.f32 %v1709, %v1711
  %v1842 = vmax.f32 %v1710, %v1712
  %v1843 = vmax.f32 %v1717, %v1719
  %v1844 = vmax.f32 %v1718, %v1720
  %v1845 = vmax.f32 %v1725, %v1727
  %v1846 = vmax.f32 %v1726, %v1728
  %v1847 = vmax.f32 %v1733, %v1735
  %v1848 = vmax.f32 %v1734, %v1736
  %v1849 = vmax.f32 %v1741, %v1743
  %v1850 = vmax.f32 %v1742, %v1744
  %v1851 = vmax.f32 %v1749, %v1751
  %v1852 = vmax.f32 %v1750, %v1752
  %v1853 = vmax.f32 %v1757, %v1759
  %v1854 = vmax.f32 %v1758, %v1760
  %v1855 = vmax.f32 %v1765, %v1767
  %v1856 = vmax.f32 %v1766, %v1768
  %v1857 = vmax.f32 %v1773, %v1775
  %v1858 = vmax.f32 %v1774, %v1776
  %v1859 = vmax.f32 %v1781, %v1783
  %v1860 = vmax.f32 %v1782, %v1784
  %v1861 = vmax.f32 %v1789, %v1791
  %v1862 = vmax.f32 %v1790, %v1792
  %v1863 = vmax.f32 %v1797, %v1799
  %v1864 = vmax.f32 %v1798, %v1800
  %v1865 = vmax.f32 %v1801, %v1833
  %v1866 = vmax.f32 %v1802, %v1834
  %v1867 = vmax.f32 %v1803, %v1835
  %v1868 = vmax.f32 %v1804, %v1836
  %v1869 = vmax.f32 %v1805, %v1837
  %v1870 = vmax.f32 %v1806, %v1838
  %v1871 = vmax.f32 %v1807, %v1839
  %v1872 = vmax.f32 %v1808, %v1840
  %v1873 = vmax.f32 %v1809, %v1841
  %v1874 = vmax.f32 %v1810, %v1842
  %v1875 = vmax.f32 %v1811, %v1843
  %v1876 = vmax.f32 %v1812, %v1844
  %v1877 = vmax.f32 %v1813, %v1845
  %v1878 = vmax.f32 %v1814, %v1846
  %v1879 = vmax.f32 %v1815, %v1847
  %v1880 = vmax.f32 %v1816, %v1848
  %v1881 = vmax.f32 %v1817, %v1849
  %v1882 = vmax.f32 %v1818, %v1850
  %v1883 = vmax.f32 %v1819, %v1851
  %v1884 = vmax.f32 %v1820, %v1852
  %v1885 = vmax.f32 %v1821, %v1853
  %v1886 = vmax.f32 %v1822, %v1854
  %v1887 = vmax.f32 %v1823, %v1855
  %v1888 = vmax.f32 %v1824, %v1856
  %v1889 = vmax.f32 %v1825, %v1857
  %v1890 = vmax.f32 %v1826, %v1858
  %v1891 = vmax.f32 %v1827, %v1859
  %v1892 = vmax.f32 %v1828, %v1860
  %v1893 = vmax.f32 %v1829, %v1861
  %v1894 = vmax.f32 %v1830, %v1862
  %v1895 = vmax.f32 %v1831, %v1863
  %v1896 = vmax.f32 %v1832, %v1864
  %v1897 = vpack.c.bf16 %v1867, %v1865
  %v1898 = vpack.c.bf16 %v1868, %v1866
  %v1899 = vpack.c.bf16 %v1871, %v1869
  %v1900 = vpack.c.bf16 %v1872, %v1870
  %v1901 = vpack.c.bf16 %v1875, %v1873
  %v1902 = vpack.c.bf16 %v1876, %v1874
  %v1903 = vpack.c.bf16 %v1879, %v1877
  %v1904 = vpack.c.bf16 %v1880, %v1878
  %v1905 = vpack.c.bf16 %v1883, %v1881
  %v1906 = vpack.c.bf16 %v1884, %v1882
  %v1907 = vpack.c.bf16 %v1887, %v1885
  %v1908 = vpack.c.bf16 %v1888, %v1886
  %v1909 = vpack.c.bf16 %v1891, %v1889
  %v1910 = vpack.c.bf16 %v1892, %v1890
  %v1911 = vpack.c.bf16 %v1895, %v1893
  %v1912 = vpack.c.bf16 %v1896, %v1894
  %v1929 = vunpack.c.l.b16 %v1897
  %v1930 = vunpack.c.l.b16 %v1898
  %v1931 = vunpack.c.h.b16 %v1897
  %v1932 = vunpack.c.h.b16 %v1898
  %v1933 = vunpack.c.l.b16 %v1899
  %v1934 = vunpack.c.l.b16 %v1900
  %v1935 = vunpack.c.h.b16 %v1899
  %v1936 = vunpack.c.h.b16 %v1900
  %v1937 = vunpack.c.l.b16 %v1901
  %v1938 = vunpack.c.l.b16 %v1902
  %v1939 = vunpack.c.h.b16 %v1901
  %v1940 = vunpack.c.h.b16 %v1902
  %v1941 = vunpack.c.l.b16 %v1903
  %v1942 = vunpack.c.l.b16 %v1904
  %v1943 = vunpack.c.h.b16 %v1903
  %v1944 = vunpack.c.h.b16 %v1904
  %v1945 = vunpack.c.l.b16 %v1905
  %v1946 = vunpack.c.l.b16 %v1906
  %v1947 = vunpack.c.h.b16 %v1905
  %v1948 = vunpack.c.h.b16 %v1906
  %v1949 = vunpack.c.l.b16 %v1907
  %v1950 = vunpack.c.l.b16 %v1908
  %v1951 = vunpack.c.h.b16 %v1907
  %v1952 = vunpack.c.h.b16 %v1908
  %v1953 = vunpack.c.l.b16 %v1909
  %v1954 = vunpack.c.l.b16 %v1910
  %v1955 = vunpack.c.h.b16 %v1909
  %v1956 = vunpack.c.h.b16 %v1910
  %v1957 = vunpack.c.l.b16 %v1911
  %v1958 = vunpack.c.l.b16 %v1912
  %v1959 = vunpack.c.h.b16 %v1911
  %v1960 = vunpack.c.h.b16 %v1912
  %v1961 = vpack.c.b16 %v1930, %v1929
  %v1962 = vpack.c.b16 %v1932, %v1931
  %v1963 = vpack.c.b16 %v1934, %v1933
  %v1964 = vpack.c.b16 %v1936, %v1935
  %v1965 = vpack.c.b16 %v1938, %v1937
  %v1966 = vpack.c.b16 %v1940, %v1939
  %v1967 = vpack.c.b16 %v1942, %v1941
  %v1968 = vpack.c.b16 %v1944, %v1943
  %v1969 = vpack.c.b16 %v1946, %v1945
  %v1970 = vpack.c.b16 %v1948, %v1947
  %v1971 = vpack.c.b16 %v1950, %v1949
  %v1972 = vpack.c.b16 %v1952, %v1951
  %v1973 = vpack.c.b16 %v1954, %v1953
  %v1974 = vpack.c.b16 %v1956, %v1955
  %v1975 = vpack.c.b16 %v1958, %v1957
  %v1976 = vpack.c.b16 %v1960, %v1959
  %1993 = vst [vmem:[%s3] sm:$0xff] %v1961
  %1994 = vst [vmem:[%s3 + $0x8] sm:$0xff] %v1962
  %1995 = vst [vmem:[%s3 + $0x10] sm:$0xff] %v1963
  %1996 = vst [vmem:[%s3 + $0x18] sm:$0xff] %v1964
  %1997 = vst [vmem:[%s3 + $0x20] sm:$0xff] %v1965
  %1998 = vst [vmem:[%s3 + $0x28] sm:$0xff] %v1966
  %1999 = vst [vmem:[%s3 + $0x30] sm:$0xff] %v1967
  %2000 = vst [vmem:[%s3 + $0x38] sm:$0xff] %v1968
  %2001 = vst [vmem:[%s3 + $0x40] sm:$0xff] %v1969
  %2002 = vst [vmem:[%s3 + $0x48] sm:$0xff] %v1970
  %2003 = vst [vmem:[%s3 + $0x50] sm:$0xff] %v1971
  %2004 = vst [vmem:[%s3 + $0x58] sm:$0xff] %v1972
  %2005 = vst [vmem:[%s3 + $0x60] sm:$0xff] %v1973
  %2006 = vst [vmem:[%s3 + $0x68] sm:$0xff] %v1974
  %2007 = vst [vmem:[%s3 + $0x70] sm:$0xff] %v1975
  %2008 = vst [vmem:[%s3 + $0x78] sm:$0x77] %v1976
  // Predicated region
  $region14: #{cnn_forward.4} parent=0 // pred_check
    _
  $region15: #{cnn_forward.4} parent=0 // pred_check_branch
    %2010 = sbr.rel (0) target = $region17
  $region16: #{cnn_forward.4} parent=0 // pred_region
    _
  $region17: #{cnn_forward.4} parent=0 // pred_fallthru
    _
  // Predicated region
  $region18: #{cnn_forward.4} parent=0 // pred_check
    _
  $region19: #{cnn_forward.4} parent=0 // pred_check_branch
    %2012 = sbr.rel (0) target = $region21
  $region20: #{cnn_forward.4} parent=0 // pred_region
    _
  $region21: #{cnn_forward.4} parent=0 // pred_fallthru
    _

// kernel: cnn_forward.5
$region0: #{cnn_forward.5}
  #allocation0 [shape = 'u32[]', space=smem, size = 0x4, offset = 0x4, fixed_abs, tag = 'smem constant byte address 0x4 - core index']
  #allocation1 [shape = 'u32[144,128]{1,0:T(1,128)}', space=vmem, size = 0x12000, scoped, tag = 'internal scratch']
  %s0 = inlined_call_operand.vmem [shape: bf16[576,64], index: 0, kind: input, shape index: {}]
  %s1 = inlined_call_operand.vmem [shape: bf16[4,64,128], index: 1, kind: input, shape index: {}]
  %s2 = inlined_call_operand.vmem [shape: f32[1,128], index: 2, kind: input, shape index: {}]
  %s3 = inlined_call_operand.vmem [shape: bf16[576,32], index: 3, kind: output, shape index: {}]
  %s4 = sld [smem:[#allocation0]]
  $region22: #{cnn_forward.5} parent=0
    _
  %s6 = ssub.s32 1, %s4
  %s7 = scalar_select 0, %s6, %s4
  // Predicated region
  $region2: #{cnn_forward.5} parent=0 // pred_check
    _
  $region3: #{cnn_forward.5} parent=0 // pred_check_branch
    %9 = sbr.rel (0) target = $region5
  $region4: #{cnn_forward.5} parent=0 // pred_region
    _
  $region5: #{cnn_forward.5} parent=0 // pred_fallthru
    _
  // Predicated region
  $region6: #{cnn_forward.5} parent=0 // pred_check
    _
  $region7: #{cnn_forward.5} parent=0 // pred_check_branch
    %11 = sbr.rel (0) target = $region9
  $region8: #{cnn_forward.5} parent=0 // pred_region
    _
  $region9: #{cnn_forward.5} parent=0 // pred_fallthru
    _
  // Predicated region
  $region10: #{cnn_forward.5} parent=0 // pred_check
    _
  $region11: #{cnn_forward.5} parent=0 // pred_check_branch
    %13 = sbr.rel (0) target = $region13
  $region12: #{cnn_forward.5} parent=0 // pred_region
    _
  $region13: #{cnn_forward.5} parent=0 // pred_fallthru
    _
  %v15 = vld [vmem:[%s0] sm:$0xf]
  %v16 = vld [vmem:[%s0 + $0x4] sm:$0xf]
  %v17 = vld [vmem:[%s0 + $0x8] sm:$0xf]
  %v18 = vld [vmem:[%s0 + $0xc] sm:$0xf]
  %v19 = vld [vmem:[%s0 + $0x10] sm:$0xf]
  %v20 = vld [vmem:[%s0 + $0x14] sm:$0xf]
  %v21 = vld [vmem:[%s0 + $0x18] sm:$0xf]
  %v22 = vld [vmem:[%s0 + $0x1c] sm:$0xf]
  %v23 = vld [vmem:[%s0 + $0x20] sm:$0xf]
  %v24 = vld [vmem:[%s0 + $0x24] sm:$0xf]
  %v25 = vld [vmem:[%s0 + $0x28] sm:$0xf]
  %v26 = vld [vmem:[%s0 + $0x2c] sm:$0xf]
  %v27 = vld [vmem:[%s0 + $0x30] sm:$0xf]
  %v28 = vld [vmem:[%s0 + $0x34] sm:$0xf]
  %v29 = vld [vmem:[%s0 + $0x38] sm:$0xf]
  %v30 = vld [vmem:[%s0 + $0x3c] sm:$0xf]
  %v31 = vld [vmem:[%s0 + $0x40] sm:$0xf]
  %v32 = vld [vmem:[%s0 + $0x44] sm:$0xf]
  %v33 = vld [vmem:[%s0 + $0x48] sm:$0xf]
  %v34 = vld [vmem:[%s0 + $0x4c] sm:$0xf]
  %v35 = vld [vmem:[%s0 + $0x50] sm:$0xf]
  %v36 = vld [vmem:[%s0 + $0x54] sm:$0xf]
  %v37 = vld [vmem:[%s0 + $0x58] sm:$0xf]
  %v38 = vld [vmem:[%s0 + $0x5c] sm:$0xf]
  %v39 = vld [vmem:[%s0 + $0x60] sm:$0xf]
  %v40 = vld [vmem:[%s0 + $0x64] sm:$0xf]
  %v41 = vld [vmem:[%s0 + $0x68] sm:$0xf]
  %v42 = vld [vmem:[%s0 + $0x6c] sm:$0xf]
  %v43 = vld [vmem:[%s0 + $0x70] sm:$0xf]
  %v44 = vld [vmem:[%s0 + $0x74] sm:$0xf]
  %v45 = vld [vmem:[%s0 + $0x78] sm:$0xf]
  %v46 = vld [vmem:[%s0 + $0x7c] sm:$0xf]
  %v47 = vld [vmem:[%s0 + $0x80] sm:$0xf]
  %v48 = vld [vmem:[%s0 + $0x84] sm:$0xf]
  %v49 = vld [vmem:[%s0 + $0x88] sm:$0xf]
  %v50 = vld [vmem:[%s0 + $0x8c] sm:$0xf]
  %v51 = vld [vmem:[%s0 + $0x90] sm:$0xf]
  %v52 = vld [vmem:[%s0 + $0x94] sm:$0xf]
  %v53 = vld [vmem:[%s0 + $0x98] sm:$0xf]
  %v54 = vld [vmem:[%s0 + $0x9c] sm:$0xf]
  %v55 = vld [vmem:[%s0 + $0xa0] sm:$0xf]
  %v56 = vld [vmem:[%s0 + $0xa4] sm:$0xf]
  %v57 = vld [vmem:[%s0 + $0xa8] sm:$0xf]
  %v58 = vld [vmem:[%s0 + $0xac] sm:$0xf]
  %v59 = vld [vmem:[%s0 + $0xb0] sm:$0xf]
  %v60 = vld [vmem:[%s0 + $0xb4] sm:$0xf]
  %v61 = vld [vmem:[%s0 + $0xb8] sm:$0xf]
  %v62 = vld [vmem:[%s0 + $0xbc] sm:$0xf]
  %v63 = vld [vmem:[%s0 + $0xc0] sm:$0xf]
  %v64 = vld [vmem:[%s0 + $0xc4] sm:$0xf]
  %v65 = vld [vmem:[%s0 + $0xc8] sm:$0xf]
  %v66 = vld [vmem:[%s0 + $0xcc] sm:$0xf]
  %v67 = vld [vmem:[%s0 + $0xd0] sm:$0xf]
  %v68 = vld [vmem:[%s0 + $0xd4] sm:$0xf]
  %v69 = vld [vmem:[%s0 + $0xd8] sm:$0xf]
  %v70 = vld [vmem:[%s0 + $0xdc] sm:$0xf]
  %v71 = vld [vmem:[%s0 + $0xe0] sm:$0xf]
  %v72 = vld [vmem:[%s0 + $0xe4] sm:$0xf]
  %v73 = vld [vmem:[%s0 + $0xe8] sm:$0xf]
  %v74 = vld [vmem:[%s0 + $0xec] sm:$0xf]
  %v75 = vld [vmem:[%s0 + $0xf0] sm:$0xf]
  %v76 = vld [vmem:[%s0 + $0xf4] sm:$0xf]
  %v77 = vld [vmem:[%s0 + $0xf8] sm:$0xf]
  %v78 = vld [vmem:[%s0 + $0xfc] sm:$0xf]
  %v79 = vld [vmem:[%s0 + $0x100] sm:$0xf]
  %v80 = vld [vmem:[%s0 + $0x104] sm:$0xf]
  %v81 = vld [vmem:[%s0 + $0x108] sm:$0xf]
  %v82 = vld [vmem:[%s0 + $0x10c] sm:$0xf]
  %v83 = vld [vmem:[%s0 + $0x110] sm:$0xf]
  %v84 = vld [vmem:[%s0 + $0x114] sm:$0xf]
  %v85 = vld [vmem:[%s1] sm:$0xf]
  %v86 = vld [vmem:[%s1 + $0x4] sm:$0xf]
  %v87 = vld [vmem:[%s1 + $0x8] sm:$0xf]
  %v88 = vld [vmem:[%s1 + $0xc] sm:$0xf]
  %v89 = vld [vmem:[%s1 + $0x10] sm:$0xf]
  %v90 = vld [vmem:[%s1 + $0x14] sm:$0xf]
  %v91 = vld [vmem:[%s1 + $0x18] sm:$0xf]
  %v92 = vld [vmem:[%s1 + $0x1c] sm:$0xf]
  %v93 = vld [vmem:[%s0 + $0x118] sm:$0x1]
  %s94 = scalar_lea.vmem %s1, 32
  %v95 = vld [vmem:[%s94] sm:$0xf]
  %v96 = vld [vmem:[%s94 + $0x4] sm:$0xf]
  %v97 = vld [vmem:[%s94 + $0x8] sm:$0xf]
  %v98 = vld [vmem:[%s94 + $0xc] sm:$0xf]
  %v99 = vld [vmem:[%s94 + $0x10] sm:$0xf]
  %v100 = vld [vmem:[%s94 + $0x14] sm:$0xf]
  %v101 = vld [vmem:[%s94 + $0x18] sm:$0xf]
  %v102 = vld [vmem:[%s94 + $0x1c] sm:$0xf]
  %v174 = vunpack.c.l.b16 %v15
  %v175 = vunpack.c.l.b16 %v16
  %v176 = vunpack.c.l.b16 %v17
  %v177 = vunpack.c.l.b16 %v18
  %v178 = vunpack.c.l.b16 %v19
  %v179 = vunpack.c.l.b16 %v20
  %v180 = vunpack.c.l.b16 %v21
  %v181 = vunpack.c.l.b16 %v22
  %v182 = vunpack.c.l.b16 %v23
  %v183 = vunpack.c.l.b16 %v24
  %v184 = vunpack.c.l.b16 %v25
  %v185 = vunpack.c.l.b16 %v26
  %v186 = vunpack.c.l.b16 %v27
  %v187 = vunpack.c.l.b16 %v28
  %v188 = vunpack.c.l.b16 %v29
  %v189 = vunpack.c.l.b16 %v30
  %v190 = vunpack.c.l.b16 %v31
  %v191 = vunpack.c.l.b16 %v32
  %v192 = vunpack.c.l.b16 %v33
  %v193 = vunpack.c.l.b16 %v34
  %v194 = vunpack.c.l.b16 %v35
  %v195 = vunpack.c.l.b16 %v36
  %v196 = vunpack.c.l.b16 %v37
  %v197 = vunpack.c.l.b16 %v38
  %v198 = vunpack.c.l.b16 %v39
  %v199 = vunpack.c.l.b16 %v40
  %v200 = vunpack.c.l.b16 %v41
  %v201 = vunpack.c.l.b16 %v42
  %v202 = vunpack.c.l.b16 %v43
  %v203 = vunpack.c.l.b16 %v44
  %v204 = vunpack.c.l.b16 %v45
  %v205 = vunpack.c.l.b16 %v46
  %v206 = vunpack.c.l.b16 %v47
  %v207 = vunpack.c.l.b16 %v48
  %v208 = vunpack.c.l.b16 %v49
  %v209 = vunpack.c.l.b16 %v50
  %v210 = vunpack.c.l.b16 %v51
  %v211 = vunpack.c.l.b16 %v52
  %v212 = vunpack.c.l.b16 %v53
  %v213 = vunpack.c.l.b16 %v54
  %v214 = vunpack.c.l.b16 %v55
  %v215 = vunpack.c.l.b16 %v56
  %v216 = vunpack.c.l.b16 %v57
  %v217 = vunpack.c.l.b16 %v58
  %v218 = vunpack.c.l.b16 %v59
  %v219 = vunpack.c.l.b16 %v60
  %v220 = vunpack.c.l.b16 %v61
  %v221 = vunpack.c.l.b16 %v62
  %v222 = vunpack.c.l.b16 %v63
  %v223 = vunpack.c.l.b16 %v64
  %v224 = vunpack.c.l.b16 %v65
  %v225 = vunpack.c.l.b16 %v66
  %v226 = vunpack.c.l.b16 %v67
  %v227 = vunpack.c.l.b16 %v68
  %v228 = vunpack.c.l.b16 %v69
  %v229 = vunpack.c.l.b16 %v70
  %v230 = vunpack.c.l.b16 %v71
  %v231 = vunpack.c.l.b16 %v72
  %v232 = vunpack.c.l.b16 %v73
  %v233 = vunpack.c.l.b16 %v74
  %v234 = vunpack.c.l.b16 %v75
  %v235 = vunpack.c.l.b16 %v76
  %v236 = vunpack.c.l.b16 %v77
  %v237 = vunpack.c.l.b16 %v78
  %v238 = vunpack.c.l.b16 %v79
  %v239 = vunpack.c.l.b16 %v80
  %v240 = vunpack.c.l.b16 %v81
  %v241 = vunpack.c.l.b16 %v82
  %v242 = vunpack.c.l.b16 %v83
  %v243 = vunpack.c.l.b16 %v84
  %v244 = vunpack.c.l.b16 %v93
  %v245 = vpack.c.b16 %v175, %v174
  %v246 = vpack.c.b16 %v177, %v176
  %v247 = vpack.c.b16 %v179, %v178
  %v248 = vpack.c.b16 %v181, %v180
  %v249 = vpack.c.b16 %v183, %v182
  %v250 = vpack.c.b16 %v185, %v184
  %v251 = vpack.c.b16 %v187, %v186
  %v252 = vpack.c.b16 %v189, %v188
  %v253 = vpack.c.b16 %v191, %v190
  %v254 = vpack.c.b16 %v193, %v192
  %v255 = vpack.c.b16 %v195, %v194
  %v256 = vpack.c.b16 %v197, %v196
  %v257 = vpack.c.b16 %v199, %v198
  %v258 = vpack.c.b16 %v201, %v200
  %v259 = vpack.c.b16 %v203, %v202
  %v260 = vpack.c.b16 %v205, %v204
  %v261 = vpack.c.b16 %v207, %v206
  %v262 = vpack.c.b16 %v209, %v208
  %v263 = vpack.c.b16 %v211, %v210
  %v264 = vpack.c.b16 %v213, %v212
  %v265 = vpack.c.b16 %v215, %v214
  %v266 = vpack.c.b16 %v217, %v216
  %v267 = vpack.c.b16 %v219, %v218
  %v268 = vpack.c.b16 %v221, %v220
  %v269 = vpack.c.b16 %v223, %v222
  %v270 = vpack.c.b16 %v225, %v224
  %v271 = vpack.c.b16 %v227, %v226
  %v272 = vpack.c.b16 %v229, %v228
  %v273 = vpack.c.b16 %v231, %v230
  %v274 = vpack.c.b16 %v233, %v232
  %v275 = vpack.c.b16 %v235, %v234
  %v276 = vpack.c.b16 %v237, %v236
  %v277 = vpack.c.b16 %v239, %v238
  %v278 = vpack.c.b16 %v241, %v240
  %v279 = vpack.c.b16 %v243, %v242
  %v280 = vpack.c.b16 %v244, %v244
  %vm281 = vsmask.f32 7424
  %v283 = vshrl.u32 %v245, 16
  %v285 = vshll.u32 %v245, 16
  %v287 = vrot.slane %v285, 1
  %v288 = vor.u32 %v283, %v287
  %v290 = vshll.u32 %v246, 16
  %v292 = vrot.slane %v290, 1
  %v293 = vsel %vm281, %v288, %v292
  %v294 = vshrl.u32 %v246, 16
  %v296 = vor.u32 %v294, %v292
  %v298 = vshll.u32 %v247, 16
  %v300 = vrot.slane %v298, 1
  %v301 = vsel %vm281, %v296, %v300
  %v302 = vshrl.u32 %v247, 16
  %v304 = vor.u32 %v302, %v300
  %v306 = vshll.u32 %v248, 16
  %v308 = vrot.slane %v306, 1
  %v309 = vsel %vm281, %v304, %v308
  %v310 = vshrl.u32 %v248, 16
  %v312 = vor.u32 %v310, %v308
  %v314 = vshll.u32 %v249, 16
  %v316 = vrot.slane %v314, 1
  %v317 = vsel %vm281, %v312, %v316
  %v318 = vshrl.u32 %v249, 16
  %v320 = vor.u32 %v318, %v316
  %v322 = vshll.u32 %v250, 16
  %v324 = vrot.slane %v322, 1
  %v325 = vsel %vm281, %v320, %v324
  %v326 = vshrl.u32 %v250, 16
  %v328 = vor.u32 %v326, %v324
  %v330 = vshll.u32 %v251, 16
  %v332 = vrot.slane %v330, 1
  %v333 = vsel %vm281, %v328, %v332
  %v334 = vshrl.u32 %v251, 16
  %v336 = vor.u32 %v334, %v332
  %v338 = vshll.u32 %v252, 16
  %v340 = vrot.slane %v338, 1
  %v341 = vsel %vm281, %v336, %v340
  %v342 = vshrl.u32 %v252, 16
  %v344 = vor.u32 %v342, %v340
  %v346 = vshll.u32 %v253, 16
  %v348 = vrot.slane %v346, 1
  %v349 = vsel %vm281, %v344, %v348
  %v350 = vshrl.u32 %v253, 16
  %v352 = vor.u32 %v350, %v348
  %v354 = vshll.u32 %v254, 16
  %v356 = vrot.slane %v354, 1
  %v357 = vsel %vm281, %v352, %v356
  %v358 = vshrl.u32 %v254, 16
  %v360 = vor.u32 %v358, %v356
  %v362 = vshll.u32 %v255, 16
  %v364 = vrot.slane %v362, 1
  %v365 = vsel %vm281, %v360, %v364
  %v366 = vshrl.u32 %v255, 16
  %v368 = vor.u32 %v366, %v364
  %v370 = vshll.u32 %v256, 16
  %v372 = vrot.slane %v370, 1
  %v373 = vsel %vm281, %v368, %v372
  %v374 = vshrl.u32 %v256, 16
  %v376 = vor.u32 %v374, %v372
  %v378 = vshll.u32 %v257, 16
  %v380 = vrot.slane %v378, 1
  %v381 = vsel %vm281, %v376, %v380
  %v382 = vshrl.u32 %v257, 16
  %v384 = vor.u32 %v382, %v380
  %v386 = vshll.u32 %v258, 16
  %v388 = vrot.slane %v386, 1
  %v389 = vsel %vm281, %v384, %v388
  %v390 = vshrl.u32 %v258, 16
  %v392 = vor.u32 %v390, %v388
  %v394 = vshll.u32 %v259, 16
  %v396 = vrot.slane %v394, 1
  %v397 = vsel %vm281, %v392, %v396
  %v398 = vshrl.u32 %v259, 16
  %v400 = vor.u32 %v398, %v396
  %v402 = vshll.u32 %v260, 16
  %v404 = vrot.slane %v402, 1
  %v405 = vsel %vm281, %v400, %v404
  %v406 = vshrl.u32 %v260, 16
  %v408 = vor.u32 %v406, %v404
  %v410 = vshll.u32 %v261, 16
  %v412 = vrot.slane %v410, 1
  %v413 = vsel %vm281, %v408, %v412
  %v414 = vshrl.u32 %v261, 16
  %v416 = vor.u32 %v414, %v412
  %v418 = vshll.u32 %v262, 16
  %v420 = vrot.slane %v418, 1
  %v421 = vsel %vm281, %v416, %v420
  %v422 = vshrl.u32 %v262, 16
  %v424 = vor.u32 %v422, %v420
  %v426 = vshll.u32 %v263, 16
  %v428 = vrot.slane %v426, 1
  %v429 = vsel %vm281, %v424, %v428
  %v430 = vshrl.u32 %v263, 16
  %v432 = vor.u32 %v430, %v428
  %v434 = vshll.u32 %v264, 16
  %v436 = vrot.slane %v434, 1
  %v437 = vsel %vm281, %v432, %v436
  %v438 = vshrl.u32 %v264, 16
  %v440 = vor.u32 %v438, %v436
  %v442 = vshll.u32 %v265, 16
  %v444 = vrot.slane %v442, 1
  %v445 = vsel %vm281, %v440, %v444
  %v446 = vshrl.u32 %v265, 16
  %v448 = vor.u32 %v446, %v444
  %v450 = vshll.u32 %v266, 16
  %v452 = vrot.slane %v450, 1
  %v453 = vsel %vm281, %v448, %v452
  %v454 = vshrl.u32 %v266, 16
  %v456 = vor.u32 %v454, %v452
  %v458 = vshll.u32 %v267, 16
  %v460 = vrot.slane %v458, 1
  %v461 = vsel %vm281, %v456, %v460
  %v462 = vshrl.u32 %v267, 16
  %v464 = vor.u32 %v462, %v460
  %v466 = vshll.u32 %v268, 16
  %v468 = vrot.slane %v466, 1
  %v469 = vsel %vm281, %v464, %v468
  %v470 = vshrl.u32 %v268, 16
  %v472 = vor.u32 %v470, %v468
  %v474 = vshll.u32 %v269, 16
  %v476 = vrot.slane %v474, 1
  %v477 = vsel %vm281, %v472, %v476
  %v478 = vshrl.u32 %v269, 16
  %v480 = vor.u32 %v478, %v476
  %v482 = vshll.u32 %v270, 16
  %v484 = vrot.slane %v482, 1
  %v485 = vsel %vm281, %v480, %v484
  %v486 = vshrl.u32 %v270, 16
  %v488 = vor.u32 %v486, %v484
  %v490 = vshll.u32 %v271, 16
  %v492 = vrot.slane %v490, 1
  %v493 = vsel %vm281, %v488, %v492
  %v494 = vshrl.u32 %v271, 16
  %v496 = vor.u32 %v494, %v492
  %v498 = vshll.u32 %v272, 16
  %v500 = vrot.slane %v498, 1
  %v501 = vsel %vm281, %v496, %v500
  %v502 = vshrl.u32 %v272, 16
  %v504 = vor.u32 %v502, %v500
  %v506 = vshll.u32 %v273, 16
  %v508 = vrot.slane %v506, 1
  %v509 = vsel %vm281, %v504, %v508
  %v510 = vshrl.u32 %v273, 16
  %v512 = vor.u32 %v510, %v508
  %v514 = vshll.u32 %v274, 16
  %v516 = vrot.slane %v514, 1
  %v517 = vsel %vm281, %v512, %v516
  %v518 = vshrl.u32 %v274, 16
  %v520 = vor.u32 %v518, %v516
  %v522 = vshll.u32 %v275, 16
  %v524 = vrot.slane %v522, 1
  %v525 = vsel %vm281, %v520, %v524
  %v526 = vshrl.u32 %v275, 16
  %v528 = vor.u32 %v526, %v524
  %v530 = vshll.u32 %v276, 16
  %v532 = vrot.slane %v530, 1
  %v533 = vsel %vm281, %v528, %v532
  %v534 = vshrl.u32 %v276, 16
  %v536 = vor.u32 %v534, %v532
  %v538 = vshll.u32 %v277, 16
  %v540 = vrot.slane %v538, 1
  %v541 = vsel %vm281, %v536, %v540
  %v542 = vshrl.u32 %v277, 16
  %v544 = vor.u32 %v542, %v540
  %v546 = vshll.u32 %v278, 16
  %v548 = vrot.slane %v546, 1
  %v549 = vsel %vm281, %v544, %v548
  %v550 = vshrl.u32 %v278, 16
  %v552 = vor.u32 %v550, %v548
  %v554 = vshll.u32 %v279, 16
  %v556 = vrot.slane %v554, 1
  %v557 = vsel %vm281, %v552, %v556
  %v558 = vshrl.u32 %v279, 16
  %v560 = vor.u32 %v558, %v556
  %v562 = vshll.u32 %v280, 16
  %v564 = vrot.slane %v562, 1
  %v565 = vsel %vm281, %v560, %v564
  %v574 = vunpack.c.l.b16 %v95
  %v575 = vunpack.c.l.b16 %v96
  %v576 = vunpack.c.l.b16 %v97
  %v577 = vunpack.c.l.b16 %v98
  %v578 = vunpack.c.l.b16 %v99
  %v579 = vunpack.c.l.b16 %v100
  %v580 = vunpack.c.l.b16 %v101
  %v581 = vunpack.c.l.b16 %v102
  %v582 = vpack.c.b16 %v575, %v574
  %v583 = vpack.c.b16 %v577, %v576
  %v584 = vpack.c.b16 %v579, %v578
  %v585 = vpack.c.b16 %v581, %v580
  %vm590 = vcmask 523264
  %v592 = vsel %vm590, %v293, 0
  %v595 = vsel %vm590, %v301, 0
  %v598 = vsel %vm590, %v309, 0
  %v601 = vsel %vm590, %v317, 0
  %v604 = vsel %vm590, %v325, 0
  %v607 = vsel %vm590, %v333, 0
  %v610 = vsel %vm590, %v341, 0
  %v613 = vsel %vm590, %v349, 0
  %v616 = vsel %vm590, %v357, 0
  %v619 = vsel %vm590, %v365, 0
  %v622 = vsel %vm590, %v373, 0
  %v625 = vsel %vm590, %v381, 0
  %v628 = vsel %vm590, %v389, 0
  %v631 = vsel %vm590, %v397, 0
  %v634 = vsel %vm590, %v405, 0
  %v637 = vsel %vm590, %v413, 0
  %v640 = vsel %vm590, %v421, 0
  %v643 = vsel %vm590, %v429, 0
  %v646 = vsel %vm590, %v437, 0
  %v649 = vsel %vm590, %v445, 0
  %v652 = vsel %vm590, %v453, 0
  %v655 = vsel %vm590, %v461, 0
  %v658 = vsel %vm590, %v469, 0
  %v661 = vsel %vm590, %v477, 0
  %v664 = vsel %vm590, %v485, 0
  %v667 = vsel %vm590, %v493, 0
  %v670 = vsel %vm590, %v501, 0
  %v673 = vsel %vm590, %v509, 0
  %v676 = vsel %vm590, %v517, 0
  %v679 = vsel %vm590, %v525, 0
  %v682 = vsel %vm590, %v533, 0
  %v685 = vsel %vm590, %v541, 0
  %v688 = vsel %vm590, %v549, 0
  %v691 = vsel %vm590, %v557, 0
  %v694 = vsel %vm590, %v565, 0
  %696 = vmatprep.subr.bf16.mxu0 0
  %697 = vmatpush1.bf16.msra.mxu0 %v582
  %698 = vmatprep.subr.bf16.mxu0 0
  %699 = vmatpush1.bf16.msra.mxu0 %v583
  %700 = vmatprep.subr.bf16.mxu0 0
  %701 = vmatpush1.bf16.msra.mxu0 %v584
  %702 = vmatprep.subr.bf16.mxu0 0
  %703 = vmatpush1.bf16.msra.mxu0 %v585
  %704 = vmatprep.subr.bf16.mxu0 0
  %705 = vmatpush1.bf16.msra.mxu0 0
  %706 = vmatprep.subr.bf16.mxu0 0
  %707 = vmatpush1.bf16.msra.mxu0 0
  %708 = vmatprep.subr.bf16.mxu0 0
  %709 = vmatpush1.bf16.msra.mxu0 0
  %710 = vmatprep.subr.bf16.mxu0 0
  %711 = vmatpush1.bf16.msra.mxu0 0
  %712 = vmatprep.subr.bf16.mxu0 0
  %713 = vmatpush1.bf16.msra.mxu0 0
  %714 = vmatprep.subr.bf16.mxu0 0
  %715 = vmatpush1.bf16.msra.mxu0 0
  %716 = vmatprep.subr.bf16.mxu0 0
  %717 = vmatpush1.bf16.msra.mxu0 0
  %718 = vmatprep.subr.bf16.mxu0 0
  %719 = vmatpush1.bf16.msra.mxu0 0
  %720 = vmatprep.subr.bf16.mxu0 0
  %721 = vmatpush1.bf16.msra.mxu0 0
  %722 = vmatprep.subr.bf16.mxu0 0
  %723 = vmatpush1.bf16.msra.mxu0 0
  %724 = vmatprep.subr.bf16.mxu0 0
  %725 = vmatpush1.bf16.msra.mxu0 0
  %726 = vmatprep.subr.bf16.mxu0 0
  %727 = vmatpush1.bf16.msra.mxu0 0
  %728 = vmatprep.mubr.bf16.mxu0 0
  %729 = vmatmul.mubr.bf16.gmra.mrb[0].mxu0 %v592
  %v730 = vpop.f32.mrb[0].mxu0
  %v731 = vadd.f32 0.0, %v730
  %v732 = vpop.f32.mrb[0].mxu0
  %v733 = vpop.f32.mrb[0].mxu0
  %v734 = vadd.f32 0.0, %v733
  %v735 = vpop.f32.mrb[0].mxu0
  %736 = vmatprep.mubr.bf16.mxu0 0
  %737 = vmatmul.mubr.bf16.gmra.mrb[0].mxu0 %v595
  %v738 = vpop.f32.mrb[0].mxu0
  %v739 = vadd.f32 0.0, %v738
  %v740 = vpop.f32.mrb[0].mxu0
  %v741 = vpop.f32.mrb[0].mxu0
  %v742 = vadd.f32 0.0, %v741
  %v743 = vpop.f32.mrb[0].mxu0
  %744 = vmatprep.mubr.bf16.mxu0 0
  %745 = vmatmul.mubr.bf16.gmra.mrb[0].mxu0 %v598
  %v746 = vpop.f32.mrb[0].mxu0
  %v747 = vadd.f32 0.0, %v746
  %v748 = vpop.f32.mrb[0].mxu0
  %v749 = vpop.f32.mrb[0].mxu0
  %v750 = vadd.f32 0.0, %v749
  %v751 = vpop.f32.mrb[0].mxu0
  %752 = vmatprep.mubr.bf16.mxu0 0
  %753 = vmatmul.mubr.bf16.gmra.mrb[0].mxu0 %v601
  %v754 = vpop.f32.mrb[0].mxu0
  %v755 = vadd.f32 0.0, %v754
  %v756 = vpop.f32.mrb[0].mxu0
  %v757 = vpop.f32.mrb[0].mxu0
  %v758 = vadd.f32 0.0, %v757
  %v759 = vpop.f32.mrb[0].mxu0
  %760 = vmatprep.mubr.bf16.mxu0 0
  %761 = vmatmul.mubr.bf16.gmra.mrb[0].mxu0 %v604
  %v762 = vpop.f32.mrb[0].mxu0
  %v763 = vadd.f32 0.0, %v762
  %v764 = vpop.f32.mrb[0].mxu0
  %v765 = vpop.f32.mrb[0].mxu0
  %v766 = vadd.f32 0.0, %v765
  %v767 = vpop.f32.mrb[0].mxu0
  %768 = vmatprep.mubr.bf16.mxu0 0
  %769 = vmatmul.mubr.bf16.gmra.mrb[0].mxu0 %v607
  %v770 = vpop.f32.mrb[0].mxu0
  %v771 = vadd.f32 0.0, %v770
  %v772 = vpop.f32.mrb[0].mxu0
  %v773 = vpop.f32.mrb[0].mxu0
  %v774 = vadd.f32 0.0, %v773
  %v775 = vpop.f32.mrb[0].mxu0
  %776 = vmatprep.mubr.bf16.mxu0 0
  %777 = vmatmul.mubr.bf16.gmra.mrb[0].mxu0 %v610
  %v778 = vpop.f32.mrb[0].mxu0
  %v779 = vadd.f32 0.0, %v778
  %v780 = vpop.f32.mrb[0].mxu0
  %v781 = vpop.f32.mrb[0].mxu0
  %v782 = vadd.f32 0.0, %v781
  %v783 = vpop.f32.mrb[0].mxu0
  %784 = vmatprep.mubr.bf16.mxu0 0
  %785 = vmatmul.mubr.bf16.gmra.mrb[0].mxu0 %v613
  %v786 = vpop.f32.mrb[0].mxu0
  %v787 = vadd.f32 0.0, %v786
  %v788 = vpop.f32.mrb[0].mxu0
  %v789 = vpop.f32.mrb[0].mxu0
  %v790 = vadd.f32 0.0, %v789
  %v791 = vpop.f32.mrb[0].mxu0
  %792 = vmatprep.mubr.bf16.mxu0 0
  %793 = vmatmul.mubr.bf16.gmra.mrb[0].mxu0 %v616
  %v794 = vpop.f32.mrb[0].mxu0
  %v795 = vadd.f32 0.0, %v794
  %v796 = vpop.f32.mrb[0].mxu0
  %v797 = vpop.f32.mrb[0].mxu0
  %v798 = vadd.f32 0.0, %v797
  %v799 = vpop.f32.mrb[0].mxu0
  %800 = vmatprep.mubr.bf16.mxu0 0
  %801 = vmatmul.mubr.bf16.gmra.mrb[0].mxu0 %v619
  %v802 = vpop.f32.mrb[0].mxu0
  %v803 = vadd.f32 0.0, %v802
  %v804 = vpop.f32.mrb[0].mxu0
  %v805 = vpop.f32.mrb[0].mxu0
  %v806 = vadd.f32 0.0, %v805
  %v807 = vpop.f32.mrb[0].mxu0
  %808 = vmatprep.mubr.bf16.mxu0 0
  %809 = vmatmul.mubr.bf16.gmra.mrb[0].mxu0 %v622
  %v810 = vpop.f32.mrb[0].mxu0
  %v811 = vadd.f32 0.0, %v810
  %v812 = vpop.f32.mrb[0].mxu0
  %v813 = vpop.f32.mrb[0].mxu0
  %v814 = vadd.f32 0.0, %v813
  %v815 = vpop.f32.mrb[0].mxu0
  %816 = vmatprep.mubr.bf16.mxu0 0
  %817 = vmatmul.mubr.bf16.gmra.mrb[0].mxu0 %v625
  %v818 = vpop.f32.mrb[0].mxu0
  %v819 = vadd.f32 0.0, %v818
  %v820 = vpop.f32.mrb[0].mxu0
  %v821 = vpop.f32.mrb[0].mxu0
  %v822 = vadd.f32 0.0, %v821
  %v823 = vpop.f32.mrb[0].mxu0
  %824 = vmatprep.mubr.bf16.mxu0 0
  %825 = vmatmul.mubr.bf16.gmra.mrb[0].mxu0 %v628
  %v826 = vpop.f32.mrb[0].mxu0
  %v827 = vadd.f32 0.0, %v826
  %v828 = vpop.f32.mrb[0].mxu0
  %v829 = vpop.f32.mrb[0].mxu0
  %v830 = vadd.f32 0.0, %v829
  %v831 = vpop.f32.mrb[0].mxu0
  %832 = vmatprep.mubr.bf16.mxu0 0
  %833 = vmatmul.mubr.bf16.gmra.mrb[0].mxu0 %v631
  %v834 = vpop.f32.mrb[0].mxu0
  %v835 = vadd.f32 0.0, %v834
  %v836 = vpop.f32.mrb[0].mxu0
  %v837 = vpop.f32.mrb[0].mxu0
  %v838 = vadd.f32 0.0, %v837
  %v839 = vpop.f32.mrb[0].mxu0
  %840 = vmatprep.mubr.bf16.mxu0 0
  %841 = vmatmul.mubr.bf16.gmra.mrb[0].mxu0 %v634
  %v842 = vpop.f32.mrb[0].mxu0
  %v843 = vadd.f32 0.0, %v842
  %v844 = vpop.f32.mrb[0].mxu0
  %v845 = vpop.f32.mrb[0].mxu0
  %v846 = vadd.f32 0.0, %v845
  %v847 = vpop.f32.mrb[0].mxu0
  %848 = vmatprep.mubr.bf16.mxu0 0
  %849 = vmatmul.mubr.bf16.gmra.mrb[0].mxu0 %v637
  %v850 = vpop.f32.mrb[0].mxu0
  %v851 = vadd.f32 0.0, %v850
  %v852 = vpop.f32.mrb[0].mxu0
  %v853 = vpop.f32.mrb[0].mxu0
  %v854 = vadd.f32 0.0, %v853
  %v855 = vpop.f32.mrb[0].mxu0
  %856 = vmatprep.mubr.bf16.mxu0 0
  %857 = vmatmul.mubr.bf16.gmra.mrb[0].mxu0 %v640
  %v858 = vpop.f32.mrb[0].mxu0
  %v859 = vadd.f32 0.0, %v858
  %v860 = vpop.f32.mrb[0].mxu0
  %v861 = vpop.f32.mrb[0].mxu0
  %v862 = vadd.f32 0.0, %v861
  %v863 = vpop.f32.mrb[0].mxu0
  %864 = vmatprep.mubr.bf16.mxu0 0
  %865 = vmatmul.mubr.bf16.gmra.mrb[0].mxu0 %v643
  %v866 = vpop.f32.mrb[0].mxu0
  %v867 = vadd.f32 0.0, %v866
  %v868 = vpop.f32.mrb[0].mxu0
  %v869 = vpop.f32.mrb[0].mxu0
  %v870 = vadd.f32 0.0, %v869
  %v871 = vpop.f32.mrb[0].mxu0
  %872 = vmatprep.mubr.bf16.mxu0 0
  %873 = vmatmul.mubr.bf16.gmra.mrb[0].mxu0 %v646
  %v874 = vpop.f32.mrb[0].mxu0
  %v875 = vadd.f32 0.0, %v874
  %v876 = vpop.f32.mrb[0].mxu0
  %v877 = vpop.f32.mrb[0].mxu0
  %v878 = vadd.f32 0.0, %v877
  %v879 = vpop.f32.mrb[0].mxu0
  %880 = vmatprep.mubr.bf16.mxu0 0
  %881 = vmatmul.mubr.bf16.gmra.mrb[0].mxu0 %v649
  %v882 = vpop.f32.mrb[0].mxu0
  %v883 = vadd.f32 0.0, %v882
  %v884 = vpop.f32.mrb[0].mxu0
  %v885 = vpop.f32.mrb[0].mxu0
  %v886 = vadd.f32 0.0, %v885
  %v887 = vpop.f32.mrb[0].mxu0
  %888 = vmatprep.mubr.bf16.mxu0 0
  %889 = vmatmul.mubr.bf16.gmra.mrb[0].mxu0 %v652
  %v890 = vpop.f32.mrb[0].mxu0
  %v891 = vadd.f32 0.0, %v890
  %v892 = vpop.f32.mrb[0].mxu0
  %v893 = vpop.f32.mrb[0].mxu0
  %v894 = vadd.f32 0.0, %v893
  %v895 = vpop.f32.mrb[0].mxu0
  %896 = vmatprep.mubr.bf16.mxu0 0
  %897 = vmatmul.mubr.bf16.gmra.mrb[0].mxu0 %v655
  %v898 = vpop.f32.mrb[0].mxu0
  %v899 = vadd.f32 0.0, %v898
  %v900 = vpop.f32.mrb[0].mxu0
  %v901 = vpop.f32.mrb[0].mxu0
  %v902 = vadd.f32 0.0, %v901
  %v903 = vpop.f32.mrb[0].mxu0
  %904 = vmatprep.mubr.bf16.mxu0 0
  %905 = vmatmul.mubr.bf16.gmra.mrb[0].mxu0 %v658
  %v906 = vpop.f32.mrb[0].mxu0
  %v907 = vadd.f32 0.0, %v906
  %v908 = vpop.f32.mrb[0].mxu0
  %v909 = vpop.f32.mrb[0].mxu0
  %v910 = vadd.f32 0.0, %v909
  %v911 = vpop.f32.mrb[0].mxu0
  %912 = vmatprep.mubr.bf16.mxu0 0
  %913 = vmatmul.mubr.bf16.gmra.mrb[0].mxu0 %v661
  %v914 = vpop.f32.mrb[0].mxu0
  %v915 = vadd.f32 0.0, %v914
  %v916 = vpop.f32.mrb[0].mxu0
  %v917 = vpop.f32.mrb[0].mxu0
  %v918 = vadd.f32 0.0, %v917
  %v919 = vpop.f32.mrb[0].mxu0
  %920 = vmatprep.mubr.bf16.mxu0 0
  %921 = vmatmul.mubr.bf16.gmra.mrb[0].mxu0 %v664
  %v922 = vpop.f32.mrb[0].mxu0
  %v923 = vadd.f32 0.0, %v922
  %v924 = vpop.f32.mrb[0].mxu0
  %v925 = vpop.f32.mrb[0].mxu0
  %v926 = vadd.f32 0.0, %v925
  %v927 = vpop.f32.mrb[0].mxu0
  %928 = vmatprep.mubr.bf16.mxu0 0
  %929 = vmatmul.mubr.bf16.gmra.mrb[0].mxu0 %v667
  %v930 = vpop.f32.mrb[0].mxu0
  %v931 = vadd.f32 0.0, %v930
  %v932 = vpop.f32.mrb[0].mxu0
  %v933 = vpop.f32.mrb[0].mxu0
  %v934 = vadd.f32 0.0, %v933
  %v935 = vpop.f32.mrb[0].mxu0
  %936 = vmatprep.mubr.bf16.mxu0 0
  %937 = vmatmul.mubr.bf16.gmra.mrb[0].mxu0 %v670
  %v938 = vpop.f32.mrb[0].mxu0
  %v939 = vadd.f32 0.0, %v938
  %v940 = vpop.f32.mrb[0].mxu0
  %v941 = vpop.f32.mrb[0].mxu0
  %v942 = vadd.f32 0.0, %v941
  %v943 = vpop.f32.mrb[0].mxu0
  %944 = vmatprep.mubr.bf16.mxu0 0
  %945 = vmatmul.mubr.bf16.gmra.mrb[0].mxu0 %v673
  %v946 = vpop.f32.mrb[0].mxu0
  %v947 = vadd.f32 0.0, %v946
  %v948 = vpop.f32.mrb[0].mxu0
  %v949 = vpop.f32.mrb[0].mxu0
  %v950 = vadd.f32 0.0, %v949
  %v951 = vpop.f32.mrb[0].mxu0
  %952 = vmatprep.mubr.bf16.mxu0 0
  %953 = vmatmul.mubr.bf16.gmra.mrb[0].mxu0 %v676
  %v954 = vpop.f32.mrb[0].mxu0
  %v955 = vadd.f32 0.0, %v954
  %v956 = vpop.f32.mrb[0].mxu0
  %v957 = vpop.f32.mrb[0].mxu0
  %v958 = vadd.f32 0.0, %v957
  %v959 = vpop.f32.mrb[0].mxu0
  %960 = vmatprep.mubr.bf16.mxu0 0
  %961 = vmatmul.mubr.bf16.gmra.mrb[0].mxu0 %v679
  %v962 = vpop.f32.mrb[0].mxu0
  %v963 = vadd.f32 0.0, %v962
  %v964 = vpop.f32.mrb[0].mxu0
  %v965 = vpop.f32.mrb[0].mxu0
  %v966 = vadd.f32 0.0, %v965
  %v967 = vpop.f32.mrb[0].mxu0
  %968 = vmatprep.mubr.bf16.mxu0 0
  %969 = vmatmul.mubr.bf16.gmra.mrb[0].mxu0 %v682
  %v970 = vpop.f32.mrb[0].mxu0
  %v971 = vadd.f32 0.0, %v970
  %v972 = vpop.f32.mrb[0].mxu0
  %v973 = vpop.f32.mrb[0].mxu0
  %v974 = vadd.f32 0.0, %v973
  %v975 = vpop.f32.mrb[0].mxu0
  %976 = vmatprep.mubr.bf16.mxu0 0
  %977 = vmatmul.mubr.bf16.gmra.mrb[0].mxu0 %v685
  %v978 = vpop.f32.mrb[0].mxu0
  %v979 = vadd.f32 0.0, %v978
  %v980 = vpop.f32.mrb[0].mxu0
  %v981 = vpop.f32.mrb[0].mxu0
  %v982 = vadd.f32 0.0, %v981
  %v983 = vpop.f32.mrb[0].mxu0
  %984 = vmatprep.mubr.bf16.mxu0 0
  %985 = vmatmul.mubr.bf16.gmra.mrb[0].mxu0 %v688
  %v986 = vpop.f32.mrb[0].mxu0
  %v987 = vadd.f32 0.0, %v986
  %v988 = vpop.f32.mrb[0].mxu0
  %v989 = vpop.f32.mrb[0].mxu0
  %v990 = vadd.f32 0.0, %v989
  %v991 = vpop.f32.mrb[0].mxu0
  %992 = vmatprep.mubr.bf16.mxu0 0
  %993 = vmatmul.mubr.bf16.gmra.mrb[0].mxu0 %v691
  %v994 = vpop.f32.mrb[0].mxu0
  %v995 = vadd.f32 0.0, %v994
  %v996 = vpop.f32.mrb[0].mxu0
  %v997 = vpop.f32.mrb[0].mxu0
  %v998 = vadd.f32 0.0, %v997
  %v999 = vpop.f32.mrb[0].mxu0
  %1000 = vmatprep.mubr.bf16.mxu0 0
  %1001 = vmatmul.mubr.bf16.gmra.mrb[0].mxu0 %v694
  %v1002 = vpop.f32.mrb[0].mxu0
  %v1003 = vadd.f32 0.0, %v1002
  %v1004 = vpop.f32.mrb[0].mxu0
  %v1005 = vpop.f32.mrb[0].mxu0
  %v1006 = vadd.f32 0.0, %v1005
  %v1007 = vpop.f32.mrb[0].mxu0
  %1008 = vdwg.mxu0
  %v1017 = vunpack.c.l.b16 %v85
  %v1018 = vunpack.c.l.b16 %v86
  %v1019 = vunpack.c.l.b16 %v87
  %v1020 = vunpack.c.l.b16 %v88
  %v1021 = vunpack.c.l.b16 %v89
  %v1022 = vunpack.c.l.b16 %v90
  %v1023 = vunpack.c.l.b16 %v91
  %v1024 = vunpack.c.l.b16 %v92
  %v1025 = vpack.c.b16 %v1018, %v1017
  %v1026 = vpack.c.b16 %v1020, %v1019
  %v1027 = vpack.c.b16 %v1022, %v1021
  %v1028 = vpack.c.b16 %v1024, %v1023
  %v1033 = vsel %vm590, %v245, 0
  %v1035 = vsel %vm590, %v246, 0
  %v1037 = vsel %vm590, %v247, 0
  %v1039 = vsel %vm590, %v248, 0
  %v1041 = vsel %vm590, %v249, 0
  %v1043 = vsel %vm590, %v250, 0
  %v1045 = vsel %vm590, %v251, 0
  %v1047 = vsel %vm590, %v252, 0
  %v1049 = vsel %vm590, %v253, 0
  %v1051 = vsel %vm590, %v254, 0
  %v1053 = vsel %vm590, %v255, 0
  %v1055 = vsel %vm590, %v256, 0
  %v1057 = vsel %vm590, %v257, 0
  %v1059 = vsel %vm590, %v258, 0
  %v1061 = vsel %vm590, %v259, 0
  %v1063 = vsel %vm590, %v260, 0
  %v1065 = vsel %vm590, %v261, 0
  %v1067 = vsel %vm590, %v262, 0
  %v1069 = vsel %vm590, %v263, 0
  %v1071 = vsel %vm590, %v264, 0
  %v1073 = vsel %vm590, %v265, 0
  %v1075 = vsel %vm590, %v266, 0
  %v1077 = vsel %vm590, %v267, 0
  %v1079 = vsel %vm590, %v268, 0
  %v1081 = vsel %vm590, %v269, 0
  %v1083 = vsel %vm590, %v270, 0
  %v1085 = vsel %vm590, %v271, 0
  %v1087 = vsel %vm590, %v272, 0
  %v1089 = vsel %vm590, %v273, 0
  %v1091 = vsel %vm590, %v274, 0
  %v1093 = vsel %vm590, %v275, 0
  %v1095 = vsel %vm590, %v276, 0
  %v1097 = vsel %vm590, %v277, 0
  %v1099 = vsel %vm590, %v278, 0
  %v1101 = vsel %vm590, %v279, 0
  %1103 = vmatprep.subr.bf16.mxu0 0
  %1104 = vmatpush1.bf16.msra.mxu0 %v1025
  %1105 = vmatprep.subr.bf16.mxu0 0
  %1106 = vmatpush1.bf16.msra.mxu0 %v1026
  %1107 = vmatprep.subr.bf16.mxu0 0
  %1108 = vmatpush1.bf16.msra.mxu0 %v1027
  %1109 = vmatprep.subr.bf16.mxu0 0
  %1110 = vmatpush1.bf16.msra.mxu0 %v1028
  %1111 = vmatprep.subr.bf16.mxu0 0
  %1112 = vmatpush1.bf16.msra.mxu0 0
  %1113 = vmatprep.subr.bf16.mxu0 0
  %1114 = vmatpush1.bf16.msra.mxu0 0
  %1115 = vmatprep.subr.bf16.mxu0 0
  %1116 = vmatpush1.bf16.msra.mxu0 0
  %1117 = vmatprep.subr.bf16.mxu0 0
  %1118 = vmatpush1.bf16.msra.mxu0 0
  %1119 = vmatprep.subr.bf16.mxu0 0
  %1120 = vmatpush1.bf16.msra.mxu0 0
  %1121 = vmatprep.subr.bf16.mxu0 0
  %1122 = vmatpush1.bf16.msra.mxu0 0
  %1123 = vmatprep.subr.bf16.mxu0 0
  %1124 = vmatpush1.bf16.msra.mxu0 0
  %1125 = vmatprep.subr.bf16.mxu0 0
  %1126 = vmatpush1.bf16.msra.mxu0 0
  %1127 = vmatprep.subr.bf16.mxu0 0
  %1128 = vmatpush1.bf16.msra.mxu0 0
  %1129 = vmatprep.subr.bf16.mxu0 0
  %1130 = vmatpush1.bf16.msra.mxu0 0
  %1131 = vmatprep.subr.bf16.mxu0 0
  %1132 = vmatpush1.bf16.msra.mxu0 0
  %1133 = vmatprep.subr.bf16.mxu0 0
  %1134 = vmatpush1.bf16.msra.mxu0 0
  %1135 = vmatprep.mubr.bf16.mxu0 0
  %1136 = vmatmul.mubr.bf16.gmra.mrb[0].mxu0 %v1033
  %v1137 = vpop.f32.mrb[0].mxu0
  %v1138 = vadd.f32 %v731, %v1137
  %v1139 = vpop.f32.mrb[0].mxu0
  %v1140 = vpop.f32.mrb[0].mxu0
  %v1141 = vadd.f32 %v734, %v1140
  %v1142 = vpop.f32.mrb[0].mxu0
  %1143 = vmatprep.mubr.bf16.mxu0 0
  %1144 = vmatmul.mubr.bf16.gmra.mrb[0].mxu0 %v1035
  %v1145 = vpop.f32.mrb[0].mxu0
  %v1146 = vadd.f32 %v739, %v1145
  %v1147 = vpop.f32.mrb[0].mxu0
  %v1148 = vpop.f32.mrb[0].mxu0
  %v1149 = vadd.f32 %v742, %v1148
  %v1150 = vpop.f32.mrb[0].mxu0
  %1151 = vmatprep.mubr.bf16.mxu0 0
  %1152 = vmatmul.mubr.bf16.gmra.mrb[0].mxu0 %v1037
  %v1153 = vpop.f32.mrb[0].mxu0
  %v1154 = vadd.f32 %v747, %v1153
  %v1155 = vpop.f32.mrb[0].mxu0
  %v1156 = vpop.f32.mrb[0].mxu0
  %v1157 = vadd.f32 %v750, %v1156
  %v1158 = vpop.f32.mrb[0].mxu0
  %1159 = vmatprep.mubr.bf16.mxu0 0
  %1160 = vmatmul.mubr.bf16.gmra.mrb[0].mxu0 %v1039
  %v1161 = vpop.f32.mrb[0].mxu0
  %v1162 = vadd.f32 %v755, %v1161
  %v1163 = vpop.f32.mrb[0].mxu0
  %v1164 = vpop.f32.mrb[0].mxu0
  %v1165 = vadd.f32 %v758, %v1164
  %v1166 = vpop.f32.mrb[0].mxu0
  %1167 = vmatprep.mubr.bf16.mxu0 0
  %1168 = vmatmul.mubr.bf16.gmra.mrb[0].mxu0 %v1041
  %v1169 = vpop.f32.mrb[0].mxu0
  %v1170 = vadd.f32 %v763, %v1169
  %v1171 = vpop.f32.mrb[0].mxu0
  %v1172 = vpop.f32.mrb[0].mxu0
  %v1173 = vadd.f32 %v766, %v1172
  %v1174 = vpop.f32.mrb[0].mxu0
  %1175 = vmatprep.mubr.bf16.mxu0 0
  %1176 = vmatmul.mubr.bf16.gmra.mrb[0].mxu0 %v1043
  %v1177 = vpop.f32.mrb[0].mxu0
  %v1178 = vadd.f32 %v771, %v1177
  %v1179 = vpop.f32.mrb[0].mxu0
  %v1180 = vpop.f32.mrb[0].mxu0
  %v1181 = vadd.f32 %v774, %v1180
  %v1182 = vpop.f32.mrb[0].mxu0
  %1183 = vmatprep.mubr.bf16.mxu0 0
  %1184 = vmatmul.mubr.bf16.gmra.mrb[0].mxu0 %v1045
  %v1185 = vpop.f32.mrb[0].mxu0
  %v1186 = vadd.f32 %v779, %v1185
  %v1187 = vpop.f32.mrb[0].mxu0
  %v1188 = vpop.f32.mrb[0].mxu0
  %v1189 = vadd.f32 %v782, %v1188
  %v1190 = vpop.f32.mrb[0].mxu0
  %1191 = vmatprep.mubr.bf16.mxu0 0
  %1192 = vmatmul.mubr.bf16.gmra.mrb[0].mxu0 %v1047
  %v1193 = vpop.f32.mrb[0].mxu0
  %v1194 = vadd.f32 %v787, %v1193
  %v1195 = vpop.f32.mrb[0].mxu0
  %v1196 = vpop.f32.mrb[0].mxu0
  %v1197 = vadd.f32 %v790, %v1196
  %v1198 = vpop.f32.mrb[0].mxu0
  %1199 = vmatprep.mubr.bf16.mxu0 0
  %1200 = vmatmul.mubr.bf16.gmra.mrb[0].mxu0 %v1049
  %v1201 = vpop.f32.mrb[0].mxu0
  %v1202 = vadd.f32 %v795, %v1201
  %v1203 = vpop.f32.mrb[0].mxu0
  %v1204 = vpop.f32.mrb[0].mxu0
  %v1205 = vadd.f32 %v798, %v1204
  %v1206 = vpop.f32.mrb[0].mxu0
  %1207 = vmatprep.mubr.bf16.mxu0 0
  %1208 = vmatmul.mubr.bf16.gmra.mrb[0].mxu0 %v1051
  %v1209 = vpop.f32.mrb[0].mxu0
  %v1210 = vadd.f32 %v803, %v1209
  %v1211 = vpop.f32.mrb[0].mxu0
  %v1212 = vpop.f32.mrb[0].mxu0
  %v1213 = vadd.f32 %v806, %v1212
  %v1214 = vpop.f32.mrb[0].mxu0
  %1215 = vmatprep.mubr.bf16.mxu0 0
  %1216 = vmatmul.mubr.bf16.gmra.mrb[0].mxu0 %v1053
  %v1217 = vpop.f32.mrb[0].mxu0
  %v1218 = vadd.f32 %v811, %v1217
  %v1219 = vpop.f32.mrb[0].mxu0
  %v1220 = vpop.f32.mrb[0].mxu0
  %v1221 = vadd.f32 %v814, %v1220
  %v1222 = vpop.f32.mrb[0].mxu0
  %1223 = vmatprep.mubr.bf16.mxu0 0
  %1224 = vmatmul.mubr.bf16.gmra.mrb[0].mxu0 %v1055
  %v1225 = vpop.f32.mrb[0].mxu0
  %v1226 = vadd.f32 %v819, %v1225
  %v1227 = vpop.f32.mrb[0].mxu0
  %v1228 = vpop.f32.mrb[0].mxu0
  %v1229 = vadd.f32 %v822, %v1228
  %v1230 = vpop.f32.mrb[0].mxu0
  %1231 = vmatprep.mubr.bf16.mxu0 0
  %1232 = vmatmul.mubr.bf16.gmra.mrb[0].mxu0 %v1057
  %v1233 = vpop.f32.mrb[0].mxu0
  %v1234 = vadd.f32 %v827, %v1233
  %v1235 = vpop.f32.mrb[0].mxu0
  %v1236 = vpop.f32.mrb[0].mxu0
  %v1237 = vadd.f32 %v830, %v1236
  %v1238 = vpop.f32.mrb[0].mxu0
  %1239 = vmatprep.mubr.bf16.mxu0 0
  %1240 = vmatmul.mubr.bf16.gmra.mrb[0].mxu0 %v1059
  %v1241 = vpop.f32.mrb[0].mxu0
  %v1242 = vadd.f32 %v835, %v1241
  %v1243 = vpop.f32.mrb[0].mxu0
  %v1244 = vpop.f32.mrb[0].mxu0
  %v1245 = vadd.f32 %v838, %v1244
  %v1246 = vpop.f32.mrb[0].mxu0
  %1247 = vmatprep.mubr.bf16.mxu0 0
  %1248 = vmatmul.mubr.bf16.gmra.mrb[0].mxu0 %v1061
  %v1249 = vpop.f32.mrb[0].mxu0
  %v1250 = vadd.f32 %v843, %v1249
  %v1251 = vpop.f32.mrb[0].mxu0
  %v1252 = vpop.f32.mrb[0].mxu0
  %v1253 = vadd.f32 %v846, %v1252
  %v1254 = vpop.f32.mrb[0].mxu0
  %1255 = vmatprep.mubr.bf16.mxu0 0
  %1256 = vmatmul.mubr.bf16.gmra.mrb[0].mxu0 %v1063
  %v1257 = vpop.f32.mrb[0].mxu0
  %v1258 = vadd.f32 %v851, %v1257
  %v1259 = vpop.f32.mrb[0].mxu0
  %v1260 = vpop.f32.mrb[0].mxu0
  %v1261 = vadd.f32 %v854, %v1260
  %v1262 = vpop.f32.mrb[0].mxu0
  %1263 = vmatprep.mubr.bf16.mxu0 0
  %1264 = vmatmul.mubr.bf16.gmra.mrb[0].mxu0 %v1065
  %v1265 = vpop.f32.mrb[0].mxu0
  %v1266 = vadd.f32 %v859, %v1265
  %v1267 = vpop.f32.mrb[0].mxu0
  %v1268 = vpop.f32.mrb[0].mxu0
  %v1269 = vadd.f32 %v862, %v1268
  %v1270 = vpop.f32.mrb[0].mxu0
  %1271 = vmatprep.mubr.bf16.mxu0 0
  %1272 = vmatmul.mubr.bf16.gmra.mrb[0].mxu0 %v1067
  %v1273 = vpop.f32.mrb[0].mxu0
  %v1274 = vadd.f32 %v867, %v1273
  %v1275 = vpop.f32.mrb[0].mxu0
  %v1276 = vpop.f32.mrb[0].mxu0
  %v1277 = vadd.f32 %v870, %v1276
  %v1278 = vpop.f32.mrb[0].mxu0
  %1279 = vmatprep.mubr.bf16.mxu0 0
  %1280 = vmatmul.mubr.bf16.gmra.mrb[0].mxu0 %v1069
  %v1281 = vpop.f32.mrb[0].mxu0
  %v1282 = vadd.f32 %v875, %v1281
  %v1283 = vpop.f32.mrb[0].mxu0
  %v1284 = vpop.f32.mrb[0].mxu0
  %v1285 = vadd.f32 %v878, %v1284
  %v1286 = vpop.f32.mrb[0].mxu0
  %1287 = vmatprep.mubr.bf16.mxu0 0
  %1288 = vmatmul.mubr.bf16.gmra.mrb[0].mxu0 %v1071
  %v1289 = vpop.f32.mrb[0].mxu0
  %v1290 = vadd.f32 %v883, %v1289
  %v1291 = vpop.f32.mrb[0].mxu0
  %v1292 = vpop.f32.mrb[0].mxu0
  %v1293 = vadd.f32 %v886, %v1292
  %v1294 = vpop.f32.mrb[0].mxu0
  %1295 = vmatprep.mubr.bf16.mxu0 0
  %1296 = vmatmul.mubr.bf16.gmra.mrb[0].mxu0 %v1073
  %v1297 = vpop.f32.mrb[0].mxu0
  %v1298 = vadd.f32 %v891, %v1297
  %v1299 = vpop.f32.mrb[0].mxu0
  %v1300 = vpop.f32.mrb[0].mxu0
  %v1301 = vadd.f32 %v894, %v1300
  %v1302 = vpop.f32.mrb[0].mxu0
  %1303 = vmatprep.mubr.bf16.mxu0 0
  %1304 = vmatmul.mubr.bf16.gmra.mrb[0].mxu0 %v1075
  %v1305 = vpop.f32.mrb[0].mxu0
  %v1306 = vadd.f32 %v899, %v1305
  %v1307 = vpop.f32.mrb[0].mxu0
  %v1308 = vpop.f32.mrb[0].mxu0
  %v1309 = vadd.f32 %v902, %v1308
  %v1310 = vpop.f32.mrb[0].mxu0
  %1311 = vmatprep.mubr.bf16.mxu0 0
  %1312 = vmatmul.mubr.bf16.gmra.mrb[0].mxu0 %v1077
  %v1313 = vpop.f32.mrb[0].mxu0
  %v1314 = vadd.f32 %v907, %v1313
  %v1315 = vpop.f32.mrb[0].mxu0
  %v1316 = vpop.f32.mrb[0].mxu0
  %v1317 = vadd.f32 %v910, %v1316
  %v1318 = vpop.f32.mrb[0].mxu0
  %1319 = vmatprep.mubr.bf16.mxu0 0
  %1320 = vmatmul.mubr.bf16.gmra.mrb[0].mxu0 %v1079
  %v1321 = vpop.f32.mrb[0].mxu0
  %v1322 = vadd.f32 %v915, %v1321
  %v1323 = vpop.f32.mrb[0].mxu0
  %v1324 = vpop.f32.mrb[0].mxu0
  %v1325 = vadd.f32 %v918, %v1324
  %v1326 = vpop.f32.mrb[0].mxu0
  %1327 = vmatprep.mubr.bf16.mxu0 0
  %1328 = vmatmul.mubr.bf16.gmra.mrb[0].mxu0 %v1081
  %v1329 = vpop.f32.mrb[0].mxu0
  %v1330 = vadd.f32 %v923, %v1329
  %v1331 = vpop.f32.mrb[0].mxu0
  %v1332 = vpop.f32.mrb[0].mxu0
  %v1333 = vadd.f32 %v926, %v1332
  %v1334 = vpop.f32.mrb[0].mxu0
  %1335 = vmatprep.mubr.bf16.mxu0 0
  %1336 = vmatmul.mubr.bf16.gmra.mrb[0].mxu0 %v1083
  %v1337 = vpop.f32.mrb[0].mxu0
  %v1338 = vadd.f32 %v931, %v1337
  %v1339 = vpop.f32.mrb[0].mxu0
  %v1340 = vpop.f32.mrb[0].mxu0
  %v1341 = vadd.f32 %v934, %v1340
  %v1342 = vpop.f32.mrb[0].mxu0
  %1343 = vmatprep.mubr.bf16.mxu0 0
  %1344 = vmatmul.mubr.bf16.gmra.mrb[0].mxu0 %v1085
  %v1345 = vpop.f32.mrb[0].mxu0
  %v1346 = vadd.f32 %v939, %v1345
  %v1347 = vpop.f32.mrb[0].mxu0
  %v1348 = vpop.f32.mrb[0].mxu0
  %v1349 = vadd.f32 %v942, %v1348
  %v1350 = vpop.f32.mrb[0].mxu0
  %1351 = vmatprep.mubr.bf16.mxu0 0
  %1352 = vmatmul.mubr.bf16.gmra.mrb[0].mxu0 %v1087
  %v1353 = vpop.f32.mrb[0].mxu0
  %v1354 = vadd.f32 %v947, %v1353
  %v1355 = vpop.f32.mrb[0].mxu0
  %v1356 = vpop.f32.mrb[0].mxu0
  %v1357 = vadd.f32 %v950, %v1356
  %v1358 = vpop.f32.mrb[0].mxu0
  %1359 = vmatprep.mubr.bf16.mxu0 0
  %1360 = vmatmul.mubr.bf16.gmra.mrb[0].mxu0 %v1089
  %v1361 = vpop.f32.mrb[0].mxu0
  %v1362 = vadd.f32 %v955, %v1361
  %v1363 = vpop.f32.mrb[0].mxu0
  %v1364 = vpop.f32.mrb[0].mxu0
  %v1365 = vadd.f32 %v958, %v1364
  %v1366 = vpop.f32.mrb[0].mxu0
  %1367 = vmatprep.mubr.bf16.mxu0 0
  %1368 = vmatmul.mubr.bf16.gmra.mrb[0].mxu0 %v1091
  %v1369 = vpop.f32.mrb[0].mxu0
  %v1370 = vadd.f32 %v963, %v1369
  %v1371 = vpop.f32.mrb[0].mxu0
  %v1372 = vpop.f32.mrb[0].mxu0
  %v1373 = vadd.f32 %v966, %v1372
  %v1374 = vpop.f32.mrb[0].mxu0
  %1375 = vmatprep.mubr.bf16.mxu0 0
  %1376 = vmatmul.mubr.bf16.gmra.mrb[0].mxu0 %v1093
  %v1377 = vpop.f32.mrb[0].mxu0
  %v1378 = vadd.f32 %v971, %v1377
  %v1379 = vpop.f32.mrb[0].mxu0
  %v1380 = vpop.f32.mrb[0].mxu0
  %v1381 = vadd.f32 %v974, %v1380
  %v1382 = vpop.f32.mrb[0].mxu0
  %1383 = vmatprep.mubr.bf16.mxu0 0
  %1384 = vmatmul.mubr.bf16.gmra.mrb[0].mxu0 %v1095
  %v1385 = vpop.f32.mrb[0].mxu0
  %v1386 = vadd.f32 %v979, %v1385
  %v1387 = vpop.f32.mrb[0].mxu0
  %v1388 = vpop.f32.mrb[0].mxu0
  %v1389 = vadd.f32 %v982, %v1388
  %v1390 = vpop.f32.mrb[0].mxu0
  %1391 = vmatprep.mubr.bf16.mxu0 0
  %1392 = vmatmul.mubr.bf16.gmra.mrb[0].mxu0 %v1097
  %v1393 = vpop.f32.mrb[0].mxu0
  %v1394 = vadd.f32 %v987, %v1393
  %v1395 = vpop.f32.mrb[0].mxu0
  %v1396 = vpop.f32.mrb[0].mxu0
  %v1397 = vadd.f32 %v990, %v1396
  %v1398 = vpop.f32.mrb[0].mxu0
  %1399 = vmatprep.mubr.bf16.mxu0 0
  %1400 = vmatmul.mubr.bf16.gmra.mrb[0].mxu0 %v1099
  %v1401 = vpop.f32.mrb[0].mxu0
  %v1402 = vadd.f32 %v995, %v1401
  %v1403 = vpop.f32.mrb[0].mxu0
  %v1404 = vpop.f32.mrb[0].mxu0
  %v1405 = vadd.f32 %v998, %v1404
  %v1406 = vpop.f32.mrb[0].mxu0
  %1407 = vmatprep.mubr.bf16.mxu0 0
  %1408 = vmatmul.mubr.bf16.gmra.mrb[0].mxu0 %v1101
  %v1409 = vpop.f32.mrb[0].mxu0
  %v1410 = vadd.f32 %v1003, %v1409
  %v1411 = vpop.f32.mrb[0].mxu0
  %v1412 = vpop.f32.mrb[0].mxu0
  %v1413 = vadd.f32 %v1006, %v1412
  %v1414 = vpop.f32.mrb[0].mxu0
  %1415 = vdwg.mxu0
  %v1416 = vld [vmem:[%s0 + $0x118] sm:$0xf]
  %s1417 = scalar_lea.vmem %s1, 64
  %v1418 = vld [vmem:[%s1417] sm:$0xf]
  %v1419 = vld [vmem:[%s1417 + $0x4] sm:$0xf]
  %v1420 = vld [vmem:[%s1417 + $0x8] sm:$0xf]
  %v1421 = vld [vmem:[%s1417 + $0xc] sm:$0xf]
  %v1422 = vld [vmem:[%s1417 + $0x10] sm:$0xf]
  %v1423 = vld [vmem:[%s1417 + $0x14] sm:$0xf]
  %v1424 = vld [vmem:[%s1417 + $0x18] sm:$0xf]
  %v1425 = vld [vmem:[%s1417 + $0x1c] sm:$0xf]
  %v1427 = vunpack.c.l.b16 %v1416
  %v1428 = vpack.c.b16 %v176, %v175
  %v1429 = vpack.c.b16 %v178, %v177
  %v1430 = vpack.c.b16 %v180, %v179
  %v1431 = vpack.c.b16 %v182, %v181
  %v1432 = vpack.c.b16 %v184, %v183
  %v1433 = vpack.c.b16 %v186, %v185
  %v1434 = vpack.c.b16 %v188, %v187
  %v1435 = vpack.c.b16 %v190, %v189
  %v1436 = vpack.c.b16 %v192, %v191
  %v1437 = vpack.c.b16 %v194, %v193
  %v1438 = vpack.c.b16 %v196, %v195
  %v1439 = vpack.c.b16 %v198, %v197
  %v1440 = vpack.c.b16 %v200, %v199
  %v1441 = vpack.c.b16 %v202, %v201
  %v1442 = vpack.c.b16 %v204, %v203
  %v1443 = vpack.c.b16 %v206, %v205
  %v1444 = vpack.c.b16 %v208, %v207
  %v1445 = vpack.c.b16 %v210, %v209
  %v1446 = vpack.c.b16 %v212, %v211
  %v1447 = vpack.c.b16 %v214, %v213
  %v1448 = vpack.c.b16 %v216, %v215
  %v1449 = vpack.c.b16 %v218, %v217
  %v1450 = vpack.c.b16 %v220, %v219
  %v1451 = vpack.c.b16 %v222, %v221
  %v1452 = vpack.c.b16 %v224, %v223
  %v1453 = vpack.c.b16 %v226, %v225
  %v1454 = vpack.c.b16 %v228, %v227
  %v1455 = vpack.c.b16 %v230, %v229
  %v1456 = vpack.c.b16 %v232, %v231
  %v1457 = vpack.c.b16 %v234, %v233
  %v1458 = vpack.c.b16 %v236, %v235
  %v1459 = vpack.c.b16 %v238, %v237
  %v1460 = vpack.c.b16 %v240, %v239
  %v1461 = vpack.c.b16 %v242, %v241
  %v1462 = vpack.c.b16 %v1427, %v243
  %v1471 = vunpack.c.l.b16 %v1418
  %v1472 = vunpack.c.l.b16 %v1419
  %v1473 = vunpack.c.l.b16 %v1420
  %v1474 = vunpack.c.l.b16 %v1421
  %v1475 = vunpack.c.l.b16 %v1422
  %v1476 = vunpack.c.l.b16 %v1423
  %v1477 = vunpack.c.l.b16 %v1424
  %v1478 = vunpack.c.l.b16 %v1425
  %v1479 = vpack.c.b16 %v1472, %v1471
  %v1480 = vpack.c.b16 %v1474, %v1473
  %v1481 = vpack.c.b16 %v1476, %v1475
  %v1482 = vpack.c.b16 %v1478, %v1477
  %v1488 = vsel %vm590, %v1428, 0
  %v1491 = vsel %vm590, %v1429, 0
  %v1494 = vsel %vm590, %v1430, 0
  %v1497 = vsel %vm590, %v1431, 0
  %v1500 = vsel %vm590, %v1432, 0
  %v1503 = vsel %vm590, %v1433, 0
  %v1506 = vsel %vm590, %v1434, 0
  %v1509 = vsel %vm590, %v1435, 0
  %v1512 = vsel %vm590, %v1436, 0
  %v1515 = vsel %vm590, %v1437, 0
  %v1518 = vsel %vm590, %v1438, 0
  %v1521 = vsel %vm590, %v1439, 0
  %v1524 = vsel %vm590, %v1440, 0
  %v1527 = vsel %vm590, %v1441, 0
  %v1530 = vsel %vm590, %v1442, 0
  %v1533 = vsel %vm590, %v1443, 0
  %v1536 = vsel %vm590, %v1444, 0
  %v1539 = vsel %vm590, %v1445, 0
  %v1542 = vsel %vm590, %v1446, 0
  %v1545 = vsel %vm590, %v1447, 0
  %v1548 = vsel %vm590, %v1448, 0
  %v1551 = vsel %vm590, %v1449, 0
  %v1554 = vsel %vm590, %v1450, 0
  %v1557 = vsel %vm590, %v1451, 0
  %v1560 = vsel %vm590, %v1452, 0
  %v1563 = vsel %vm590, %v1453, 0
  %v1566 = vsel %vm590, %v1454, 0
  %v1569 = vsel %vm590, %v1455, 0
  %v1572 = vsel %vm590, %v1456, 0
  %v1575 = vsel %vm590, %v1457, 0
  %v1578 = vsel %vm590, %v1458, 0
  %v1581 = vsel %vm590, %v1459, 0
  %v1584 = vsel %vm590, %v1460, 0
  %v1587 = vsel %vm590, %v1461, 0
  %v1590 = vsel %vm590, %v1462, 0
  %1592 = vmatprep.subr.bf16.mxu0 0
  %1593 = vmatpush1.bf16.msra.mxu0 %v1479
  %1594 = vmatprep.subr.bf16.mxu0 0
  %1595 = vmatpush1.bf16.msra.mxu0 %v1480
  %1596 = vmatprep.subr.bf16.mxu0 0
  %1597 = vmatpush1.bf16.msra.mxu0 %v1481
  %1598 = vmatprep.subr.bf16.mxu0 0
  %1599 = vmatpush1.bf16.msra.mxu0 %v1482
  %1600 = vmatprep.subr.bf16.mxu0 0
  %1601 = vmatpush1.bf16.msra.mxu0 0
  %1602 = vmatprep.subr.bf16.mxu0 0
  %1603 = vmatpush1.bf16.msra.mxu0 0
  %1604 = vmatprep.subr.bf16.mxu0 0
  %1605 = vmatpush1.bf16.msra.mxu0 0
  %1606 = vmatprep.subr.bf16.mxu0 0
  %1607 = vmatpush1.bf16.msra.mxu0 0
  %1608 = vmatprep.subr.bf16.mxu0 0
  %1609 = vmatpush1.bf16.msra.mxu0 0
  %1610 = vmatprep.subr.bf16.mxu0 0
  %1611 = vmatpush1.bf16.msra.mxu0 0
  %1612 = vmatprep.subr.bf16.mxu0 0
  %1613 = vmatpush1.bf16.msra.mxu0 0
  %1614 = vmatprep.subr.bf16.mxu0 0
  %1615 = vmatpush1.bf16.msra.mxu0 0
  %1616 = vmatprep.subr.bf16.mxu0 0
  %1617 = vmatpush1.bf16.msra.mxu0 0
  %1618 = vmatprep.subr.bf16.mxu0 0
  %1619 = vmatpush1.bf16.msra.mxu0 0
  %1620 = vmatprep.subr.bf16.mxu0 0
  %1621 = vmatpush1.bf16.msra.mxu0 0
  %1622 = vmatprep.subr.bf16.mxu0 0
  %1623 = vmatpush1.bf16.msra.mxu0 0
  %1624 = vmatprep.mubr.bf16.mxu0 0
  %1625 = vmatmul.mubr.bf16.gmra.mrb[0].mxu0 %v1488
  %v1626 = vpop.f32.mrb[0].mxu0
  %v1627 = vadd.f32 0.0, %v1626
  %v1628 = vpop.f32.mrb[0].mxu0
  %v1629 = vpop.f32.mrb[0].mxu0
  %v1630 = vadd.f32 0.0, %v1629
  %v1631 = vpop.f32.mrb[0].mxu0
  %1632 = vmatprep.mubr.bf16.mxu0 0
  %1633 = vmatmul.mubr.bf16.gmra.mrb[0].mxu0 %v1491
  %v1634 = vpop.f32.mrb[0].mxu0
  %v1635 = vadd.f32 0.0, %v1634
  %v1636 = vpop.f32.mrb[0].mxu0
  %v1637 = vpop.f32.mrb[0].mxu0
  %v1638 = vadd.f32 0.0, %v1637
  %v1639 = vpop.f32.mrb[0].mxu0
  %1640 = vmatprep.mubr.bf16.mxu0 0
  %1641 = vmatmul.mubr.bf16.gmra.mrb[0].mxu0 %v1494
  %v1642 = vpop.f32.mrb[0].mxu0
  %v1643 = vadd.f32 0.0, %v1642
  %v1644 = vpop.f32.mrb[0].mxu0
  %v1645 = vpop.f32.mrb[0].mxu0
  %v1646 = vadd.f32 0.0, %v1645
  %v1647 = vpop.f32.mrb[0].mxu0
  %1648 = vmatprep.mubr.bf16.mxu0 0
  %1649 = vmatmul.mubr.bf16.gmra.mrb[0].mxu0 %v1497
  %v1650 = vpop.f32.mrb[0].mxu0
  %v1651 = vadd.f32 0.0, %v1650
  %v1652 = vpop.f32.mrb[0].mxu0
  %v1653 = vpop.f32.mrb[0].mxu0
  %v1654 = vadd.f32 0.0, %v1653
  %v1655 = vpop.f32.mrb[0].mxu0
  %1656 = vmatprep.mubr.bf16.mxu0 0
  %1657 = vmatmul.mubr.bf16.gmra.mrb[0].mxu0 %v1500
  %v1658 = vpop.f32.mrb[0].mxu0
  %v1659 = vadd.f32 0.0, %v1658
  %v1660 = vpop.f32.mrb[0].mxu0
  %v1661 = vpop.f32.mrb[0].mxu0
  %v1662 = vadd.f32 0.0, %v1661
  %v1663 = vpop.f32.mrb[0].mxu0
  %1664 = vmatprep.mubr.bf16.mxu0 0
  %1665 = vmatmul.mubr.bf16.gmra.mrb[0].mxu0 %v1503
  %v1666 = vpop.f32.mrb[0].mxu0
  %v1667 = vadd.f32 0.0, %v1666
  %v1668 = vpop.f32.mrb[0].mxu0
  %v1669 = vpop.f32.mrb[0].mxu0
  %v1670 = vadd.f32 0.0, %v1669
  %v1671 = vpop.f32.mrb[0].mxu0
  %1672 = vmatprep.mubr.bf16.mxu0 0
  %1673 = vmatmul.mubr.bf16.gmra.mrb[0].mxu0 %v1506
  %v1674 = vpop.f32.mrb[0].mxu0
  %v1675 = vadd.f32 0.0, %v1674
  %v1676 = vpop.f32.mrb[0].mxu0
  %v1677 = vpop.f32.mrb[0].mxu0
  %v1678 = vadd.f32 0.0, %v1677
  %v1679 = vpop.f32.mrb[0].mxu0
  %1680 = vmatprep.mubr.bf16.mxu0 0
  %1681 = vmatmul.mubr.bf16.gmra.mrb[0].mxu0 %v1509
  %v1682 = vpop.f32.mrb[0].mxu0
  %v1683 = vadd.f32 0.0, %v1682
  %v1684 = vpop.f32.mrb[0].mxu0
  %v1685 = vpop.f32.mrb[0].mxu0
  %v1686 = vadd.f32 0.0, %v1685
  %v1687 = vpop.f32.mrb[0].mxu0
  %1688 = vmatprep.mubr.bf16.mxu0 0
  %1689 = vmatmul.mubr.bf16.gmra.mrb[0].mxu0 %v1512
  %v1690 = vpop.f32.mrb[0].mxu0
  %v1691 = vadd.f32 0.0, %v1690
  %v1692 = vpop.f32.mrb[0].mxu0
  %v1693 = vpop.f32.mrb[0].mxu0
  %v1694 = vadd.f32 0.0, %v1693
  %v1695 = vpop.f32.mrb[0].mxu0
  %1696 = vmatprep.mubr.bf16.mxu0 0
  %1697 = vmatmul.mubr.bf16.gmra.mrb[0].mxu0 %v1515
  %v1698 = vpop.f32.mrb[0].mxu0
  %v1699 = vadd.f32 0.0, %v1698
  %v1700 = vpop.f32.mrb[0].mxu0
  %v1701 = vpop.f32.mrb[0].mxu0
  %v1702 = vadd.f32 0.0, %v1701
  %v1703 = vpop.f32.mrb[0].mxu0
  %1704 = vmatprep.mubr.bf16.mxu0 0
  %1705 = vmatmul.mubr.bf16.gmra.mrb[0].mxu0 %v1518
  %v1706 = vpop.f32.mrb[0].mxu0
  %v1707 = vadd.f32 0.0, %v1706
  %v1708 = vpop.f32.mrb[0].mxu0
  %v1709 = vpop.f32.mrb[0].mxu0
  %v1710 = vadd.f32 0.0, %v1709
  %v1711 = vpop.f32.mrb[0].mxu0
  %1712 = vmatprep.mubr.bf16.mxu0 0
  %1713 = vmatmul.mubr.bf16.gmra.mrb[0].mxu0 %v1521
  %v1714 = vpop.f32.mrb[0].mxu0
  %v1715 = vadd.f32 0.0, %v1714
  %v1716 = vpop.f32.mrb[0].mxu0
  %v1717 = vpop.f32.mrb[0].mxu0
  %v1718 = vadd.f32 0.0, %v1717
  %v1719 = vpop.f32.mrb[0].mxu0
  %1720 = vmatprep.mubr.bf16.mxu0 0
  %1721 = vmatmul.mubr.bf16.gmra.mrb[0].mxu0 %v1524
  %v1722 = vpop.f32.mrb[0].mxu0
  %v1723 = vadd.f32 0.0, %v1722
  %v1724 = vpop.f32.mrb[0].mxu0
  %v1725 = vpop.f32.mrb[0].mxu0
  %v1726 = vadd.f32 0.0, %v1725
  %v1727 = vpop.f32.mrb[0].mxu0
  %1728 = vmatprep.mubr.bf16.mxu0 0
  %1729 = vmatmul.mubr.bf16.gmra.mrb[0].mxu0 %v1527
  %v1730 = vpop.f32.mrb[0].mxu0
  %v1731 = vadd.f32 0.0, %v1730
  %v1732 = vpop.f32.mrb[0].mxu0
  %v1733 = vpop.f32.mrb[0].mxu0
  %v1734 = vadd.f32 0.0, %v1733
  %v1735 = vpop.f32.mrb[0].mxu0
  %1736 = vmatprep.mubr.bf16.mxu0 0
  %1737 = vmatmul.mubr.bf16.gmra.mrb[0].mxu0 %v1530
  %v1738 = vpop.f32.mrb[0].mxu0
  %v1739 = vadd.f32 0.0, %v1738
  %v1740 = vpop.f32.mrb[0].mxu0
  %v1741 = vpop.f32.mrb[0].mxu0
  %v1742 = vadd.f32 0.0, %v1741
  %v1743 = vpop.f32.mrb[0].mxu0
  %1744 = vmatprep.mubr.bf16.mxu0 0
  %1745 = vmatmul.mubr.bf16.gmra.mrb[0].mxu0 %v1533
  %v1746 = vpop.f32.mrb[0].mxu0
  %v1747 = vadd.f32 0.0, %v1746
  %v1748 = vpop.f32.mrb[0].mxu0
  %v1749 = vpop.f32.mrb[0].mxu0
  %v1750 = vadd.f32 0.0, %v1749
  %v1751 = vpop.f32.mrb[0].mxu0
  %1752 = vmatprep.mubr.bf16.mxu0 0
  %1753 = vmatmul.mubr.bf16.gmra.mrb[0].mxu0 %v1536
  %v1754 = vpop.f32.mrb[0].mxu0
  %v1755 = vadd.f32 0.0, %v1754
  %v1756 = vpop.f32.mrb[0].mxu0
  %v1757 = vpop.f32.mrb[0].mxu0
  %v1758 = vadd.f32 0.0, %v1757
  %v1759 = vpop.f32.mrb[0].mxu0
  %1760 = vmatprep.mubr.bf16.mxu0 0
  %1761 = vmatmul.mubr.bf16.gmra.mrb[0].mxu0 %v1539
  %v1762 = vpop.f32.mrb[0].mxu0
  %v1763 = vadd.f32 0.0, %v1762
  %v1764 = vpop.f32.mrb[0].mxu0
  %v1765 = vpop.f32.mrb[0].mxu0
  %v1766 = vadd.f32 0.0, %v1765
  %v1767 = vpop.f32.mrb[0].mxu0
  %1768 = vmatprep.mubr.bf16.mxu0 0
  %1769 = vmatmul.mubr.bf16.gmra.mrb[0].mxu0 %v1542
  %v1770 = vpop.f32.mrb[0].mxu0
  %v1771 = vadd.f32 0.0, %v1770
  %v1772 = vpop.f32.mrb[0].mxu0
  %v1773 = vpop.f32.mrb[0].mxu0
  %v1774 = vadd.f32 0.0, %v1773
  %v1775 = vpop.f32.mrb[0].mxu0
  %1776 = vmatprep.mubr.bf16.mxu0 0
  %1777 = vmatmul.mubr.bf16.gmra.mrb[0].mxu0 %v1545
  %v1778 = vpop.f32.mrb[0].mxu0
  %v1779 = vadd.f32 0.0, %v1778
  %v1780 = vpop.f32.mrb[0].mxu0
  %v1781 = vpop.f32.mrb[0].mxu0
  %v1782 = vadd.f32 0.0, %v1781
  %v1783 = vpop.f32.mrb[0].mxu0
  %1784 = vmatprep.mubr.bf16.mxu0 0
  %1785 = vmatmul.mubr.bf16.gmra.mrb[0].mxu0 %v1548
  %v1786 = vpop.f32.mrb[0].mxu0
  %v1787 = vadd.f32 0.0, %v1786
  %v1788 = vpop.f32.mrb[0].mxu0
  %v1789 = vpop.f32.mrb[0].mxu0
  %v1790 = vadd.f32 0.0, %v1789
  %v1791 = vpop.f32.mrb[0].mxu0
  %1792 = vmatprep.mubr.bf16.mxu0 0
  %1793 = vmatmul.mubr.bf16.gmra.mrb[0].mxu0 %v1551
  %v1794 = vpop.f32.mrb[0].mxu0
  %v1795 = vadd.f32 0.0, %v1794
  %v1796 = vpop.f32.mrb[0].mxu0
  %v1797 = vpop.f32.mrb[0].mxu0
  %v1798 = vadd.f32 0.0, %v1797
  %v1799 = vpop.f32.mrb[0].mxu0
  %1800 = vmatprep.mubr.bf16.mxu0 0
  %1801 = vmatmul.mubr.bf16.gmra.mrb[0].mxu0 %v1554
  %v1802 = vpop.f32.mrb[0].mxu0
  %v1803 = vadd.f32 0.0, %v1802
  %v1804 = vpop.f32.mrb[0].mxu0
  %v1805 = vpop.f32.mrb[0].mxu0
  %v1806 = vadd.f32 0.0, %v1805
  %v1807 = vpop.f32.mrb[0].mxu0
  %1808 = vmatprep.mubr.bf16.mxu0 0
  %1809 = vmatmul.mubr.bf16.gmra.mrb[0].mxu0 %v1557
  %v1810 = vpop.f32.mrb[0].mxu0
  %v1811 = vadd.f32 0.0, %v1810
  %v1812 = vpop.f32.mrb[0].mxu0
  %v1813 = vpop.f32.mrb[0].mxu0
  %v1814 = vadd.f32 0.0, %v1813
  %v1815 = vpop.f32.mrb[0].mxu0
  %1816 = vmatprep.mubr.bf16.mxu0 0
  %1817 = vmatmul.mubr.bf16.gmra.mrb[0].mxu0 %v1560
  %v1818 = vpop.f32.mrb[0].mxu0
  %v1819 = vadd.f32 0.0, %v1818
  %v1820 = vpop.f32.mrb[0].mxu0
  %v1821 = vpop.f32.mrb[0].mxu0
  %v1822 = vadd.f32 0.0, %v1821
  %v1823 = vpop.f32.mrb[0].mxu0
  %1824 = vmatprep.mubr.bf16.mxu0 0
  %1825 = vmatmul.mubr.bf16.gmra.mrb[0].mxu0 %v1563
  %v1826 = vpop.f32.mrb[0].mxu0
  %v1827 = vadd.f32 0.0, %v1826
  %v1828 = vpop.f32.mrb[0].mxu0
  %v1829 = vpop.f32.mrb[0].mxu0
  %v1830 = vadd.f32 0.0, %v1829
  %v1831 = vpop.f32.mrb[0].mxu0
  %1832 = vmatprep.mubr.bf16.mxu0 0
  %1833 = vmatmul.mubr.bf16.gmra.mrb[0].mxu0 %v1566
  %v1834 = vpop.f32.mrb[0].mxu0
  %v1835 = vadd.f32 0.0, %v1834
  %v1836 = vpop.f32.mrb[0].mxu0
  %v1837 = vpop.f32.mrb[0].mxu0
  %v1838 = vadd.f32 0.0, %v1837
  %v1839 = vpop.f32.mrb[0].mxu0
  %1840 = vmatprep.mubr.bf16.mxu0 0
  %1841 = vmatmul.mubr.bf16.gmra.mrb[0].mxu0 %v1569
  %v1842 = vpop.f32.mrb[0].mxu0
  %v1843 = vadd.f32 0.0, %v1842
  %v1844 = vpop.f32.mrb[0].mxu0
  %v1845 = vpop.f32.mrb[0].mxu0
  %v1846 = vadd.f32 0.0, %v1845
  %v1847 = vpop.f32.mrb[0].mxu0
  %1848 = vmatprep.mubr.bf16.mxu0 0
  %1849 = vmatmul.mubr.bf16.gmra.mrb[0].mxu0 %v1572
  %v1850 = vpop.f32.mrb[0].mxu0
  %v1851 = vadd.f32 0.0, %v1850
  %v1852 = vpop.f32.mrb[0].mxu0
  %v1853 = vpop.f32.mrb[0].mxu0
  %v1854 = vadd.f32 0.0, %v1853
  %v1855 = vpop.f32.mrb[0].mxu0
  %1856 = vmatprep.mubr.bf16.mxu0 0
  %1857 = vmatmul.mubr.bf16.gmra.mrb[0].mxu0 %v1575
  %v1858 = vpop.f32.mrb[0].mxu0
  %v1859 = vadd.f32 0.0, %v1858
  %v1860 = vpop.f32.mrb[0].mxu0
  %v1861 = vpop.f32.mrb[0].mxu0
  %v1862 = vadd.f32 0.0, %v1861
  %v1863 = vpop.f32.mrb[0].mxu0
  %1864 = vmatprep.mubr.bf16.mxu0 0
  %1865 = vmatmul.mubr.bf16.gmra.mrb[0].mxu0 %v1578
  %v1866 = vpop.f32.mrb[0].mxu0
  %v1867 = vadd.f32 0.0, %v1866
  %v1868 = vpop.f32.mrb[0].mxu0
  %v1869 = vpop.f32.mrb[0].mxu0
  %v1870 = vadd.f32 0.0, %v1869
  %v1871 = vpop.f32.mrb[0].mxu0
  %1872 = vmatprep.mubr.bf16.mxu0 0
  %1873 = vmatmul.mubr.bf16.gmra.mrb[0].mxu0 %v1581
  %v1874 = vpop.f32.mrb[0].mxu0
  %v1875 = vadd.f32 0.0, %v1874
  %v1876 = vpop.f32.mrb[0].mxu0
  %v1877 = vpop.f32.mrb[0].mxu0
  %v1878 = vadd.f32 0.0, %v1877
  %v1879 = vpop.f32.mrb[0].mxu0
  %1880 = vmatprep.mubr.bf16.mxu0 0
  %1881 = vmatmul.mubr.bf16.gmra.mrb[0].mxu0 %v1584
  %v1882 = vpop.f32.mrb[0].mxu0
  %v1883 = vadd.f32 0.0, %v1882
  %v1884 = vpop.f32.mrb[0].mxu0
  %v1885 = vpop.f32.mrb[0].mxu0
  %v1886 = vadd.f32 0.0, %v1885
  %v1887 = vpop.f32.mrb[0].mxu0
  %1888 = vmatprep.mubr.bf16.mxu0 0
  %1889 = vmatmul.mubr.bf16.gmra.mrb[0].mxu0 %v1587
  %v1890 = vpop.f32.mrb[0].mxu0
  %v1891 = vadd.f32 0.0, %v1890
  %v1892 = vpop.f32.mrb[0].mxu0
  %v1893 = vpop.f32.mrb[0].mxu0
  %v1894 = vadd.f32 0.0, %v1893
  %v1895 = vpop.f32.mrb[0].mxu0
  %1896 = vmatprep.mubr.bf16.mxu0 0
  %1897 = vmatmul.mubr.bf16.gmra.mrb[0].mxu0 %v1590
  %v1898 = vpop.f32.mrb[0].mxu0
  %v1899 = vadd.f32 0.0, %v1898
  %v1900 = vpop.f32.mrb[0].mxu0
  %v1901 = vpop.f32.mrb[0].mxu0
  %v1902 = vadd.f32 0.0, %v1901
  %v1903 = vpop.f32.mrb[0].mxu0
  %1904 = vdwg.mxu0
  %v1905 = vadd.f32 %v1138, %v1627
  %v1906 = vadd.f32 %v1141, %v1630
  %v1907 = vadd.f32 %v1146, %v1635
  %v1908 = vadd.f32 %v1149, %v1638
  %v1909 = vadd.f32 %v1154, %v1643
  %v1910 = vadd.f32 %v1157, %v1646
  %v1911 = vadd.f32 %v1162, %v1651
  %v1912 = vadd.f32 %v1165, %v1654
  %v1913 = vadd.f32 %v1170, %v1659
  %v1914 = vadd.f32 %v1173, %v1662
  %v1915 = vadd.f32 %v1178, %v1667
  %v1916 = vadd.f32 %v1181, %v1670
  %v1917 = vadd.f32 %v1186, %v1675
  %v1918 = vadd.f32 %v1189, %v1678
  %v1919 = vadd.f32 %v1194, %v1683
  %v1920 = vadd.f32 %v1197, %v1686
  %v1921 = vadd.f32 %v1202, %v1691
  %v1922 = vadd.f32 %v1205, %v1694
  %v1923 = vadd.f32 %v1210, %v1699
  %v1924 = vadd.f32 %v1213, %v1702
  %v1925 = vadd.f32 %v1218, %v1707
  %v1926 = vadd.f32 %v1221, %v1710
  %v1927 = vadd.f32 %v1226, %v1715
  %v1928 = vadd.f32 %v1229, %v1718
  %v1929 = vadd.f32 %v1234, %v1723
  %v1930 = vadd.f32 %v1237, %v1726
  %v1931 = vadd.f32 %v1242, %v1731
  %v1932 = vadd.f32 %v1245, %v1734
  %v1933 = vadd.f32 %v1250, %v1739
  %v1934 = vadd.f32 %v1253, %v1742
  %v1935 = vadd.f32 %v1258, %v1747
  %v1936 = vadd.f32 %v1261, %v1750
  %v1937 = vadd.f32 %v1266, %v1755
  %v1938 = vadd.f32 %v1269, %v1758
  %v1939 = vadd.f32 %v1274, %v1763
  %v1940 = vadd.f32 %v1277, %v1766
  %v1941 = vadd.f32 %v1282, %v1771
  %v1942 = vadd.f32 %v1285, %v1774
  %v1943 = vadd.f32 %v1290, %v1779
  %v1944 = vadd.f32 %v1293, %v1782
  %v1945 = vadd.f32 %v1298, %v1787
  %v1946 = vadd.f32 %v1301, %v1790
  %v1947 = vadd.f32 %v1306, %v1795
  %v1948 = vadd.f32 %v1309, %v1798
  %v1949 = vadd.f32 %v1314, %v1803
  %v1950 = vadd.f32 %v1317, %v1806
  %v1951 = vadd.f32 %v1322, %v1811
  %v1952 = vadd.f32 %v1325, %v1814
  %v1953 = vadd.f32 %v1330, %v1819
  %v1954 = vadd.f32 %v1333, %v1822
  %v1955 = vadd.f32 %v1338, %v1827
  %v1956 = vadd.f32 %v1341, %v1830
  %v1957 = vadd.f32 %v1346, %v1835
  %v1958 = vadd.f32 %v1349, %v1838
  %v1959 = vadd.f32 %v1354, %v1843
  %v1960 = vadd.f32 %v1357, %v1846
  %v1961 = vadd.f32 %v1362, %v1851
  %v1962 = vadd.f32 %v1365, %v1854
  %v1963 = vadd.f32 %v1370, %v1859
  %v1964 = vadd.f32 %v1373, %v1862
  %v1965 = vadd.f32 %v1378, %v1867
  %v1966 = vadd.f32 %v1381, %v1870
  %v1967 = vadd.f32 %v1386, %v1875
  %v1968 = vadd.f32 %v1389, %v1878
  %v1969 = vadd.f32 %v1394, %v1883
  %v1970 = vadd.f32 %v1397, %v1886
  %v1971 = vadd.f32 %v1402, %v1891
  %v1972 = vadd.f32 %v1405, %v1894
  %v1973 = vadd.f32 %v1410, %v1899
  %v1974 = vadd.f32 %v1413, %v1902
  %v1975 = vld [vmem:[%s0 + $0x4] sm:$0xf]
  %v1976 = vld [vmem:[%s0 + $0x8] sm:$0xf]
  %v1977 = vld [vmem:[%s0 + $0xc] sm:$0xf]
  %v1978 = vld [vmem:[%s0 + $0x10] sm:$0xf]
  %v1979 = vld [vmem:[%s0 + $0x14] sm:$0xf]
  %v1980 = vld [vmem:[%s0 + $0x18] sm:$0xf]
  %v1981 = vld [vmem:[%s0 + $0x1c] sm:$0xf]
  %v1982 = vld [vmem:[%s0 + $0x20] sm:$0xf]
  %v1983 = vld [vmem:[%s0 + $0x24] sm:$0xf]
  %v1984 = vld [vmem:[%s0 + $0x28] sm:$0xf]
  %v1985 = vld [vmem:[%s0 + $0x2c] sm:$0xf]
  %v1986 = vld [vmem:[%s0 + $0x30] sm:$0xf]
  %v1987 = vld [vmem:[%s0 + $0x34] sm:$0xf]
  %v1988 = vld [vmem:[%s0 + $0x38] sm:$0xf]
  %v1989 = vld [vmem:[%s0 + $0x3c] sm:$0xf]
  %v1990 = vld [vmem:[%s0 + $0x40] sm:$0xf]
  %v1991 = vld [vmem:[%s0 + $0x44] sm:$0xf]
  %v1992 = vld [vmem:[%s0 + $0x48] sm:$0xf]
  %v1993 = vld [vmem:[%s0 + $0x4c] sm:$0xf]
  %v1994 = vld [vmem:[%s0 + $0x50] sm:$0xf]
  %v1995 = vld [vmem:[%s0 + $0x54] sm:$0xf]
  %v1996 = vld [vmem:[%s0 + $0x58] sm:$0xf]
  %v1997 = vld [vmem:[%s0 + $0x5c] sm:$0xf]
  %v1998 = vld [vmem:[%s0 + $0x60] sm:$0xf]
  %v1999 = vld [vmem:[%s0 + $0x64] sm:$0xf]
  %v2000 = vld [vmem:[%s0 + $0x68] sm:$0xf]
  %v2001 = vld [vmem:[%s0 + $0x6c] sm:$0xf]
  %v2002 = vld [vmem:[%s0 + $0x70] sm:$0xf]
  %v2003 = vld [vmem:[%s0 + $0x74] sm:$0xf]
  %v2004 = vld [vmem:[%s0 + $0x78] sm:$0xf]
  %v2005 = vld [vmem:[%s0 + $0x7c] sm:$0xf]
  %v2006 = vld [vmem:[%s0 + $0x80] sm:$0xf]
  %v2007 = vld [vmem:[%s0 + $0x84] sm:$0xf]
  %v2008 = vld [vmem:[%s0 + $0x88] sm:$0xf]
  %v2009 = vld [vmem:[%s0 + $0x8c] sm:$0xf]
  %v2010 = vld [vmem:[%s0 + $0x90] sm:$0xf]
  %v2011 = vld [vmem:[%s0 + $0x94] sm:$0xf]
  %v2012 = vld [vmem:[%s0 + $0x98] sm:$0xf]
  %v2013 = vld [vmem:[%s0 + $0x9c] sm:$0xf]
  %v2014 = vld [vmem:[%s0 + $0xa0] sm:$0xf]
  %v2015 = vld [vmem:[%s0 + $0xa4] sm:$0xf]
  %v2016 = vld [vmem:[%s0 + $0xa8] sm:$0xf]
  %v2017 = vld [vmem:[%s0 + $0xac] sm:$0xf]
  %v2018 = vld [vmem:[%s0 + $0xb0] sm:$0xf]
  %v2019 = vld [vmem:[%s0 + $0xb4] sm:$0xf]
  %v2020 = vld [vmem:[%s0 + $0xb8] sm:$0xf]
  %v2021 = vld [vmem:[%s0 + $0xbc] sm:$0xf]
  %v2022 = vld [vmem:[%s0 + $0xc0] sm:$0xf]
  %v2023 = vld [vmem:[%s0 + $0xc4] sm:$0xf]
  %v2024 = vld [vmem:[%s0 + $0xc8] sm:$0xf]
  %v2025 = vld [vmem:[%s0 + $0xcc] sm:$0xf]
  %v2026 = vld [vmem:[%s0 + $0xd0] sm:$0xf]
  %v2027 = vld [vmem:[%s0 + $0xd4] sm:$0xf]
  %v2028 = vld [vmem:[%s0 + $0xd8] sm:$0xf]
  %v2029 = vld [vmem:[%s0 + $0xdc] sm:$0xf]
  %v2030 = vld [vmem:[%s0 + $0xe0] sm:$0xf]
  %v2031 = vld [vmem:[%s0 + $0xe4] sm:$0xf]
  %v2032 = vld [vmem:[%s0 + $0xe8] sm:$0xf]
  %v2033 = vld [vmem:[%s0 + $0xec] sm:$0xf]
  %v2034 = vld [vmem:[%s0 + $0xf0] sm:$0xf]
  %v2035 = vld [vmem:[%s0 + $0xf4] sm:$0xf]
  %v2036 = vld [vmem:[%s0 + $0xf8] sm:$0xf]
  %v2037 = vld [vmem:[%s0 + $0xfc] sm:$0xf]
  %v2038 = vld [vmem:[%s0 + $0x100] sm:$0xf]
  %v2039 = vld [vmem:[%s0 + $0x104] sm:$0xf]
  %v2040 = vld [vmem:[%s0 + $0x108] sm:$0xf]
  %v2041 = vld [vmem:[%s0 + $0x10c] sm:$0xf]
  %v2042 = vld [vmem:[%s0 + $0x110] sm:$0xf]
  %v2043 = vld [vmem:[%s0 + $0x114] sm:$0xf]
  %v2044 = vld [vmem:[%s0 + $0x118] sm:$0xf]
  %v2045 = vld [vmem:[%s0 + $0x11c] sm:$0x1]
  %s2046 = scalar_lea.vmem %s1, 96
  %v2047 = vld [vmem:[%s2046] sm:$0xf]
  %v2048 = vld [vmem:[%s2046 + $0x4] sm:$0xf]
  %v2049 = vld [vmem:[%s2046 + $0x8] sm:$0xf]
  %v2050 = vld [vmem:[%s2046 + $0xc] sm:$0xf]
  %v2051 = vld [vmem:[%s2046 + $0x10] sm:$0xf]
  %v2052 = vld [vmem:[%s2046 + $0x14] sm:$0xf]
  %v2053 = vld [vmem:[%s2046 + $0x18] sm:$0xf]
  %v2054 = vld [vmem:[%s2046 + $0x1c] sm:$0xf]
  %v2126 = vunpack.c.l.b16 %v1975
  %v2127 = vunpack.c.l.b16 %v1976
  %v2128 = vunpack.c.l.b16 %v1977
  %v2129 = vunpack.c.l.b16 %v1978
  %v2130 = vunpack.c.l.b16 %v1979
  %v2131 = vunpack.c.l.b16 %v1980
  %v2132 = vunpack.c.l.b16 %v1981
  %v2133 = vunpack.c.l.b16 %v1982
  %v2134 = vunpack.c.l.b16 %v1983
  %v2135 = vunpack.c.l.b16 %v1984
  %v2136 = vunpack.c.l.b16 %v1985
  %v2137 = vunpack.c.l.b16 %v1986
  %v2138 = vunpack.c.l.b16 %v1987
  %v2139 = vunpack.c.l.b16 %v1988
  %v2140 = vunpack.c.l.b16 %v1989
  %v2141 = vunpack.c.l.b16 %v1990
  %v2142 = vunpack.c.l.b16 %v1991
  %v2143 = vunpack.c.l.b16 %v1992
  %v2144 = vunpack.c.l.b16 %v1993
  %v2145 = vunpack.c.l.b16 %v1994
  %v2146 = vunpack.c.l.b16 %v1995
  %v2147 = vunpack.c.l.b16 %v1996
  %v2148 = vunpack.c.l.b16 %v1997
  %v2149 = vunpack.c.l.b16 %v1998
  %v2150 = vunpack.c.l.b16 %v1999
  %v2151 = vunpack.c.l.b16 %v2000
  %v2152 = vunpack.c.l.b16 %v2001
  %v2153 = vunpack.c.l.b16 %v2002
  %v2154 = vunpack.c.l.b16 %v2003
  %v2155 = vunpack.c.l.b16 %v2004
  %v2156 = vunpack.c.l.b16 %v2005
  %v2157 = vunpack.c.l.b16 %v2006
  %v2158 = vunpack.c.l.b16 %v2007
  %v2159 = vunpack.c.l.b16 %v2008
  %v2160 = vunpack.c.l.b16 %v2009
  %v2161 = vunpack.c.l.b16 %v2010
  %v2162 = vunpack.c.l.b16 %v2011
  %v2163 = vunpack.c.l.b16 %v2012
  %v2164 = vunpack.c.l.b16 %v2013
  %v2165 = vunpack.c.l.b16 %v2014
  %v2166 = vunpack.c.l.b16 %v2015
  %v2167 = vunpack.c.l.b16 %v2016
  %v2168 = vunpack.c.l.b16 %v2017
  %v2169 = vunpack.c.l.b16 %v2018
  %v2170 = vunpack.c.l.b16 %v2019
  %v2171 = vunpack.c.l.b16 %v2020
  %v2172 = vunpack.c.l.b16 %v2021
  %v2173 = vunpack.c.l.b16 %v2022
  %v2174 = vunpack.c.l.b16 %v2023
  %v2175 = vunpack.c.l.b16 %v2024
  %v2176 = vunpack.c.l.b16 %v2025
  %v2177 = vunpack.c.l.b16 %v2026
  %v2178 = vunpack.c.l.b16 %v2027
  %v2179 = vunpack.c.l.b16 %v2028
  %v2180 = vunpack.c.l.b16 %v2029
  %v2181 = vunpack.c.l.b16 %v2030
  %v2182 = vunpack.c.l.b16 %v2031
  %v2183 = vunpack.c.l.b16 %v2032
  %v2184 = vunpack.c.l.b16 %v2033
  %v2185 = vunpack.c.l.b16 %v2034
  %v2186 = vunpack.c.l.b16 %v2035
  %v2187 = vunpack.c.l.b16 %v2036
  %v2188 = vunpack.c.l.b16 %v2037
  %v2189 = vunpack.c.l.b16 %v2038
  %v2190 = vunpack.c.l.b16 %v2039
  %v2191 = vunpack.c.l.b16 %v2040
  %v2192 = vunpack.c.l.b16 %v2041
  %v2193 = vunpack.c.l.b16 %v2042
  %v2194 = vunpack.c.l.b16 %v2043
  %v2195 = vunpack.c.l.b16 %v2044
  %v2196 = vunpack.c.l.b16 %v2045
  %v2197 = vpack.c.b16 %v2127, %v2126
  %v2198 = vpack.c.b16 %v2129, %v2128
  %v2199 = vpack.c.b16 %v2131, %v2130
  %v2200 = vpack.c.b16 %v2133, %v2132
  %v2201 = vpack.c.b16 %v2135, %v2134
  %v2202 = vpack.c.b16 %v2137, %v2136
  %v2203 = vpack.c.b16 %v2139, %v2138
  %v2204 = vpack.c.b16 %v2141, %v2140
  %v2205 = vpack.c.b16 %v2143, %v2142
  %v2206 = vpack.c.b16 %v2145, %v2144
  %v2207 = vpack.c.b16 %v2147, %v2146
  %v2208 = vpack.c.b16 %v2149, %v2148
  %v2209 = vpack.c.b16 %v2151, %v2150
  %v2210 = vpack.c.b16 %v2153, %v2152
  %v2211 = vpack.c.b16 %v2155, %v2154
  %v2212 = vpack.c.b16 %v2157, %v2156
  %v2213 = vpack.c.b16 %v2159, %v2158
  %v2214 = vpack.c.b16 %v2161, %v2160
  %v2215 = vpack.c.b16 %v2163, %v2162
  %v2216 = vpack.c.b16 %v2165, %v2164
  %v2217 = vpack.c.b16 %v2167, %v2166
  %v2218 = vpack.c.b16 %v2169, %v2168
  %v2219 = vpack.c.b16 %v2171, %v2170
  %v2220 = vpack.c.b16 %v2173, %v2172
  %v2221 = vpack.c.b16 %v2175, %v2174
  %v2222 = vpack.c.b16 %v2177, %v2176
  %v2223 = vpack.c.b16 %v2179, %v2178
  %v2224 = vpack.c.b16 %v2181, %v2180
  %v2225 = vpack.c.b16 %v2183, %v2182
  %v2226 = vpack.c.b16 %v2185, %v2184
  %v2227 = vpack.c.b16 %v2187, %v2186
  %v2228 = vpack.c.b16 %v2189, %v2188
  %v2229 = vpack.c.b16 %v2191, %v2190
  %v2230 = vpack.c.b16 %v2193, %v2192
  %v2231 = vpack.c.b16 %v2195, %v2194
  %v2232 = vpack.c.b16 %v2196, %v2196
  %v2234 = vshrl.u32 %v2197, 16
  %v2236 = vshll.u32 %v2197, 16
  %v2238 = vrot.slane %v2236, 1
  %v2239 = vor.u32 %v2234, %v2238
  %v2241 = vshll.u32 %v2198, 16
  %v2243 = vrot.slane %v2241, 1
  %v2244 = vsel %vm281, %v2239, %v2243
  %v2245 = vshrl.u32 %v2198, 16
  %v2247 = vor.u32 %v2245, %v2243
  %v2249 = vshll.u32 %v2199, 16
  %v2251 = vrot.slane %v2249, 1
  %v2252 = vsel %vm281, %v2247, %v2251
  %v2253 = vshrl.u32 %v2199, 16
  %v2255 = vor.u32 %v2253, %v2251
  %v2257 = vshll.u32 %v2200, 16
  %v2259 = vrot.slane %v2257, 1
  %v2260 = vsel %vm281, %v2255, %v2259
  %v2261 = vshrl.u32 %v2200, 16
  %v2263 = vor.u32 %v2261, %v2259
  %v2265 = vshll.u32 %v2201, 16
  %v2267 = vrot.slane %v2265, 1
  %v2268 = vsel %vm281, %v2263, %v2267
  %v2269 = vshrl.u32 %v2201, 16
  %v2271 = vor.u32 %v2269, %v2267
  %v2273 = vshll.u32 %v2202, 16
  %v2275 = vrot.slane %v2273, 1
  %v2276 = vsel %vm281, %v2271, %v2275
  %v2277 = vshrl.u32 %v2202, 16
  %v2279 = vor.u32 %v2277, %v2275
  %v2281 = vshll.u32 %v2203, 16
  %v2283 = vrot.slane %v2281, 1
  %v2284 = vsel %vm281, %v2279, %v2283
  %v2285 = vshrl.u32 %v2203, 16
  %v2287 = vor.u32 %v2285, %v2283
  %v2289 = vshll.u32 %v2204, 16
  %v2291 = vrot.slane %v2289, 1
  %v2292 = vsel %vm281, %v2287, %v2291
  %v2293 = vshrl.u32 %v2204, 16
  %v2295 = vor.u32 %v2293, %v2291
  %v2297 = vshll.u32 %v2205, 16
  %v2299 = vrot.slane %v2297, 1
  %v2300 = vsel %vm281, %v2295, %v2299
  %v2301 = vshrl.u32 %v2205, 16
  %v2303 = vor.u32 %v2301, %v2299
  %v2305 = vshll.u32 %v2206, 16
  %v2307 = vrot.slane %v2305, 1
  %v2308 = vsel %vm281, %v2303, %v2307
  %v2309 = vshrl.u32 %v2206, 16
  %v2311 = vor.u32 %v2309, %v2307
  %v2313 = vshll.u32 %v2207, 16
  %v2315 = vrot.slane %v2313, 1
  %v2316 = vsel %vm281, %v2311, %v2315
  %v2317 = vshrl.u32 %v2207, 16
  %v2319 = vor.u32 %v2317, %v2315
  %v2321 = vshll.u32 %v2208, 16
  %v2323 = vrot.slane %v2321, 1
  %v2324 = vsel %vm281, %v2319, %v2323
  %v2325 = vshrl.u32 %v2208, 16
  %v2327 = vor.u32 %v2325, %v2323
  %v2329 = vshll.u32 %v2209, 16
  %v2331 = vrot.slane %v2329, 1
  %v2332 = vsel %vm281, %v2327, %v2331
  %v2333 = vshrl.u32 %v2209, 16
  %v2335 = vor.u32 %v2333, %v2331
  %v2337 = vshll.u32 %v2210, 16
  %v2339 = vrot.slane %v2337, 1
  %v2340 = vsel %vm281, %v2335, %v2339
  %v2341 = vshrl.u32 %v2210, 16
  %v2343 = vor.u32 %v2341, %v2339
  %v2345 = vshll.u32 %v2211, 16
  %v2347 = vrot.slane %v2345, 1
  %v2348 = vsel %vm281, %v2343, %v2347
  %v2349 = vshrl.u32 %v2211, 16
  %v2351 = vor.u32 %v2349, %v2347
  %v2353 = vshll.u32 %v2212, 16
  %v2355 = vrot.slane %v2353, 1
  %v2356 = vsel %vm281, %v2351, %v2355
  %v2357 = vshrl.u32 %v2212, 16
  %v2359 = vor.u32 %v2357, %v2355
  %v2361 = vshll.u32 %v2213, 16
  %v2363 = vrot.slane %v2361, 1
  %v2364 = vsel %vm281, %v2359, %v2363
  %v2365 = vshrl.u32 %v2213, 16
  %v2367 = vor.u32 %v2365, %v2363
  %v2369 = vshll.u32 %v2214, 16
  %v2371 = vrot.slane %v2369, 1
  %v2372 = vsel %vm281, %v2367, %v2371
  %v2373 = vshrl.u32 %v2214, 16
  %v2375 = vor.u32 %v2373, %v2371
  %v2377 = vshll.u32 %v2215, 16
  %v2379 = vrot.slane %v2377, 1
  %v2380 = vsel %vm281, %v2375, %v2379
  %v2381 = vshrl.u32 %v2215, 16
  %v2383 = vor.u32 %v2381, %v2379
  %v2385 = vshll.u32 %v2216, 16
  %v2387 = vrot.slane %v2385, 1
  %v2388 = vsel %vm281, %v2383, %v2387
  %v2389 = vshrl.u32 %v2216, 16
  %v2391 = vor.u32 %v2389, %v2387
  %v2393 = vshll.u32 %v2217, 16
  %v2395 = vrot.slane %v2393, 1
  %v2396 = vsel %vm281, %v2391, %v2395
  %v2397 = vshrl.u32 %v2217, 16
  %v2399 = vor.u32 %v2397, %v2395
  %v2401 = vshll.u32 %v2218, 16
  %v2403 = vrot.slane %v2401, 1
  %v2404 = vsel %vm281, %v2399, %v2403
  %v2405 = vshrl.u32 %v2218, 16
  %v2407 = vor.u32 %v2405, %v2403
  %v2409 = vshll.u32 %v2219, 16
  %v2411 = vrot.slane %v2409, 1
  %v2412 = vsel %vm281, %v2407, %v2411
  %v2413 = vshrl.u32 %v2219, 16
  %v2415 = vor.u32 %v2413, %v2411
  %v2417 = vshll.u32 %v2220, 16
  %v2419 = vrot.slane %v2417, 1
  %v2420 = vsel %vm281, %v2415, %v2419
  %v2421 = vshrl.u32 %v2220, 16
  %v2423 = vor.u32 %v2421, %v2419
  %v2425 = vshll.u32 %v2221, 16
  %v2427 = vrot.slane %v2425, 1
  %v2428 = vsel %vm281, %v2423, %v2427
  %v2429 = vshrl.u32 %v2221, 16
  %v2431 = vor.u32 %v2429, %v2427
  %v2433 = vshll.u32 %v2222, 16
  %v2435 = vrot.slane %v2433, 1
  %v2436 = vsel %vm281, %v2431, %v2435
  %v2437 = vshrl.u32 %v2222, 16
  %v2439 = vor.u32 %v2437, %v2435
  %v2441 = vshll.u32 %v2223, 16
  %v2443 = vrot.slane %v2441, 1
  %v2444 = vsel %vm281, %v2439, %v2443
  %v2445 = vshrl.u32 %v2223, 16
  %v2447 = vor.u32 %v2445, %v2443
  %v2449 = vshll.u32 %v2224, 16
  %v2451 = vrot.slane %v2449, 1
  %v2452 = vsel %vm281, %v2447, %v2451
  %v2453 = vshrl.u32 %v2224, 16
  %v2455 = vor.u32 %v2453, %v2451
  %v2457 = vshll.u32 %v2225, 16
  %v2459 = vrot.slane %v2457, 1
  %v2460 = vsel %vm281, %v2455, %v2459
  %v2461 = vshrl.u32 %v2225, 16
  %v2463 = vor.u32 %v2461, %v2459
  %v2465 = vshll.u32 %v2226, 16
  %v2467 = vrot.slane %v2465, 1
  %v2468 = vsel %vm281, %v2463, %v2467
  %v2469 = vshrl.u32 %v2226, 16
  %v2471 = vor.u32 %v2469, %v2467
  %v2473 = vshll.u32 %v2227, 16
  %v2475 = vrot.slane %v2473, 1
  %v2476 = vsel %vm281, %v2471, %v2475
  %v2477 = vshrl.u32 %v2227, 16
  %v2479 = vor.u32 %v2477, %v2475
  %v2481 = vshll.u32 %v2228, 16
  %v2483 = vrot.slane %v2481, 1
  %v2484 = vsel %vm281, %v2479, %v2483
  %v2485 = vshrl.u32 %v2228, 16
  %v2487 = vor.u32 %v2485, %v2483
  %v2489 = vshll.u32 %v2229, 16
  %v2491 = vrot.slane %v2489, 1
  %v2492 = vsel %vm281, %v2487, %v2491
  %v2493 = vshrl.u32 %v2229, 16
  %v2495 = vor.u32 %v2493, %v2491
  %v2497 = vshll.u32 %v2230, 16
  %v2499 = vrot.slane %v2497, 1
  %v2500 = vsel %vm281, %v2495, %v2499
  %v2501 = vshrl.u32 %v2230, 16
  %v2503 = vor.u32 %v2501, %v2499
  %v2505 = vshll.u32 %v2231, 16
  %v2507 = vrot.slane %v2505, 1
  %v2508 = vsel %vm281, %v2503, %v2507
  %v2509 = vshrl.u32 %v2231, 16
  %v2511 = vor.u32 %v2509, %v2507
  %v2513 = vshll.u32 %v2232, 16
  %v2515 = vrot.slane %v2513, 1
  %v2516 = vsel %vm281, %v2511, %v2515
  %v2525 = vunpack.c.l.b16 %v2047
  %v2526 = vunpack.c.l.b16 %v2048
  %v2527 = vunpack.c.l.b16 %v2049
  %v2528 = vunpack.c.l.b16 %v2050
  %v2529 = vunpack.c.l.b16 %v2051
  %v2530 = vunpack.c.l.b16 %v2052
  %v2531 = vunpack.c.l.b16 %v2053
  %v2532 = vunpack.c.l.b16 %v2054
  %v2533 = vpack.c.b16 %v2526, %v2525
  %v2534 = vpack.c.b16 %v2528, %v2527
  %v2535 = vpack.c.b16 %v2530, %v2529
  %v2536 = vpack.c.b16 %v2532, %v2531
  %v2542 = vsel %vm590, %v2244, 0
  %v2545 = vsel %vm590, %v2252, 0
  %v2548 = vsel %vm590, %v2260, 0
  %v2551 = vsel %vm590, %v2268, 0
  %v2554 = vsel %vm590, %v2276, 0
  %v2557 = vsel %vm590, %v2284, 0
  %v2560 = vsel %vm590, %v2292, 0
  %v2563 = vsel %vm590, %v2300, 0
  %v2566 = vsel %vm590, %v2308, 0
  %v2569 = vsel %vm590, %v2316, 0
  %v2572 = vsel %vm590, %v2324, 0
  %v2575 = vsel %vm590, %v2332, 0
  %v2578 = vsel %vm590, %v2340, 0
  %v2581 = vsel %vm590, %v2348, 0
  %v2584 = vsel %vm590, %v2356, 0
  %v2587 = vsel %vm590, %v2364, 0
  %v2590 = vsel %vm590, %v2372, 0
  %v2593 = vsel %vm590, %v2380, 0
  %v2596 = vsel %vm590, %v2388, 0
  %v2599 = vsel %vm590, %v2396, 0
  %v2602 = vsel %vm590, %v2404, 0
  %v2605 = vsel %vm590, %v2412, 0
  %v2608 = vsel %vm590, %v2420, 0
  %v2611 = vsel %vm590, %v2428, 0
  %v2614 = vsel %vm590, %v2436, 0
  %v2617 = vsel %vm590, %v2444, 0
  %v2620 = vsel %vm590, %v2452, 0
  %v2623 = vsel %vm590, %v2460, 0
  %v2626 = vsel %vm590, %v2468, 0
  %v2629 = vsel %vm590, %v2476, 0
  %v2632 = vsel %vm590, %v2484, 0
  %v2635 = vsel %vm590, %v2492, 0
  %v2638 = vsel %vm590, %v2500, 0
  %v2641 = vsel %vm590, %v2508, 0
  %v2644 = vsel %vm590, %v2516, 0
  %2646 = vmatprep.subr.bf16.mxu0 0
  %2647 = vmatpush1.bf16.msra.mxu0 %v2533
  %2648 = vmatprep.subr.bf16.mxu0 0
  %2649 = vmatpush1.bf16.msra.mxu0 %v2534
  %2650 = vmatprep.subr.bf16.mxu0 0
  %2651 = vmatpush1.bf16.msra.mxu0 %v2535
  %2652 = vmatprep.subr.bf16.mxu0 0
  %2653 = vmatpush1.bf16.msra.mxu0 %v2536
  %2654 = vmatprep.subr.bf16.mxu0 0
  %2655 = vmatpush1.bf16.msra.mxu0 0
  %2656 = vmatprep.subr.bf16.mxu0 0
  %2657 = vmatpush1.bf16.msra.mxu0 0
  %2658 = vmatprep.subr.bf16.mxu0 0
  %2659 = vmatpush1.bf16.msra.mxu0 0
  %2660 = vmatprep.subr.bf16.mxu0 0
  %2661 = vmatpush1.bf16.msra.mxu0 0
  %2662 = vmatprep.subr.bf16.mxu0 0
  %2663 = vmatpush1.bf16.msra.mxu0 0
  %2664 = vmatprep.subr.bf16.mxu0 0
  %2665 = vmatpush1.bf16.msra.mxu0 0
  %2666 = vmatprep.subr.bf16.mxu0 0
  %2667 = vmatpush1.bf16.msra.mxu0 0
  %2668 = vmatprep.subr.bf16.mxu0 0
  %2669 = vmatpush1.bf16.msra.mxu0 0
  %2670 = vmatprep.subr.bf16.mxu0 0
  %2671 = vmatpush1.bf16.msra.mxu0 0
  %2672 = vmatprep.subr.bf16.mxu0 0
  %2673 = vmatpush1.bf16.msra.mxu0 0
  %2674 = vmatprep.subr.bf16.mxu0 0
  %2675 = vmatpush1.bf16.msra.mxu0 0
  %2676 = vmatprep.subr.bf16.mxu0 0
  %2677 = vmatpush1.bf16.msra.mxu0 0
  %2678 = vmatprep.mubr.bf16.mxu0 0
  %2679 = vmatmul.mubr.bf16.gmra.mrb[0].mxu0 %v2542
  %v2680 = vpop.f32.mrb[0].mxu0
  %v2681 = vadd.f32 0.0, %v2680
  %v2682 = vpop.f32.mrb[0].mxu0
  %v2683 = vpop.f32.mrb[0].mxu0
  %v2684 = vadd.f32 0.0, %v2683
  %v2685 = vpop.f32.mrb[0].mxu0
  %2686 = vmatprep.mubr.bf16.mxu0 0
  %2687 = vmatmul.mubr.bf16.gmra.mrb[0].mxu0 %v2545
  %v2688 = vpop.f32.mrb[0].mxu0
  %v2689 = vadd.f32 0.0, %v2688
  %v2690 = vpop.f32.mrb[0].mxu0
  %v2691 = vpop.f32.mrb[0].mxu0
  %v2692 = vadd.f32 0.0, %v2691
  %v2693 = vpop.f32.mrb[0].mxu0
  %2694 = vmatprep.mubr.bf16.mxu0 0
  %2695 = vmatmul.mubr.bf16.gmra.mrb[0].mxu0 %v2548
  %v2696 = vpop.f32.mrb[0].mxu0
  %v2697 = vadd.f32 0.0, %v2696
  %v2698 = vpop.f32.mrb[0].mxu0
  %v2699 = vpop.f32.mrb[0].mxu0
  %v2700 = vadd.f32 0.0, %v2699
  %v2701 = vpop.f32.mrb[0].mxu0
  %2702 = vmatprep.mubr.bf16.mxu0 0
  %2703 = vmatmul.mubr.bf16.gmra.mrb[0].mxu0 %v2551
  %v2704 = vpop.f32.mrb[0].mxu0
  %v2705 = vadd.f32 0.0, %v2704
  %v2706 = vpop.f32.mrb[0].mxu0
  %v2707 = vpop.f32.mrb[0].mxu0
  %v2708 = vadd.f32 0.0, %v2707
  %v2709 = vpop.f32.mrb[0].mxu0
  %2710 = vmatprep.mubr.bf16.mxu0 0
  %2711 = vmatmul.mubr.bf16.gmra.mrb[0].mxu0 %v2554
  %v2712 = vpop.f32.mrb[0].mxu0
  %v2713 = vadd.f32 0.0, %v2712
  %v2714 = vpop.f32.mrb[0].mxu0
  %v2715 = vpop.f32.mrb[0].mxu0
  %v2716 = vadd.f32 0.0, %v2715
  %v2717 = vpop.f32.mrb[0].mxu0
  %2718 = vmatprep.mubr.bf16.mxu0 0
  %2719 = vmatmul.mubr.bf16.gmra.mrb[0].mxu0 %v2557
  %v2720 = vpop.f32.mrb[0].mxu0
  %v2721 = vadd.f32 0.0, %v2720
  %v2722 = vpop.f32.mrb[0].mxu0
  %v2723 = vpop.f32.mrb[0].mxu0
  %v2724 = vadd.f32 0.0, %v2723
  %v2725 = vpop.f32.mrb[0].mxu0
  %2726 = vmatprep.mubr.bf16.mxu0 0
  %2727 = vmatmul.mubr.bf16.gmra.mrb[0].mxu0 %v2560
  %v2728 = vpop.f32.mrb[0].mxu0
  %v2729 = vadd.f32 0.0, %v2728
  %v2730 = vpop.f32.mrb[0].mxu0
  %v2731 = vpop.f32.mrb[0].mxu0
  %v2732 = vadd.f32 0.0, %v2731
  %v2733 = vpop.f32.mrb[0].mxu0
  %2734 = vmatprep.mubr.bf16.mxu0 0
  %2735 = vmatmul.mubr.bf16.gmra.mrb[0].mxu0 %v2563
  %v2736 = vpop.f32.mrb[0].mxu0
  %v2737 = vadd.f32 0.0, %v2736
  %v2738 = vpop.f32.mrb[0].mxu0
  %v2739 = vpop.f32.mrb[0].mxu0
  %v2740 = vadd.f32 0.0, %v2739
  %v2741 = vpop.f32.mrb[0].mxu0
  %2742 = vmatprep.mubr.bf16.mxu0 0
  %2743 = vmatmul.mubr.bf16.gmra.mrb[0].mxu0 %v2566
  %v2744 = vpop.f32.mrb[0].mxu0
  %v2745 = vadd.f32 0.0, %v2744
  %v2746 = vpop.f32.mrb[0].mxu0
  %v2747 = vpop.f32.mrb[0].mxu0
  %v2748 = vadd.f32 0.0, %v2747
  %v2749 = vpop.f32.mrb[0].mxu0
  %2750 = vmatprep.mubr.bf16.mxu0 0
  %2751 = vmatmul.mubr.bf16.gmra.mrb[0].mxu0 %v2569
  %v2752 = vpop.f32.mrb[0].mxu0
  %v2753 = vadd.f32 0.0, %v2752
  %v2754 = vpop.f32.mrb[0].mxu0
  %v2755 = vpop.f32.mrb[0].mxu0
  %v2756 = vadd.f32 0.0, %v2755
  %v2757 = vpop.f32.mrb[0].mxu0
  %2758 = vmatprep.mubr.bf16.mxu0 0
  %2759 = vmatmul.mubr.bf16.gmra.mrb[0].mxu0 %v2572
  %v2760 = vpop.f32.mrb[0].mxu0
  %v2761 = vadd.f32 0.0, %v2760
  %v2762 = vpop.f32.mrb[0].mxu0
  %v2763 = vpop.f32.mrb[0].mxu0
  %v2764 = vadd.f32 0.0, %v2763
  %v2765 = vpop.f32.mrb[0].mxu0
  %2766 = vmatprep.mubr.bf16.mxu0 0
  %2767 = vmatmul.mubr.bf16.gmra.mrb[0].mxu0 %v2575
  %v2768 = vpop.f32.mrb[0].mxu0
  %v2769 = vadd.f32 0.0, %v2768
  %v2770 = vpop.f32.mrb[0].mxu0
  %v2771 = vpop.f32.mrb[0].mxu0
  %v2772 = vadd.f32 0.0, %v2771
  %v2773 = vpop.f32.mrb[0].mxu0
  %2774 = vmatprep.mubr.bf16.mxu0 0
  %2775 = vmatmul.mubr.bf16.gmra.mrb[0].mxu0 %v2578
  %v2776 = vpop.f32.mrb[0].mxu0
  %v2777 = vadd.f32 0.0, %v2776
  %v2778 = vpop.f32.mrb[0].mxu0
  %v2779 = vpop.f32.mrb[0].mxu0
  %v2780 = vadd.f32 0.0, %v2779
  %v2781 = vpop.f32.mrb[0].mxu0
  %2782 = vmatprep.mubr.bf16.mxu0 0
  %2783 = vmatmul.mubr.bf16.gmra.mrb[0].mxu0 %v2581
  %v2784 = vpop.f32.mrb[0].mxu0
  %v2785 = vadd.f32 0.0, %v2784
  %v2786 = vpop.f32.mrb[0].mxu0
  %v2787 = vpop.f32.mrb[0].mxu0
  %v2788 = vadd.f32 0.0, %v2787
  %v2789 = vpop.f32.mrb[0].mxu0
  %2790 = vmatprep.mubr.bf16.mxu0 0
  %2791 = vmatmul.mubr.bf16.gmra.mrb[0].mxu0 %v2584
  %v2792 = vpop.f32.mrb[0].mxu0
  %v2793 = vadd.f32 0.0, %v2792
  %v2794 = vpop.f32.mrb[0].mxu0
  %v2795 = vpop.f32.mrb[0].mxu0
  %v2796 = vadd.f32 0.0, %v2795
  %v2797 = vpop.f32.mrb[0].mxu0
  %2798 = vmatprep.mubr.bf16.mxu0 0
  %2799 = vmatmul.mubr.bf16.gmra.mrb[0].mxu0 %v2587
  %v2800 = vpop.f32.mrb[0].mxu0
  %v2801 = vadd.f32 0.0, %v2800
  %v2802 = vpop.f32.mrb[0].mxu0
  %v2803 = vpop.f32.mrb[0].mxu0
  %v2804 = vadd.f32 0.0, %v2803
  %v2805 = vpop.f32.mrb[0].mxu0
  %2806 = vmatprep.mubr.bf16.mxu0 0
  %2807 = vmatmul.mubr.bf16.gmra.mrb[0].mxu0 %v2590
  %v2808 = vpop.f32.mrb[0].mxu0
  %v2809 = vadd.f32 0.0, %v2808
  %v2810 = vpop.f32.mrb[0].mxu0
  %v2811 = vpop.f32.mrb[0].mxu0
  %v2812 = vadd.f32 0.0, %v2811
  %v2813 = vpop.f32.mrb[0].mxu0
  %2814 = vmatprep.mubr.bf16.mxu0 0
  %2815 = vmatmul.mubr.bf16.gmra.mrb[0].mxu0 %v2593
  %v2816 = vpop.f32.mrb[0].mxu0
  %v2817 = vadd.f32 0.0, %v2816
  %v2818 = vpop.f32.mrb[0].mxu0
  %v2819 = vpop.f32.mrb[0].mxu0
  %v2820 = vadd.f32 0.0, %v2819
  %v2821 = vpop.f32.mrb[0].mxu0
  %2822 = vmatprep.mubr.bf16.mxu0 0
  %2823 = vmatmul.mubr.bf16.gmra.mrb[0].mxu0 %v2596
  %v2824 = vpop.f32.mrb[0].mxu0
  %v2825 = vadd.f32 0.0, %v2824
  %v2826 = vpop.f32.mrb[0].mxu0
  %v2827 = vpop.f32.mrb[0].mxu0
  %v2828 = vadd.f32 0.0, %v2827
  %v2829 = vpop.f32.mrb[0].mxu0
  %2830 = vmatprep.mubr.bf16.mxu0 0
  %2831 = vmatmul.mubr.bf16.gmra.mrb[0].mxu0 %v2599
  %v2832 = vpop.f32.mrb[0].mxu0
  %v2833 = vadd.f32 0.0, %v2832
  %v2834 = vpop.f32.mrb[0].mxu0
  %v2835 = vpop.f32.mrb[0].mxu0
  %v2836 = vadd.f32 0.0, %v2835
  %v2837 = vpop.f32.mrb[0].mxu0
  %2838 = vmatprep.mubr.bf16.mxu0 0
  %2839 = vmatmul.mubr.bf16.gmra.mrb[0].mxu0 %v2602
  %v2840 = vpop.f32.mrb[0].mxu0
  %v2841 = vadd.f32 0.0, %v2840
  %v2842 = vpop.f32.mrb[0].mxu0
  %v2843 = vpop.f32.mrb[0].mxu0
  %v2844 = vadd.f32 0.0, %v2843
  %v2845 = vpop.f32.mrb[0].mxu0
  %2846 = vmatprep.mubr.bf16.mxu0 0
  %2847 = vmatmul.mubr.bf16.gmra.mrb[0].mxu0 %v2605
  %v2848 = vpop.f32.mrb[0].mxu0
  %v2849 = vadd.f32 0.0, %v2848
  %v2850 = vpop.f32.mrb[0].mxu0
  %v2851 = vpop.f32.mrb[0].mxu0
  %v2852 = vadd.f32 0.0, %v2851
  %v2853 = vpop.f32.mrb[0].mxu0
  %2854 = vmatprep.mubr.bf16.mxu0 0
  %2855 = vmatmul.mubr.bf16.gmra.mrb[0].mxu0 %v2608
  %v2856 = vpop.f32.mrb[0].mxu0
  %v2857 = vadd.f32 0.0, %v2856
  %v2858 = vpop.f32.mrb[0].mxu0
  %v2859 = vpop.f32.mrb[0].mxu0
  %v2860 = vadd.f32 0.0, %v2859
  %v2861 = vpop.f32.mrb[0].mxu0
  %2862 = vmatprep.mubr.bf16.mxu0 0
  %2863 = vmatmul.mubr.bf16.gmra.mrb[0].mxu0 %v2611
  %v2864 = vpop.f32.mrb[0].mxu0
  %v2865 = vadd.f32 0.0, %v2864
  %v2866 = vpop.f32.mrb[0].mxu0
  %v2867 = vpop.f32.mrb[0].mxu0
  %v2868 = vadd.f32 0.0, %v2867
  %v2869 = vpop.f32.mrb[0].mxu0
  %2870 = vmatprep.mubr.bf16.mxu0 0
  %2871 = vmatmul.mubr.bf16.gmra.mrb[0].mxu0 %v2614
  %v2872 = vpop.f32.mrb[0].mxu0
  %v2873 = vadd.f32 0.0, %v2872
  %v2874 = vpop.f32.mrb[0].mxu0
  %v2875 = vpop.f32.mrb[0].mxu0
  %v2876 = vadd.f32 0.0, %v2875
  %v2877 = vpop.f32.mrb[0].mxu0
  %2878 = vmatprep.mubr.bf16.mxu0 0
  %2879 = vmatmul.mubr.bf16.gmra.mrb[0].mxu0 %v2617
  %v2880 = vpop.f32.mrb[0].mxu0
  %v2881 = vadd.f32 0.0, %v2880
  %v2882 = vpop.f32.mrb[0].mxu0
  %v2883 = vpop.f32.mrb[0].mxu0
  %v2884 = vadd.f32 0.0, %v2883
  %v2885 = vpop.f32.mrb[0].mxu0
  %2886 = vmatprep.mubr.bf16.mxu0 0
  %2887 = vmatmul.mubr.bf16.gmra.mrb[0].mxu0 %v2620
  %v2888 = vpop.f32.mrb[0].mxu0
  %v2889 = vadd.f32 0.0, %v2888
  %v2890 = vpop.f32.mrb[0].mxu0
  %v2891 = vpop.f32.mrb[0].mxu0
  %v2892 = vadd.f32 0.0, %v2891
  %v2893 = vpop.f32.mrb[0].mxu0
  %2894 = vmatprep.mubr.bf16.mxu0 0
  %2895 = vmatmul.mubr.bf16.gmra.mrb[0].mxu0 %v2623
  %v2896 = vpop.f32.mrb[0].mxu0
  %v2897 = vadd.f32 0.0, %v2896
  %v2898 = vpop.f32.mrb[0].mxu0
  %v2899 = vpop.f32.mrb[0].mxu0
  %v2900 = vadd.f32 0.0, %v2899
  %v2901 = vpop.f32.mrb[0].mxu0
  %2902 = vmatprep.mubr.bf16.mxu0 0
  %2903 = vmatmul.mubr.bf16.gmra.mrb[0].mxu0 %v2626
  %v2904 = vpop.f32.mrb[0].mxu0
  %v2905 = vadd.f32 0.0, %v2904
  %v2906 = vpop.f32.mrb[0].mxu0
  %v2907 = vpop.f32.mrb[0].mxu0
  %v2908 = vadd.f32 0.0, %v2907
  %v2909 = vpop.f32.mrb[0].mxu0
  %2910 = vmatprep.mubr.bf16.mxu0 0
  %2911 = vmatmul.mubr.bf16.gmra.mrb[0].mxu0 %v2629
  %v2912 = vpop.f32.mrb[0].mxu0
  %v2913 = vadd.f32 0.0, %v2912
  %v2914 = vpop.f32.mrb[0].mxu0
  %v2915 = vpop.f32.mrb[0].mxu0
  %v2916 = vadd.f32 0.0, %v2915
  %v2917 = vpop.f32.mrb[0].mxu0
  %2918 = vmatprep.mubr.bf16.mxu0 0
  %2919 = vmatmul.mubr.bf16.gmra.mrb[0].mxu0 %v2632
  %v2920 = vpop.f32.mrb[0].mxu0
  %v2921 = vadd.f32 0.0, %v2920
  %v2922 = vpop.f32.mrb[0].mxu0
  %v2923 = vpop.f32.mrb[0].mxu0
  %v2924 = vadd.f32 0.0, %v2923
  %v2925 = vpop.f32.mrb[0].mxu0
  %2926 = vmatprep.mubr.bf16.mxu0 0
  %2927 = vmatmul.mubr.bf16.gmra.mrb[0].mxu0 %v2635
  %v2928 = vpop.f32.mrb[0].mxu0
  %v2929 = vadd.f32 0.0, %v2928
  %v2930 = vpop.f32.mrb[0].mxu0
  %v2931 = vpop.f32.mrb[0].mxu0
  %v2932 = vadd.f32 0.0, %v2931
  %v2933 = vpop.f32.mrb[0].mxu0
  %2934 = vmatprep.mubr.bf16.mxu0 0
  %2935 = vmatmul.mubr.bf16.gmra.mrb[0].mxu0 %v2638
  %v2936 = vpop.f32.mrb[0].mxu0
  %v2937 = vadd.f32 0.0, %v2936
  %v2938 = vpop.f32.mrb[0].mxu0
  %v2939 = vpop.f32.mrb[0].mxu0
  %v2940 = vadd.f32 0.0, %v2939
  %v2941 = vpop.f32.mrb[0].mxu0
  %2942 = vmatprep.mubr.bf16.mxu0 0
  %2943 = vmatmul.mubr.bf16.gmra.mrb[0].mxu0 %v2641
  %v2944 = vpop.f32.mrb[0].mxu0
  %v2945 = vadd.f32 0.0, %v2944
  %v2946 = vpop.f32.mrb[0].mxu0
  %v2947 = vpop.f32.mrb[0].mxu0
  %v2948 = vadd.f32 0.0, %v2947
  %v2949 = vpop.f32.mrb[0].mxu0
  %2950 = vmatprep.mubr.bf16.mxu0 0
  %2951 = vmatmul.mubr.bf16.gmra.mrb[0].mxu0 %v2644
  %v2952 = vpop.f32.mrb[0].mxu0
  %v2953 = vadd.f32 0.0, %v2952
  %v2954 = vpop.f32.mrb[0].mxu0
  %v2955 = vpop.f32.mrb[0].mxu0
  %v2956 = vadd.f32 0.0, %v2955
  %v2957 = vpop.f32.mrb[0].mxu0
  %2958 = vdwg.mxu0
  %v2959 = vadd.f32 %v1905, %v2681
  %v2960 = vadd.f32 %v1906, %v2684
  %v2961 = vadd.f32 %v1907, %v2689
  %v2962 = vadd.f32 %v1908, %v2692
  %v2963 = vadd.f32 %v1909, %v2697
  %v2964 = vadd.f32 %v1910, %v2700
  %v2965 = vadd.f32 %v1911, %v2705
  %v2966 = vadd.f32 %v1912, %v2708
  %v2967 = vadd.f32 %v1913, %v2713
  %v2968 = vadd.f32 %v1914, %v2716
  %v2969 = vadd.f32 %v1915, %v2721
  %v2970 = vadd.f32 %v1916, %v2724
  %v2971 = vadd.f32 %v1917, %v2729
  %v2972 = vadd.f32 %v1918, %v2732
  %v2973 = vadd.f32 %v1919, %v2737
  %v2974 = vadd.f32 %v1920, %v2740
  %v2975 = vadd.f32 %v1921, %v2745
  %v2976 = vadd.f32 %v1922, %v2748
  %v2977 = vadd.f32 %v1923, %v2753
  %v2978 = vadd.f32 %v1924, %v2756
  %v2979 = vadd.f32 %v1925, %v2761
  %v2980 = vadd.f32 %v1926, %v2764
  %v2981 = vadd.f32 %v1927, %v2769
  %v2982 = vadd.f32 %v1928, %v2772
  %v2983 = vadd.f32 %v1929, %v2777
  %v2984 = vadd.f32 %v1930, %v2780
  %v2985 = vadd.f32 %v1931, %v2785
  %v2986 = vadd.f32 %v1932, %v2788
  %v2987 = vadd.f32 %v1933, %v2793
  %v2988 = vadd.f32 %v1934, %v2796
  %v2989 = vadd.f32 %v1935, %v2801
  %v2990 = vadd.f32 %v1936, %v2804
  %v2991 = vadd.f32 %v1937, %v2809
  %v2992 = vadd.f32 %v1938, %v2812
  %v2993 = vadd.f32 %v1939, %v2817
  %v2994 = vadd.f32 %v1940, %v2820
  %v2995 = vadd.f32 %v1941, %v2825
  %v2996 = vadd.f32 %v1942, %v2828
  %v2997 = vadd.f32 %v1943, %v2833
  %v2998 = vadd.f32 %v1944, %v2836
  %v2999 = vadd.f32 %v1945, %v2841
  %v3000 = vadd.f32 %v1946, %v2844
  %v3001 = vadd.f32 %v1947, %v2849
  %v3002 = vadd.f32 %v1948, %v2852
  %v3003 = vadd.f32 %v1949, %v2857
  %v3004 = vadd.f32 %v1950, %v2860
  %v3005 = vadd.f32 %v1951, %v2865
  %v3006 = vadd.f32 %v1952, %v2868
  %v3007 = vadd.f32 %v1953, %v2873
  %v3008 = vadd.f32 %v1954, %v2876
  %v3009 = vadd.f32 %v1955, %v2881
  %v3010 = vadd.f32 %v1956, %v2884
  %v3011 = vadd.f32 %v1957, %v2889
  %v3012 = vadd.f32 %v1958, %v2892
  %v3013 = vadd.f32 %v1959, %v2897
  %v3014 = vadd.f32 %v1960, %v2900
  %v3015 = vadd.f32 %v1961, %v2905
  %v3016 = vadd.f32 %v1962, %v2908
  %v3017 = vadd.f32 %v1963, %v2913
  %v3018 = vadd.f32 %v1964, %v2916
  %v3019 = vadd.f32 %v1965, %v2921
  %v3020 = vadd.f32 %v1966, %v2924
  %v3021 = vadd.f32 %v1967, %v2929
  %v3022 = vadd.f32 %v1968, %v2932
  %v3023 = vadd.f32 %v1969, %v2937
  %v3024 = vadd.f32 %v1970, %v2940
  %v3025 = vadd.f32 %v1971, %v2945
  %v3026 = vadd.f32 %v1972, %v2948
  %v3027 = vadd.f32 %v1973, %v2953
  %v3028 = vadd.f32 %v1974, %v2956
  %v3029 = vld [vmem:[%s2] sm:$0x1]
  %v3031 = vlaneseq
  %v3032 = vshrl.u32 %v3031, 7
  %v3033 = vsub.s32 0, %v3032
  %v3034 = vrot.slane %v3029, %v3033
  %v3036 = vadd.f32 %v2959, %v3034
  %v3037 = vadd.f32 %v2960, %v3034
  %v3038 = vadd.f32 %v2961, %v3034
  %v3039 = vadd.f32 %v2962, %v3034
  %v3040 = vadd.f32 %v2963, %v3034
  %v3041 = vadd.f32 %v2964, %v3034
  %v3042 = vadd.f32 %v2965, %v3034
  %v3043 = vadd.f32 %v2966, %v3034
  %v3044 = vadd.f32 %v2967, %v3034
  %v3045 = vadd.f32 %v2968, %v3034
  %v3046 = vadd.f32 %v2969, %v3034
  %v3047 = vadd.f32 %v2970, %v3034
  %v3048 = vadd.f32 %v2971, %v3034
  %v3049 = vadd.f32 %v2972, %v3034
  %v3050 = vadd.f32 %v2973, %v3034
  %v3051 = vadd.f32 %v2974, %v3034
  %v3052 = vadd.f32 %v2975, %v3034
  %v3053 = vadd.f32 %v2976, %v3034
  %v3054 = vadd.f32 %v2977, %v3034
  %v3055 = vadd.f32 %v2978, %v3034
  %v3056 = vadd.f32 %v2979, %v3034
  %v3057 = vadd.f32 %v2980, %v3034
  %v3058 = vadd.f32 %v2981, %v3034
  %v3059 = vadd.f32 %v2982, %v3034
  %v3060 = vadd.f32 %v2983, %v3034
  %v3061 = vadd.f32 %v2984, %v3034
  %v3062 = vadd.f32 %v2985, %v3034
  %v3063 = vadd.f32 %v2986, %v3034
  %v3064 = vadd.f32 %v2987, %v3034
  %v3065 = vadd.f32 %v2988, %v3034
  %v3066 = vadd.f32 %v2989, %v3034
  %v3067 = vadd.f32 %v2990, %v3034
  %v3068 = vadd.f32 %v2991, %v3034
  %v3069 = vadd.f32 %v2992, %v3034
  %v3070 = vadd.f32 %v2993, %v3034
  %v3071 = vadd.f32 %v2994, %v3034
  %v3072 = vadd.f32 %v2995, %v3034
  %v3073 = vadd.f32 %v2996, %v3034
  %v3074 = vadd.f32 %v2997, %v3034
  %v3075 = vadd.f32 %v2998, %v3034
  %v3076 = vadd.f32 %v2999, %v3034
  %v3077 = vadd.f32 %v3000, %v3034
  %v3078 = vadd.f32 %v3001, %v3034
  %v3079 = vadd.f32 %v3002, %v3034
  %v3080 = vadd.f32 %v3003, %v3034
  %v3081 = vadd.f32 %v3004, %v3034
  %v3082 = vadd.f32 %v3005, %v3034
  %v3083 = vadd.f32 %v3006, %v3034
  %v3084 = vadd.f32 %v3007, %v3034
  %v3085 = vadd.f32 %v3008, %v3034
  %v3086 = vadd.f32 %v3009, %v3034
  %v3087 = vadd.f32 %v3010, %v3034
  %v3088 = vadd.f32 %v3011, %v3034
  %v3089 = vadd.f32 %v3012, %v3034
  %v3090 = vadd.f32 %v3013, %v3034
  %v3091 = vadd.f32 %v3014, %v3034
  %v3092 = vadd.f32 %v3015, %v3034
  %v3093 = vadd.f32 %v3016, %v3034
  %v3094 = vadd.f32 %v3017, %v3034
  %v3095 = vadd.f32 %v3018, %v3034
  %v3096 = vadd.f32 %v3019, %v3034
  %v3097 = vadd.f32 %v3020, %v3034
  %v3098 = vadd.f32 %v3021, %v3034
  %v3099 = vadd.f32 %v3022, %v3034
  %v3100 = vadd.f32 %v3023, %v3034
  %v3101 = vadd.f32 %v3024, %v3034
  %v3102 = vadd.f32 %v3025, %v3034
  %v3103 = vadd.f32 %v3026, %v3034
  %v3104 = vadd.f32 %v3027, %v3034
  %v3105 = vadd.f32 %v3028, %v3034
  %v3106 = vmax.f32 %v3036, 0.0
  %v3107 = vmax.f32 %v3037, 0.0
  %v3108 = vmax.f32 %v3038, 0.0
  %v3109 = vmax.f32 %v3039, 0.0
  %v3110 = vmax.f32 %v3040, 0.0
  %v3111 = vmax.f32 %v3041, 0.0
  %v3112 = vmax.f32 %v3042, 0.0
  %v3113 = vmax.f32 %v3043, 0.0
  %v3114 = vmax.f32 %v3044, 0.0
  %v3115 = vmax.f32 %v3045, 0.0
  %v3116 = vmax.f32 %v3046, 0.0
  %v3117 = vmax.f32 %v3047, 0.0
  %v3118 = vmax.f32 %v3048, 0.0
  %v3119 = vmax.f32 %v3049, 0.0
  %v3120 = vmax.f32 %v3050, 0.0
  %v3121 = vmax.f32 %v3051, 0.0
  %v3122 = vmax.f32 %v3052, 0.0
  %v3123 = vmax.f32 %v3053, 0.0
  %v3124 = vmax.f32 %v3054, 0.0
  %v3125 = vmax.f32 %v3055, 0.0
  %v3126 = vmax.f32 %v3056, 0.0
  %v3127 = vmax.f32 %v3057, 0.0
  %v3128 = vmax.f32 %v3058, 0.0
  %v3129 = vmax.f32 %v3059, 0.0
  %v3130 = vmax.f32 %v3060, 0.0
  %v3131 = vmax.f32 %v3061, 0.0
  %v3132 = vmax.f32 %v3062, 0.0
  %v3133 = vmax.f32 %v3063, 0.0
  %v3134 = vmax.f32 %v3064, 0.0
  %v3135 = vmax.f32 %v3065, 0.0
  %v3136 = vmax.f32 %v3066, 0.0
  %v3137 = vmax.f32 %v3067, 0.0
  %v3138 = vmax.f32 %v3068, 0.0
  %v3139 = vmax.f32 %v3069, 0.0
  %v3140 = vmax.f32 %v3070, 0.0
  %v3141 = vmax.f32 %v3071, 0.0
  %v3142 = vmax.f32 %v3072, 0.0
  %v3143 = vmax.f32 %v3073, 0.0
  %v3144 = vmax.f32 %v3074, 0.0
  %v3145 = vmax.f32 %v3075, 0.0
  %v3146 = vmax.f32 %v3076, 0.0
  %v3147 = vmax.f32 %v3077, 0.0
  %v3148 = vmax.f32 %v3078, 0.0
  %v3149 = vmax.f32 %v3079, 0.0
  %v3150 = vmax.f32 %v3080, 0.0
  %v3151 = vmax.f32 %v3081, 0.0
  %v3152 = vmax.f32 %v3082, 0.0
  %v3153 = vmax.f32 %v3083, 0.0
  %v3154 = vmax.f32 %v3084, 0.0
  %v3155 = vmax.f32 %v3085, 0.0
  %v3156 = vmax.f32 %v3086, 0.0
  %v3157 = vmax.f32 %v3087, 0.0
  %v3158 = vmax.f32 %v3088, 0.0
  %v3159 = vmax.f32 %v3089, 0.0
  %v3160 = vmax.f32 %v3090, 0.0
  %v3161 = vmax.f32 %v3091, 0.0
  %v3162 = vmax.f32 %v3092, 0.0
  %v3163 = vmax.f32 %v3093, 0.0
  %v3164 = vmax.f32 %v3094, 0.0
  %v3165 = vmax.f32 %v3095, 0.0
  %v3166 = vmax.f32 %v3096, 0.0
  %v3167 = vmax.f32 %v3097, 0.0
  %v3168 = vmax.f32 %v3098, 0.0
  %v3169 = vmax.f32 %v3099, 0.0
  %v3170 = vmax.f32 %v3100, 0.0
  %v3171 = vmax.f32 %v3101, 0.0
  %v3172 = vmax.f32 %v3102, 0.0
  %v3173 = vmax.f32 %v3103, 0.0
  %v3174 = vmax.f32 %v3104, 0.0
  %v3175 = vmax.f32 %v3105, 0.0
  %3246 = vrot.lane.b32.xlu0 %v3106, 96
  %v3247 = vpop.permute.xlu0 %3246
  %3248 = vrot.lane.b32.xlu0 %v3107, 96
  %v3249 = vpop.permute.xlu0 %3248
  %3250 = vrot.lane.b32.xlu0 %v3108, 96
  %v3251 = vpop.permute.xlu0 %3250
  %3252 = vrot.lane.b32.xlu0 %v3109, 96
  %v3253 = vpop.permute.xlu0 %3252
  %3254 = vrot.lane.b32.xlu0 %v3110, 96
  %v3255 = vpop.permute.xlu0 %3254
  %3256 = vrot.lane.b32.xlu0 %v3111, 96
  %v3257 = vpop.permute.xlu0 %3256
  %3258 = vrot.lane.b32.xlu0 %v3112, 96
  %v3259 = vpop.permute.xlu0 %3258
  %3260 = vrot.lane.b32.xlu0 %v3113, 96
  %v3261 = vpop.permute.xlu0 %3260
  %3262 = vrot.lane.b32.xlu0 %v3114, 96
  %v3263 = vpop.permute.xlu0 %3262
  %3264 = vrot.lane.b32.xlu0 %v3115, 96
  %v3265 = vpop.permute.xlu0 %3264
  %3266 = vrot.lane.b32.xlu0 %v3116, 96
  %v3267 = vpop.permute.xlu0 %3266
  %3268 = vrot.lane.b32.xlu0 %v3117, 96
  %v3269 = vpop.permute.xlu0 %3268
  %3270 = vrot.lane.b32.xlu0 %v3118, 96
  %v3271 = vpop.permute.xlu0 %3270
  %3272 = vrot.lane.b32.xlu0 %v3119, 96
  %v3273 = vpop.permute.xlu0 %3272
  %3274 = vrot.lane.b32.xlu0 %v3120, 96
  %v3275 = vpop.permute.xlu0 %3274
  %3276 = vrot.lane.b32.xlu0 %v3121, 96
  %v3277 = vpop.permute.xlu0 %3276
  %3278 = vrot.lane.b32.xlu0 %v3122, 96
  %v3279 = vpop.permute.xlu0 %3278
  %3280 = vrot.lane.b32.xlu0 %v3123, 96
  %v3281 = vpop.permute.xlu0 %3280
  %3282 = vrot.lane.b32.xlu0 %v3124, 96
  %v3283 = vpop.permute.xlu0 %3282
  %3284 = vrot.lane.b32.xlu0 %v3125, 96
  %v3285 = vpop.permute.xlu0 %3284
  %3286 = vrot.lane.b32.xlu0 %v3126, 96
  %v3287 = vpop.permute.xlu0 %3286
  %3288 = vrot.lane.b32.xlu0 %v3127, 96
  %v3289 = vpop.permute.xlu0 %3288
  %3290 = vrot.lane.b32.xlu0 %v3128, 96
  %v3291 = vpop.permute.xlu0 %3290
  %3292 = vrot.lane.b32.xlu0 %v3129, 96
  %v3293 = vpop.permute.xlu0 %3292
  %3294 = vrot.lane.b32.xlu0 %v3130, 96
  %v3295 = vpop.permute.xlu0 %3294
  %3296 = vrot.lane.b32.xlu0 %v3131, 96
  %v3297 = vpop.permute.xlu0 %3296
  %3298 = vrot.lane.b32.xlu0 %v3132, 96
  %v3299 = vpop.permute.xlu0 %3298
  %3300 = vrot.lane.b32.xlu0 %v3133, 96
  %v3301 = vpop.permute.xlu0 %3300
  %3302 = vrot.lane.b32.xlu0 %v3134, 96
  %v3303 = vpop.permute.xlu0 %3302
  %3304 = vrot.lane.b32.xlu0 %v3135, 96
  %v3305 = vpop.permute.xlu0 %3304
  %3306 = vrot.lane.b32.xlu0 %v3136, 96
  %v3307 = vpop.permute.xlu0 %3306
  %3308 = vrot.lane.b32.xlu0 %v3137, 96
  %v3309 = vpop.permute.xlu0 %3308
  %3310 = vrot.lane.b32.xlu0 %v3138, 96
  %v3311 = vpop.permute.xlu0 %3310
  %3312 = vrot.lane.b32.xlu0 %v3139, 96
  %v3313 = vpop.permute.xlu0 %3312
  %3314 = vrot.lane.b32.xlu0 %v3140, 96
  %v3315 = vpop.permute.xlu0 %3314
  %3316 = vrot.lane.b32.xlu0 %v3141, 96
  %v3317 = vpop.permute.xlu0 %3316
  %3318 = vrot.lane.b32.xlu0 %v3142, 96
  %v3319 = vpop.permute.xlu0 %3318
  %3320 = vrot.lane.b32.xlu0 %v3143, 96
  %v3321 = vpop.permute.xlu0 %3320
  %3322 = vrot.lane.b32.xlu0 %v3144, 96
  %v3323 = vpop.permute.xlu0 %3322
  %3324 = vrot.lane.b32.xlu0 %v3145, 96
  %v3325 = vpop.permute.xlu0 %3324
  %3326 = vrot.lane.b32.xlu0 %v3146, 96
  %v3327 = vpop.permute.xlu0 %3326
  %3328 = vrot.lane.b32.xlu0 %v3147, 96
  %v3329 = vpop.permute.xlu0 %3328
  %3330 = vrot.lane.b32.xlu0 %v3148, 96
  %v3331 = vpop.permute.xlu0 %3330
  %3332 = vrot.lane.b32.xlu0 %v3149, 96
  %v3333 = vpop.permute.xlu0 %3332
  %3334 = vrot.lane.b32.xlu0 %v3150, 96
  %v3335 = vpop.permute.xlu0 %3334
  %3336 = vrot.lane.b32.xlu0 %v3151, 96
  %v3337 = vpop.permute.xlu0 %3336
  %3338 = vrot.lane.b32.xlu0 %v3152, 96
  %v3339 = vpop.permute.xlu0 %3338
  %3340 = vrot.lane.b32.xlu0 %v3153, 96
  %v3341 = vpop.permute.xlu0 %3340
  %3342 = vrot.lane.b32.xlu0 %v3154, 96
  %v3343 = vpop.permute.xlu0 %3342
  %3344 = vrot.lane.b32.xlu0 %v3155, 96
  %v3345 = vpop.permute.xlu0 %3344
  %3346 = vrot.lane.b32.xlu0 %v3156, 96
  %v3347 = vpop.permute.xlu0 %3346
  %3348 = vrot.lane.b32.xlu0 %v3157, 96
  %v3349 = vpop.permute.xlu0 %3348
  %3350 = vrot.lane.b32.xlu0 %v3158, 96
  %v3351 = vpop.permute.xlu0 %3350
  %3352 = vrot.lane.b32.xlu0 %v3159, 96
  %v3353 = vpop.permute.xlu0 %3352
  %3354 = vrot.lane.b32.xlu0 %v3160, 96
  %v3355 = vpop.permute.xlu0 %3354
  %3356 = vrot.lane.b32.xlu0 %v3161, 96
  %v3357 = vpop.permute.xlu0 %3356
  %3358 = vrot.lane.b32.xlu0 %v3162, 96
  %v3359 = vpop.permute.xlu0 %3358
  %3360 = vrot.lane.b32.xlu0 %v3163, 96
  %v3361 = vpop.permute.xlu0 %3360
  %3362 = vrot.lane.b32.xlu0 %v3164, 96
  %v3363 = vpop.permute.xlu0 %3362
  %3364 = vrot.lane.b32.xlu0 %v3165, 96
  %v3365 = vpop.permute.xlu0 %3364
  %3366 = vrot.lane.b32.xlu0 %v3166, 96
  %v3367 = vpop.permute.xlu0 %3366
  %3368 = vrot.lane.b32.xlu0 %v3167, 96
  %v3369 = vpop.permute.xlu0 %3368
  %3370 = vrot.lane.b32.xlu0 %v3168, 96
  %v3371 = vpop.permute.xlu0 %3370
  %3372 = vrot.lane.b32.xlu0 %v3169, 96
  %v3373 = vpop.permute.xlu0 %3372
  %3374 = vrot.lane.b32.xlu0 %v3170, 96
  %v3375 = vpop.permute.xlu0 %3374
  %3376 = vrot.lane.b32.xlu0 %v3171, 96
  %v3377 = vpop.permute.xlu0 %3376
  %3378 = vrot.lane.b32.xlu0 %v3172, 96
  %v3379 = vpop.permute.xlu0 %3378
  %3380 = vrot.lane.b32.xlu0 %v3173, 96
  %v3381 = vpop.permute.xlu0 %3380
  %3382 = vrot.lane.b32.xlu0 %v3174, 96
  %v3383 = vpop.permute.xlu0 %3382
  %3384 = vrot.lane.b32.xlu0 %v3175, 96
  %v3385 = vpop.permute.xlu0 %3384
  %v3456 = vmax.f32 %v3106, %v3247
  %v3457 = vmax.f32 %v3107, %v3249
  %v3458 = vmax.f32 %v3108, %v3251
  %v3459 = vmax.f32 %v3109, %v3253
  %v3460 = vmax.f32 %v3110, %v3255
  %v3461 = vmax.f32 %v3111, %v3257
  %v3462 = vmax.f32 %v3112, %v3259
  %v3463 = vmax.f32 %v3113, %v3261
  %v3464 = vmax.f32 %v3114, %v3263
  %v3465 = vmax.f32 %v3115, %v3265
  %v3466 = vmax.f32 %v3116, %v3267
  %v3467 = vmax.f32 %v3117, %v3269
  %v3468 = vmax.f32 %v3118, %v3271
  %v3469 = vmax.f32 %v3119, %v3273
  %v3470 = vmax.f32 %v3120, %v3275
  %v3471 = vmax.f32 %v3121, %v3277
  %v3472 = vmax.f32 %v3122, %v3279
  %v3473 = vmax.f32 %v3123, %v3281
  %v3474 = vmax.f32 %v3124, %v3283
  %v3475 = vmax.f32 %v3125, %v3285
  %v3476 = vmax.f32 %v3126, %v3287
  %v3477 = vmax.f32 %v3127, %v3289
  %v3478 = vmax.f32 %v3128, %v3291
  %v3479 = vmax.f32 %v3129, %v3293
  %v3480 = vmax.f32 %v3130, %v3295
  %v3481 = vmax.f32 %v3131, %v3297
  %v3482 = vmax.f32 %v3132, %v3299
  %v3483 = vmax.f32 %v3133, %v3301
  %v3484 = vmax.f32 %v3134, %v3303
  %v3485 = vmax.f32 %v3135, %v3305
  %v3486 = vmax.f32 %v3136, %v3307
  %v3487 = vmax.f32 %v3137, %v3309
  %v3488 = vmax.f32 %v3138, %v3311
  %v3489 = vmax.f32 %v3139, %v3313
  %v3490 = vmax.f32 %v3140, %v3315
  %v3491 = vmax.f32 %v3141, %v3317
  %v3492 = vmax.f32 %v3142, %v3319
  %v3493 = vmax.f32 %v3143, %v3321
  %v3494 = vmax.f32 %v3144, %v3323
  %v3495 = vmax.f32 %v3145, %v3325
  %v3496 = vmax.f32 %v3146, %v3327
  %v3497 = vmax.f32 %v3147, %v3329
  %v3498 = vmax.f32 %v3148, %v3331
  %v3499 = vmax.f32 %v3149, %v3333
  %v3500 = vmax.f32 %v3150, %v3335
  %v3501 = vmax.f32 %v3151, %v3337
  %v3502 = vmax.f32 %v3152, %v3339
  %v3503 = vmax.f32 %v3153, %v3341
  %v3504 = vmax.f32 %v3154, %v3343
  %v3505 = vmax.f32 %v3155, %v3345
  %v3506 = vmax.f32 %v3156, %v3347
  %v3507 = vmax.f32 %v3157, %v3349
  %v3508 = vmax.f32 %v3158, %v3351
  %v3509 = vmax.f32 %v3159, %v3353
  %v3510 = vmax.f32 %v3160, %v3355
  %v3511 = vmax.f32 %v3161, %v3357
  %v3512 = vmax.f32 %v3162, %v3359
  %v3513 = vmax.f32 %v3163, %v3361
  %v3514 = vmax.f32 %v3164, %v3363
  %v3515 = vmax.f32 %v3165, %v3365
  %v3516 = vmax.f32 %v3166, %v3367
  %v3517 = vmax.f32 %v3167, %v3369
  %v3518 = vmax.f32 %v3168, %v3371
  %v3519 = vmax.f32 %v3169, %v3373
  %v3520 = vmax.f32 %v3170, %v3375
  %v3521 = vmax.f32 %v3171, %v3377
  %v3522 = vmax.f32 %v3172, %v3379
  %v3523 = vmax.f32 %v3173, %v3381
  %v3524 = vmax.f32 %v3174, %v3383
  %v3525 = vmax.f32 %v3175, %v3385
  %3596 = vrot.lane.b32.xlu0 %v3456, 64
  %v3597 = vpop.permute.xlu0 %3596
  %3598 = vrot.lane.b32.xlu0 %v3457, 64
  %v3599 = vpop.permute.xlu0 %3598
  %3600 = vrot.lane.b32.xlu0 %v3458, 64
  %v3601 = vpop.permute.xlu0 %3600
  %3602 = vrot.lane.b32.xlu0 %v3459, 64
  %v3603 = vpop.permute.xlu0 %3602
  %3604 = vrot.lane.b32.xlu0 %v3460, 64
  %v3605 = vpop.permute.xlu0 %3604
  %3606 = vrot.lane.b32.xlu0 %v3461, 64
  %v3607 = vpop.permute.xlu0 %3606
  %3608 = vrot.lane.b32.xlu0 %v3462, 64
  %v3609 = vpop.permute.xlu0 %3608
  %3610 = vrot.lane.b32.xlu0 %v3463, 64
  %v3611 = vpop.permute.xlu0 %3610
  %3612 = vrot.lane.b32.xlu0 %v3464, 64
  %v3613 = vpop.permute.xlu0 %3612
  %3614 = vrot.lane.b32.xlu0 %v3465, 64
  %v3615 = vpop.permute.xlu0 %3614
  %3616 = vrot.lane.b32.xlu0 %v3466, 64
  %v3617 = vpop.permute.xlu0 %3616
  %3618 = vrot.lane.b32.xlu0 %v3467, 64
  %v3619 = vpop.permute.xlu0 %3618
  %3620 = vrot.lane.b32.xlu0 %v3468, 64
  %v3621 = vpop.permute.xlu0 %3620
  %3622 = vrot.lane.b32.xlu0 %v3469, 64
  %v3623 = vpop.permute.xlu0 %3622
  %3624 = vrot.lane.b32.xlu0 %v3470, 64
  %v3625 = vpop.permute.xlu0 %3624
  %3626 = vrot.lane.b32.xlu0 %v3471, 64
  %v3627 = vpop.permute.xlu0 %3626
  %3628 = vrot.lane.b32.xlu0 %v3472, 64
  %v3629 = vpop.permute.xlu0 %3628
  %3630 = vrot.lane.b32.xlu0 %v3473, 64
  %v3631 = vpop.permute.xlu0 %3630
  %3632 = vrot.lane.b32.xlu0 %v3474, 64
  %v3633 = vpop.permute.xlu0 %3632
  %3634 = vrot.lane.b32.xlu0 %v3475, 64
  %v3635 = vpop.permute.xlu0 %3634
  %3636 = vrot.lane.b32.xlu0 %v3476, 64
  %v3637 = vpop.permute.xlu0 %3636
  %3638 = vrot.lane.b32.xlu0 %v3477, 64
  %v3639 = vpop.permute.xlu0 %3638
  %3640 = vrot.lane.b32.xlu0 %v3478, 64
  %v3641 = vpop.permute.xlu0 %3640
  %3642 = vrot.lane.b32.xlu0 %v3479, 64
  %v3643 = vpop.permute.xlu0 %3642
  %3644 = vrot.lane.b32.xlu0 %v3480, 64
  %v3645 = vpop.permute.xlu0 %3644
  %3646 = vrot.lane.b32.xlu0 %v3481, 64
  %v3647 = vpop.permute.xlu0 %3646
  %3648 = vrot.lane.b32.xlu0 %v3482, 64
  %v3649 = vpop.permute.xlu0 %3648
  %3650 = vrot.lane.b32.xlu0 %v3483, 64
  %v3651 = vpop.permute.xlu0 %3650
  %3652 = vrot.lane.b32.xlu0 %v3484, 64
  %v3653 = vpop.permute.xlu0 %3652
  %3654 = vrot.lane.b32.xlu0 %v3485, 64
  %v3655 = vpop.permute.xlu0 %3654
  %3656 = vrot.lane.b32.xlu0 %v3486, 64
  %v3657 = vpop.permute.xlu0 %3656
  %3658 = vrot.lane.b32.xlu0 %v3487, 64
  %v3659 = vpop.permute.xlu0 %3658
  %3660 = vrot.lane.b32.xlu0 %v3488, 64
  %v3661 = vpop.permute.xlu0 %3660
  %3662 = vrot.lane.b32.xlu0 %v3489, 64
  %v3663 = vpop.permute.xlu0 %3662
  %3664 = vrot.lane.b32.xlu0 %v3490, 64
  %v3665 = vpop.permute.xlu0 %3664
  %3666 = vrot.lane.b32.xlu0 %v3491, 64
  %v3667 = vpop.permute.xlu0 %3666
  %3668 = vrot.lane.b32.xlu0 %v3492, 64
  %v3669 = vpop.permute.xlu0 %3668
  %3670 = vrot.lane.b32.xlu0 %v3493, 64
  %v3671 = vpop.permute.xlu0 %3670
  %3672 = vrot.lane.b32.xlu0 %v3494, 64
  %v3673 = vpop.permute.xlu0 %3672
  %3674 = vrot.lane.b32.xlu0 %v3495, 64
  %v3675 = vpop.permute.xlu0 %3674
  %3676 = vrot.lane.b32.xlu0 %v3496, 64
  %v3677 = vpop.permute.xlu0 %3676
  %3678 = vrot.lane.b32.xlu0 %v3497, 64
  %v3679 = vpop.permute.xlu0 %3678
  %3680 = vrot.lane.b32.xlu0 %v3498, 64
  %v3681 = vpop.permute.xlu0 %3680
  %3682 = vrot.lane.b32.xlu0 %v3499, 64
  %v3683 = vpop.permute.xlu0 %3682
  %3684 = vrot.lane.b32.xlu0 %v3500, 64
  %v3685 = vpop.permute.xlu0 %3684
  %3686 = vrot.lane.b32.xlu0 %v3501, 64
  %v3687 = vpop.permute.xlu0 %3686
  %3688 = vrot.lane.b32.xlu0 %v3502, 64
  %v3689 = vpop.permute.xlu0 %3688
  %3690 = vrot.lane.b32.xlu0 %v3503, 64
  %v3691 = vpop.permute.xlu0 %3690
  %3692 = vrot.lane.b32.xlu0 %v3504, 64
  %v3693 = vpop.permute.xlu0 %3692
  %3694 = vrot.lane.b32.xlu0 %v3505, 64
  %v3695 = vpop.permute.xlu0 %3694
  %3696 = vrot.lane.b32.xlu0 %v3506, 64
  %v3697 = vpop.permute.xlu0 %3696
  %3698 = vrot.lane.b32.xlu0 %v3507, 64
  %v3699 = vpop.permute.xlu0 %3698
  %3700 = vrot.lane.b32.xlu0 %v3508, 64
  %v3701 = vpop.permute.xlu0 %3700
  %3702 = vrot.lane.b32.xlu0 %v3509, 64
  %v3703 = vpop.permute.xlu0 %3702
  %3704 = vrot.lane.b32.xlu0 %v3510, 64
  %v3705 = vpop.permute.xlu0 %3704
  %3706 = vrot.lane.b32.xlu0 %v3511, 64
  %v3707 = vpop.permute.xlu0 %3706
  %3708 = vrot.lane.b32.xlu0 %v3512, 64
  %v3709 = vpop.permute.xlu0 %3708
  %3710 = vrot.lane.b32.xlu0 %v3513, 64
  %v3711 = vpop.permute.xlu0 %3710
  %3712 = vrot.lane.b32.xlu0 %v3514, 64
  %v3713 = vpop.permute.xlu0 %3712
  %3714 = vrot.lane.b32.xlu0 %v3515, 64
  %v3715 = vpop.permute.xlu0 %3714
  %3716 = vrot.lane.b32.xlu0 %v3516, 64
  %v3717 = vpop.permute.xlu0 %3716
  %3718 = vrot.lane.b32.xlu0 %v3517, 64
  %v3719 = vpop.permute.xlu0 %3718
  %3720 = vrot.lane.b32.xlu0 %v3518, 64
  %v3721 = vpop.permute.xlu0 %3720
  %3722 = vrot.lane.b32.xlu0 %v3519, 64
  %v3723 = vpop.permute.xlu0 %3722
  %3724 = vrot.lane.b32.xlu0 %v3520, 64
  %v3725 = vpop.permute.xlu0 %3724
  %3726 = vrot.lane.b32.xlu0 %v3521, 64
  %v3727 = vpop.permute.xlu0 %3726
  %3728 = vrot.lane.b32.xlu0 %v3522, 64
  %v3729 = vpop.permute.xlu0 %3728
  %3730 = vrot.lane.b32.xlu0 %v3523, 64
  %v3731 = vpop.permute.xlu0 %3730
  %3732 = vrot.lane.b32.xlu0 %v3524, 64
  %v3733 = vpop.permute.xlu0 %3732
  %3734 = vrot.lane.b32.xlu0 %v3525, 64
  %v3735 = vpop.permute.xlu0 %3734
  %v3806 = vmax.f32 %v3456, %v3597
  %v3807 = vmax.f32 %v3457, %v3599
  %v3808 = vmax.f32 %v3458, %v3601
  %v3809 = vmax.f32 %v3459, %v3603
  %v3810 = vmax.f32 %v3460, %v3605
  %v3811 = vmax.f32 %v3461, %v3607
  %v3812 = vmax.f32 %v3462, %v3609
  %v3813 = vmax.f32 %v3463, %v3611
  %v3814 = vmax.f32 %v3464, %v3613
  %v3815 = vmax.f32 %v3465, %v3615
  %v3816 = vmax.f32 %v3466, %v3617
  %v3817 = vmax.f32 %v3467, %v3619
  %v3818 = vmax.f32 %v3468, %v3621
  %v3819 = vmax.f32 %v3469, %v3623
  %v3820 = vmax.f32 %v3470, %v3625
  %v3821 = vmax.f32 %v3471, %v3627
  %v3822 = vmax.f32 %v3472, %v3629
  %v3823 = vmax.f32 %v3473, %v3631
  %v3824 = vmax.f32 %v3474, %v3633
  %v3825 = vmax.f32 %v3475, %v3635
  %v3826 = vmax.f32 %v3476, %v3637
  %v3827 = vmax.f32 %v3477, %v3639
  %v3828 = vmax.f32 %v3478, %v3641
  %v3829 = vmax.f32 %v3479, %v3643
  %v3830 = vmax.f32 %v3480, %v3645
  %v3831 = vmax.f32 %v3481, %v3647
  %v3832 = vmax.f32 %v3482, %v3649
  %v3833 = vmax.f32 %v3483, %v3651
  %v3834 = vmax.f32 %v3484, %v3653
  %v3835 = vmax.f32 %v3485, %v3655
  %v3836 = vmax.f32 %v3486, %v3657
  %v3837 = vmax.f32 %v3487, %v3659
  %v3838 = vmax.f32 %v3488, %v3661
  %v3839 = vmax.f32 %v3489, %v3663
  %v3840 = vmax.f32 %v3490, %v3665
  %v3841 = vmax.f32 %v3491, %v3667
  %v3842 = vmax.f32 %v3492, %v3669
  %v3843 = vmax.f32 %v3493, %v3671
  %v3844 = vmax.f32 %v3494, %v3673
  %v3845 = vmax.f32 %v3495, %v3675
  %v3846 = vmax.f32 %v3496, %v3677
  %v3847 = vmax.f32 %v3497, %v3679
  %v3848 = vmax.f32 %v3498, %v3681
  %v3849 = vmax.f32 %v3499, %v3683
  %v3850 = vmax.f32 %v3500, %v3685
  %v3851 = vmax.f32 %v3501, %v3687
  %v3852 = vmax.f32 %v3502, %v3689
  %v3853 = vmax.f32 %v3503, %v3691
  %v3854 = vmax.f32 %v3504, %v3693
  %v3855 = vmax.f32 %v3505, %v3695
  %v3856 = vmax.f32 %v3506, %v3697
  %v3857 = vmax.f32 %v3507, %v3699
  %v3858 = vmax.f32 %v3508, %v3701
  %v3859 = vmax.f32 %v3509, %v3703
  %v3860 = vmax.f32 %v3510, %v3705
  %v3861 = vmax.f32 %v3511, %v3707
  %v3862 = vmax.f32 %v3512, %v3709
  %v3863 = vmax.f32 %v3513, %v3711
  %v3864 = vmax.f32 %v3514, %v3713
  %v3865 = vmax.f32 %v3515, %v3715
  %v3866 = vmax.f32 %v3516, %v3717
  %v3867 = vmax.f32 %v3517, %v3719
  %v3868 = vmax.f32 %v3518, %v3721
  %v3869 = vmax.f32 %v3519, %v3723
  %v3870 = vmax.f32 %v3520, %v3725
  %v3871 = vmax.f32 %v3521, %v3727
  %v3872 = vmax.f32 %v3522, %v3729
  %v3873 = vmax.f32 %v3523, %v3731
  %v3874 = vmax.f32 %v3524, %v3733
  %v3875 = vmax.f32 %v3525, %v3735
  %v3876 = vpack.c.bf16 %v3807, %v3806
  %v3877 = vpack.c.bf16 %v3809, %v3808
  %v3878 = vpack.c.bf16 %v3811, %v3810
  %v3879 = vpack.c.bf16 %v3813, %v3812
  %v3880 = vpack.c.bf16 %v3815, %v3814
  %v3881 = vpack.c.bf16 %v3817, %v3816
  %v3882 = vpack.c.bf16 %v3819, %v3818
  %v3883 = vpack.c.bf16 %v3821, %v3820
  %v3884 = vpack.c.bf16 %v3823, %v3822
  %v3885 = vpack.c.bf16 %v3825, %v3824
  %v3886 = vpack.c.bf16 %v3827, %v3826
  %v3887 = vpack.c.bf16 %v3829, %v3828
  %v3888 = vpack.c.bf16 %v3831, %v3830
  %v3889 = vpack.c.bf16 %v3833, %v3832
  %v3890 = vpack.c.bf16 %v3835, %v3834
  %v3891 = vpack.c.bf16 %v3837, %v3836
  %v3892 = vpack.c.bf16 %v3839, %v3838
  %v3893 = vpack.c.bf16 %v3841, %v3840
  %v3894 = vpack.c.bf16 %v3843, %v3842
  %v3895 = vpack.c.bf16 %v3845, %v3844
  %v3896 = vpack.c.bf16 %v3847, %v3846
  %v3897 = vpack.c.bf16 %v3849, %v3848
  %v3898 = vpack.c.bf16 %v3851, %v3850
  %v3899 = vpack.c.bf16 %v3853, %v3852
  %v3900 = vpack.c.bf16 %v3855, %v3854
  %v3901 = vpack.c.bf16 %v3857, %v3856
  %v3902 = vpack.c.bf16 %v3859, %v3858
  %v3903 = vpack.c.bf16 %v3861, %v3860
  %v3904 = vpack.c.bf16 %v3863, %v3862
  %v3905 = vpack.c.bf16 %v3865, %v3864
  %v3906 = vpack.c.bf16 %v3867, %v3866
  %v3907 = vpack.c.bf16 %v3869, %v3868
  %v3908 = vpack.c.bf16 %v3871, %v3870
  %v3909 = vpack.c.bf16 %v3873, %v3872
  %v3910 = vpack.c.bf16 %v3875, %v3874
  %v3946 = vunpack.c.l.b16 %v3876
  %v3947 = vunpack.c.h.b16 %v3876
  %v3948 = vunpack.c.l.b16 %v3877
  %v3949 = vunpack.c.h.b16 %v3877
  %v3950 = vunpack.c.l.b16 %v3878
  %v3951 = vunpack.c.h.b16 %v3878
  %v3952 = vunpack.c.l.b16 %v3879
  %v3953 = vunpack.c.h.b16 %v3879
  %v3954 = vunpack.c.l.b16 %v3880
  %v3955 = vunpack.c.h.b16 %v3880
  %v3956 = vunpack.c.l.b16 %v3881
  %v3957 = vunpack.c.h.b16 %v3881
  %v3958 = vunpack.c.l.b16 %v3882
  %v3959 = vunpack.c.h.b16 %v3882
  %v3960 = vunpack.c.l.b16 %v3883
  %v3961 = vunpack.c.h.b16 %v3883
  %v3962 = vunpack.c.l.b16 %v3884
  %v3963 = vunpack.c.h.b16 %v3884
  %v3964 = vunpack.c.l.b16 %v3885
  %v3965 = vunpack.c.h.b16 %v3885
  %v3966 = vunpack.c.l.b16 %v3886
  %v3967 = vunpack.c.h.b16 %v3886
  %v3968 = vunpack.c.l.b16 %v3887
  %v3969 = vunpack.c.h.b16 %v3887
  %v3970 = vunpack.c.l.b16 %v3888
  %v3971 = vunpack.c.h.b16 %v3888
  %v3972 = vunpack.c.l.b16 %v3889
  %v3973 = vunpack.c.h.b16 %v3889
  %v3974 = vunpack.c.l.b16 %v3890
  %v3975 = vunpack.c.h.b16 %v3890
  %v3976 = vunpack.c.l.b16 %v3891
  %v3977 = vunpack.c.h.b16 %v3891
  %v3978 = vunpack.c.l.b16 %v3892
  %v3979 = vunpack.c.h.b16 %v3892
  %v3980 = vunpack.c.l.b16 %v3893
  %v3981 = vunpack.c.h.b16 %v3893
  %v3982 = vunpack.c.l.b16 %v3894
  %v3983 = vunpack.c.h.b16 %v3894
  %v3984 = vunpack.c.l.b16 %v3895
  %v3985 = vunpack.c.h.b16 %v3895
  %v3986 = vunpack.c.l.b16 %v3896
  %v3987 = vunpack.c.h.b16 %v3896
  %v3988 = vunpack.c.l.b16 %v3897
  %v3989 = vunpack.c.h.b16 %v3897
  %v3990 = vunpack.c.l.b16 %v3898
  %v3991 = vunpack.c.h.b16 %v3898
  %v3992 = vunpack.c.l.b16 %v3899
  %v3993 = vunpack.c.h.b16 %v3899
  %v3994 = vunpack.c.l.b16 %v3900
  %v3995 = vunpack.c.h.b16 %v3900
  %v3996 = vunpack.c.l.b16 %v3901
  %v3997 = vunpack.c.h.b16 %v3901
  %v3998 = vunpack.c.l.b16 %v3902
  %v3999 = vunpack.c.h.b16 %v3902
  %v4000 = vunpack.c.l.b16 %v3903
  %v4001 = vunpack.c.h.b16 %v3903
  %v4002 = vunpack.c.l.b16 %v3904
  %v4003 = vunpack.c.h.b16 %v3904
  %v4004 = vunpack.c.l.b16 %v3905
  %v4005 = vunpack.c.h.b16 %v3905
  %v4006 = vunpack.c.l.b16 %v3906
  %v4007 = vunpack.c.h.b16 %v3906
  %v4008 = vunpack.c.l.b16 %v3907
  %v4009 = vunpack.c.h.b16 %v3907
  %v4010 = vunpack.c.l.b16 %v3908
  %v4011 = vunpack.c.h.b16 %v3908
  %v4012 = vunpack.c.l.b16 %v3909
  %v4013 = vunpack.c.h.b16 %v3909
  %v4014 = vunpack.c.l.b16 %v3910
  %v4015 = vunpack.c.h.b16 %v3910
  %v4016 = vpack.c.b16 %v3946, %v3946
  %v4017 = vpack.c.b16 %v3947, %v3947
  %v4018 = vpack.c.b16 %v3948, %v3948
  %v4019 = vpack.c.b16 %v3949, %v3949
  %v4020 = vpack.c.b16 %v3950, %v3950
  %v4021 = vpack.c.b16 %v3951, %v3951
  %v4022 = vpack.c.b16 %v3952, %v3952
  %v4023 = vpack.c.b16 %v3953, %v3953
  %v4024 = vpack.c.b16 %v3954, %v3954
  %v4025 = vpack.c.b16 %v3955, %v3955
  %v4026 = vpack.c.b16 %v3956, %v3956
  %v4027 = vpack.c.b16 %v3957, %v3957
  %v4028 = vpack.c.b16 %v3958, %v3958
  %v4029 = vpack.c.b16 %v3959, %v3959
  %v4030 = vpack.c.b16 %v3960, %v3960
  %v4031 = vpack.c.b16 %v3961, %v3961
  %v4032 = vpack.c.b16 %v3962, %v3962
  %v4033 = vpack.c.b16 %v3963, %v3963
  %v4034 = vpack.c.b16 %v3964, %v3964
  %v4035 = vpack.c.b16 %v3965, %v3965
  %v4036 = vpack.c.b16 %v3966, %v3966
  %v4037 = vpack.c.b16 %v3967, %v3967
  %v4038 = vpack.c.b16 %v3968, %v3968
  %v4039 = vpack.c.b16 %v3969, %v3969
  %v4040 = vpack.c.b16 %v3970, %v3970
  %v4041 = vpack.c.b16 %v3971, %v3971
  %v4042 = vpack.c.b16 %v3972, %v3972
  %v4043 = vpack.c.b16 %v3973, %v3973
  %v4044 = vpack.c.b16 %v3974, %v3974
  %v4045 = vpack.c.b16 %v3975, %v3975
  %v4046 = vpack.c.b16 %v3976, %v3976
  %v4047 = vpack.c.b16 %v3977, %v3977
  %v4048 = vpack.c.b16 %v3978, %v3978
  %v4049 = vpack.c.b16 %v3979, %v3979
  %v4050 = vpack.c.b16 %v3980, %v3980
  %v4051 = vpack.c.b16 %v3981, %v3981
  %v4052 = vpack.c.b16 %v3982, %v3982
  %v4053 = vpack.c.b16 %v3983, %v3983
  %v4054 = vpack.c.b16 %v3984, %v3984
  %v4055 = vpack.c.b16 %v3985, %v3985
  %v4056 = vpack.c.b16 %v3986, %v3986
  %v4057 = vpack.c.b16 %v3987, %v3987
  %v4058 = vpack.c.b16 %v3988, %v3988
  %v4059 = vpack.c.b16 %v3989, %v3989
  %v4060 = vpack.c.b16 %v3990, %v3990
  %v4061 = vpack.c.b16 %v3991, %v3991
  %v4062 = vpack.c.b16 %v3992, %v3992
  %v4063 = vpack.c.b16 %v3993, %v3993
  %v4064 = vpack.c.b16 %v3994, %v3994
  %v4065 = vpack.c.b16 %v3995, %v3995
  %v4066 = vpack.c.b16 %v3996, %v3996
  %v4067 = vpack.c.b16 %v3997, %v3997
  %v4068 = vpack.c.b16 %v3998, %v3998
  %v4069 = vpack.c.b16 %v3999, %v3999
  %v4070 = vpack.c.b16 %v4000, %v4000
  %v4071 = vpack.c.b16 %v4001, %v4001
  %v4072 = vpack.c.b16 %v4002, %v4002
  %v4073 = vpack.c.b16 %v4003, %v4003
  %v4074 = vpack.c.b16 %v4004, %v4004
  %v4075 = vpack.c.b16 %v4005, %v4005
  %v4076 = vpack.c.b16 %v4006, %v4006
  %v4077 = vpack.c.b16 %v4007, %v4007
  %v4078 = vpack.c.b16 %v4008, %v4008
  %v4079 = vpack.c.b16 %v4009, %v4009
  %v4080 = vpack.c.b16 %v4010, %v4010
  %v4081 = vpack.c.b16 %v4011, %v4011
  %v4082 = vpack.c.b16 %v4012, %v4012
  %v4083 = vpack.c.b16 %v4013, %v4013
  %v4084 = vpack.c.b16 %v4014, %v4014
  %v4085 = vpack.c.b16 %v4015, %v4015
  %vm4156 = vcmask 257024
  %4157 = vst.msk [vmem:[%s3] sm:$0xf] %vm4156, %v4016
  %4158 = vst.msk [vmem:[%s3 + $0x4] sm:$0xf] %vm4156, %v4017
  %4159 = vst.msk [vmem:[%s3 + $0x8] sm:$0xf] %vm4156, %v4018
  %4160 = vst.msk [vmem:[%s3 + $0xc] sm:$0xf] %vm4156, %v4019
  %4161 = vst.msk [vmem:[%s3 + $0x10] sm:$0xf] %vm4156, %v4020
  %4162 = vst.msk [vmem:[%s3 + $0x14] sm:$0xf] %vm4156, %v4021
  %4163 = vst.msk [vmem:[%s3 + $0x18] sm:$0xf] %vm4156, %v4022
  %4164 = vst.msk [vmem:[%s3 + $0x1c] sm:$0xf] %vm4156, %v4023
  %4165 = vst.msk [vmem:[%s3 + $0x20] sm:$0xf] %vm4156, %v4024
  %4166 = vst.msk [vmem:[%s3 + $0x24] sm:$0xf] %vm4156, %v4025
  %4167 = vst.msk [vmem:[%s3 + $0x28] sm:$0xf] %vm4156, %v4026
  %4168 = vst.msk [vmem:[%s3 + $0x2c] sm:$0xf] %vm4156, %v4027
  %4169 = vst.msk [vmem:[%s3 + $0x30] sm:$0xf] %vm4156, %v4028
  %4170 = vst.msk [vmem:[%s3 + $0x34] sm:$0xf] %vm4156, %v4029
  %4171 = vst.msk [vmem:[%s3 + $0x38] sm:$0xf] %vm4156, %v4030
  %4172 = vst.msk [vmem:[%s3 + $0x3c] sm:$0xf] %vm4156, %v4031
  %4173 = vst.msk [vmem:[%s3 + $0x40] sm:$0xf] %vm4156, %v4032
  %4174 = vst.msk [vmem:[%s3 + $0x44] sm:$0xf] %vm4156, %v4033
  %4175 = vst.msk [vmem:[%s3 + $0x48] sm:$0xf] %vm4156, %v4034
  %4176 = vst.msk [vmem:[%s3 + $0x4c] sm:$0xf] %vm4156, %v4035
  %4177 = vst.msk [vmem:[%s3 + $0x50] sm:$0xf] %vm4156, %v4036
  %4178 = vst.msk [vmem:[%s3 + $0x54] sm:$0xf] %vm4156, %v4037
  %4179 = vst.msk [vmem:[%s3 + $0x58] sm:$0xf] %vm4156, %v4038
  %4180 = vst.msk [vmem:[%s3 + $0x5c] sm:$0xf] %vm4156, %v4039
  %4181 = vst.msk [vmem:[%s3 + $0x60] sm:$0xf] %vm4156, %v4040
  %4182 = vst.msk [vmem:[%s3 + $0x64] sm:$0xf] %vm4156, %v4041
  %4183 = vst.msk [vmem:[%s3 + $0x68] sm:$0xf] %vm4156, %v4042
  %4184 = vst.msk [vmem:[%s3 + $0x6c] sm:$0xf] %vm4156, %v4043
  %4185 = vst.msk [vmem:[%s3 + $0x70] sm:$0xf] %vm4156, %v4044
  %4186 = vst.msk [vmem:[%s3 + $0x74] sm:$0xf] %vm4156, %v4045
  %4187 = vst.msk [vmem:[%s3 + $0x78] sm:$0xf] %vm4156, %v4046
  %4188 = vst.msk [vmem:[%s3 + $0x7c] sm:$0xf] %vm4156, %v4047
  %4189 = vst.msk [vmem:[%s3 + $0x80] sm:$0xf] %vm4156, %v4048
  %4190 = vst.msk [vmem:[%s3 + $0x84] sm:$0xf] %vm4156, %v4049
  %4191 = vst.msk [vmem:[%s3 + $0x88] sm:$0xf] %vm4156, %v4050
  %4192 = vst.msk [vmem:[%s3 + $0x8c] sm:$0xf] %vm4156, %v4051
  %4193 = vst.msk [vmem:[%s3 + $0x90] sm:$0xf] %vm4156, %v4052
  %4194 = vst.msk [vmem:[%s3 + $0x94] sm:$0xf] %vm4156, %v4053
  %4195 = vst.msk [vmem:[%s3 + $0x98] sm:$0xf] %vm4156, %v4054
  %4196 = vst.msk [vmem:[%s3 + $0x9c] sm:$0xf] %vm4156, %v4055
  %4197 = vst.msk [vmem:[%s3 + $0xa0] sm:$0xf] %vm4156, %v4056
  %4198 = vst.msk [vmem:[%s3 + $0xa4] sm:$0xf] %vm4156, %v4057
  %4199 = vst.msk [vmem:[%s3 + $0xa8] sm:$0xf] %vm4156, %v4058
  %4200 = vst.msk [vmem:[%s3 + $0xac] sm:$0xf] %vm4156, %v4059
  %4201 = vst.msk [vmem:[%s3 + $0xb0] sm:$0xf] %vm4156, %v4060
  %4202 = vst.msk [vmem:[%s3 + $0xb4] sm:$0xf] %vm4156, %v4061
  %4203 = vst.msk [vmem:[%s3 + $0xb8] sm:$0xf] %vm4156, %v4062
  %4204 = vst.msk [vmem:[%s3 + $0xbc] sm:$0xf] %vm4156, %v4063
  %4205 = vst.msk [vmem:[%s3 + $0xc0] sm:$0xf] %vm4156, %v4064
  %4206 = vst.msk [vmem:[%s3 + $0xc4] sm:$0xf] %vm4156, %v4065
  %4207 = vst.msk [vmem:[%s3 + $0xc8] sm:$0xf] %vm4156, %v4066
  %4208 = vst.msk [vmem:[%s3 + $0xcc] sm:$0xf] %vm4156, %v4067
  %4209 = vst.msk [vmem:[%s3 + $0xd0] sm:$0xf] %vm4156, %v4068
  %4210 = vst.msk [vmem:[%s3 + $0xd4] sm:$0xf] %vm4156, %v4069
  %4211 = vst.msk [vmem:[%s3 + $0xd8] sm:$0xf] %vm4156, %v4070
  %4212 = vst.msk [vmem:[%s3 + $0xdc] sm:$0xf] %vm4156, %v4071
  %4213 = vst.msk [vmem:[%s3 + $0xe0] sm:$0xf] %vm4156, %v4072
  %4214 = vst.msk [vmem:[%s3 + $0xe4] sm:$0xf] %vm4156, %v4073
  %4215 = vst.msk [vmem:[%s3 + $0xe8] sm:$0xf] %vm4156, %v4074
  %4216 = vst.msk [vmem:[%s3 + $0xec] sm:$0xf] %vm4156, %v4075
  %4217 = vst.msk [vmem:[%s3 + $0xf0] sm:$0xf] %vm4156, %v4076
  %4218 = vst.msk [vmem:[%s3 + $0xf4] sm:$0xf] %vm4156, %v4077
  %4219 = vst.msk [vmem:[%s3 + $0xf8] sm:$0xf] %vm4156, %v4078
  %4220 = vst.msk [vmem:[%s3 + $0xfc] sm:$0xf] %vm4156, %v4079
  %4221 = vst.msk [vmem:[%s3 + $0x100] sm:$0xf] %vm4156, %v4080
  %4222 = vst.msk [vmem:[%s3 + $0x104] sm:$0xf] %vm4156, %v4081
  %4223 = vst.msk [vmem:[%s3 + $0x108] sm:$0xf] %vm4156, %v4082
  %4224 = vst.msk [vmem:[%s3 + $0x10c] sm:$0xf] %vm4156, %v4083
  %4225 = vst.msk [vmem:[%s3 + $0x110] sm:$0xf] %vm4156, %v4084
  %4226 = vst.msk [vmem:[%s3 + $0x114] sm:$0xf] %vm4156, %v4085
  // Predicated region
  $region14: #{cnn_forward.5} parent=0 // pred_check
    _
  $region15: #{cnn_forward.5} parent=0 // pred_check_branch
    %4228 = sbr.rel (0) target = $region17
  $region16: #{cnn_forward.5} parent=0 // pred_region
    _
  $region17: #{cnn_forward.5} parent=0 // pred_fallthru
    _
  // Predicated region
  $region18: #{cnn_forward.5} parent=0 // pred_check
    _
  $region19: #{cnn_forward.5} parent=0 // pred_check_branch
    %4230 = sbr.rel (0) target = $region21
  $region20: #{cnn_forward.5} parent=0 // pred_region
    _
  $region21: #{cnn_forward.5} parent=0 // pred_fallthru
    _

// kernel: cnn_forward.6
$region0: #{cnn_forward.6}
  #allocation0 [shape = 'u32[]', space=smem, size = 0x4, offset = 0x4, fixed_abs, tag = 'smem constant byte address 0x4 - core index']
  #allocation1 [shape = 'u32[144,128]{1,0:T(1,128)}', space=vmem, size = 0x12000, scoped, tag = 'internal scratch']
  %s0 = inlined_call_operand.vmem [shape: bf16[160,128], index: 0, kind: input, shape index: {}]
  %s1 = inlined_call_operand.vmem [shape: bf16[4,128,256], index: 1, kind: input, shape index: {}]
  %s2 = inlined_call_operand.vmem [shape: f32[1,256], index: 2, kind: input, shape index: {}]
  %s3 = inlined_call_operand.vmem [shape: bf16[160,64], index: 3, kind: output, shape index: {}]
  %s4 = sld [smem:[#allocation0]]
  $region22: #{cnn_forward.6} parent=0
    _
  %s6 = ssub.s32 1, %s4
  %s7 = scalar_select 0, %s6, %s4
  // Predicated region
  $region2: #{cnn_forward.6} parent=0 // pred_check
    _
  $region3: #{cnn_forward.6} parent=0 // pred_check_branch
    %9 = sbr.rel (0) target = $region5
  $region4: #{cnn_forward.6} parent=0 // pred_region
    _
  $region5: #{cnn_forward.6} parent=0 // pred_fallthru
    _
  // Predicated region
  $region6: #{cnn_forward.6} parent=0 // pred_check
    _
  $region7: #{cnn_forward.6} parent=0 // pred_check_branch
    %11 = sbr.rel (0) target = $region9
  $region8: #{cnn_forward.6} parent=0 // pred_region
    _
  $region9: #{cnn_forward.6} parent=0 // pred_fallthru
    _
  // Predicated region
  $region10: #{cnn_forward.6} parent=0 // pred_check
    _
  $region11: #{cnn_forward.6} parent=0 // pred_check_branch
    %13 = sbr.rel (0) target = $region13
  $region12: #{cnn_forward.6} parent=0 // pred_region
    _
  $region13: #{cnn_forward.6} parent=0 // pred_fallthru
    _
  %v15 = vld [vmem:[%s0] sm:$0xf]
  %v16 = vld [vmem:[%s0 + $0x4] sm:$0xf]
  %v17 = vld [vmem:[%s0 + $0x8] sm:$0xf]
  %v18 = vld [vmem:[%s0 + $0xc] sm:$0xf]
  %v19 = vld [vmem:[%s0 + $0x10] sm:$0xf]
  %v20 = vld [vmem:[%s0 + $0x14] sm:$0xf]
  %v21 = vld [vmem:[%s0 + $0x18] sm:$0xf]
  %v22 = vld [vmem:[%s0 + $0x1c] sm:$0xf]
  %v23 = vld [vmem:[%s0 + $0x20] sm:$0xf]
  %v24 = vld [vmem:[%s0 + $0x24] sm:$0xf]
  %v25 = vld [vmem:[%s0 + $0x28] sm:$0xf]
  %v26 = vld [vmem:[%s0 + $0x2c] sm:$0xf]
  %v27 = vld [vmem:[%s0 + $0x30] sm:$0xf]
  %v28 = vld [vmem:[%s0 + $0x34] sm:$0xf]
  %v29 = vld [vmem:[%s0 + $0x38] sm:$0xf]
  %v30 = vld [vmem:[%s0 + $0x3c] sm:$0xf]
  %v31 = vld [vmem:[%s0 + $0x40] sm:$0xf]
  %v32 = vld [vmem:[%s0 + $0x44] sm:$0xf]
  %v33 = vld [vmem:[%s0 + $0x48] sm:$0xf]
  %v34 = vld [vmem:[%s1] sm:$0xff]
  %v35 = vld [vmem:[%s1 + $0x8] sm:$0xff]
  %v36 = vld [vmem:[%s1 + $0x10] sm:$0xff]
  %v37 = vld [vmem:[%s1 + $0x18] sm:$0xff]
  %v38 = vld [vmem:[%s1 + $0x20] sm:$0xff]
  %v39 = vld [vmem:[%s1 + $0x28] sm:$0xff]
  %v40 = vld [vmem:[%s1 + $0x30] sm:$0xff]
  %v41 = vld [vmem:[%s1 + $0x38] sm:$0xff]
  %v42 = vld [vmem:[%s1 + $0x40] sm:$0xff]
  %v43 = vld [vmem:[%s1 + $0x48] sm:$0xff]
  %v44 = vld [vmem:[%s1 + $0x50] sm:$0xff]
  %v45 = vld [vmem:[%s1 + $0x58] sm:$0xff]
  %v46 = vld [vmem:[%s1 + $0x60] sm:$0xff]
  %v47 = vld [vmem:[%s1 + $0x68] sm:$0xff]
  %v48 = vld [vmem:[%s1 + $0x70] sm:$0xff]
  %v49 = vld [vmem:[%s1 + $0x78] sm:$0xff]
  %v50 = vld [vmem:[%s0] sm:$0xf]
  %v51 = vld [vmem:[%s0 + $0x4] sm:$0xf]
  %v52 = vld [vmem:[%s0 + $0x8] sm:$0xf]
  %v53 = vld [vmem:[%s0 + $0xc] sm:$0xf]
  %v54 = vld [vmem:[%s0 + $0x10] sm:$0xf]
  %v55 = vld [vmem:[%s0 + $0x14] sm:$0xf]
  %v56 = vld [vmem:[%s0 + $0x18] sm:$0xf]
  %v57 = vld [vmem:[%s0 + $0x1c] sm:$0xf]
  %v58 = vld [vmem:[%s0 + $0x20] sm:$0xf]
  %v59 = vld [vmem:[%s0 + $0x24] sm:$0xf]
  %v60 = vld [vmem:[%s0 + $0x28] sm:$0xf]
  %v61 = vld [vmem:[%s0 + $0x2c] sm:$0xf]
  %v62 = vld [vmem:[%s0 + $0x30] sm:$0xf]
  %v63 = vld [vmem:[%s0 + $0x34] sm:$0xf]
  %v64 = vld [vmem:[%s0 + $0x38] sm:$0xf]
  %v65 = vld [vmem:[%s0 + $0x3c] sm:$0xf]
  %v66 = vld [vmem:[%s0 + $0x40] sm:$0xf]
  %v67 = vld [vmem:[%s0 + $0x44] sm:$0xf]
  %v68 = vld [vmem:[%s0 + $0x48] sm:$0xf]
  %v69 = vld [vmem:[%s0 + $0x4c] sm:$0x1]
  %s70 = scalar_lea.vmem %s1, 128
  %v71 = vld [vmem:[%s70] sm:$0xff]
  %v72 = vld [vmem:[%s70 + $0x8] sm:$0xff]
  %v73 = vld [vmem:[%s70 + $0x10] sm:$0xff]
  %v74 = vld [vmem:[%s70 + $0x18] sm:$0xff]
  %v75 = vld [vmem:[%s70 + $0x20] sm:$0xff]
  %v76 = vld [vmem:[%s70 + $0x28] sm:$0xff]
  %v77 = vld [vmem:[%s70 + $0x30] sm:$0xff]
  %v78 = vld [vmem:[%s70 + $0x38] sm:$0xff]
  %v79 = vld [vmem:[%s70 + $0x40] sm:$0xff]
  %v80 = vld [vmem:[%s70 + $0x48] sm:$0xff]
  %v81 = vld [vmem:[%s70 + $0x50] sm:$0xff]
  %v82 = vld [vmem:[%s70 + $0x58] sm:$0xff]
  %v83 = vld [vmem:[%s70 + $0x60] sm:$0xff]
  %v84 = vld [vmem:[%s70 + $0x68] sm:$0xff]
  %v85 = vld [vmem:[%s70 + $0x70] sm:$0xff]
  %v86 = vld [vmem:[%s70 + $0x78] sm:$0xff]
  %v107 = vunpack.c.l.b16 %v50
  %v108 = vunpack.c.l.b16 %v51
  %v109 = vunpack.c.l.b16 %v52
  %v110 = vunpack.c.l.b16 %v53
  %v111 = vunpack.c.l.b16 %v54
  %v112 = vunpack.c.l.b16 %v55
  %v113 = vunpack.c.l.b16 %v56
  %v114 = vunpack.c.l.b16 %v57
  %v115 = vunpack.c.l.b16 %v58
  %v116 = vunpack.c.l.b16 %v59
  %v117 = vunpack.c.l.b16 %v60
  %v118 = vunpack.c.l.b16 %v61
  %v119 = vunpack.c.l.b16 %v62
  %v120 = vunpack.c.l.b16 %v63
  %v121 = vunpack.c.l.b16 %v64
  %v122 = vunpack.c.l.b16 %v65
  %v123 = vunpack.c.l.b16 %v66
  %v124 = vunpack.c.l.b16 %v67
  %v125 = vunpack.c.l.b16 %v68
  %v126 = vunpack.c.l.b16 %v69
  %v127 = vpack.c.b16 %v108, %v107
  %v128 = vpack.c.b16 %v110, %v109
  %v129 = vpack.c.b16 %v112, %v111
  %v130 = vpack.c.b16 %v114, %v113
  %v131 = vpack.c.b16 %v116, %v115
  %v132 = vpack.c.b16 %v118, %v117
  %v133 = vpack.c.b16 %v120, %v119
  %v134 = vpack.c.b16 %v122, %v121
  %v135 = vpack.c.b16 %v124, %v123
  %v136 = vpack.c.b16 %v126, %v125
  %vm137 = vsmask.f32 7424
  %v139 = vshrl.u32 %v127, 16
  %v141 = vshll.u32 %v127, 16
  %v143 = vrot.slane %v141, 1
  %v144 = vor.u32 %v139, %v143
  %v146 = vshll.u32 %v128, 16
  %v148 = vrot.slane %v146, 1
  %v149 = vsel %vm137, %v144, %v148
  %v150 = vshrl.u32 %v128, 16
  %v152 = vor.u32 %v150, %v148
  %v154 = vshll.u32 %v129, 16
  %v156 = vrot.slane %v154, 1
  %v157 = vsel %vm137, %v152, %v156
  %v158 = vshrl.u32 %v129, 16
  %v160 = vor.u32 %v158, %v156
  %v162 = vshll.u32 %v130, 16
  %v164 = vrot.slane %v162, 1
  %v165 = vsel %vm137, %v160, %v164
  %v166 = vshrl.u32 %v130, 16
  %v168 = vor.u32 %v166, %v164
  %v170 = vshll.u32 %v131, 16
  %v172 = vrot.slane %v170, 1
  %v173 = vsel %vm137, %v168, %v172
  %v174 = vshrl.u32 %v131, 16
  %v176 = vor.u32 %v174, %v172
  %v178 = vshll.u32 %v132, 16
  %v180 = vrot.slane %v178, 1
  %v181 = vsel %vm137, %v176, %v180
  %v182 = vshrl.u32 %v132, 16
  %v184 = vor.u32 %v182, %v180
  %v186 = vshll.u32 %v133, 16
  %v188 = vrot.slane %v186, 1
  %v189 = vsel %vm137, %v184, %v188
  %v190 = vshrl.u32 %v133, 16
  %v192 = vor.u32 %v190, %v188
  %v194 = vshll.u32 %v134, 16
  %v196 = vrot.slane %v194, 1
  %v197 = vsel %vm137, %v192, %v196
  %v198 = vshrl.u32 %v134, 16
  %v200 = vor.u32 %v198, %v196
  %v202 = vshll.u32 %v135, 16
  %v204 = vrot.slane %v202, 1
  %v205 = vsel %vm137, %v200, %v204
  %v206 = vshrl.u32 %v135, 16
  %v208 = vor.u32 %v206, %v204
  %v210 = vshll.u32 %v136, 16
  %v212 = vrot.slane %v210, 1
  %v213 = vsel %vm137, %v208, %v212
  %v214 = vshrl.u32 %v136, 16
  %v216 = vor.u32 %v214, %v212
  %v243 = vunpack.c.l.b16 %v71
  %v244 = vunpack.c.h.b16 %v71
  %v245 = vunpack.c.l.b16 %v72
  %v246 = vunpack.c.h.b16 %v72
  %v247 = vunpack.c.l.b16 %v73
  %v248 = vunpack.c.h.b16 %v73
  %v249 = vunpack.c.l.b16 %v74
  %v250 = vunpack.c.h.b16 %v74
  %v251 = vunpack.c.l.b16 %v75
  %v252 = vunpack.c.h.b16 %v75
  %v253 = vunpack.c.l.b16 %v76
  %v254 = vunpack.c.h.b16 %v76
  %v255 = vunpack.c.l.b16 %v77
  %v256 = vunpack.c.h.b16 %v77
  %v257 = vunpack.c.l.b16 %v78
  %v258 = vunpack.c.h.b16 %v78
  %v259 = vunpack.c.l.b16 %v79
  %v260 = vunpack.c.h.b16 %v79
  %v261 = vunpack.c.l.b16 %v80
  %v262 = vunpack.c.h.b16 %v80
  %v263 = vunpack.c.l.b16 %v81
  %v264 = vunpack.c.h.b16 %v81
  %v265 = vunpack.c.l.b16 %v82
  %v266 = vunpack.c.h.b16 %v82
  %v267 = vunpack.c.l.b16 %v83
  %v268 = vunpack.c.h.b16 %v83
  %v269 = vunpack.c.l.b16 %v84
  %v270 = vunpack.c.h.b16 %v84
  %v271 = vunpack.c.l.b16 %v85
  %v272 = vunpack.c.h.b16 %v85
  %v273 = vunpack.c.l.b16 %v86
  %v274 = vunpack.c.h.b16 %v86
  %v275 = vpack.c.b16 %v245, %v243
  %v276 = vpack.c.b16 %v246, %v244
  %v277 = vpack.c.b16 %v249, %v247
  %v278 = vpack.c.b16 %v250, %v248
  %v279 = vpack.c.b16 %v253, %v251
  %v280 = vpack.c.b16 %v254, %v252
  %v281 = vpack.c.b16 %v257, %v255
  %v282 = vpack.c.b16 %v258, %v256
  %v283 = vpack.c.b16 %v261, %v259
  %v284 = vpack.c.b16 %v262, %v260
  %v285 = vpack.c.b16 %v265, %v263
  %v286 = vpack.c.b16 %v266, %v264
  %v287 = vpack.c.b16 %v269, %v267
  %v288 = vpack.c.b16 %v270, %v268
  %v289 = vpack.c.b16 %v273, %v271
  %v290 = vpack.c.b16 %v274, %v272
  %307 = vmatprep.subr.bf16.mxu0 %v276
  %308 = vmatpush1.bf16.msra.mxu0 %v275
  %309 = vmatprep.subr.bf16.mxu0 %v278
  %310 = vmatpush1.bf16.msra.mxu0 %v277
  %311 = vmatprep.subr.bf16.mxu0 %v280
  %312 = vmatpush1.bf16.msra.mxu0 %v279
  %313 = vmatprep.subr.bf16.mxu0 %v282
  %314 = vmatpush1.bf16.msra.mxu0 %v281
  %315 = vmatprep.subr.bf16.mxu0 %v284
  %316 = vmatpush1.bf16.msra.mxu0 %v283
  %317 = vmatprep.subr.bf16.mxu0 %v286
  %318 = vmatpush1.bf16.msra.mxu0 %v285
  %319 = vmatprep.subr.bf16.mxu0 %v288
  %320 = vmatpush1.bf16.msra.mxu0 %v287
  %321 = vmatprep.subr.bf16.mxu0 %v290
  %322 = vmatpush1.bf16.msra.mxu0 %v289
  %323 = vmatprep.subr.bf16.mxu0 0
  %324 = vmatpush1.bf16.msra.mxu0 0
  %325 = vmatprep.subr.bf16.mxu0 0
  %326 = vmatpush1.bf16.msra.mxu0 0
  %327 = vmatprep.subr.bf16.mxu0 0
  %328 = vmatpush1.bf16.msra.mxu0 0
  %329 = vmatprep.subr.bf16.mxu0 0
  %330 = vmatpush1.bf16.msra.mxu0 0
  %331 = vmatprep.subr.bf16.mxu0 0
  %332 = vmatpush1.bf16.msra.mxu0 0
  %333 = vmatprep.subr.bf16.mxu0 0
  %334 = vmatpush1.bf16.msra.mxu0 0
  %335 = vmatprep.subr.bf16.mxu0 0
  %336 = vmatpush1.bf16.msra.mxu0 0
  %337 = vmatprep.subr.bf16.mxu0 0
  %338 = vmatpush1.bf16.msra.mxu0 0
  %339 = vmatprep.mubr.bf16.mxu0 0
  %340 = vmatmul.mubr.bf16.gmra.mrb[0].mxu0 %v149
  %v341 = vpop.f32.mrb[0].mxu0
  %v342 = vadd.f32 0.0, %v341
  %v343 = vpop.f32.mrb[0].mxu0
  %v344 = vadd.f32 0.0, %v343
  %v345 = vpop.f32.mrb[0].mxu0
  %v346 = vadd.f32 0.0, %v345
  %v347 = vpop.f32.mrb[0].mxu0
  %v348 = vadd.f32 0.0, %v347
  %349 = vmatprep.mubr.bf16.mxu0 0
  %350 = vmatmul.mubr.bf16.gmra.mrb[0].mxu0 %v157
  %v351 = vpop.f32.mrb[0].mxu0
  %v352 = vadd.f32 0.0, %v351
  %v353 = vpop.f32.mrb[0].mxu0
  %v354 = vadd.f32 0.0, %v353
  %v355 = vpop.f32.mrb[0].mxu0
  %v356 = vadd.f32 0.0, %v355
  %v357 = vpop.f32.mrb[0].mxu0
  %v358 = vadd.f32 0.0, %v357
  %359 = vmatprep.mubr.bf16.mxu0 0
  %360 = vmatmul.mubr.bf16.gmra.mrb[0].mxu0 %v165
  %v361 = vpop.f32.mrb[0].mxu0
  %v362 = vadd.f32 0.0, %v361
  %v363 = vpop.f32.mrb[0].mxu0
  %v364 = vadd.f32 0.0, %v363
  %v365 = vpop.f32.mrb[0].mxu0
  %v366 = vadd.f32 0.0, %v365
  %v367 = vpop.f32.mrb[0].mxu0
  %v368 = vadd.f32 0.0, %v367
  %369 = vmatprep.mubr.bf16.mxu0 0
  %370 = vmatmul.mubr.bf16.gmra.mrb[0].mxu0 %v173
  %v371 = vpop.f32.mrb[0].mxu0
  %v372 = vadd.f32 0.0, %v371
  %v373 = vpop.f32.mrb[0].mxu0
  %v374 = vadd.f32 0.0, %v373
  %v375 = vpop.f32.mrb[0].mxu0
  %v376 = vadd.f32 0.0, %v375
  %v377 = vpop.f32.mrb[0].mxu0
  %v378 = vadd.f32 0.0, %v377
  %379 = vmatprep.mubr.bf16.mxu0 0
  %380 = vmatmul.mubr.bf16.gmra.mrb[0].mxu0 %v181
  %v381 = vpop.f32.mrb[0].mxu0
  %v382 = vadd.f32 0.0, %v381
  %v383 = vpop.f32.mrb[0].mxu0
  %v384 = vadd.f32 0.0, %v383
  %v385 = vpop.f32.mrb[0].mxu0
  %v386 = vadd.f32 0.0, %v385
  %v387 = vpop.f32.mrb[0].mxu0
  %v388 = vadd.f32 0.0, %v387
  %389 = vmatprep.mubr.bf16.mxu0 0
  %390 = vmatmul.mubr.bf16.gmra.mrb[0].mxu0 %v189
  %v391 = vpop.f32.mrb[0].mxu0
  %v392 = vadd.f32 0.0, %v391
  %v393 = vpop.f32.mrb[0].mxu0
  %v394 = vadd.f32 0.0, %v393
  %v395 = vpop.f32.mrb[0].mxu0
  %v396 = vadd.f32 0.0, %v395
  %v397 = vpop.f32.mrb[0].mxu0
  %v398 = vadd.f32 0.0, %v397
  %399 = vmatprep.mubr.bf16.mxu0 0
  %400 = vmatmul.mubr.bf16.gmra.mrb[0].mxu0 %v197
  %v401 = vpop.f32.mrb[0].mxu0
  %v402 = vadd.f32 0.0, %v401
  %v403 = vpop.f32.mrb[0].mxu0
  %v404 = vadd.f32 0.0, %v403
  %v405 = vpop.f32.mrb[0].mxu0
  %v406 = vadd.f32 0.0, %v405
  %v407 = vpop.f32.mrb[0].mxu0
  %v408 = vadd.f32 0.0, %v407
  %409 = vmatprep.mubr.bf16.mxu0 0
  %410 = vmatmul.mubr.bf16.gmra.mrb[0].mxu0 %v205
  %v411 = vpop.f32.mrb[0].mxu0
  %v412 = vadd.f32 0.0, %v411
  %v413 = vpop.f32.mrb[0].mxu0
  %v414 = vadd.f32 0.0, %v413
  %v415 = vpop.f32.mrb[0].mxu0
  %v416 = vadd.f32 0.0, %v415
  %v417 = vpop.f32.mrb[0].mxu0
  %v418 = vadd.f32 0.0, %v417
  %419 = vmatprep.mubr.bf16.mxu0 0
  %420 = vmatmul.mubr.bf16.gmra.mrb[0].mxu0 %v213
  %v421 = vpop.f32.mrb[0].mxu0
  %v422 = vadd.f32 0.0, %v421
  %v423 = vpop.f32.mrb[0].mxu0
  %v424 = vadd.f32 0.0, %v423
  %v425 = vpop.f32.mrb[0].mxu0
  %v426 = vadd.f32 0.0, %v425
  %v427 = vpop.f32.mrb[0].mxu0
  %v428 = vadd.f32 0.0, %v427
  %429 = vmatprep.mubr.bf16.mxu0 0
  %430 = vmatmul.mubr.bf16.gmra.mrb[0].mxu0 %v216
  %v431 = vpop.f32.mrb[0].mxu0
  %v432 = vadd.f32 0.0, %v431
  %v433 = vpop.f32.mrb[0].mxu0
  %v434 = vadd.f32 0.0, %v433
  %v435 = vpop.f32.mrb[0].mxu0
  %v436 = vpop.f32.mrb[0].mxu0
  %437 = vdwg.mxu0
  %v457 = vunpack.c.l.b16 %v15
  %v458 = vunpack.c.l.b16 %v16
  %v459 = vunpack.c.l.b16 %v17
  %v460 = vunpack.c.l.b16 %v18
  %v461 = vunpack.c.l.b16 %v19
  %v462 = vunpack.c.l.b16 %v20
  %v463 = vunpack.c.l.b16 %v21
  %v464 = vunpack.c.l.b16 %v22
  %v465 = vunpack.c.l.b16 %v23
  %v466 = vunpack.c.l.b16 %v24
  %v467 = vunpack.c.l.b16 %v25
  %v468 = vunpack.c.l.b16 %v26
  %v469 = vunpack.c.l.b16 %v27
  %v470 = vunpack.c.l.b16 %v28
  %v471 = vunpack.c.l.b16 %v29
  %v472 = vunpack.c.l.b16 %v30
  %v473 = vunpack.c.l.b16 %v31
  %v474 = vunpack.c.l.b16 %v32
  %v475 = vunpack.c.l.b16 %v33
  %v476 = vpack.c.b16 %v458, %v457
  %v477 = vpack.c.b16 %v460, %v459
  %v478 = vpack.c.b16 %v462, %v461
  %v479 = vpack.c.b16 %v464, %v463
  %v480 = vpack.c.b16 %v466, %v465
  %v481 = vpack.c.b16 %v468, %v467
  %v482 = vpack.c.b16 %v470, %v469
  %v483 = vpack.c.b16 %v472, %v471
  %v484 = vpack.c.b16 %v474, %v473
  %v485 = vpack.c.b16 %v475, %v475
  %v512 = vunpack.c.l.b16 %v34
  %v513 = vunpack.c.h.b16 %v34
  %v514 = vunpack.c.l.b16 %v35
  %v515 = vunpack.c.h.b16 %v35
  %v516 = vunpack.c.l.b16 %v36
  %v517 = vunpack.c.h.b16 %v36
  %v518 = vunpack.c.l.b16 %v37
  %v519 = vunpack.c.h.b16 %v37
  %v520 = vunpack.c.l.b16 %v38
  %v521 = vunpack.c.h.b16 %v38
  %v522 = vunpack.c.l.b16 %v39
  %v523 = vunpack.c.h.b16 %v39
  %v524 = vunpack.c.l.b16 %v40
  %v525 = vunpack.c.h.b16 %v40
  %v526 = vunpack.c.l.b16 %v41
  %v527 = vunpack.c.h.b16 %v41
  %v528 = vunpack.c.l.b16 %v42
  %v529 = vunpack.c.h.b16 %v42
  %v530 = vunpack.c.l.b16 %v43
  %v531 = vunpack.c.h.b16 %v43
  %v532 = vunpack.c.l.b16 %v44
  %v533 = vunpack.c.h.b16 %v44
  %v534 = vunpack.c.l.b16 %v45
  %v535 = vunpack.c.h.b16 %v45
  %v536 = vunpack.c.l.b16 %v46
  %v537 = vunpack.c.h.b16 %v46
  %v538 = vunpack.c.l.b16 %v47
  %v539 = vunpack.c.h.b16 %v47
  %v540 = vunpack.c.l.b16 %v48
  %v541 = vunpack.c.h.b16 %v48
  %v542 = vunpack.c.l.b16 %v49
  %v543 = vunpack.c.h.b16 %v49
  %v544 = vpack.c.b16 %v514, %v512
  %v545 = vpack.c.b16 %v515, %v513
  %v546 = vpack.c.b16 %v518, %v516
  %v547 = vpack.c.b16 %v519, %v517
  %v548 = vpack.c.b16 %v522, %v520
  %v549 = vpack.c.b16 %v523, %v521
  %v550 = vpack.c.b16 %v526, %v524
  %v551 = vpack.c.b16 %v527, %v525
  %v552 = vpack.c.b16 %v530, %v528
  %v553 = vpack.c.b16 %v531, %v529
  %v554 = vpack.c.b16 %v534, %v532
  %v555 = vpack.c.b16 %v535, %v533
  %v556 = vpack.c.b16 %v538, %v536
  %v557 = vpack.c.b16 %v539, %v537
  %v558 = vpack.c.b16 %v542, %v540
  %v559 = vpack.c.b16 %v543, %v541
  %576 = vmatprep.subr.bf16.mxu0 %v545
  %577 = vmatpush1.bf16.msra.mxu0 %v544
  %578 = vmatprep.subr.bf16.mxu0 %v547
  %579 = vmatpush1.bf16.msra.mxu0 %v546
  %580 = vmatprep.subr.bf16.mxu0 %v549
  %581 = vmatpush1.bf16.msra.mxu0 %v548
  %582 = vmatprep.subr.bf16.mxu0 %v551
  %583 = vmatpush1.bf16.msra.mxu0 %v550
  %584 = vmatprep.subr.bf16.mxu0 %v553
  %585 = vmatpush1.bf16.msra.mxu0 %v552
  %586 = vmatprep.subr.bf16.mxu0 %v555
  %587 = vmatpush1.bf16.msra.mxu0 %v554
  %588 = vmatprep.subr.bf16.mxu0 %v557
  %589 = vmatpush1.bf16.msra.mxu0 %v556
  %590 = vmatprep.subr.bf16.mxu0 %v559
  %591 = vmatpush1.bf16.msra.mxu0 %v558
  %592 = vmatprep.subr.bf16.mxu0 0
  %593 = vmatpush1.bf16.msra.mxu0 0
  %594 = vmatprep.subr.bf16.mxu0 0
  %595 = vmatpush1.bf16.msra.mxu0 0
  %596 = vmatprep.subr.bf16.mxu0 0
  %597 = vmatpush1.bf16.msra.mxu0 0
  %598 = vmatprep.subr.bf16.mxu0 0
  %599 = vmatpush1.bf16.msra.mxu0 0
  %600 = vmatprep.subr.bf16.mxu0 0
  %601 = vmatpush1.bf16.msra.mxu0 0
  %602 = vmatprep.subr.bf16.mxu0 0
  %603 = vmatpush1.bf16.msra.mxu0 0
  %604 = vmatprep.subr.bf16.mxu0 0
  %605 = vmatpush1.bf16.msra.mxu0 0
  %606 = vmatprep.subr.bf16.mxu0 0
  %607 = vmatpush1.bf16.msra.mxu0 0
  %608 = vmatprep.mubr.bf16.mxu0 0
  %609 = vmatmul.mubr.bf16.gmra.mrb[0].mxu0 %v476
  %v610 = vpop.f32.mrb[0].mxu0
  %v611 = vadd.f32 %v342, %v610
  %v612 = vpop.f32.mrb[0].mxu0
  %v613 = vadd.f32 %v344, %v612
  %v614 = vpop.f32.mrb[0].mxu0
  %v615 = vadd.f32 %v346, %v614
  %v616 = vpop.f32.mrb[0].mxu0
  %v617 = vadd.f32 %v348, %v616
  %618 = vmatprep.mubr.bf16.mxu0 0
  %619 = vmatmul.mubr.bf16.gmra.mrb[0].mxu0 %v477
  %v620 = vpop.f32.mrb[0].mxu0
  %v621 = vadd.f32 %v352, %v620
  %v622 = vpop.f32.mrb[0].mxu0
  %v623 = vadd.f32 %v354, %v622
  %v624 = vpop.f32.mrb[0].mxu0
  %v625 = vadd.f32 %v356, %v624
  %v626 = vpop.f32.mrb[0].mxu0
  %v627 = vadd.f32 %v358, %v626
  %628 = vmatprep.mubr.bf16.mxu0 0
  %629 = vmatmul.mubr.bf16.gmra.mrb[0].mxu0 %v478
  %v630 = vpop.f32.mrb[0].mxu0
  %v631 = vadd.f32 %v362, %v630
  %v632 = vpop.f32.mrb[0].mxu0
  %v633 = vadd.f32 %v364, %v632
  %v634 = vpop.f32.mrb[0].mxu0
  %v635 = vadd.f32 %v366, %v634
  %v636 = vpop.f32.mrb[0].mxu0
  %v637 = vadd.f32 %v368, %v636
  %638 = vmatprep.mubr.bf16.mxu0 0
  %639 = vmatmul.mubr.bf16.gmra.mrb[0].mxu0 %v479
  %v640 = vpop.f32.mrb[0].mxu0
  %v641 = vadd.f32 %v372, %v640
  %v642 = vpop.f32.mrb[0].mxu0
  %v643 = vadd.f32 %v374, %v642
  %v644 = vpop.f32.mrb[0].mxu0
  %v645 = vadd.f32 %v376, %v644
  %v646 = vpop.f32.mrb[0].mxu0
  %v647 = vadd.f32 %v378, %v646
  %648 = vmatprep.mubr.bf16.mxu0 0
  %649 = vmatmul.mubr.bf16.gmra.mrb[0].mxu0 %v480
  %v650 = vpop.f32.mrb[0].mxu0
  %v651 = vadd.f32 %v382, %v650
  %v652 = vpop.f32.mrb[0].mxu0
  %v653 = vadd.f32 %v384, %v652
  %v654 = vpop.f32.mrb[0].mxu0
  %v655 = vadd.f32 %v386, %v654
  %v656 = vpop.f32.mrb[0].mxu0
  %v657 = vadd.f32 %v388, %v656
  %658 = vmatprep.mubr.bf16.mxu0 0
  %659 = vmatmul.mubr.bf16.gmra.mrb[0].mxu0 %v481
  %v660 = vpop.f32.mrb[0].mxu0
  %v661 = vadd.f32 %v392, %v660
  %v662 = vpop.f32.mrb[0].mxu0
  %v663 = vadd.f32 %v394, %v662
  %v664 = vpop.f32.mrb[0].mxu0
  %v665 = vadd.f32 %v396, %v664
  %v666 = vpop.f32.mrb[0].mxu0
  %v667 = vadd.f32 %v398, %v666
  %668 = vmatprep.mubr.bf16.mxu0 0
  %669 = vmatmul.mubr.bf16.gmra.mrb[0].mxu0 %v482
  %v670 = vpop.f32.mrb[0].mxu0
  %v671 = vadd.f32 %v402, %v670
  %v672 = vpop.f32.mrb[0].mxu0
  %v673 = vadd.f32 %v404, %v672
  %v674 = vpop.f32.mrb[0].mxu0
  %v675 = vadd.f32 %v406, %v674
  %v676 = vpop.f32.mrb[0].mxu0
  %v677 = vadd.f32 %v408, %v676
  %678 = vmatprep.mubr.bf16.mxu0 0
  %679 = vmatmul.mubr.bf16.gmra.mrb[0].mxu0 %v483
  %v680 = vpop.f32.mrb[0].mxu0
  %v681 = vadd.f32 %v412, %v680
  %v682 = vpop.f32.mrb[0].mxu0
  %v683 = vadd.f32 %v414, %v682
  %v684 = vpop.f32.mrb[0].mxu0
  %v685 = vadd.f32 %v416, %v684
  %v686 = vpop.f32.mrb[0].mxu0
  %v687 = vadd.f32 %v418, %v686
  %688 = vmatprep.mubr.bf16.mxu0 0
  %689 = vmatmul.mubr.bf16.gmra.mrb[0].mxu0 %v484
  %v690 = vpop.f32.mrb[0].mxu0
  %v691 = vadd.f32 %v422, %v690
  %v692 = vpop.f32.mrb[0].mxu0
  %v693 = vadd.f32 %v424, %v692
  %v694 = vpop.f32.mrb[0].mxu0
  %v695 = vadd.f32 %v426, %v694
  %v696 = vpop.f32.mrb[0].mxu0
  %v697 = vadd.f32 %v428, %v696
  %698 = vmatprep.mubr.bf16.mxu0 0
  %699 = vmatmul.mubr.bf16.gmra.mrb[0].mxu0 %v485
  %v700 = vpop.f32.mrb[0].mxu0
  %v701 = vadd.f32 %v432, %v700
  %v702 = vpop.f32.mrb[0].mxu0
  %v703 = vadd.f32 %v434, %v702
  %v704 = vpop.f32.mrb[0].mxu0
  %v705 = vpop.f32.mrb[0].mxu0
  %706 = vdwg.mxu0
  %v707 = vld [vmem:[%s0] sm:$0xc]
  %v708 = vld [vmem:[%s0 + $0x4c] sm:$0x3]
  %s709 = scalar_lea.vmem %s1, 256
  %v710 = vld [vmem:[%s709] sm:$0xff]
  %v711 = vld [vmem:[%s709 + $0x8] sm:$0xff]
  %v712 = vld [vmem:[%s709 + $0x10] sm:$0xff]
  %v713 = vld [vmem:[%s709 + $0x18] sm:$0xff]
  %v714 = vld [vmem:[%s709 + $0x20] sm:$0xff]
  %v715 = vld [vmem:[%s709 + $0x28] sm:$0xff]
  %v716 = vld [vmem:[%s709 + $0x30] sm:$0xff]
  %v717 = vld [vmem:[%s709 + $0x38] sm:$0xff]
  %v718 = vld [vmem:[%s709 + $0x40] sm:$0xff]
  %v719 = vld [vmem:[%s709 + $0x48] sm:$0xff]
  %v720 = vld [vmem:[%s709 + $0x50] sm:$0xff]
  %v721 = vld [vmem:[%s709 + $0x58] sm:$0xff]
  %v722 = vld [vmem:[%s709 + $0x60] sm:$0xff]
  %v723 = vld [vmem:[%s709 + $0x68] sm:$0xff]
  %v724 = vld [vmem:[%s709 + $0x70] sm:$0xff]
  %v725 = vld [vmem:[%s709 + $0x78] sm:$0xff]
  %v728 = vunpack.c.l.b16 %v707
  %v729 = vunpack.c.l.b16 %v708
  %v730 = vpack.c.b16 %v108, %v728
  %v731 = vpack.c.b16 %v729, %v125
  %vm732 = vcmask 1045504
  %v733 = vrot.slane %v730, 2
  %v734 = vrot.slane %v128, 2
  %v735 = vsel %vm732, %v733, %v734
  %v736 = vrot.slane %v129, 2
  %v737 = vsel %vm732, %v734, %v736
  %v738 = vrot.slane %v130, 2
  %v739 = vsel %vm732, %v736, %v738
  %v740 = vrot.slane %v131, 2
  %v741 = vsel %vm732, %v738, %v740
  %v742 = vrot.slane %v132, 2
  %v743 = vsel %vm732, %v740, %v742
  %v744 = vrot.slane %v133, 2
  %v745 = vsel %vm732, %v742, %v744
  %v746 = vrot.slane %v134, 2
  %v747 = vsel %vm732, %v744, %v746
  %v748 = vrot.slane %v135, 2
  %v749 = vsel %vm732, %v746, %v748
  %v750 = vrot.slane %v731, 2
  %v751 = vsel %vm732, %v748, %v750
  %v778 = vunpack.c.l.b16 %v710
  %v779 = vunpack.c.h.b16 %v710
  %v780 = vunpack.c.l.b16 %v711
  %v781 = vunpack.c.h.b16 %v711
  %v782 = vunpack.c.l.b16 %v712
  %v783 = vunpack.c.h.b16 %v712
  %v784 = vunpack.c.l.b16 %v713
  %v785 = vunpack.c.h.b16 %v713
  %v786 = vunpack.c.l.b16 %v714
  %v787 = vunpack.c.h.b16 %v714
  %v788 = vunpack.c.l.b16 %v715
  %v789 = vunpack.c.h.b16 %v715
  %v790 = vunpack.c.l.b16 %v716
  %v791 = vunpack.c.h.b16 %v716
  %v792 = vunpack.c.l.b16 %v717
  %v793 = vunpack.c.h.b16 %v717
  %v794 = vunpack.c.l.b16 %v718
  %v795 = vunpack.c.h.b16 %v718
  %v796 = vunpack.c.l.b16 %v719
  %v797 = vunpack.c.h.b16 %v719
  %v798 = vunpack.c.l.b16 %v720
  %v799 = vunpack.c.h.b16 %v720
  %v800 = vunpack.c.l.b16 %v721
  %v801 = vunpack.c.h.b16 %v721
  %v802 = vunpack.c.l.b16 %v722
  %v803 = vunpack.c.h.b16 %v722
  %v804 = vunpack.c.l.b16 %v723
  %v805 = vunpack.c.h.b16 %v723
  %v806 = vunpack.c.l.b16 %v724
  %v807 = vunpack.c.h.b16 %v724
  %v808 = vunpack.c.l.b16 %v725
  %v809 = vunpack.c.h.b16 %v725
  %v810 = vpack.c.b16 %v780, %v778
  %v811 = vpack.c.b16 %v781, %v779
  %v812 = vpack.c.b16 %v784, %v782
  %v813 = vpack.c.b16 %v785, %v783
  %v814 = vpack.c.b16 %v788, %v786
  %v815 = vpack.c.b16 %v789, %v787
  %v816 = vpack.c.b16 %v792, %v790
  %v817 = vpack.c.b16 %v793, %v791
  %v818 = vpack.c.b16 %v796, %v794
  %v819 = vpack.c.b16 %v797, %v795
  %v820 = vpack.c.b16 %v800, %v798
  %v821 = vpack.c.b16 %v801, %v799
  %v822 = vpack.c.b16 %v804, %v802
  %v823 = vpack.c.b16 %v805, %v803
  %v824 = vpack.c.b16 %v808, %v806
  %v825 = vpack.c.b16 %v809, %v807
  %842 = vmatprep.subr.bf16.mxu0 %v811
  %843 = vmatpush1.bf16.msra.mxu0 %v810
  %844 = vmatprep.subr.bf16.mxu0 %v813
  %845 = vmatpush1.bf16.msra.mxu0 %v812
  %846 = vmatprep.subr.bf16.mxu0 %v815
  %847 = vmatpush1.bf16.msra.mxu0 %v814
  %848 = vmatprep.subr.bf16.mxu0 %v817
  %849 = vmatpush1.bf16.msra.mxu0 %v816
  %850 = vmatprep.subr.bf16.mxu0 %v819
  %851 = vmatpush1.bf16.msra.mxu0 %v818
  %852 = vmatprep.subr.bf16.mxu0 %v821
  %853 = vmatpush1.bf16.msra.mxu0 %v820
  %854 = vmatprep.subr.bf16.mxu0 %v823
  %855 = vmatpush1.bf16.msra.mxu0 %v822
  %856 = vmatprep.subr.bf16.mxu0 %v825
  %857 = vmatpush1.bf16.msra.mxu0 %v824
  %858 = vmatprep.subr.bf16.mxu0 0
  %859 = vmatpush1.bf16.msra.mxu0 0
  %860 = vmatprep.subr.bf16.mxu0 0
  %861 = vmatpush1.bf16.msra.mxu0 0
  %862 = vmatprep.subr.bf16.mxu0 0
  %863 = vmatpush1.bf16.msra.mxu0 0
  %864 = vmatprep.subr.bf16.mxu0 0
  %865 = vmatpush1.bf16.msra.mxu0 0
  %866 = vmatprep.subr.bf16.mxu0 0
  %867 = vmatpush1.bf16.msra.mxu0 0
  %868 = vmatprep.subr.bf16.mxu0 0
  %869 = vmatpush1.bf16.msra.mxu0 0
  %870 = vmatprep.subr.bf16.mxu0 0
  %871 = vmatpush1.bf16.msra.mxu0 0
  %872 = vmatprep.subr.bf16.mxu0 0
  %873 = vmatpush1.bf16.msra.mxu0 0
  %874 = vmatprep.mubr.bf16.mxu0 0
  %875 = vmatmul.mubr.bf16.gmra.mrb[0].mxu0 %v735
  %v876 = vpop.f32.mrb[0].mxu0
  %v877 = vadd.f32 0.0, %v876
  %v878 = vpop.f32.mrb[0].mxu0
  %v879 = vadd.f32 0.0, %v878
  %v880 = vpop.f32.mrb[0].mxu0
  %v881 = vadd.f32 0.0, %v880
  %v882 = vpop.f32.mrb[0].mxu0
  %v883 = vadd.f32 0.0, %v882
  %884 = vmatprep.mubr.bf16.mxu0 0
  %885 = vmatmul.mubr.bf16.gmra.mrb[0].mxu0 %v737
  %v886 = vpop.f32.mrb[0].mxu0
  %v887 = vadd.f32 0.0, %v886
  %v888 = vpop.f32.mrb[0].mxu0
  %v889 = vadd.f32 0.0, %v888
  %v890 = vpop.f32.mrb[0].mxu0
  %v891 = vadd.f32 0.0, %v890
  %v892 = vpop.f32.mrb[0].mxu0
  %v893 = vadd.f32 0.0, %v892
  %894 = vmatprep.mubr.bf16.mxu0 0
  %895 = vmatmul.mubr.bf16.gmra.mrb[0].mxu0 %v739
  %v896 = vpop.f32.mrb[0].mxu0
  %v897 = vadd.f32 0.0, %v896
  %v898 = vpop.f32.mrb[0].mxu0
  %v899 = vadd.f32 0.0, %v898
  %v900 = vpop.f32.mrb[0].mxu0
  %v901 = vadd.f32 0.0, %v900
  %v902 = vpop.f32.mrb[0].mxu0
  %v903 = vadd.f32 0.0, %v902
  %904 = vmatprep.mubr.bf16.mxu0 0
  %905 = vmatmul.mubr.bf16.gmra.mrb[0].mxu0 %v741
  %v906 = vpop.f32.mrb[0].mxu0
  %v907 = vadd.f32 0.0, %v906
  %v908 = vpop.f32.mrb[0].mxu0
  %v909 = vadd.f32 0.0, %v908
  %v910 = vpop.f32.mrb[0].mxu0
  %v911 = vadd.f32 0.0, %v910
  %v912 = vpop.f32.mrb[0].mxu0
  %v913 = vadd.f32 0.0, %v912
  %914 = vmatprep.mubr.bf16.mxu0 0
  %915 = vmatmul.mubr.bf16.gmra.mrb[0].mxu0 %v743
  %v916 = vpop.f32.mrb[0].mxu0
  %v917 = vadd.f32 0.0, %v916
  %v918 = vpop.f32.mrb[0].mxu0
  %v919 = vadd.f32 0.0, %v918
  %v920 = vpop.f32.mrb[0].mxu0
  %v921 = vadd.f32 0.0, %v920
  %v922 = vpop.f32.mrb[0].mxu0
  %v923 = vadd.f32 0.0, %v922
  %924 = vmatprep.mubr.bf16.mxu0 0
  %925 = vmatmul.mubr.bf16.gmra.mrb[0].mxu0 %v745
  %v926 = vpop.f32.mrb[0].mxu0
  %v927 = vadd.f32 0.0, %v926
  %v928 = vpop.f32.mrb[0].mxu0
  %v929 = vadd.f32 0.0, %v928
  %v930 = vpop.f32.mrb[0].mxu0
  %v931 = vadd.f32 0.0, %v930
  %v932 = vpop.f32.mrb[0].mxu0
  %v933 = vadd.f32 0.0, %v932
  %934 = vmatprep.mubr.bf16.mxu0 0
  %935 = vmatmul.mubr.bf16.gmra.mrb[0].mxu0 %v747
  %v936 = vpop.f32.mrb[0].mxu0
  %v937 = vadd.f32 0.0, %v936
  %v938 = vpop.f32.mrb[0].mxu0
  %v939 = vadd.f32 0.0, %v938
  %v940 = vpop.f32.mrb[0].mxu0
  %v941 = vadd.f32 0.0, %v940
  %v942 = vpop.f32.mrb[0].mxu0
  %v943 = vadd.f32 0.0, %v942
  %944 = vmatprep.mubr.bf16.mxu0 0
  %945 = vmatmul.mubr.bf16.gmra.mrb[0].mxu0 %v749
  %v946 = vpop.f32.mrb[0].mxu0
  %v947 = vadd.f32 0.0, %v946
  %v948 = vpop.f32.mrb[0].mxu0
  %v949 = vadd.f32 0.0, %v948
  %v950 = vpop.f32.mrb[0].mxu0
  %v951 = vadd.f32 0.0, %v950
  %v952 = vpop.f32.mrb[0].mxu0
  %v953 = vadd.f32 0.0, %v952
  %954 = vmatprep.mubr.bf16.mxu0 0
  %955 = vmatmul.mubr.bf16.gmra.mrb[0].mxu0 %v751
  %v956 = vpop.f32.mrb[0].mxu0
  %v957 = vadd.f32 0.0, %v956
  %v958 = vpop.f32.mrb[0].mxu0
  %v959 = vadd.f32 0.0, %v958
  %v960 = vpop.f32.mrb[0].mxu0
  %v961 = vadd.f32 0.0, %v960
  %v962 = vpop.f32.mrb[0].mxu0
  %v963 = vadd.f32 0.0, %v962
  %964 = vmatprep.mubr.bf16.mxu0 0
  %965 = vmatmul.mubr.bf16.gmra.mrb[0].mxu0 %v750
  %v966 = vpop.f32.mrb[0].mxu0
  %v967 = vadd.f32 0.0, %v966
  %v968 = vpop.f32.mrb[0].mxu0
  %v969 = vadd.f32 0.0, %v968
  %v970 = vpop.f32.mrb[0].mxu0
  %v971 = vpop.f32.mrb[0].mxu0
  %972 = vdwg.mxu0
  %v973 = vadd.f32 %v611, %v877
  %v974 = vadd.f32 %v613, %v879
  %v975 = vadd.f32 %v615, %v881
  %v976 = vadd.f32 %v617, %v883
  %v977 = vadd.f32 %v621, %v887
  %v978 = vadd.f32 %v623, %v889
  %v979 = vadd.f32 %v625, %v891
  %v980 = vadd.f32 %v627, %v893
  %v981 = vadd.f32 %v631, %v897
  %v982 = vadd.f32 %v633, %v899
  %v983 = vadd.f32 %v635, %v901
  %v984 = vadd.f32 %v637, %v903
  %v985 = vadd.f32 %v641, %v907
  %v986 = vadd.f32 %v643, %v909
  %v987 = vadd.f32 %v645, %v911
  %v988 = vadd.f32 %v647, %v913
  %v989 = vadd.f32 %v651, %v917
  %v990 = vadd.f32 %v653, %v919
  %v991 = vadd.f32 %v655, %v921
  %v992 = vadd.f32 %v657, %v923
  %v993 = vadd.f32 %v661, %v927
  %v994 = vadd.f32 %v663, %v929
  %v995 = vadd.f32 %v665, %v931
  %v996 = vadd.f32 %v667, %v933
  %v997 = vadd.f32 %v671, %v937
  %v998 = vadd.f32 %v673, %v939
  %v999 = vadd.f32 %v675, %v941
  %v1000 = vadd.f32 %v677, %v943
  %v1001 = vadd.f32 %v681, %v947
  %v1002 = vadd.f32 %v683, %v949
  %v1003 = vadd.f32 %v685, %v951
  %v1004 = vadd.f32 %v687, %v953
  %v1005 = vadd.f32 %v691, %v957
  %v1006 = vadd.f32 %v693, %v959
  %v1007 = vadd.f32 %v695, %v961
  %v1008 = vadd.f32 %v697, %v963
  %v1009 = vadd.f32 %v701, %v967
  %v1010 = vadd.f32 %v703, %v969
  %v1011 = vld [vmem:[%s0 + $0x4c] sm:$0x7]
  %s1012 = scalar_lea.vmem %s1, 384
  %v1013 = vld [vmem:[%s1012] sm:$0xff]
  %v1014 = vld [vmem:[%s1012 + $0x8] sm:$0xff]
  %v1015 = vld [vmem:[%s1012 + $0x10] sm:$0xff]
  %v1016 = vld [vmem:[%s1012 + $0x18] sm:$0xff]
  %v1017 = vld [vmem:[%s1012 + $0x20] sm:$0xff]
  %v1018 = vld [vmem:[%s1012 + $0x28] sm:$0xff]
  %v1019 = vld [vmem:[%s1012 + $0x30] sm:$0xff]
  %v1020 = vld [vmem:[%s1012 + $0x38] sm:$0xff]
  %v1021 = vld [vmem:[%s1012 + $0x40] sm:$0xff]
  %v1022 = vld [vmem:[%s1012 + $0x48] sm:$0xff]
  %v1023 = vld [vmem:[%s1012 + $0x50] sm:$0xff]
  %v1024 = vld [vmem:[%s1012 + $0x58] sm:$0xff]
  %v1025 = vld [vmem:[%s1012 + $0x60] sm:$0xff]
  %v1026 = vld [vmem:[%s1012 + $0x68] sm:$0xff]
  %v1027 = vld [vmem:[%s1012 + $0x70] sm:$0xff]
  %v1028 = vld [vmem:[%s1012 + $0x78] sm:$0xff]
  %v1030 = vunpack.c.l.b16 %v1011
  %v1031 = vpack.c.b16 %v1030, %v125
  %vm1032 = vsmask.f32 5376
  %v1034 = vshrl.u32 %v730, 16
  %v1036 = vrot.slane %v1034, 2
  %v1037 = vshll.u32 %v730, 16
  %v1039 = vrot.slane %v1037, 3
  %v1040 = vor.u32 %v1036, %v1039
  %v1041 = vrot.slane %v150, 2
  %v1042 = vrot.slane %v146, 3
  %v1043 = vor.u32 %v1041, %v1042
  %v1044 = vsel %vm1032, %v1040, %v1043
  %v1045 = vrot.slane %v158, 2
  %v1046 = vrot.slane %v154, 3
  %v1047 = vor.u32 %v1045, %v1046
  %v1048 = vsel %vm1032, %v1043, %v1047
  %v1049 = vrot.slane %v166, 2
  %v1050 = vrot.slane %v162, 3
  %v1051 = vor.u32 %v1049, %v1050
  %v1052 = vsel %vm1032, %v1047, %v1051
  %v1053 = vrot.slane %v174, 2
  %v1054 = vrot.slane %v170, 3
  %v1055 = vor.u32 %v1053, %v1054
  %v1056 = vsel %vm1032, %v1051, %v1055
  %v1057 = vrot.slane %v182, 2
  %v1058 = vrot.slane %v178, 3
  %v1059 = vor.u32 %v1057, %v1058
  %v1060 = vsel %vm1032, %v1055, %v1059
  %v1061 = vrot.slane %v190, 2
  %v1062 = vrot.slane %v186, 3
  %v1063 = vor.u32 %v1061, %v1062
  %v1064 = vsel %vm1032, %v1059, %v1063
  %v1065 = vrot.slane %v198, 2
  %v1066 = vrot.slane %v194, 3
  %v1067 = vor.u32 %v1065, %v1066
  %v1068 = vsel %vm1032, %v1063, %v1067
  %v1069 = vrot.slane %v206, 2
  %v1070 = vrot.slane %v202, 3
  %v1071 = vor.u32 %v1069, %v1070
  %v1072 = vsel %vm1032, %v1067, %v1071
  %v1074 = vshrl.u32 %v1031, 16
  %v1076 = vrot.slane %v1074, 2
  %v1077 = vshll.u32 %v1031, 16
  %v1079 = vrot.slane %v1077, 3
  %v1080 = vor.u32 %v1076, %v1079
  %v1081 = vsel %vm1032, %v1071, %v1080
  %v1108 = vunpack.c.l.b16 %v1013
  %v1109 = vunpack.c.h.b16 %v1013
  %v1110 = vunpack.c.l.b16 %v1014
  %v1111 = vunpack.c.h.b16 %v1014
  %v1112 = vunpack.c.l.b16 %v1015
  %v1113 = vunpack.c.h.b16 %v1015
  %v1114 = vunpack.c.l.b16 %v1016
  %v1115 = vunpack.c.h.b16 %v1016
  %v1116 = vunpack.c.l.b16 %v1017
  %v1117 = vunpack.c.h.b16 %v1017
  %v1118 = vunpack.c.l.b16 %v1018
  %v1119 = vunpack.c.h.b16 %v1018
  %v1120 = vunpack.c.l.b16 %v1019
  %v1121 = vunpack.c.h.b16 %v1019
  %v1122 = vunpack.c.l.b16 %v1020
  %v1123 = vunpack.c.h.b16 %v1020
  %v1124 = vunpack.c.l.b16 %v1021
  %v1125 = vunpack.c.h.b16 %v1021
  %v1126 = vunpack.c.l.b16 %v1022
  %v1127 = vunpack.c.h.b16 %v1022
  %v1128 = vunpack.c.l.b16 %v1023
  %v1129 = vunpack.c.h.b16 %v1023
  %v1130 = vunpack.c.l.b16 %v1024
  %v1131 = vunpack.c.h.b16 %v1024
  %v1132 = vunpack.c.l.b16 %v1025
  %v1133 = vunpack.c.h.b16 %v1025
  %v1134 = vunpack.c.l.b16 %v1026
  %v1135 = vunpack.c.h.b16 %v1026
  %v1136 = vunpack.c.l.b16 %v1027
  %v1137 = vunpack.c.h.b16 %v1027
  %v1138 = vunpack.c.l.b16 %v1028
  %v1139 = vunpack.c.h.b16 %v1028
  %v1140 = vpack.c.b16 %v1110, %v1108
  %v1141 = vpack.c.b16 %v1111, %v1109
  %v1142 = vpack.c.b16 %v1114, %v1112
  %v1143 = vpack.c.b16 %v1115, %v1113
  %v1144 = vpack.c.b16 %v1118, %v1116
  %v1145 = vpack.c.b16 %v1119, %v1117
  %v1146 = vpack.c.b16 %v1122, %v1120
  %v1147 = vpack.c.b16 %v1123, %v1121
  %v1148 = vpack.c.b16 %v1126, %v1124
  %v1149 = vpack.c.b16 %v1127, %v1125
  %v1150 = vpack.c.b16 %v1130, %v1128
  %v1151 = vpack.c.b16 %v1131, %v1129
  %v1152 = vpack.c.b16 %v1134, %v1132
  %v1153 = vpack.c.b16 %v1135, %v1133
  %v1154 = vpack.c.b16 %v1138, %v1136
  %v1155 = vpack.c.b16 %v1139, %v1137
  %1172 = vmatprep.subr.bf16.mxu0 %v1141
  %1173 = vmatpush1.bf16.msra.mxu0 %v1140
  %1174 = vmatprep.subr.bf16.mxu0 %v1143
  %1175 = vmatpush1.bf16.msra.mxu0 %v1142
  %1176 = vmatprep.subr.bf16.mxu0 %v1145
  %1177 = vmatpush1.bf16.msra.mxu0 %v1144
  %1178 = vmatprep.subr.bf16.mxu0 %v1147
  %1179 = vmatpush1.bf16.msra.mxu0 %v1146
  %1180 = vmatprep.subr.bf16.mxu0 %v1149
  %1181 = vmatpush1.bf16.msra.mxu0 %v1148
  %1182 = vmatprep.subr.bf16.mxu0 %v1151
  %1183 = vmatpush1.bf16.msra.mxu0 %v1150
  %1184 = vmatprep.subr.bf16.mxu0 %v1153
  %1185 = vmatpush1.bf16.msra.mxu0 %v1152
  %1186 = vmatprep.subr.bf16.mxu0 %v1155
  %1187 = vmatpush1.bf16.msra.mxu0 %v1154
  %1188 = vmatprep.subr.bf16.mxu0 0
  %1189 = vmatpush1.bf16.msra.mxu0 0
  %1190 = vmatprep.subr.bf16.mxu0 0
  %1191 = vmatpush1.bf16.msra.mxu0 0
  %1192 = vmatprep.subr.bf16.mxu0 0
  %1193 = vmatpush1.bf16.msra.mxu0 0
  %1194 = vmatprep.subr.bf16.mxu0 0
  %1195 = vmatpush1.bf16.msra.mxu0 0
  %1196 = vmatprep.subr.bf16.mxu0 0
  %1197 = vmatpush1.bf16.msra.mxu0 0
  %1198 = vmatprep.subr.bf16.mxu0 0
  %1199 = vmatpush1.bf16.msra.mxu0 0
  %1200 = vmatprep.subr.bf16.mxu0 0
  %1201 = vmatpush1.bf16.msra.mxu0 0
  %1202 = vmatprep.subr.bf16.mxu0 0
  %1203 = vmatpush1.bf16.msra.mxu0 0
  %1204 = vmatprep.mubr.bf16.mxu0 0
  %1205 = vmatmul.mubr.bf16.gmra.mrb[0].mxu0 %v1044
  %v1206 = vpop.f32.mrb[0].mxu0
  %v1207 = vadd.f32 0.0, %v1206
  %v1208 = vpop.f32.mrb[0].mxu0
  %v1209 = vadd.f32 0.0, %v1208
  %v1210 = vpop.f32.mrb[0].mxu0
  %v1211 = vadd.f32 0.0, %v1210
  %v1212 = vpop.f32.mrb[0].mxu0
  %v1213 = vadd.f32 0.0, %v1212
  %1214 = vmatprep.mubr.bf16.mxu0 0
  %1215 = vmatmul.mubr.bf16.gmra.mrb[0].mxu0 %v1048
  %v1216 = vpop.f32.mrb[0].mxu0
  %v1217 = vadd.f32 0.0, %v1216
  %v1218 = vpop.f32.mrb[0].mxu0
  %v1219 = vadd.f32 0.0, %v1218
  %v1220 = vpop.f32.mrb[0].mxu0
  %v1221 = vadd.f32 0.0, %v1220
  %v1222 = vpop.f32.mrb[0].mxu0
  %v1223 = vadd.f32 0.0, %v1222
  %1224 = vmatprep.mubr.bf16.mxu0 0
  %1225 = vmatmul.mubr.bf16.gmra.mrb[0].mxu0 %v1052
  %v1226 = vpop.f32.mrb[0].mxu0
  %v1227 = vadd.f32 0.0, %v1226
  %v1228 = vpop.f32.mrb[0].mxu0
  %v1229 = vadd.f32 0.0, %v1228
  %v1230 = vpop.f32.mrb[0].mxu0
  %v1231 = vadd.f32 0.0, %v1230
  %v1232 = vpop.f32.mrb[0].mxu0
  %v1233 = vadd.f32 0.0, %v1232
  %1234 = vmatprep.mubr.bf16.mxu0 0
  %1235 = vmatmul.mubr.bf16.gmra.mrb[0].mxu0 %v1056
  %v1236 = vpop.f32.mrb[0].mxu0
  %v1237 = vadd.f32 0.0, %v1236
  %v1238 = vpop.f32.mrb[0].mxu0
  %v1239 = vadd.f32 0.0, %v1238
  %v1240 = vpop.f32.mrb[0].mxu0
  %v1241 = vadd.f32 0.0, %v1240
  %v1242 = vpop.f32.mrb[0].mxu0
  %v1243 = vadd.f32 0.0, %v1242
  %1244 = vmatprep.mubr.bf16.mxu0 0
  %1245 = vmatmul.mubr.bf16.gmra.mrb[0].mxu0 %v1060
  %v1246 = vpop.f32.mrb[0].mxu0
  %v1247 = vadd.f32 0.0, %v1246
  %v1248 = vpop.f32.mrb[0].mxu0
  %v1249 = vadd.f32 0.0, %v1248
  %v1250 = vpop.f32.mrb[0].mxu0
  %v1251 = vadd.f32 0.0, %v1250
  %v1252 = vpop.f32.mrb[0].mxu0
  %v1253 = vadd.f32 0.0, %v1252
  %1254 = vmatprep.mubr.bf16.mxu0 0
  %1255 = vmatmul.mubr.bf16.gmra.mrb[0].mxu0 %v1064
  %v1256 = vpop.f32.mrb[0].mxu0
  %v1257 = vadd.f32 0.0, %v1256
  %v1258 = vpop.f32.mrb[0].mxu0
  %v1259 = vadd.f32 0.0, %v1258
  %v1260 = vpop.f32.mrb[0].mxu0
  %v1261 = vadd.f32 0.0, %v1260
  %v1262 = vpop.f32.mrb[0].mxu0
  %v1263 = vadd.f32 0.0, %v1262
  %1264 = vmatprep.mubr.bf16.mxu0 0
  %1265 = vmatmul.mubr.bf16.gmra.mrb[0].mxu0 %v1068
  %v1266 = vpop.f32.mrb[0].mxu0
  %v1267 = vadd.f32 0.0, %v1266
  %v1268 = vpop.f32.mrb[0].mxu0
  %v1269 = vadd.f32 0.0, %v1268
  %v1270 = vpop.f32.mrb[0].mxu0
  %v1271 = vadd.f32 0.0, %v1270
  %v1272 = vpop.f32.mrb[0].mxu0
  %v1273 = vadd.f32 0.0, %v1272
  %1274 = vmatprep.mubr.bf16.mxu0 0
  %1275 = vmatmul.mubr.bf16.gmra.mrb[0].mxu0 %v1072
  %v1276 = vpop.f32.mrb[0].mxu0
  %v1277 = vadd.f32 0.0, %v1276
  %v1278 = vpop.f32.mrb[0].mxu0
  %v1279 = vadd.f32 0.0, %v1278
  %v1280 = vpop.f32.mrb[0].mxu0
  %v1281 = vadd.f32 0.0, %v1280
  %v1282 = vpop.f32.mrb[0].mxu0
  %v1283 = vadd.f32 0.0, %v1282
  %1284 = vmatprep.mubr.bf16.mxu0 0
  %1285 = vmatmul.mubr.bf16.gmra.mrb[0].mxu0 %v1081
  %v1286 = vpop.f32.mrb[0].mxu0
  %v1287 = vadd.f32 0.0, %v1286
  %v1288 = vpop.f32.mrb[0].mxu0
  %v1289 = vadd.f32 0.0, %v1288
  %v1290 = vpop.f32.mrb[0].mxu0
  %v1291 = vadd.f32 0.0, %v1290
  %v1292 = vpop.f32.mrb[0].mxu0
  %v1293 = vadd.f32 0.0, %v1292
  %1294 = vmatprep.mubr.bf16.mxu0 0
  %1295 = vmatmul.mubr.bf16.gmra.mrb[0].mxu0 %v1080
  %v1296 = vpop.f32.mrb[0].mxu0
  %v1297 = vadd.f32 0.0, %v1296
  %v1298 = vpop.f32.mrb[0].mxu0
  %v1299 = vadd.f32 0.0, %v1298
  %v1300 = vpop.f32.mrb[0].mxu0
  %v1301 = vpop.f32.mrb[0].mxu0
  %1302 = vdwg.mxu0
  %v1303 = vadd.f32 %v973, %v1207
  %v1304 = vadd.f32 %v974, %v1209
  %v1305 = vadd.f32 %v975, %v1211
  %v1306 = vadd.f32 %v976, %v1213
  %v1307 = vadd.f32 %v977, %v1217
  %v1308 = vadd.f32 %v978, %v1219
  %v1309 = vadd.f32 %v979, %v1221
  %v1310 = vadd.f32 %v980, %v1223
  %v1311 = vadd.f32 %v981, %v1227
  %v1312 = vadd.f32 %v982, %v1229
  %v1313 = vadd.f32 %v983, %v1231
  %v1314 = vadd.f32 %v984, %v1233
  %v1315 = vadd.f32 %v985, %v1237
  %v1316 = vadd.f32 %v986, %v1239
  %v1317 = vadd.f32 %v987, %v1241
  %v1318 = vadd.f32 %v988, %v1243
  %v1319 = vadd.f32 %v989, %v1247
  %v1320 = vadd.f32 %v990, %v1249
  %v1321 = vadd.f32 %v991, %v1251
  %v1322 = vadd.f32 %v992, %v1253
  %v1323 = vadd.f32 %v993, %v1257
  %v1324 = vadd.f32 %v994, %v1259
  %v1325 = vadd.f32 %v995, %v1261
  %v1326 = vadd.f32 %v996, %v1263
  %v1327 = vadd.f32 %v997, %v1267
  %v1328 = vadd.f32 %v998, %v1269
  %v1329 = vadd.f32 %v999, %v1271
  %v1330 = vadd.f32 %v1000, %v1273
  %v1331 = vadd.f32 %v1001, %v1277
  %v1332 = vadd.f32 %v1002, %v1279
  %v1333 = vadd.f32 %v1003, %v1281
  %v1334 = vadd.f32 %v1004, %v1283
  %v1335 = vadd.f32 %v1005, %v1287
  %v1336 = vadd.f32 %v1006, %v1289
  %v1337 = vadd.f32 %v1007, %v1291
  %v1338 = vadd.f32 %v1008, %v1293
  %v1339 = vadd.f32 %v1009, %v1297
  %v1340 = vadd.f32 %v1010, %v1299
  %v1341 = vld [vmem:[%s2] sm:$0x3]
  %v1343 = vlaneseq
  %v1344 = vshrl.u32 %v1343, 7
  %v1345 = vsub.s32 0, %v1344
  %v1346 = vrot.slane %v1341, %v1345
  %v1347 = vlaneseq
  %v1348 = vshrl.u32 %v1347, 7
  %v1349 = vsub.s32 1, %v1348
  %v1350 = vrot.slane %v1341, %v1349
  %v1353 = vadd.f32 %v1303, %v1346
  %v1354 = vadd.f32 %v1304, %v1350
  %v1355 = vadd.f32 %v1305, %v1346
  %v1356 = vadd.f32 %v1306, %v1350
  %v1357 = vadd.f32 %v1307, %v1346
  %v1358 = vadd.f32 %v1308, %v1350
  %v1359 = vadd.f32 %v1309, %v1346
  %v1360 = vadd.f32 %v1310, %v1350
  %v1361 = vadd.f32 %v1311, %v1346
  %v1362 = vadd.f32 %v1312, %v1350
  %v1363 = vadd.f32 %v1313, %v1346
  %v1364 = vadd.f32 %v1314, %v1350
  %v1365 = vadd.f32 %v1315, %v1346
  %v1366 = vadd.f32 %v1316, %v1350
  %v1367 = vadd.f32 %v1317, %v1346
  %v1368 = vadd.f32 %v1318, %v1350
  %v1369 = vadd.f32 %v1319, %v1346
  %v1370 = vadd.f32 %v1320, %v1350
  %v1371 = vadd.f32 %v1321, %v1346
  %v1372 = vadd.f32 %v1322, %v1350
  %v1373 = vadd.f32 %v1323, %v1346
  %v1374 = vadd.f32 %v1324, %v1350
  %v1375 = vadd.f32 %v1325, %v1346
  %v1376 = vadd.f32 %v1326, %v1350
  %v1377 = vadd.f32 %v1327, %v1346
  %v1378 = vadd.f32 %v1328, %v1350
  %v1379 = vadd.f32 %v1329, %v1346
  %v1380 = vadd.f32 %v1330, %v1350
  %v1381 = vadd.f32 %v1331, %v1346
  %v1382 = vadd.f32 %v1332, %v1350
  %v1383 = vadd.f32 %v1333, %v1346
  %v1384 = vadd.f32 %v1334, %v1350
  %v1385 = vadd.f32 %v1335, %v1346
  %v1386 = vadd.f32 %v1336, %v1350
  %v1387 = vadd.f32 %v1337, %v1346
  %v1388 = vadd.f32 %v1338, %v1350
  %v1389 = vadd.f32 %v1339, %v1346
  %v1390 = vadd.f32 %v1340, %v1350
  %v1391 = vmax.f32 %v1353, 0.0
  %v1392 = vmax.f32 %v1354, 0.0
  %v1393 = vmax.f32 %v1355, 0.0
  %v1394 = vmax.f32 %v1356, 0.0
  %v1395 = vmax.f32 %v1357, 0.0
  %v1396 = vmax.f32 %v1358, 0.0
  %v1397 = vmax.f32 %v1359, 0.0
  %v1398 = vmax.f32 %v1360, 0.0
  %v1399 = vmax.f32 %v1361, 0.0
  %v1400 = vmax.f32 %v1362, 0.0
  %v1401 = vmax.f32 %v1363, 0.0
  %v1402 = vmax.f32 %v1364, 0.0
  %v1403 = vmax.f32 %v1365, 0.0
  %v1404 = vmax.f32 %v1366, 0.0
  %v1405 = vmax.f32 %v1367, 0.0
  %v1406 = vmax.f32 %v1368, 0.0
  %v1407 = vmax.f32 %v1369, 0.0
  %v1408 = vmax.f32 %v1370, 0.0
  %v1409 = vmax.f32 %v1371, 0.0
  %v1410 = vmax.f32 %v1372, 0.0
  %v1411 = vmax.f32 %v1373, 0.0
  %v1412 = vmax.f32 %v1374, 0.0
  %v1413 = vmax.f32 %v1375, 0.0
  %v1414 = vmax.f32 %v1376, 0.0
  %v1415 = vmax.f32 %v1377, 0.0
  %v1416 = vmax.f32 %v1378, 0.0
  %v1417 = vmax.f32 %v1379, 0.0
  %v1418 = vmax.f32 %v1380, 0.0
  %v1419 = vmax.f32 %v1381, 0.0
  %v1420 = vmax.f32 %v1382, 0.0
  %v1421 = vmax.f32 %v1383, 0.0
  %v1422 = vmax.f32 %v1384, 0.0
  %v1423 = vmax.f32 %v1385, 0.0
  %v1424 = vmax.f32 %v1386, 0.0
  %v1425 = vmax.f32 %v1387, 0.0
  %v1426 = vmax.f32 %v1388, 0.0
  %v1427 = vmax.f32 %v1389, 0.0
  %v1428 = vmax.f32 %v1390, 0.0
  %1448 = vrot.lane.b32.xlu0 %v1391, 64
  %v1449 = vpop.permute.xlu0 %1448
  %1450 = vrot.lane.b32.xlu0 %v1393, 64
  %v1451 = vpop.permute.xlu0 %1450
  %1452 = vrot.lane.b32.xlu0 %v1395, 64
  %v1453 = vpop.permute.xlu0 %1452
  %1454 = vrot.lane.b32.xlu0 %v1397, 64
  %v1455 = vpop.permute.xlu0 %1454
  %1456 = vrot.lane.b32.xlu0 %v1399, 64
  %v1457 = vpop.permute.xlu0 %1456
  %1458 = vrot.lane.b32.xlu0 %v1401, 64
  %v1459 = vpop.permute.xlu0 %1458
  %1460 = vrot.lane.b32.xlu0 %v1403, 64
  %v1461 = vpop.permute.xlu0 %1460
  %1462 = vrot.lane.b32.xlu0 %v1405, 64
  %v1463 = vpop.permute.xlu0 %1462
  %1464 = vrot.lane.b32.xlu0 %v1407, 64
  %v1465 = vpop.permute.xlu0 %1464
  %1466 = vrot.lane.b32.xlu0 %v1409, 64
  %v1467 = vpop.permute.xlu0 %1466
  %1468 = vrot.lane.b32.xlu0 %v1411, 64
  %v1469 = vpop.permute.xlu0 %1468
  %1470 = vrot.lane.b32.xlu0 %v1413, 64
  %v1471 = vpop.permute.xlu0 %1470
  %1472 = vrot.lane.b32.xlu0 %v1415, 64
  %v1473 = vpop.permute.xlu0 %1472
  %1474 = vrot.lane.b32.xlu0 %v1417, 64
  %v1475 = vpop.permute.xlu0 %1474
  %1476 = vrot.lane.b32.xlu0 %v1419, 64
  %v1477 = vpop.permute.xlu0 %1476
  %1478 = vrot.lane.b32.xlu0 %v1421, 64
  %v1479 = vpop.permute.xlu0 %1478
  %1480 = vrot.lane.b32.xlu0 %v1423, 64
  %v1481 = vpop.permute.xlu0 %1480
  %1482 = vrot.lane.b32.xlu0 %v1425, 64
  %v1483 = vpop.permute.xlu0 %1482
  %1484 = vrot.lane.b32.xlu0 %v1427, 64
  %v1485 = vpop.permute.xlu0 %1484
  %v1505 = vmax.f32 %v1391, %v1449
  %v1506 = vmax.f32 %v1393, %v1451
  %v1507 = vmax.f32 %v1395, %v1453
  %v1508 = vmax.f32 %v1397, %v1455
  %v1509 = vmax.f32 %v1399, %v1457
  %v1510 = vmax.f32 %v1401, %v1459
  %v1511 = vmax.f32 %v1403, %v1461
  %v1512 = vmax.f32 %v1405, %v1463
  %v1513 = vmax.f32 %v1407, %v1465
  %v1514 = vmax.f32 %v1409, %v1467
  %v1515 = vmax.f32 %v1411, %v1469
  %v1516 = vmax.f32 %v1413, %v1471
  %v1517 = vmax.f32 %v1415, %v1473
  %v1518 = vmax.f32 %v1417, %v1475
  %v1519 = vmax.f32 %v1419, %v1477
  %v1520 = vmax.f32 %v1421, %v1479
  %v1521 = vmax.f32 %v1423, %v1481
  %v1522 = vmax.f32 %v1425, %v1483
  %v1523 = vmax.f32 %v1427, %v1485
  %1543 = vrot.lane.b32.xlu0 %v1392, 64
  %v1544 = vpop.permute.xlu0 %1543
  %1545 = vrot.lane.b32.xlu0 %v1394, 64
  %v1546 = vpop.permute.xlu0 %1545
  %1547 = vrot.lane.b32.xlu0 %v1396, 64
  %v1548 = vpop.permute.xlu0 %1547
  %1549 = vrot.lane.b32.xlu0 %v1398, 64
  %v1550 = vpop.permute.xlu0 %1549
  %1551 = vrot.lane.b32.xlu0 %v1400, 64
  %v1552 = vpop.permute.xlu0 %1551
  %1553 = vrot.lane.b32.xlu0 %v1402, 64
  %v1554 = vpop.permute.xlu0 %1553
  %1555 = vrot.lane.b32.xlu0 %v1404, 64
  %v1556 = vpop.permute.xlu0 %1555
  %1557 = vrot.lane.b32.xlu0 %v1406, 64
  %v1558 = vpop.permute.xlu0 %1557
  %1559 = vrot.lane.b32.xlu0 %v1408, 64
  %v1560 = vpop.permute.xlu0 %1559
  %1561 = vrot.lane.b32.xlu0 %v1410, 64
  %v1562 = vpop.permute.xlu0 %1561
  %1563 = vrot.lane.b32.xlu0 %v1412, 64
  %v1564 = vpop.permute.xlu0 %1563
  %1565 = vrot.lane.b32.xlu0 %v1414, 64
  %v1566 = vpop.permute.xlu0 %1565
  %1567 = vrot.lane.b32.xlu0 %v1416, 64
  %v1568 = vpop.permute.xlu0 %1567
  %1569 = vrot.lane.b32.xlu0 %v1418, 64
  %v1570 = vpop.permute.xlu0 %1569
  %1571 = vrot.lane.b32.xlu0 %v1420, 64
  %v1572 = vpop.permute.xlu0 %1571
  %1573 = vrot.lane.b32.xlu0 %v1422, 64
  %v1574 = vpop.permute.xlu0 %1573
  %1575 = vrot.lane.b32.xlu0 %v1424, 64
  %v1576 = vpop.permute.xlu0 %1575
  %1577 = vrot.lane.b32.xlu0 %v1426, 64
  %v1578 = vpop.permute.xlu0 %1577
  %1579 = vrot.lane.b32.xlu0 %v1428, 64
  %v1580 = vpop.permute.xlu0 %1579
  %v1600 = vmax.f32 %v1392, %v1544
  %v1601 = vmax.f32 %v1394, %v1546
  %v1602 = vmax.f32 %v1396, %v1548
  %v1603 = vmax.f32 %v1398, %v1550
  %v1604 = vmax.f32 %v1400, %v1552
  %v1605 = vmax.f32 %v1402, %v1554
  %v1606 = vmax.f32 %v1404, %v1556
  %v1607 = vmax.f32 %v1406, %v1558
  %v1608 = vmax.f32 %v1408, %v1560
  %v1609 = vmax.f32 %v1410, %v1562
  %v1610 = vmax.f32 %v1412, %v1564
  %v1611 = vmax.f32 %v1414, %v1566
  %v1612 = vmax.f32 %v1416, %v1568
  %v1613 = vmax.f32 %v1418, %v1570
  %v1614 = vmax.f32 %v1420, %v1572
  %v1615 = vmax.f32 %v1422, %v1574
  %v1616 = vmax.f32 %v1424, %v1576
  %v1617 = vmax.f32 %v1426, %v1578
  %v1618 = vmax.f32 %v1428, %v1580
  %v1619 = vmax.f32 %v1505, %v1600
  %v1620 = vmax.f32 %v1506, %v1601
  %v1621 = vmax.f32 %v1507, %v1602
  %v1622 = vmax.f32 %v1508, %v1603
  %v1623 = vmax.f32 %v1509, %v1604
  %v1624 = vmax.f32 %v1510, %v1605
  %v1625 = vmax.f32 %v1511, %v1606
  %v1626 = vmax.f32 %v1512, %v1607
  %v1627 = vmax.f32 %v1513, %v1608
  %v1628 = vmax.f32 %v1514, %v1609
  %v1629 = vmax.f32 %v1515, %v1610
  %v1630 = vmax.f32 %v1516, %v1611
  %v1631 = vmax.f32 %v1517, %v1612
  %v1632 = vmax.f32 %v1518, %v1613
  %v1633 = vmax.f32 %v1519, %v1614
  %v1634 = vmax.f32 %v1520, %v1615
  %v1635 = vmax.f32 %v1521, %v1616
  %v1636 = vmax.f32 %v1522, %v1617
  %v1637 = vmax.f32 %v1523, %v1618
  %v1638 = vpack.c.bf16 %v1620, %v1619
  %v1639 = vpack.c.bf16 %v1622, %v1621
  %v1640 = vpack.c.bf16 %v1624, %v1623
  %v1641 = vpack.c.bf16 %v1626, %v1625
  %v1642 = vpack.c.bf16 %v1628, %v1627
  %v1643 = vpack.c.bf16 %v1630, %v1629
  %v1644 = vpack.c.bf16 %v1632, %v1631
  %v1645 = vpack.c.bf16 %v1634, %v1633
  %v1646 = vpack.c.bf16 %v1636, %v1635
  %v1647 = vpack.c.bf16 %v1637, %v1637
  %v1658 = vunpack.c.l.b16 %v1638
  %v1659 = vunpack.c.h.b16 %v1638
  %v1660 = vunpack.c.l.b16 %v1639
  %v1661 = vunpack.c.h.b16 %v1639
  %v1662 = vunpack.c.l.b16 %v1640
  %v1663 = vunpack.c.h.b16 %v1640
  %v1664 = vunpack.c.l.b16 %v1641
  %v1665 = vunpack.c.h.b16 %v1641
  %v1666 = vunpack.c.l.b16 %v1642
  %v1667 = vunpack.c.h.b16 %v1642
  %v1668 = vunpack.c.l.b16 %v1643
  %v1669 = vunpack.c.h.b16 %v1643
  %v1670 = vunpack.c.l.b16 %v1644
  %v1671 = vunpack.c.h.b16 %v1644
  %v1672 = vunpack.c.l.b16 %v1645
  %v1673 = vunpack.c.h.b16 %v1645
  %v1674 = vunpack.c.l.b16 %v1646
  %v1675 = vunpack.c.h.b16 %v1646
  %v1676 = vunpack.c.l.b16 %v1647
  %v1677 = vpack.c.b16 %v1658, %v1658
  %v1678 = vpack.c.b16 %v1659, %v1659
  %v1679 = vpack.c.b16 %v1660, %v1660
  %v1680 = vpack.c.b16 %v1661, %v1661
  %v1681 = vpack.c.b16 %v1662, %v1662
  %v1682 = vpack.c.b16 %v1663, %v1663
  %v1683 = vpack.c.b16 %v1664, %v1664
  %v1684 = vpack.c.b16 %v1665, %v1665
  %v1685 = vpack.c.b16 %v1666, %v1666
  %v1686 = vpack.c.b16 %v1667, %v1667
  %v1687 = vpack.c.b16 %v1668, %v1668
  %v1688 = vpack.c.b16 %v1669, %v1669
  %v1689 = vpack.c.b16 %v1670, %v1670
  %v1690 = vpack.c.b16 %v1671, %v1671
  %v1691 = vpack.c.b16 %v1672, %v1672
  %v1692 = vpack.c.b16 %v1673, %v1673
  %v1693 = vpack.c.b16 %v1674, %v1674
  %v1694 = vpack.c.b16 %v1675, %v1675
  %v1695 = vpack.c.b16 %v1676, %v1676
  %vm1715 = vcmask 519168
  %1716 = vst.msk [vmem:[%s3] sm:$0xf] %vm1715, %v1677
  %1717 = vst.msk [vmem:[%s3 + $0x4] sm:$0xf] %vm1715, %v1678
  %1718 = vst.msk [vmem:[%s3 + $0x8] sm:$0xf] %vm1715, %v1679
  %1719 = vst.msk [vmem:[%s3 + $0xc] sm:$0xf] %vm1715, %v1680
  %1720 = vst.msk [vmem:[%s3 + $0x10] sm:$0xf] %vm1715, %v1681
  %1721 = vst.msk [vmem:[%s3 + $0x14] sm:$0xf] %vm1715, %v1682
  %1722 = vst.msk [vmem:[%s3 + $0x18] sm:$0xf] %vm1715, %v1683
  %1723 = vst.msk [vmem:[%s3 + $0x1c] sm:$0xf] %vm1715, %v1684
  %1724 = vst.msk [vmem:[%s3 + $0x20] sm:$0xf] %vm1715, %v1685
  %1725 = vst.msk [vmem:[%s3 + $0x24] sm:$0xf] %vm1715, %v1686
  %1726 = vst.msk [vmem:[%s3 + $0x28] sm:$0xf] %vm1715, %v1687
  %1727 = vst.msk [vmem:[%s3 + $0x2c] sm:$0xf] %vm1715, %v1688
  %1728 = vst.msk [vmem:[%s3 + $0x30] sm:$0xf] %vm1715, %v1689
  %1729 = vst.msk [vmem:[%s3 + $0x34] sm:$0xf] %vm1715, %v1690
  %1730 = vst.msk [vmem:[%s3 + $0x38] sm:$0xf] %vm1715, %v1691
  %1731 = vst.msk [vmem:[%s3 + $0x3c] sm:$0xf] %vm1715, %v1692
  %1732 = vst.msk [vmem:[%s3 + $0x40] sm:$0xf] %vm1715, %v1693
  %1733 = vst.msk [vmem:[%s3 + $0x44] sm:$0xf] %vm1715, %v1694
  %1734 = vst.msk [vmem:[%s3 + $0x48] sm:$0xf] %vm1715, %v1695
  // Predicated region
  $region14: #{cnn_forward.6} parent=0 // pred_check
    _
  $region15: #{cnn_forward.6} parent=0 // pred_check_branch
    %1736 = sbr.rel (0) target = $region17
  $region16: #{cnn_forward.6} parent=0 // pred_region
    _
  $region17: #{cnn_forward.6} parent=0 // pred_fallthru
    _
  // Predicated region
  $region18: #{cnn_forward.6} parent=0 // pred_check
    _
  $region19: #{cnn_forward.6} parent=0 // pred_check_branch
    %1738 = sbr.rel (0) target = $region21
  $region20: #{cnn_forward.6} parent=0 // pred_region
    _
  $region21: #{cnn_forward.6} parent=0 // pred_fallthru
    _

// kernel: cnn_forward.7
$region0: #{cnn_forward.7}
  #allocation0 [shape = 'u32[]', space=smem, size = 0x4, offset = 0x4, fixed_abs, tag = 'smem constant byte address 0x4 - core index']
  #allocation1 [shape = 'u32[144,128]{1,0:T(1,128)}', space=vmem, size = 0x12000, scoped, tag = 'internal scratch']
  %s0 = inlined_call_operand.vmem [shape: bf16[8,576], index: 0, kind: input, shape index: {}]
  %s1 = inlined_call_operand.vmem [shape: bf16[576,128], index: 1, kind: input, shape index: {}]
  %s2 = inlined_call_operand.vmem [shape: f32[1,128], index: 2, kind: input, shape index: {}]
  %s3 = inlined_call_operand.vmem [shape: f32[8,128], index: 3, kind: output, shape index: {}]
  %s4 = sld [smem:[#allocation0]]
  $region22: #{cnn_forward.7} parent=0
    _
  %s6 = ssub.s32 1, %s4
  %s7 = scalar_select 0, %s6, %s4
  // Predicated region
  $region2: #{cnn_forward.7} parent=0 // pred_check
    _
  $region3: #{cnn_forward.7} parent=0 // pred_check_branch
    %9 = sbr.rel (0) target = $region5
  $region4: #{cnn_forward.7} parent=0 // pred_region
    _
  $region5: #{cnn_forward.7} parent=0 // pred_fallthru
    _
  // Predicated region
  $region6: #{cnn_forward.7} parent=0 // pred_check
    _
  $region7: #{cnn_forward.7} parent=0 // pred_check_branch
    %11 = sbr.rel (0) target = $region9
  $region8: #{cnn_forward.7} parent=0 // pred_region
    _
  $region9: #{cnn_forward.7} parent=0 // pred_fallthru
    _
  // Predicated region
  $region10: #{cnn_forward.7} parent=0 // pred_check
    _
  $region11: #{cnn_forward.7} parent=0 // pred_check_branch
    %13 = sbr.rel (0) target = $region13
  $region12: #{cnn_forward.7} parent=0 // pred_region
    _
  $region13: #{cnn_forward.7} parent=0 // pred_fallthru
    _
  %v15 = vld [vmem:[%s0] sm:$0xff]
  %v16 = vld [vmem:[%s0 + $0x8] sm:$0xff]
  %v17 = vld [vmem:[%s0 + $0x10] sm:$0xf]
  %v18 = vld [vmem:[%s1] sm:$0xf]
  %v19 = vld [vmem:[%s1 + $0x4] sm:$0xf]
  %v20 = vld [vmem:[%s1 + $0x8] sm:$0xf]
  %v21 = vld [vmem:[%s1 + $0xc] sm:$0xf]
  %v22 = vld [vmem:[%s1 + $0x10] sm:$0xf]
  %v23 = vld [vmem:[%s1 + $0x14] sm:$0xf]
  %v24 = vld [vmem:[%s1 + $0x18] sm:$0xf]
  %v25 = vld [vmem:[%s1 + $0x1c] sm:$0xf]
  %v26 = vld [vmem:[%s1 + $0x20] sm:$0xf]
  %v27 = vld [vmem:[%s1 + $0x24] sm:$0xf]
  %v28 = vld [vmem:[%s1 + $0x28] sm:$0xf]
  %v29 = vld [vmem:[%s1 + $0x2c] sm:$0xf]
  %v30 = vld [vmem:[%s1 + $0x30] sm:$0xf]
  %v31 = vld [vmem:[%s1 + $0x34] sm:$0xf]
  %v32 = vld [vmem:[%s1 + $0x38] sm:$0xf]
  %v33 = vld [vmem:[%s1 + $0x3c] sm:$0xf]
  %v34 = vld [vmem:[%s1 + $0x40] sm:$0xf]
  %v35 = vld [vmem:[%s1 + $0x44] sm:$0xf]
  %v36 = vld [vmem:[%s1 + $0x48] sm:$0xf]
  %v37 = vld [vmem:[%s1 + $0x4c] sm:$0xf]
  %v38 = vld [vmem:[%s1 + $0x50] sm:$0xf]
  %v39 = vld [vmem:[%s1 + $0x54] sm:$0xf]
  %v40 = vld [vmem:[%s1 + $0x58] sm:$0xf]
  %v41 = vld [vmem:[%s1 + $0x5c] sm:$0xf]
  %v42 = vld [vmem:[%s1 + $0x60] sm:$0xf]
  %v43 = vld [vmem:[%s1 + $0x64] sm:$0xf]
  %v44 = vld [vmem:[%s1 + $0x68] sm:$0xf]
  %v45 = vld [vmem:[%s1 + $0x6c] sm:$0xf]
  %v46 = vld [vmem:[%s1 + $0x70] sm:$0xf]
  %v47 = vld [vmem:[%s1 + $0x74] sm:$0xf]
  %v48 = vld [vmem:[%s1 + $0x78] sm:$0xf]
  %v49 = vld [vmem:[%s1 + $0x7c] sm:$0xf]
  %v50 = vld [vmem:[%s1 + $0x80] sm:$0xf]
  %v51 = vld [vmem:[%s1 + $0x84] sm:$0xf]
  %v52 = vld [vmem:[%s1 + $0x88] sm:$0xf]
  %v53 = vld [vmem:[%s1 + $0x8c] sm:$0xf]
  %v54 = vld [vmem:[%s1 + $0x90] sm:$0xf]
  %v55 = vld [vmem:[%s1 + $0x94] sm:$0xf]
  %v56 = vld [vmem:[%s1 + $0x98] sm:$0xf]
  %v57 = vld [vmem:[%s1 + $0x9c] sm:$0xf]
  %v58 = vld [vmem:[%s1 + $0xa0] sm:$0xf]
  %v59 = vld [vmem:[%s1 + $0xa4] sm:$0xf]
  %v60 = vld [vmem:[%s1 + $0xa8] sm:$0xf]
  %v61 = vld [vmem:[%s1 + $0xac] sm:$0xf]
  %v62 = vld [vmem:[%s1 + $0xb0] sm:$0xf]
  %v63 = vld [vmem:[%s1 + $0xb4] sm:$0xf]
  %v64 = vld [vmem:[%s1 + $0xb8] sm:$0xf]
  %v65 = vld [vmem:[%s1 + $0xbc] sm:$0xf]
  %v66 = vld [vmem:[%s1 + $0xc0] sm:$0xf]
  %v67 = vld [vmem:[%s1 + $0xc4] sm:$0xf]
  %v68 = vld [vmem:[%s1 + $0xc8] sm:$0xf]
  %v69 = vld [vmem:[%s1 + $0xcc] sm:$0xf]
  %v70 = vld [vmem:[%s1 + $0xd0] sm:$0xf]
  %v71 = vld [vmem:[%s1 + $0xd4] sm:$0xf]
  %v72 = vld [vmem:[%s1 + $0xd8] sm:$0xf]
  %v73 = vld [vmem:[%s1 + $0xdc] sm:$0xf]
  %v74 = vld [vmem:[%s1 + $0xe0] sm:$0xf]
  %v75 = vld [vmem:[%s1 + $0xe4] sm:$0xf]
  %v76 = vld [vmem:[%s1 + $0xe8] sm:$0xf]
  %v77 = vld [vmem:[%s1 + $0xec] sm:$0xf]
  %v78 = vld [vmem:[%s1 + $0xf0] sm:$0xf]
  %v79 = vld [vmem:[%s1 + $0xf4] sm:$0xf]
  %v80 = vld [vmem:[%s1 + $0xf8] sm:$0xf]
  %v81 = vld [vmem:[%s1 + $0xfc] sm:$0xf]
  %v82 = vld [vmem:[%s1 + $0x100] sm:$0xf]
  %v83 = vld [vmem:[%s1 + $0x104] sm:$0xf]
  %v84 = vld [vmem:[%s1 + $0x108] sm:$0xf]
  %v85 = vld [vmem:[%s1 + $0x10c] sm:$0xf]
  %v86 = vld [vmem:[%s1 + $0x110] sm:$0xf]
  %v87 = vld [vmem:[%s1 + $0x114] sm:$0xf]
  %v88 = vld [vmem:[%s1 + $0x118] sm:$0xf]
  %v89 = vld [vmem:[%s1 + $0x11c] sm:$0xf]
  %v90 = vld [vmem:[%s2] sm:$0x1]
  %v92 = vlaneseq
  %v93 = vshrl.u32 %v92, 7
  %v94 = vsub.s32 0, %v93
  %v95 = vrot.slane %v90, %v94
  %v100 = vunpack.c.l.b16 %v15
  %v101 = vunpack.c.h.b16 %v15
  %v102 = vunpack.c.l.b16 %v16
  %v103 = vunpack.c.h.b16 %v16
  %v104 = vunpack.c.l.b16 %v17
  %v105 = vpack.c.b16 %v100, %v100
  %v106 = vpack.c.b16 %v101, %v101
  %v107 = vpack.c.b16 %v102, %v102
  %v108 = vpack.c.b16 %v103, %v103
  %v109 = vpack.c.b16 %v104, %v104
  %v186 = vunpack.c.l.b16 %v18
  %v187 = vunpack.c.l.b16 %v19
  %v188 = vunpack.c.l.b16 %v20
  %v189 = vunpack.c.l.b16 %v21
  %v190 = vunpack.c.l.b16 %v22
  %v191 = vunpack.c.l.b16 %v23
  %v192 = vunpack.c.l.b16 %v24
  %v193 = vunpack.c.l.b16 %v25
  %v194 = vunpack.c.l.b16 %v26
  %v195 = vunpack.c.l.b16 %v27
  %v196 = vunpack.c.l.b16 %v28
  %v197 = vunpack.c.l.b16 %v29
  %v198 = vunpack.c.l.b16 %v30
  %v199 = vunpack.c.l.b16 %v31
  %v200 = vunpack.c.l.b16 %v32
  %v201 = vunpack.c.l.b16 %v33
  %v202 = vunpack.c.l.b16 %v34
  %v203 = vunpack.c.l.b16 %v35
  %v204 = vunpack.c.l.b16 %v36
  %v205 = vunpack.c.l.b16 %v37
  %v206 = vunpack.c.l.b16 %v38
  %v207 = vunpack.c.l.b16 %v39
  %v208 = vunpack.c.l.b16 %v40
  %v209 = vunpack.c.l.b16 %v41
  %v210 = vunpack.c.l.b16 %v42
  %v211 = vunpack.c.l.b16 %v43
  %v212 = vunpack.c.l.b16 %v44
  %v213 = vunpack.c.l.b16 %v45
  %v214 = vunpack.c.l.b16 %v46
  %v215 = vunpack.c.l.b16 %v47
  %v216 = vunpack.c.l.b16 %v48
  %v217 = vunpack.c.l.b16 %v49
  %v218 = vunpack.c.l.b16 %v50
  %v219 = vunpack.c.l.b16 %v51
  %v220 = vunpack.c.l.b16 %v52
  %v221 = vunpack.c.l.b16 %v53
  %v222 = vunpack.c.l.b16 %v54
  %v223 = vunpack.c.l.b16 %v55
  %v224 = vunpack.c.l.b16 %v56
  %v225 = vunpack.c.l.b16 %v57
  %v226 = vunpack.c.l.b16 %v58
  %v227 = vunpack.c.l.b16 %v59
  %v228 = vunpack.c.l.b16 %v60
  %v229 = vunpack.c.l.b16 %v61
  %v230 = vunpack.c.l.b16 %v62
  %v231 = vunpack.c.l.b16 %v63
  %v232 = vunpack.c.l.b16 %v64
  %v233 = vunpack.c.l.b16 %v65
  %v234 = vunpack.c.l.b16 %v66
  %v235 = vunpack.c.l.b16 %v67
  %v236 = vunpack.c.l.b16 %v68
  %v237 = vunpack.c.l.b16 %v69
  %v238 = vunpack.c.l.b16 %v70
  %v239 = vunpack.c.l.b16 %v71
  %v240 = vunpack.c.l.b16 %v72
  %v241 = vunpack.c.l.b16 %v73
  %v242 = vunpack.c.l.b16 %v74
  %v243 = vunpack.c.l.b16 %v75
  %v244 = vunpack.c.l.b16 %v76
  %v245 = vunpack.c.l.b16 %v77
  %v246 = vunpack.c.l.b16 %v78
  %v247 = vunpack.c.l.b16 %v79
  %v248 = vunpack.c.l.b16 %v80
  %v249 = vunpack.c.l.b16 %v81
  %v250 = vunpack.c.l.b16 %v82
  %v251 = vunpack.c.l.b16 %v83
  %v252 = vunpack.c.l.b16 %v84
  %v253 = vunpack.c.l.b16 %v85
  %v254 = vunpack.c.l.b16 %v86
  %v255 = vunpack.c.l.b16 %v87
  %v256 = vunpack.c.l.b16 %v88
  %v257 = vunpack.c.l.b16 %v89
  %v258 = vpack.c.b16 %v187, %v186
  %v259 = vpack.c.b16 %v189, %v188
  %v260 = vpack.c.b16 %v191, %v190
  %v261 = vpack.c.b16 %v193, %v192
  %v262 = vpack.c.b16 %v195, %v194
  %v263 = vpack.c.b16 %v197, %v196
  %v264 = vpack.c.b16 %v199, %v198
  %v265 = vpack.c.b16 %v201, %v200
  %v266 = vpack.c.b16 %v203, %v202
  %v267 = vpack.c.b16 %v205, %v204
  %v268 = vpack.c.b16 %v207, %v206
  %v269 = vpack.c.b16 %v209, %v208
  %v270 = vpack.c.b16 %v211, %v210
  %v271 = vpack.c.b16 %v213, %v212
  %v272 = vpack.c.b16 %v215, %v214
  %v273 = vpack.c.b16 %v217, %v216
  %v274 = vpack.c.b16 %v219, %v218
  %v275 = vpack.c.b16 %v221, %v220
  %v276 = vpack.c.b16 %v223, %v222
  %v277 = vpack.c.b16 %v225, %v224
  %v278 = vpack.c.b16 %v227, %v226
  %v279 = vpack.c.b16 %v229, %v228
  %v280 = vpack.c.b16 %v231, %v230
  %v281 = vpack.c.b16 %v233, %v232
  %v282 = vpack.c.b16 %v235, %v234
  %v283 = vpack.c.b16 %v237, %v236
  %v284 = vpack.c.b16 %v239, %v238
  %v285 = vpack.c.b16 %v241, %v240
  %v286 = vpack.c.b16 %v243, %v242
  %v287 = vpack.c.b16 %v245, %v244
  %v288 = vpack.c.b16 %v247, %v246
  %v289 = vpack.c.b16 %v249, %v248
  %v290 = vpack.c.b16 %v251, %v250
  %v291 = vpack.c.b16 %v253, %v252
  %v292 = vpack.c.b16 %v255, %v254
  %v293 = vpack.c.b16 %v257, %v256
  %vm330 = vcmask 523264
  %v332 = vsel %vm330, %v109, 0
  %334 = vmatprep.subr.bf16.mxu0 0
  %335 = vmatpush1.bf16.msra.mxu0 %v258
  %336 = vmatprep.subr.bf16.mxu0 0
  %337 = vmatpush1.bf16.msra.mxu0 %v259
  %338 = vmatprep.subr.bf16.mxu0 0
  %339 = vmatpush1.bf16.msra.mxu0 %v260
  %340 = vmatprep.subr.bf16.mxu0 0
  %341 = vmatpush1.bf16.msra.mxu0 %v261
  %342 = vmatprep.subr.bf16.mxu0 0
  %343 = vmatpush1.bf16.msra.mxu0 %v262
  %344 = vmatprep.subr.bf16.mxu0 0
  %345 = vmatpush1.bf16.msra.mxu0 %v263
  %346 = vmatprep.subr.bf16.mxu0 0
  %347 = vmatpush1.bf16.msra.mxu0 %v264
  %348 = vmatprep.subr.bf16.mxu0 0
  %349 = vmatpush1.bf16.msra.mxu0 %v265
  %350 = vmatprep.subr.bf16.mxu0 0
  %351 = vmatpush1.bf16.msra.mxu0 %v266
  %352 = vmatprep.subr.bf16.mxu0 0
  %353 = vmatpush1.bf16.msra.mxu0 %v267
  %354 = vmatprep.subr.bf16.mxu0 0
  %355 = vmatpush1.bf16.msra.mxu0 %v268
  %356 = vmatprep.subr.bf16.mxu0 0
  %357 = vmatpush1.bf16.msra.mxu0 %v269
  %358 = vmatprep.subr.bf16.mxu0 0
  %359 = vmatpush1.bf16.msra.mxu0 %v270
  %360 = vmatprep.subr.bf16.mxu0 0
  %361 = vmatpush1.bf16.msra.mxu0 %v271
  %362 = vmatprep.subr.bf16.mxu0 0
  %363 = vmatpush1.bf16.msra.mxu0 %v272
  %364 = vmatprep.subr.bf16.mxu0 0
  %365 = vmatpush1.bf16.msra.mxu0 %v273
  %366 = vmatprep.mubr.bf16.mxu0 %v106
  %367 = vmatmul.mubr.bf16.gmra.mrb[0].mxu0 %v105
  %v368 = vpop.f32.mrb[0].mxu0
  %v369 = vadd.f32 %v95, %v368
  %v370 = vpop.f32.mrb[0].mxu0
  %v371 = vpop.f32.mrb[0].mxu0
  %v372 = vpop.f32.mrb[0].mxu0
  %373 = vdwg.mxu0
  %374 = vmatprep.subr.bf16.mxu0 0
  %375 = vmatpush1.bf16.msra.mxu0 %v274
  %376 = vmatprep.subr.bf16.mxu0 0
  %377 = vmatpush1.bf16.msra.mxu0 %v275
  %378 = vmatprep.subr.bf16.mxu0 0
  %379 = vmatpush1.bf16.msra.mxu0 %v276
  %380 = vmatprep.subr.bf16.mxu0 0
  %381 = vmatpush1.bf16.msra.mxu0 %v277
  %382 = vmatprep.subr.bf16.mxu0 0
  %383 = vmatpush1.bf16.msra.mxu0 %v278
  %384 = vmatprep.subr.bf16.mxu0 0
  %385 = vmatpush1.bf16.msra.mxu0 %v279
  %386 = vmatprep.subr.bf16.mxu0 0
  %387 = vmatpush1.bf16.msra.mxu0 %v280
  %388 = vmatprep.subr.bf16.mxu0 0
  %389 = vmatpush1.bf16.msra.mxu0 %v281
  %390 = vmatprep.subr.bf16.mxu0 0
  %391 = vmatpush1.bf16.msra.mxu0 %v282
  %392 = vmatprep.subr.bf16.mxu0 0
  %393 = vmatpush1.bf16.msra.mxu0 %v283
  %394 = vmatprep.subr.bf16.mxu0 0
  %395 = vmatpush1.bf16.msra.mxu0 %v284
  %396 = vmatprep.subr.bf16.mxu0 0
  %397 = vmatpush1.bf16.msra.mxu0 %v285
  %398 = vmatprep.subr.bf16.mxu0 0
  %399 = vmatpush1.bf16.msra.mxu0 %v286
  %400 = vmatprep.subr.bf16.mxu0 0
  %401 = vmatpush1.bf16.msra.mxu0 %v287
  %402 = vmatprep.subr.bf16.mxu0 0
  %403 = vmatpush1.bf16.msra.mxu0 %v288
  %404 = vmatprep.subr.bf16.mxu0 0
  %405 = vmatpush1.bf16.msra.mxu0 %v289
  %406 = vmatprep.mubr.bf16.mxu0 %v108
  %407 = vmatmul.mubr.bf16.gmra.mrb[0].mxu0 %v107
  %v408 = vpop.f32.mrb[0].mxu0
  %v409 = vadd.f32 %v369, %v408
  %v410 = vpop.f32.mrb[0].mxu0
  %v411 = vpop.f32.mrb[0].mxu0
  %v412 = vpop.f32.mrb[0].mxu0
  %413 = vdwg.mxu0
  %414 = vmatprep.subr.bf16.mxu0 0
  %415 = vmatpush1.bf16.msra.mxu0 %v290
  %416 = vmatprep.subr.bf16.mxu0 0
  %417 = vmatpush1.bf16.msra.mxu0 %v291
  %418 = vmatprep.subr.bf16.mxu0 0
  %419 = vmatpush1.bf16.msra.mxu0 %v292
  %420 = vmatprep.subr.bf16.mxu0 0
  %421 = vmatpush1.bf16.msra.mxu0 %v293
  %422 = vmatprep.subr.bf16.mxu0 0
  %423 = vmatpush1.bf16.msra.mxu0 0
  %424 = vmatprep.subr.bf16.mxu0 0
  %425 = vmatpush1.bf16.msra.mxu0 0
  %426 = vmatprep.subr.bf16.mxu0 0
  %427 = vmatpush1.bf16.msra.mxu0 0
  %428 = vmatprep.subr.bf16.mxu0 0
  %429 = vmatpush1.bf16.msra.mxu0 0
  %430 = vmatprep.subr.bf16.mxu0 0
  %431 = vmatpush1.bf16.msra.mxu0 0
  %432 = vmatprep.subr.bf16.mxu0 0
  %433 = vmatpush1.bf16.msra.mxu0 0
  %434 = vmatprep.subr.bf16.mxu0 0
  %435 = vmatpush1.bf16.msra.mxu0 0
  %436 = vmatprep.subr.bf16.mxu0 0
  %437 = vmatpush1.bf16.msra.mxu0 0
  %438 = vmatprep.subr.bf16.mxu0 0
  %439 = vmatpush1.bf16.msra.mxu0 0
  %440 = vmatprep.subr.bf16.mxu0 0
  %441 = vmatpush1.bf16.msra.mxu0 0
  %442 = vmatprep.subr.bf16.mxu0 0
  %443 = vmatpush1.bf16.msra.mxu0 0
  %444 = vmatprep.subr.bf16.mxu0 0
  %445 = vmatpush1.bf16.msra.mxu0 0
  %446 = vmatprep.mubr.bf16.mxu0 0
  %447 = vmatmul.mubr.bf16.gmra.mrb[0].mxu0 %v332
  %v448 = vpop.f32.mrb[0].mxu0
  %v449 = vadd.f32 %v409, %v448
  %v450 = vpop.f32.mrb[0].mxu0
  %v451 = vpop.f32.mrb[0].mxu0
  %v452 = vpop.f32.mrb[0].mxu0
  %453 = vdwg.mxu0
  %454 = vmax.xlane.f32.xlu0 %v449
  %v455 = vpop.xlane.xlu0 %454
  %v456 = vsub.f32 %v449, %v455
  %v457 = vmul.f32 %v456, 1.442695
  %v458 = vpow.pop %v457
  %459 = vadd.xlane.f32.xlu0 %v458
  %v460 = vpop.xlane.xlu0 %459
  %v461 = vlog2.pop %v460
  %v462 = vmul.f32 %v461, 0.6931472
  %v463 = vsub.f32 %v456, %v462
  %464 = vst [vmem:[%s3] sm:$0xff] %v463
  // Predicated region
  $region14: #{cnn_forward.7} parent=0 // pred_check
    _
  $region15: #{cnn_forward.7} parent=0 // pred_check_branch
    %466 = sbr.rel (0) target = $region17
  $region16: #{cnn_forward.7} parent=0 // pred_region
    _
  $region17: #{cnn_forward.7} parent=0 // pred_fallthru
    _
  // Predicated region
  $region18: #{cnn_forward.7} parent=0 // pred_check
    _
  $region19: #{cnn_forward.7} parent=0 // pred_check_branch
    %468 = sbr.rel (0) target = $region21
  $region20: #{cnn_forward.7} parent=0 // pred_region
    _
  $region21: #{cnn_forward.7} parent=0 // pred_fallthru
    _

</llo_original>
